<compile_context>
chip_gen: v7x
topology: tpu7x:2x2x1
jax: 0.10.0
libtpu: 0.0.40
codegen_flags: <defaults>
</compile_context>

<pallas_src>
import functools

import jax
import jax.numpy as jnp
from jax.experimental import pallas as pl
from jax.experimental.pallas import tpu as pltpu


# ----------------------------- shared math helpers -----------------------------
def _sigmoid(x):
    return 1.0 / (1.0 + jnp.exp(-x))


def _layernorm(x, g, b, eps):
    mu = jnp.mean(x, axis=-1, keepdims=True)
    var = jnp.mean(jnp.square(x - mu), axis=-1, keepdims=True)
    return (x - mu) * jax.lax.rsqrt(var + eps) * g + b


def _softmax_ref(x):                     # reference-only (exact divide)
    m = jnp.max(x, axis=-1, keepdims=True)
    e = jnp.exp(x - m)
    return e / jnp.sum(e, axis=-1, keepdims=True)


def _softmax_kernel(x):                  # kernel-only (approx EUP reciprocal)
    m = jnp.max(x, axis=-1, keepdims=True)
    e = jnp.exp(x - m)
    return e * pl.reciprocal(jnp.sum(e, axis=-1, keepdims=True), approx=True)


# --------------------------------- the kernel ----------------------------------
def _reattn_kernel(x_ref, pos_ref, comb_ref, itnt_ref,
                   w0t_ref, b0_ref, w1t_ref, b1_ref, alng_ref, alnb_ref,
                   wdt_ref, bd_ref, bng_ref, bnb_ref,
                   wih_ref, whh_ref, bih_ref, bhh_ref,
                   ws1_ref, ws2_ref, bs_ref, lng_ref, lnb_ref,
                   r0_ref, r1_ref, r2_ref, r_ref,
                   xp_scr,
                   *, n_items, coefficient, ln_eps, bn_eps):
    f32 = jnp.float32
    bf16 = jnp.bfloat16
    B, L = x_ref.shape
    npad, D = comb_ref.shape            # combined (item | pos | zero-pad) table
    BL = B * L
    inv_sqrt_d = 1.0 / (float(D) ** 0.5)

    x_ids = x_ref[...]                  # (B, L) int32
    pos_ids = pos_ref[...]              # (B, L) int32

    # ---- Fused embedding gather: item ids and (offset) position ids share one
    #      128-aligned table -> a single (2BL, Npad) @ (Npad, D) bf16 MXU matmul.
    iota_n = jax.lax.broadcasted_iota(jnp.int32, (B, L, npad), 2)
    oh_x = (iota_n == x_ids[:, :, None]).astype(bf16).reshape(BL, npad)
    oh_p = (iota_n == (pos_ids + n_items)[:, :, None]).astype(bf16).reshape(BL, npad)
    onehot = jnp.concatenate([oh_x, oh_p], axis=0)                    # (2BL, Npad)
    both = jnp.dot(onehot, comb_ref[...], preferred_element_type=f32)  # (2BL, D)
    x_emb_flat = both[0:BL]                                           # embedding(x)
    emb_flat = x_emb_flat + both[BL:2 * BL]                           # + pos_embedding
    # TODO(synk): all nn.Dropout layers (feat_drop, attention/DNN dropout, scorer
    # dropout, GRU dropout) run as identity (eval semantics); torch's RNG stream
    # cannot be matched on TPU.

    # ---- key-padding indicator as a lane-row (1, BL): 1.0 where key id == 0.
    #      (row 0 of the item one-hot, transposed via a tiny A @ B^T matmul.)
    e0 = (jax.lax.broadcasted_iota(jnp.int32, (8, npad), 1) == 0).astype(bf16)
    kp = jax.lax.dot_general(e0, oh_x, (((1,), (1,)), ((), ())),
                             preferred_element_type=f32)              # (8, BL)
    key_pad_row = kp[0:1, :]                                          # (1, BL)

    # ---- ReattnLayer, flattened over (batch*seq): two full-width matmuls.
    w0 = w0t_ref[...].astype(f32)
    q_flat = jnp.maximum(
        jnp.dot(emb_flat, w0, preferred_element_type=f32) + b0_ref[...], 0.0)
    s_raw = jax.lax.dot_general(q_flat, emb_flat, (((1,), (1,)), ((), ())),
                                preferred_element_type=f32)           # (BL, BL)
    # block-diagonal ∧ causal ∧ key-padding mask, built in (B, L, BL) space so
    # every reshape is a safe leading-dim split/collapse (last dim untouched).
    kf = jax.lax.broadcasted_iota(jnp.int32, (B, L, BL), 2)           # flat key idx
    ql = jax.lax.broadcasted_iota(jnp.int32, (B, L, BL), 1)           # query pos
    qb = jax.lax.broadcasted_iota(jnp.int32, (B, L, BL), 0)           # query batch
    diff = qb * L + ql - kf
    mask3 = (diff >= 0) & (diff <= ql) & (key_pad_row < 0.5)          # (B, L, BL)
    s3 = jnp.where(mask3, s_raw.reshape(B, L, BL) * inv_sqrt_d, -1e9)
    p1 = _softmax_kernel(s3).reshape(BL, BL)
    intents_flat = jnp.dot(p1, emb_flat, preferred_element_type=f32)  # (BL, D)

    w1 = w1t_ref[...].astype(f32)
    resid = jnp.maximum(
        jnp.dot(intents_flat, w1, preferred_element_type=f32) + b1_ref[...], 0.0)
    hf = _layernorm(resid + intents_flat, alng_ref[...], alnb_ref[...], ln_eps)
    h3 = hf.reshape(B, L, D)
    last = h3[:, L - 1, :]                                            # (B, D)
    valid = x_ids != 0
    s2 = jnp.sum(h3 * last[:, None, :], axis=-1) * inv_sqrt_d         # (B, L)
    s2 = jnp.where(valid, s2, -1e9)
    p2 = _softmax_kernel(s2)
    intent0 = jnp.sum(p2[:, :, None] * h3, axis=1)                    # (B, D)

    # ---- DNN -> intent1: Linear(3D->D) decomposed over the last 3 time steps,
    #      then BatchNorm1d with training-mode batch statistics.
    x_emb = x_emb_flat.reshape(B, L, D)
    y = (jnp.dot(x_emb[:, L - 3, :], wdt_ref[0].astype(f32), preferred_element_type=f32)
         + jnp.dot(x_emb[:, L - 2, :], wdt_ref[1].astype(f32), preferred_element_type=f32)
         + jnp.dot(x_emb[:, L - 1, :], wdt_ref[2].astype(f32), preferred_element_type=f32)
         + bd_ref[...])
    bmu = jnp.mean(y, axis=0, keepdims=True)
    bvar = jnp.mean(jnp.square(y - bmu), axis=0, keepdims=True)
    intent1 = (y - bmu) * jax.lax.rsqrt(bvar + bn_eps) * bng_ref[...] + bnb_ref[...]

    # ---- GRU -> intent2: batched input projection, staged in VMEM scratch so the
    #      unrolled recurrence only keeps ~3 vregs of x-gates live per step.
    xp = (jnp.dot(x_emb_flat, wih_ref[...].astype(f32), preferred_element_type=f32)
          + bih_ref[...])                                             # (BL, 3D)
    xp_b = xp.reshape(B, L, 3 * D)
    for t in range(L):
        xp_scr[t] = xp_b[:, t, :]                                     # (B, 3D)

    whh = whh_ref[...].astype(f32)                                    # (D, 3D), VMEM
    bhh = bhh_ref[...]
    hstate = jnp.zeros((B, D), f32)
    # TODO(synk): whh could be held in MXU staging registers across the 8 steps
    # (pltpu.matmul_push_rhs / matmul_acc_lhs / matmul_pop); kept as plain
    # jnp.dot for lowering robustness.
    for t in range(L):                     # L is small and static -> unrolled
        xg = xp_scr[t]                                                # (B, 3D)
        gh = jnp.dot(hstate, whh, preferred_element_type=f32) + bhh
        r = _sigmoid(xg[:, 0:D] + gh[:, 0:D])
        z = _sigmoid(xg[:, D:2 * D] + gh[:, D:2 * D])
        n = jnp.tanh(xg[:, 2 * D:3 * D] + r * gh[:, 2 * D:3 * D])
        hstate = (1.0 - z) * n + z * hstate
    intent2 = hstate
    # NOTE: nn.GRU(dropout=...) with num_layers=1 is a no-op in torch.

    # ---- scorer_linear(concat) + residual + LayerNorm
    sc = (jnp.dot(intent1, ws1_ref[...].astype(f32), preferred_element_type=f32)
          + jnp.dot(intent2, ws2_ref[...].astype(f32), preferred_element_type=f32)
          + bs_ref[...])
    intent_attn = _layernorm(intent0 + sc, lng_ref[...], lnb_ref[...], ln_eps)

    # ---- fused cosine scorer: stack the four intents into (4B, D), normalize
    #      with one rsqrt, one (4B, D) @ (D, n_scored) matmul, slice the stores.
    u = jnp.concatenate([intent0, intent1, intent2, intent_attn], axis=0)  # (4B, D)
    un = u * jax.lax.rsqrt(jnp.sum(u * u, axis=-1, keepdims=True))
    scores = coefficient * jnp.dot(un, itnt_ref[...], preferred_element_type=f32)
    r0_ref[...] = scores[0:B]
    r1_ref[...] = scores[B:2 * B]
    r2_ref[...] = scores[2 * B:3 * B]
    r_ref[...] = scores[3 * B:4 * B]


# ------------------------------- host-side wrapper ------------------------------
def reattn_forward(x_ids, pos_ids, params, *, coefficient=20.0,
                   ln_eps=1e-3, bn_eps=1e-5):
    B, L = x_ids.shape
    n_items, D = params["item_emb"].shape
    n_scored = n_items - 1

    inputs = (
        x_ids.astype(jnp.int32), pos_ids.astype(jnp.int32),
        params["comb_tab"], params["items_n_t"],
        params["w0t"], params["b0"], params["w1t"], params["b1"],
        params["attn_ln_g"], params["attn_ln_b"],
        params["wdt3"], params["bd"], params["bn_g"], params["bn_b"],
        params["wih_t"], params["whh_t"], params["b_ih"], params["b_hh"],
        params["ws1_t"], params["ws2_t"], params["bs"],
        params["ln_g"], params["ln_b"],
    )

    def _full_block(arr):
        nd = arr.ndim
        return pl.BlockSpec(arr.shape, lambda i, _nd=nd: (0,) * _nd)

    out_shape = tuple(jax.ShapeDtypeStruct((B, n_scored), jnp.float32)
                      for _ in range(4))
    out_specs = tuple(pl.BlockSpec((B, n_scored), lambda i: (0, 0))
                      for _ in range(4))

    kernel = functools.partial(_reattn_kernel, n_items=int(n_items),
                               coefficient=float(coefficient),
                               ln_eps=float(ln_eps), bn_eps=float(bn_eps))

    # TODO(synk): at this tiny B / vocab a single grid point is the right call;
    # for large vocabularies / batches, tile the scorer (and batch) over a
    # 'parallel' grid axis so v7x's second TensorCore is used and BlockSpec
    # pipelining hides the table DMA.
    return pl.pallas_call(
        kernel,
        out_shape=out_shape,
        grid_spec=pltpu.PrefetchScalarGridSpec(
            num_scalar_prefetch=0,
            grid=(1,),
            in_specs=[_full_block(a) for a in inputs],
            out_specs=out_specs,
            scratch_shapes=[pltpu.VMEM((L, B, 3 * D), jnp.float32)],
        ),
        compiler_params=pltpu.CompilerParams(
            dimension_semantics=("arbitrary",),
            vmem_limit_bytes=32 * 1024 * 1024),
    )(*inputs)


# --------------------------------- parameters -----------------------------------
def init_reattn_params(key, d, n_items, n_pos, max_norm=1.5):
    """Torch-style init; transposes / padding / bf16 casts hoisted here."""
    ks = jax.random.split(key, 16)
    bf = jnp.bfloat16

    def uniform(k, shape, bound):
        return jax.random.uniform(k, shape, jnp.float32, -bound, bound)

    # Embedding tables: N(0,1) init, padding row 0 zeroed.  torch's max_norm
    # renorm (applied lazily to accessed rows) is approximated by renormalizing
    # the whole table once; gathered values are identical and the scorer is
    # norm-invariant.
    def renorm(t):
        n = jnp.linalg.norm(t, axis=-1, keepdims=True)
        return t * jnp.minimum(1.0, max_norm / (n + 1e-7))

    emb32 = renorm(jax.random.normal(ks[0], (n_items, d), jnp.float32)).at[0].set(0.0)
    pemb32 = renorm(jax.random.normal(ks[1], (n_pos, d), jnp.float32)).at[0].set(0.0)
    emb = emb32.astype(bf)
    pemb = pemb32.astype(bf)

    # Combined (item | position | zero-pad) gather table, 128-aligned rows.
    npad = ((n_items + n_pos + 127) // 128) * 128
    comb = jnp.zeros((npad, d), bf)
    comb = comb.at[:n_items].set(emb).at[n_items:n_items + n_pos].set(pemb)

    # Pre-normalized, pre-transposed item table for the cosine scorer (f32).
    items = emb[1:].astype(jnp.float32)
    items_n_t = (items / jnp.linalg.norm(items, axis=-1, keepdims=True)).T  # (d, n-1)

    b_lin = 1.0 / (d ** 0.5)
    w0 = uniform(ks[2], (d, d), b_lin); b0 = uniform(ks[3], (d,), b_lin)
    w1 = uniform(ks[4], (d, d), b_lin); b1 = uniform(ks[5], (d,), b_lin)
    # (reattn_linear2 exists in the torch module but is unused in forward.)

    b_dnn = 1.0 / ((3 * d) ** 0.5)
    wd = uniform(ks[6], (d, 3 * d), b_dnn); bd = uniform(ks[7], (d,), b_dnn)

    b_gru = 1.0 / (d ** 0.5)
    wih = uniform(ks[8], (3 * d, d), b_gru); whh = uniform(ks[9], (3 * d, d), b_gru)
    bih = uniform(ks[10], (3 * d,), b_gru); bhh = uniform(ks[11], (3 * d,), b_gru)

    b_sc = 1.0 / ((2 * d) ** 0.5)
    ws = uniform(ks[12], (d, 2 * d), b_sc); bs = uniform(ks[13], (d,), b_sc)

    ones = jnp.ones((1, d), jnp.float32)
    zeros = jnp.zeros((1, d), jnp.float32)

    return dict(
        item_emb=emb, pos_emb=pemb, comb_tab=comb, items_n_t=items_n_t,
        w0t=w0.T.astype(bf), b0=b0[None, :], w1t=w1.T.astype(bf), b1=b1[None, :],
        attn_ln_g=ones, attn_ln_b=zeros,
        wdt3=wd.T.reshape(3, d, d).astype(bf), bd=bd[None, :],
        bn_g=ones, bn_b=zeros,
        wih_t=wih.T.astype(bf), whh_t=whh.T.astype(bf),
        b_ih=bih[None, :], b_hh=bhh[None, :],
        ws1_t=ws[:, :d].T.astype(bf), ws2_t=ws[:, d:].T.astype(bf), bs=bs[None, :],
        ln_g=ones, ln_b=zeros,
    )


# --------------------------- pure-JAX reference (no Pallas) ---------------------
def reattn_reference(x_ids, pos_ids, params, *, coefficient=20.0,
                     ln_eps=1e-3, bn_eps=1e-5):
    f32 = jnp.float32
    emb = params["item_emb"].astype(f32)
    pemb = params["pos_emb"].astype(f32)
    B, L = x_ids.shape
    D = emb.shape[1]
    inv = 1.0 / (float(D) ** 0.5)

    x_emb = jnp.take(emb, x_ids, axis=0)
    p_emb = jnp.take(pemb, pos_ids, axis=0)
    emb_seqs = x_emb + p_emb

    valid = x_ids != 0
    causal = jnp.tril(jnp.ones((L, L), bool))
    tgt_mask = valid[:, None, :] & causal[None]

    q = jnp.maximum(emb_seqs @ params["w0t"].astype(f32) + params["b0"], 0.0)
    s1 = jnp.where(tgt_mask, jnp.einsum('bqd,bkd->bqk', q, emb_seqs) * inv, -1e9)
    p1 = _softmax_ref(s1)
    intents = jnp.einsum('bqk,bkd->bqd', p1, emb_seqs)
    resid = jnp.maximum(intents @ params["w1t"].astype(f32) + params["b1"], 0.0)
    h = _layernorm(resid + intents, params["attn_ln_g"], params["attn_ln_b"], ln_eps)
    last = h[:, -1, :]
    s2 = jnp.where(valid, jnp.einsum('bd,bld->bl', last, h) * inv, -1e9)
    p2 = _softmax_ref(s2)
    intent0 = jnp.einsum('bl,bld->bd', p2, h)

    dnn_in = x_emb[:, -3:, :].reshape(B, 3 * D)
    y = dnn_in @ params["wdt3"].astype(f32).reshape(3 * D, D) + params["bd"]
    mu = y.mean(0, keepdims=True)
    var = ((y - mu) ** 2).mean(0, keepdims=True)
    intent1 = (y - mu) / jnp.sqrt(var + bn_eps) * params["bn_g"] + params["bn_b"]

    xp = x_emb @ params["wih_t"].astype(f32) + params["b_ih"]
    whh = params["whh_t"].astype(f32)
    hh = jnp.zeros((B, D), f32)
    for t in range(L):
        gh = hh @ whh + params["b_hh"]
        r = _sigmoid(xp[:, t, :D] + gh[:, :D])
        z = _sigmoid(xp[:, t, D:2 * D] + gh[:, D:2 * D])
        n = jnp.tanh(xp[:, t, 2 * D:] + r * gh[:, 2 * D:])
        hh = (1.0 - z) * n + z * hh
    intent2 = hh

    sc = (intent1 @ params["ws1_t"].astype(f32)
          + intent2 @ params["ws2_t"].astype(f32) + params["bs"])
    ia = _layernorm(intent0 + sc, params["ln_g"], params["ln_b"], ln_eps)

    items = emb[1:]
    items_n = items / jnp.linalg.norm(items, axis=-1, keepdims=True)

    def score(u):
        un = u / jnp.linalg.norm(u, axis=-1, keepdims=True)
        return coefficient * un @ items_n.T

    return score(intent0), score(intent1), score(intent2), score(ia)


# ------------------------------------- main --------------------------------------
if __name__ == "__main__":
    # Lane-aligned dims: hidden=128 -> 3*hidden=384; n_items=129 -> 128 scored
    # items (lane-dense output stores); combined gather table padded to 256 rows.
    D, L, B = 128, 8, 8
    n_items, n_pos = 129, L + 1

    key = jax.random.PRNGKey(0)
    key, kp, kx = jax.random.split(key, 3)
    params = init_reattn_params(kp, D, n_items, n_pos)

    x = jax.random.randint(kx, (B, L), 1, n_items, dtype=jnp.int32)
    pos = jnp.broadcast_to(jnp.arange(1, L + 1, dtype=jnp.int32), (B, L))
    # left-pad a few sequences with id 0 (padding_idx) to exercise the masks
    pad_len = jnp.array([0, 0, 1, 2, 3, 0, 1, 0], dtype=jnp.int32)[:, None]
    keep = jnp.arange(L, dtype=jnp.int32)[None, :] >= pad_len
    x = jnp.where(keep, x, 0)
    pos = jnp.where(keep, pos, 0)

    outs = jax.block_until_ready(reattn_forward(x, pos, params))
    refs = reattn_reference(x, pos, params)

    for name, o, r in zip(("result0", "result1", "result2", "result"), outs, refs):
        assert o.shape == (B, n_items - 1), (name, o.shape)
        err = float(jnp.max(jnp.abs(o - r)))
        assert jnp.allclose(o, r, atol=0.1, rtol=0.05), (name, err)

    print("KERNEL_OK")
</pallas_src>

<mosaic_0001>
module attributes {stable_mosaic.version = 11 : i64} {
  func.func @_reattn_kernel(%arg0: i32, %arg1: memref<8x8xi32, #tpu.memory_space<vmem>>, %arg2: memref<8x8xi32, #tpu.memory_space<vmem>>, %arg3: memref<256x128xbf16, #tpu.memory_space<vmem>>, %arg4: memref<128x128xf32, #tpu.memory_space<vmem>>, %arg5: memref<128x128xbf16, #tpu.memory_space<vmem>>, %arg6: memref<1x128xf32, #tpu.memory_space<vmem>>, %arg7: memref<128x128xbf16, #tpu.memory_space<vmem>>, %arg8: memref<1x128xf32, #tpu.memory_space<vmem>>, %arg9: memref<1x128xf32, #tpu.memory_space<vmem>>, %arg10: memref<1x128xf32, #tpu.memory_space<vmem>>, %arg11: memref<3x128x128xbf16, #tpu.memory_space<vmem>>, %arg12: memref<1x128xf32, #tpu.memory_space<vmem>>, %arg13: memref<1x128xf32, #tpu.memory_space<vmem>>, %arg14: memref<1x128xf32, #tpu.memory_space<vmem>>, %arg15: memref<128x384xbf16, #tpu.memory_space<vmem>>, %arg16: memref<128x384xbf16, #tpu.memory_space<vmem>>, %arg17: memref<1x384xf32, #tpu.memory_space<vmem>>, %arg18: memref<1x384xf32, #tpu.memory_space<vmem>>, %arg19: memref<128x128xbf16, #tpu.memory_space<vmem>>, %arg20: memref<128x128xbf16, #tpu.memory_space<vmem>>, %arg21: memref<1x128xf32, #tpu.memory_space<vmem>>, %arg22: memref<1x128xf32, #tpu.memory_space<vmem>>, %arg23: memref<1x128xf32, #tpu.memory_space<vmem>>, %arg24: memref<8x128xf32, #tpu.memory_space<vmem>>, %arg25: memref<8x128xf32, #tpu.memory_space<vmem>>, %arg26: memref<8x128xf32, #tpu.memory_space<vmem>>, %arg27: memref<8x128xf32, #tpu.memory_space<vmem>>, %arg28: memref<8x8x384xf32, #tpu.memory_space<vmem>>) attributes {dimension_semantics = [#tpu.dimension_semantics<arbitrary>], iteration_bounds = array<i64: 1>, scalar_prefetch = 0 : i64, scratch_operands = 1 : i64, tpu.core_type = #tpu.core_type<tc>, window_params = [{pipeline_mode = #tpu.pipeline_mode<synchronous>, transform_indices = @transform_0, window_bounds = array<i64: 8, 8>}, {pipeline_mode = #tpu.pipeline_mode<synchronous>, transform_indices = @transform_1, window_bounds = array<i64: 8, 8>}, {pipeline_mode = #tpu.pipeline_mode<synchronous>, transform_indices = @transform_2, window_bounds = array<i64: 256, 128>}, {pipeline_mode = #tpu.pipeline_mode<synchronous>, transform_indices = @transform_3, window_bounds = array<i64: 128, 128>}, {pipeline_mode = #tpu.pipeline_mode<synchronous>, transform_indices = @transform_4, window_bounds = array<i64: 128, 128>}, {pipeline_mode = #tpu.pipeline_mode<synchronous>, transform_indices = @transform_5, window_bounds = array<i64: 1, 128>}, {pipeline_mode = #tpu.pipeline_mode<synchronous>, transform_indices = @transform_6, window_bounds = array<i64: 128, 128>}, {pipeline_mode = #tpu.pipeline_mode<synchronous>, transform_indices = @transform_7, window_bounds = array<i64: 1, 128>}, {pipeline_mode = #tpu.pipeline_mode<synchronous>, transform_indices = @transform_8, window_bounds = array<i64: 1, 128>}, {pipeline_mode = #tpu.pipeline_mode<synchronous>, transform_indices = @transform_9, window_bounds = array<i64: 1, 128>}, {pipeline_mode = #tpu.pipeline_mode<synchronous>, transform_indices = @transform_10, window_bounds = array<i64: 3, 128, 128>}, {pipeline_mode = #tpu.pipeline_mode<synchronous>, transform_indices = @transform_11, window_bounds = array<i64: 1, 128>}, {pipeline_mode = #tpu.pipeline_mode<synchronous>, transform_indices = @transform_12, window_bounds = array<i64: 1, 128>}, {pipeline_mode = #tpu.pipeline_mode<synchronous>, transform_indices = @transform_13, window_bounds = array<i64: 1, 128>}, {pipeline_mode = #tpu.pipeline_mode<synchronous>, transform_indices = @transform_14, window_bounds = array<i64: 128, 384>}, {pipeline_mode = #tpu.pipeline_mode<synchronous>, transform_indices = @transform_15, window_bounds = array<i64: 128, 384>}, {pipeline_mode = #tpu.pipeline_mode<synchronous>, transform_indices = @transform_16, window_bounds = array<i64: 1, 384>}, {pipeline_mode = #tpu.pipeline_mode<synchronous>, transform_indices = @transform_17, window_bounds = array<i64: 1, 384>}, {pipeline_mode = #tpu.pipeline_mode<synchronous>, transform_indices = @transform_18, window_bounds = array<i64: 128, 128>}, {pipeline_mode = #tpu.pipeline_mode<synchronous>, transform_indices = @transform_19, window_bounds = array<i64: 128, 128>}, {pipeline_mode = #tpu.pipeline_mode<synchronous>, transform_indices = @transform_20, window_bounds = array<i64: 1, 128>}, {pipeline_mode = #tpu.pipeline_mode<synchronous>, transform_indices = @transform_21, window_bounds = array<i64: 1, 128>}, {pipeline_mode = #tpu.pipeline_mode<synchronous>, transform_indices = @transform_22, window_bounds = array<i64: 1, 128>}, {pipeline_mode = #tpu.pipeline_mode<synchronous>, transform_indices = @transform_23, window_bounds = array<i64: 8, 128>}, {pipeline_mode = #tpu.pipeline_mode<synchronous>, transform_indices = @transform_24, window_bounds = array<i64: 8, 128>}, {pipeline_mode = #tpu.pipeline_mode<synchronous>, transform_indices = @transform_25, window_bounds = array<i64: 8, 128>}, {pipeline_mode = #tpu.pipeline_mode<synchronous>, transform_indices = @transform_26, window_bounds = array<i64: 8, 128>}]} {
    %c0 = arith.constant 0 : index
    %c0_0 = arith.constant 0 : index
    %0 = vector.load %arg1[%c0, %c0_0] : memref<8x8xi32, #tpu.memory_space<vmem>>, vector<8x8xi32>
    %c0_1 = arith.constant 0 : index
    %c0_2 = arith.constant 0 : index
    %1 = vector.load %arg2[%c0_1, %c0_2] : memref<8x8xi32, #tpu.memory_space<vmem>>, vector<8x8xi32>
    %2 = tpu.iota {dimensions = array<i32: 2>} : vector<8x8x256xi32>
    %3 = vector.shape_cast %0 : vector<8x8xi32> to vector<8x8x1xi32>
    %4 = vector.broadcast %3 : vector<8x8x1xi32> to vector<8x8x256xi32>
    %5 = arith.cmpi eq, %2, %4 : vector<8x8x256xi32>
    %6 = arith.extui %5 : vector<8x8x256xi1> to vector<8x8x256xi32>
    %7 = arith.sitofp %6 : vector<8x8x256xi32> to vector<8x8x256xf32>
    %8 = arith.truncf %7 : vector<8x8x256xf32> to vector<8x8x256xbf16>
    %9 = vector.shape_cast %8 : vector<8x8x256xbf16> to vector<64x256xbf16>
    %c129_i32 = arith.constant 129 : i32
    %10 = vector.broadcast %c129_i32 : i32 to vector<8x8xi32>
    %11 = arith.addi %1, %10 : vector<8x8xi32>
    %12 = vector.shape_cast %11 : vector<8x8xi32> to vector<8x8x1xi32>
    %13 = vector.broadcast %12 : vector<8x8x1xi32> to vector<8x8x256xi32>
    %14 = arith.cmpi eq, %2, %13 : vector<8x8x256xi32>
    %15 = arith.extui %14 : vector<8x8x256xi1> to vector<8x8x256xi32>
    %16 = arith.sitofp %15 : vector<8x8x256xi32> to vector<8x8x256xf32>
    %17 = arith.truncf %16 : vector<8x8x256xf32> to vector<8x8x256xbf16>
    %18 = vector.shape_cast %17 : vector<8x8x256xbf16> to vector<64x256xbf16>
    %19 = tpu.concatenate %9, %18 in 0 : vector<64x256xbf16>, vector<64x256xbf16> -> vector<128x256xbf16>
    %c0_3 = arith.constant 0 : index
    %c0_4 = arith.constant 0 : index
    %20 = vector.load %arg3[%c0_3, %c0_4] : memref<256x128xbf16, #tpu.memory_space<vmem>>, vector<256x128xbf16>
    %cst = arith.constant dense<0.000000e+00> : vector<128x128xf32>
    %21 = tpu.matmul %19, %20, %cst {dimension_numbers = #tpu.dot_dimension_numbers<[1], [0], [0], [1], [0, 0, 1, 1], [], []>} : vector<128x256xbf16>, vector<256x128xbf16>, vector<128x128xf32> -> vector<128x128xf32>
    %22 = vector.extract_strided_slice %21 {offsets = [0, 0], sizes = [64, 128], strides = [1, 1]} : vector<128x128xf32> to vector<64x128xf32>
    %23 = vector.extract_strided_slice %21 {offsets = [64, 0], sizes = [64, 128], strides = [1, 1]} : vector<128x128xf32> to vector<64x128xf32>
    %24 = arith.addf %22, %23 : vector<64x128xf32>
    %25 = tpu.iota {dimensions = array<i32: 1>} : vector<8x256xi32>
    %c0_i32 = arith.constant 0 : i32
    %26 = vector.broadcast %c0_i32 : i32 to vector<8x256xi32>
    %27 = arith.cmpi eq, %25, %26 : vector<8x256xi32>
    %28 = arith.extui %27 : vector<8x256xi1> to vector<8x256xi32>
    %29 = arith.sitofp %28 : vector<8x256xi32> to vector<8x256xf32>
    %30 = arith.truncf %29 : vector<8x256xf32> to vector<8x256xbf16>
    %cst_5 = arith.constant dense<0.000000e+00> : vector<8x64xf32>
    %31 = tpu.matmul %30, %9, %cst_5 {dimension_numbers = #tpu.dot_dimension_numbers<[1], [1], [0], [0], [0, 0, 1, 0], [], []>} : vector<8x256xbf16>, vector<64x256xbf16>, vector<8x64xf32> -> vector<8x64xf32>
    %32 = vector.extract_strided_slice %31 {offsets = [0, 0], sizes = [1, 64], strides = [1, 1]} : vector<8x64xf32> to vector<1x64xf32>
    %c0_6 = arith.constant 0 : index
    %c0_7 = arith.constant 0 : index
    %33 = vector.load %arg5[%c0_6, %c0_7] : memref<128x128xbf16, #tpu.memory_space<vmem>>, vector<128x128xbf16>
    %34 = arith.extf %33 : vector<128x128xbf16> to vector<128x128xf32>
    %cst_8 = arith.constant dense<0.000000e+00> : vector<64x128xf32>
    %35 = tpu.matmul %24, %34, %cst_8 {dimension_numbers = #tpu.dot_dimension_numbers<[1], [0], [0], [1], [0, 0, 1, 1], [], []>} : vector<64x128xf32>, vector<128x128xf32>, vector<64x128xf32> -> vector<64x128xf32>
    %c0_9 = arith.constant 0 : index
    %c0_10 = arith.constant 0 : index
    %36 = vector.load %arg6[%c0_9, %c0_10] : memref<1x128xf32, #tpu.memory_space<vmem>>, vector<1x128xf32>
    %37 = vector.broadcast %36 : vector<1x128xf32> to vector<64x128xf32>
    %38 = arith.addf %35, %37 : vector<64x128xf32>
    %cst_11 = arith.constant 0.000000e+00 : f32
    %39 = vector.broadcast %cst_11 : f32 to vector<64x128xf32>
    %40 = arith.maximumf %38, %39 : vector<64x128xf32>
    %cst_12 = arith.constant dense<0.000000e+00> : vector<64x64xf32>
    %41 = tpu.matmul %40, %24, %cst_12 {dimension_numbers = #tpu.dot_dimension_numbers<[1], [1], [0], [0], [0, 0, 1, 0], [], []>} : vector<64x128xf32>, vector<64x128xf32>, vector<64x64xf32> -> vector<64x64xf32>
    %42 = tpu.iota {dimensions = array<i32: 2>} : vector<8x8x64xi32>
    %43 = tpu.iota {dimensions = array<i32: 1>} : vector<8x8x64xi32>
    %44 = tpu.iota {dimensions = array<i32: 0>} : vector<8x8x64xi32>
    %c8_i32 = arith.constant 8 : i32
    %45 = vector.broadcast %c8_i32 : i32 to vector<8x8x64xi32>
    %46 = arith.muli %44, %45 : vector<8x8x64xi32>
    %47 = arith.addi %46, %43 : vector<8x8x64xi32>
    %48 = arith.subi %47, %42 : vector<8x8x64xi32>
    %c0_i32_13 = arith.constant 0 : i32
    %49 = vector.broadcast %c0_i32_13 : i32 to vector<8x8x64xi32>
    %50 = arith.cmpi sge, %48, %49 : vector<8x8x64xi32>
    %51 = arith.cmpi sle, %48, %43 : vector<8x8x64xi32>
    %52 = arith.andi %50, %51 : vector<8x8x64xi1>
    %cst_14 = arith.constant 5.000000e-01 : f32
    %53 = vector.broadcast %cst_14 : f32 to vector<1x64xf32>
    %54 = arith.cmpf olt, %32, %53 : vector<1x64xf32>
    %55 = vector.shape_cast %54 : vector<1x64xi1> to vector<1x1x64xi1>
    %56 = vector.broadcast %55 : vector<1x1x64xi1> to vector<8x8x64xi1>
    %57 = arith.andi %52, %56 : vector<8x8x64xi1>
    %58 = vector.shape_cast %41 : vector<64x64xf32> to vector<8x8x64xf32>
    %cst_15 = arith.constant 0.0883883461 : f32
    %59 = vector.broadcast %cst_15 : f32 to vector<8x8x64xf32>
    %60 = arith.mulf %58, %59 : vector<8x8x64xf32>
    %cst_16 = arith.constant -1.000000e+09 : f32
    %61 = vector.broadcast %cst_16 : f32 to vector<8x8x64xf32>
    %62 = arith.select %57, %60, %61 : vector<8x8x64xi1>, vector<8x8x64xf32>
    %cst_17 = arith.constant dense<0xFF800000> : vector<8x8xf32>
    %63 = vector.multi_reduction <maximumf>, %62, %cst_17 [2] : vector<8x8x64xf32> to vector<8x8xf32>
    %64 = vector.shape_cast %63 : vector<8x8xf32> to vector<8x8x1xf32>
    %65 = vector.broadcast %64 : vector<8x8x1xf32> to vector<8x8x64xf32>
    %66 = arith.subf %62, %65 : vector<8x8x64xf32>
    %67 = math.exp %66 : vector<8x8x64xf32>
    %cst_18 = arith.constant dense<0.000000e+00> : vector<8x8xf32>
    %68 = vector.multi_reduction <add>, %67, %cst_18 [2] : vector<8x8x64xf32> to vector<8x8xf32>
    %69 = vector.shape_cast %68 : vector<8x8xf32> to vector<8x8x1xf32>
    %70 = tpu.reciprocal %69 {approx = true} : vector<8x8x1xf32> -> vector<8x8x1xf32>
    %71 = vector.broadcast %70 : vector<8x8x1xf32> to vector<8x8x64xf32>
    %72 = arith.mulf %67, %71 : vector<8x8x64xf32>
    %73 = vector.shape_cast %72 : vector<8x8x64xf32> to vector<64x64xf32>
    %cst_19 = arith.constant dense<0.000000e+00> : vector<64x128xf32>
    %74 = tpu.matmul %73, %24, %cst_19 {dimension_numbers = #tpu.dot_dimension_numbers<[1], [0], [0], [1], [0, 0, 1, 1], [], []>} : vector<64x64xf32>, vector<64x128xf32>, vector<64x128xf32> -> vector<64x128xf32>
    %c0_20 = arith.constant 0 : index
    %c0_21 = arith.constant 0 : index
    %75 = vector.load %arg7[%c0_20, %c0_21] : memref<128x128xbf16, #tpu.memory_space<vmem>>, vector<128x128xbf16>
    %76 = arith.extf %75 : vector<128x128xbf16> to vector<128x128xf32>
    %cst_22 = arith.constant dense<0.000000e+00> : vector<64x128xf32>
    %77 = tpu.matmul %74, %76, %cst_22 {dimension_numbers = #tpu.dot_dimension_numbers<[1], [0], [0], [1], [0, 0, 1, 1], [], []>} : vector<64x128xf32>, vector<128x128xf32>, vector<64x128xf32> -> vector<64x128xf32>
    %c0_23 = arith.constant 0 : index
    %c0_24 = arith.constant 0 : index
    %78 = vector.load %arg8[%c0_23, %c0_24] : memref<1x128xf32, #tpu.memory_space<vmem>>, vector<1x128xf32>
    %79 = vector.broadcast %78 : vector<1x128xf32> to vector<64x128xf32>
    %80 = arith.addf %77, %79 : vector<64x128xf32>
    %cst_25 = arith.constant 0.000000e+00 : f32
    %81 = vector.broadcast %cst_25 : f32 to vector<64x128xf32>
    %82 = arith.maximumf %80, %81 : vector<64x128xf32>
    %83 = arith.addf %82, %74 : vector<64x128xf32>
    %c0_26 = arith.constant 0 : index
    %c0_27 = arith.constant 0 : index
    %84 = vector.load %arg9[%c0_26, %c0_27] : memref<1x128xf32, #tpu.memory_space<vmem>>, vector<1x128xf32>
    %c0_28 = arith.constant 0 : index
    %c0_29 = arith.constant 0 : index
    %85 = vector.load %arg10[%c0_28, %c0_29] : memref<1x128xf32, #tpu.memory_space<vmem>>, vector<1x128xf32>
    %cst_30 = arith.constant dense<0.000000e+00> : vector<64xf32>
    %86 = vector.multi_reduction <add>, %83, %cst_30 [1] : vector<64x128xf32> to vector<64xf32>
    %87 = vector.shape_cast %86 : vector<64xf32> to vector<64x1xf32>
    %cst_31 = arith.constant 1.280000e+02 : f32
    %88 = vector.broadcast %cst_31 : f32 to vector<64x1xf32>
    %89 = arith.divf %87, %88 : vector<64x1xf32>
    %90 = vector.broadcast %89 : vector<64x1xf32> to vector<64x128xf32>
    %91 = arith.subf %83, %90 : vector<64x128xf32>
    %92 = arith.mulf %91, %91 : vector<64x128xf32>
    %cst_32 = arith.constant dense<0.000000e+00> : vector<64xf32>
    %93 = vector.multi_reduction <add>, %92, %cst_32 [1] : vector<64x128xf32> to vector<64xf32>
    %94 = vector.shape_cast %93 : vector<64xf32> to vector<64x1xf32>
    %cst_33 = arith.constant 1.280000e+02 : f32
    %95 = vector.broadcast %cst_33 : f32 to vector<64x1xf32>
    %96 = arith.divf %94, %95 : vector<64x1xf32>
    %97 = vector.broadcast %89 : vector<64x1xf32> to vector<64x128xf32>
    %98 = arith.subf %83, %97 : vector<64x128xf32>
    %cst_34 = arith.constant 1.000000e-03 : f32
    %99 = vector.broadcast %cst_34 : f32 to vector<64x1xf32>
    %100 = arith.addf %96, %99 : vector<64x1xf32>
    %101 = math.rsqrt %100 : vector<64x1xf32>
    %102 = vector.broadcast %101 : vector<64x1xf32> to vector<64x128xf32>
    %103 = arith.mulf %98, %102 : vector<64x128xf32>
    %104 = vector.broadcast %84 : vector<1x128xf32> to vector<64x128xf32>
    %105 = arith.mulf %103, %104 : vector<64x128xf32>
    %106 = vector.broadcast %85 : vector<1x128xf32> to vector<64x128xf32>
    %107 = arith.addf %105, %106 : vector<64x128xf32>
    %108 = vector.shape_cast %107 : vector<64x128xf32> to vector<8x8x128xf32>
    %109 = vector.extract_strided_slice %108 {offsets = [0, 7, 0], sizes = [8, 1, 128], strides = [1, 1, 1]} : vector<8x8x128xf32> to vector<8x1x128xf32>
    %110 = vector.shape_cast %109 : vector<8x1x128xf32> to vector<8x128xf32>
    %c0_i32_35 = arith.constant 0 : i32
    %111 = vector.broadcast %c0_i32_35 : i32 to vector<8x8xi32>
    %112 = arith.cmpi ne, %0, %111 : vector<8x8xi32>
    %113 = vector.shape_cast %110 : vector<8x128xf32> to vector<8x1x128xf32>
    %114 = vector.broadcast %113 : vector<8x1x128xf32> to vector<8x8x128xf32>
    %115 = arith.mulf %108, %114 : vector<8x8x128xf32>
    %cst_36 = arith.constant dense<0.000000e+00> : vector<8x8xf32>
    %116 = vector.multi_reduction <add>, %115, %cst_36 [2] : vector<8x8x128xf32> to vector<8x8xf32>
    %cst_37 = arith.constant 0.0883883461 : f32
    %117 = vector.broadcast %cst_37 : f32 to vector<8x8xf32>
    %118 = arith.mulf %116, %117 : vector<8x8xf32>
    %cst_38 = arith.constant -1.000000e+09 : f32
    %119 = vector.broadcast %cst_38 : f32 to vector<8x8xf32>
    %120 = arith.select %112, %118, %119 : vector<8x8xi1>, vector<8x8xf32>
    %cst_39 = arith.constant dense<0xFF800000> : vector<8xf32>
    %121 = vector.multi_reduction <maximumf>, %120, %cst_39 [1] : vector<8x8xf32> to vector<8xf32>
    %122 = vector.shape_cast %121 : vector<8xf32> to vector<8x1xf32>
    %123 = vector.broadcast %122 : vector<8x1xf32> to vector<8x8xf32>
    %124 = arith.subf %120, %123 : vector<8x8xf32>
    %125 = math.exp %124 : vector<8x8xf32>
    %cst_40 = arith.constant dense<0.000000e+00> : vector<8xf32>
    %126 = vector.multi_reduction <add>, %125, %cst_40 [1] : vector<8x8xf32> to vector<8xf32>
    %127 = vector.shape_cast %126 : vector<8xf32> to vector<8x1xf32>
    %128 = tpu.reciprocal %127 {approx = true} : vector<8x1xf32> -> vector<8x1xf32>
    %129 = vector.broadcast %128 : vector<8x1xf32> to vector<8x8xf32>
    %130 = arith.mulf %125, %129 : vector<8x8xf32>
    %131 = vector.shape_cast %130 : vector<8x8xf32> to vector<8x8x1xf32>
    %132 = vector.broadcast %131 : vector<8x8x1xf32> to vector<8x8x128xf32>
    %133 = arith.mulf %132, %108 : vector<8x8x128xf32>
    %cst_41 = arith.constant dense<0.000000e+00> : vector<8x128xf32>
    %134 = vector.multi_reduction <add>, %133, %cst_41 [1] : vector<8x8x128xf32> to vector<8x128xf32>
    %135 = vector.shape_cast %22 : vector<64x128xf32> to vector<8x8x128xf32>
    %136 = vector.extract_strided_slice %135 {offsets = [0, 5, 0], sizes = [8, 1, 128], strides = [1, 1, 1]} : vector<8x8x128xf32> to vector<8x1x128xf32>
    %137 = vector.shape_cast %136 : vector<8x1x128xf32> to vector<8x128xf32>
    %c0_42 = arith.constant 0 : index
    %c0_43 = arith.constant 0 : index
    %c0_44 = arith.constant 0 : index
    %138 = vector.load %arg11[%c0_42, %c0_43, %c0_44] : memref<3x128x128xbf16, #tpu.memory_space<vmem>>, vector<1x128x128xbf16>
    %139 = vector.shape_cast %138 : vector<1x128x128xbf16> to vector<128x128xbf16>
    %140 = arith.extf %139 : vector<128x128xbf16> to vector<128x128xf32>
    %cst_45 = arith.constant dense<0.000000e+00> : vector<8x128xf32>
    %141 = tpu.matmul %137, %140, %cst_45 {dimension_numbers = #tpu.dot_dimension_numbers<[1], [0], [0], [1], [0, 0, 1, 1], [], []>} : vector<8x128xf32>, vector<128x128xf32>, vector<8x128xf32> -> vector<8x128xf32>
    %142 = vector.extract_strided_slice %135 {offsets = [0, 6, 0], sizes = [8, 1, 128], strides = [1, 1, 1]} : vector<8x8x128xf32> to vector<8x1x128xf32>
    %143 = vector.shape_cast %142 : vector<8x1x128xf32> to vector<8x128xf32>
    %c1 = arith.constant 1 : index
    %c0_46 = arith.constant 0 : index
    %c0_47 = arith.constant 0 : index
    %144 = vector.load %arg11[%c1, %c0_46, %c0_47] : memref<3x128x128xbf16, #tpu.memory_space<vmem>>, vector<1x128x128xbf16>
    %145 = vector.shape_cast %144 : vector<1x128x128xbf16> to vector<128x128xbf16>
    %146 = arith.extf %145 : vector<128x128xbf16> to vector<128x128xf32>
    %cst_48 = arith.constant dense<0.000000e+00> : vector<8x128xf32>
    %147 = tpu.matmul %143, %146, %cst_48 {dimension_numbers = #tpu.dot_dimension_numbers<[1], [0], [0], [1], [0, 0, 1, 1], [], []>} : vector<8x128xf32>, vector<128x128xf32>, vector<8x128xf32> -> vector<8x128xf32>
    %148 = arith.addf %141, %147 : vector<8x128xf32>
    %149 = vector.extract_strided_slice %135 {offsets = [0, 7, 0], sizes = [8, 1, 128], strides = [1, 1, 1]} : vector<8x8x128xf32> to vector<8x1x128xf32>
    %150 = vector.shape_cast %149 : vector<8x1x128xf32> to vector<8x128xf32>
    %c2 = arith.constant 2 : index
    %c0_49 = arith.constant 0 : index
    %c0_50 = arith.constant 0 : index
    %151 = vector.load %arg11[%c2, %c0_49, %c0_50] : memref<3x128x128xbf16, #tpu.memory_space<vmem>>, vector<1x128x128xbf16>
    %152 = vector.shape_cast %151 : vector<1x128x128xbf16> to vector<128x128xbf16>
    %153 = arith.extf %152 : vector<128x128xbf16> to vector<128x128xf32>
    %cst_51 = arith.constant dense<0.000000e+00> : vector<8x128xf32>
    %154 = tpu.matmul %150, %153, %cst_51 {dimension_numbers = #tpu.dot_dimension_numbers<[1], [0], [0], [1], [0, 0, 1, 1], [], []>} : vector<8x128xf32>, vector<128x128xf32>, vector<8x128xf32> -> vector<8x128xf32>
    %155 = arith.addf %148, %154 : vector<8x128xf32>
    %c0_52 = arith.constant 0 : index
    %c0_53 = arith.constant 0 : index
    %156 = vector.load %arg12[%c0_52, %c0_53] : memref<1x128xf32, #tpu.memory_space<vmem>>, vector<1x128xf32>
    %157 = vector.broadcast %156 : vector<1x128xf32> to vector<8x128xf32>
    %158 = arith.addf %155, %157 : vector<8x128xf32>
    %cst_54 = arith.constant dense<0.000000e+00> : vector<128xf32>
    %159 = vector.multi_reduction <add>, %158, %cst_54 [0] : vector<8x128xf32> to vector<128xf32>
    %160 = vector.shape_cast %159 : vector<128xf32> to vector<1x128xf32>
    %cst_55 = arith.constant 8.000000e+00 : f32
    %161 = vector.broadcast %cst_55 : f32 to vector<1x128xf32>
    %162 = arith.divf %160, %161 : vector<1x128xf32>
    %163 = vector.broadcast %162 : vector<1x128xf32> to vector<8x128xf32>
    %164 = arith.subf %158, %163 : vector<8x128xf32>
    %165 = arith.mulf %164, %164 : vector<8x128xf32>
    %cst_56 = arith.constant dense<0.000000e+00> : vector<128xf32>
    %166 = vector.multi_reduction <add>, %165, %cst_56 [0] : vector<8x128xf32> to vector<128xf32>
    %167 = vector.shape_cast %166 : vector<128xf32> to vector<1x128xf32>
    %cst_57 = arith.constant 8.000000e+00 : f32
    %168 = vector.broadcast %cst_57 : f32 to vector<1x128xf32>
    %169 = arith.divf %167, %168 : vector<1x128xf32>
    %170 = vector.broadcast %162 : vector<1x128xf32> to vector<8x128xf32>
    %171 = arith.subf %158, %170 : vector<8x128xf32>
    %cst_58 = arith.constant 9.99999974E-6 : f32
    %172 = vector.broadcast %cst_58 : f32 to vector<1x128xf32>
    %173 = arith.addf %169, %172 : vector<1x128xf32>
    %174 = math.rsqrt %173 : vector<1x128xf32>
    %175 = vector.broadcast %174 : vector<1x128xf32> to vector<8x128xf32>
    %176 = arith.mulf %171, %175 : vector<8x128xf32>
    %c0_59 = arith.constant 0 : index
    %c0_60 = arith.constant 0 : index
    %177 = vector.load %arg13[%c0_59, %c0_60] : memref<1x128xf32, #tpu.memory_space<vmem>>, vector<1x128xf32>
    %178 = vector.broadcast %177 : vector<1x128xf32> to vector<8x128xf32>
    %179 = arith.mulf %176, %178 : vector<8x128xf32>
    %c0_61 = arith.constant 0 : index
    %c0_62 = arith.constant 0 : index
    %180 = vector.load %arg14[%c0_61, %c0_62] : memref<1x128xf32, #tpu.memory_space<vmem>>, vector<1x128xf32>
    %181 = vector.broadcast %180 : vector<1x128xf32> to vector<8x128xf32>
    %182 = arith.addf %179, %181 : vector<8x128xf32>
    %c0_63 = arith.constant 0 : index
    %c0_64 = arith.constant 0 : index
    %183 = vector.load %arg15[%c0_63, %c0_64] : memref<128x384xbf16, #tpu.memory_space<vmem>>, vector<128x384xbf16>
    %184 = arith.extf %183 : vector<128x384xbf16> to vector<128x384xf32>
    %cst_65 = arith.constant dense<0.000000e+00> : vector<64x384xf32>
    %185 = tpu.matmul %22, %184, %cst_65 {dimension_numbers = #tpu.dot_dimension_numbers<[1], [0], [0], [1], [0, 0, 1, 1], [], []>} : vector<64x128xf32>, vector<128x384xf32>, vector<64x384xf32> -> vector<64x384xf32>
    %c0_66 = arith.constant 0 : index
    %c0_67 = arith.constant 0 : index
    %186 = vector.load %arg17[%c0_66, %c0_67] : memref<1x384xf32, #tpu.memory_space<vmem>>, vector<1x384xf32>
    %187 = vector.broadcast %186 : vector<1x384xf32> to vector<64x384xf32>
    %188 = arith.addf %185, %187 : vector<64x384xf32>
    %189 = vector.shape_cast %188 : vector<64x384xf32> to vector<8x8x384xf32>
    %190 = vector.extract_strided_slice %189 {offsets = [0, 0, 0], sizes = [8, 1, 384], strides = [1, 1, 1]} : vector<8x8x384xf32> to vector<8x1x384xf32>
    %191 = vector.shape_cast %190 : vector<8x1x384xf32> to vector<8x384xf32>
    %c0_68 = arith.constant 0 : index
    %c0_69 = arith.constant 0 : index
    %c0_70 = arith.constant 0 : index
    %192 = vector.load %arg28[%c0_68, %c0_69, %c0_70] : memref<8x8x384xf32, #tpu.memory_space<vmem>>, vector<1x8x384xf32>
    %193 = vector.shape_cast %192 : vector<1x8x384xf32> to vector<8x384xf32>
    %194 = vector.shape_cast %191 : vector<8x384xf32> to vector<1x8x384xf32>
    tpu.vector_store %arg28[%c0_68, %c0_69, %c0_70], %194 {strides = array<i32>} : memref<8x8x384xf32, #tpu.memory_space<vmem>>, vector<1x8x384xf32>,
    %195 = vector.extract_strided_slice %189 {offsets = [0, 1, 0], sizes = [8, 1, 384], strides = [1, 1, 1]} : vector<8x8x384xf32> to vector<8x1x384xf32>
    %196 = vector.shape_cast %195 : vector<8x1x384xf32> to vector<8x384xf32>
    %c1_71 = arith.constant 1 : index
    %c0_72 = arith.constant 0 : index
    %c0_73 = arith.constant 0 : index
    %197 = vector.load %arg28[%c1_71, %c0_72, %c0_73] : memref<8x8x384xf32, #tpu.memory_space<vmem>>, vector<1x8x384xf32>
    %198 = vector.shape_cast %197 : vector<1x8x384xf32> to vector<8x384xf32>
    %199 = vector.shape_cast %196 : vector<8x384xf32> to vector<1x8x384xf32>
    tpu.vector_store %arg28[%c1_71, %c0_72, %c0_73], %199 {strides = array<i32>} : memref<8x8x384xf32, #tpu.memory_space<vmem>>, vector<1x8x384xf32>,
    %200 = vector.extract_strided_slice %189 {offsets = [0, 2, 0], sizes = [8, 1, 384], strides = [1, 1, 1]} : vector<8x8x384xf32> to vector<8x1x384xf32>
    %201 = vector.shape_cast %200 : vector<8x1x384xf32> to vector<8x384xf32>
    %c2_74 = arith.constant 2 : index
    %c0_75 = arith.constant 0 : index
    %c0_76 = arith.constant 0 : index
    %202 = vector.load %arg28[%c2_74, %c0_75, %c0_76] : memref<8x8x384xf32, #tpu.memory_space<vmem>>, vector<1x8x384xf32>
    %203 = vector.shape_cast %202 : vector<1x8x384xf32> to vector<8x384xf32>
    %204 = vector.shape_cast %201 : vector<8x384xf32> to vector<1x8x384xf32>
    tpu.vector_store %arg28[%c2_74, %c0_75, %c0_76], %204 {strides = array<i32>} : memref<8x8x384xf32, #tpu.memory_space<vmem>>, vector<1x8x384xf32>,
    %205 = vector.extract_strided_slice %189 {offsets = [0, 3, 0], sizes = [8, 1, 384], strides = [1, 1, 1]} : vector<8x8x384xf32> to vector<8x1x384xf32>
    %206 = vector.shape_cast %205 : vector<8x1x384xf32> to vector<8x384xf32>
    %c3 = arith.constant 3 : index
    %c0_77 = arith.constant 0 : index
    %c0_78 = arith.constant 0 : index
    %207 = vector.load %arg28[%c3, %c0_77, %c0_78] : memref<8x8x384xf32, #tpu.memory_space<vmem>>, vector<1x8x384xf32>
    %208 = vector.shape_cast %207 : vector<1x8x384xf32> to vector<8x384xf32>
    %209 = vector.shape_cast %206 : vector<8x384xf32> to vector<1x8x384xf32>
    tpu.vector_store %arg28[%c3, %c0_77, %c0_78], %209 {strides = array<i32>} : memref<8x8x384xf32, #tpu.memory_space<vmem>>, vector<1x8x384xf32>,
    %210 = vector.extract_strided_slice %189 {offsets = [0, 4, 0], sizes = [8, 1, 384], strides = [1, 1, 1]} : vector<8x8x384xf32> to vector<8x1x384xf32>
    %211 = vector.shape_cast %210 : vector<8x1x384xf32> to vector<8x384xf32>
    %c4 = arith.constant 4 : index
    %c0_79 = arith.constant 0 : index
    %c0_80 = arith.constant 0 : index
    %212 = vector.load %arg28[%c4, %c0_79, %c0_80] : memref<8x8x384xf32, #tpu.memory_space<vmem>>, vector<1x8x384xf32>
    %213 = vector.shape_cast %212 : vector<1x8x384xf32> to vector<8x384xf32>
    %214 = vector.shape_cast %211 : vector<8x384xf32> to vector<1x8x384xf32>
    tpu.vector_store %arg28[%c4, %c0_79, %c0_80], %214 {strides = array<i32>} : memref<8x8x384xf32, #tpu.memory_space<vmem>>, vector<1x8x384xf32>,
    %215 = vector.extract_strided_slice %189 {offsets = [0, 5, 0], sizes = [8, 1, 384], strides = [1, 1, 1]} : vector<8x8x384xf32> to vector<8x1x384xf32>
    %216 = vector.shape_cast %215 : vector<8x1x384xf32> to vector<8x384xf32>
    %c5 = arith.constant 5 : index
    %c0_81 = arith.constant 0 : index
    %c0_82 = arith.constant 0 : index
    %217 = vector.load %arg28[%c5, %c0_81, %c0_82] : memref<8x8x384xf32, #tpu.memory_space<vmem>>, vector<1x8x384xf32>
    %218 = vector.shape_cast %217 : vector<1x8x384xf32> to vector<8x384xf32>
    %219 = vector.shape_cast %216 : vector<8x384xf32> to vector<1x8x384xf32>
    tpu.vector_store %arg28[%c5, %c0_81, %c0_82], %219 {strides = array<i32>} : memref<8x8x384xf32, #tpu.memory_space<vmem>>, vector<1x8x384xf32>,
    %220 = vector.extract_strided_slice %189 {offsets = [0, 6, 0], sizes = [8, 1, 384], strides = [1, 1, 1]} : vector<8x8x384xf32> to vector<8x1x384xf32>
    %221 = vector.shape_cast %220 : vector<8x1x384xf32> to vector<8x384xf32>
    %c6 = arith.constant 6 : index
    %c0_83 = arith.constant 0 : index
    %c0_84 = arith.constant 0 : index
    %222 = vector.load %arg28[%c6, %c0_83, %c0_84] : memref<8x8x384xf32, #tpu.memory_space<vmem>>, vector<1x8x384xf32>
    %223 = vector.shape_cast %222 : vector<1x8x384xf32> to vector<8x384xf32>
    %224 = vector.shape_cast %221 : vector<8x384xf32> to vector<1x8x384xf32>
    tpu.vector_store %arg28[%c6, %c0_83, %c0_84], %224 {strides = array<i32>} : memref<8x8x384xf32, #tpu.memory_space<vmem>>, vector<1x8x384xf32>,
    %225 = vector.extract_strided_slice %189 {offsets = [0, 7, 0], sizes = [8, 1, 384], strides = [1, 1, 1]} : vector<8x8x384xf32> to vector<8x1x384xf32>
    %226 = vector.shape_cast %225 : vector<8x1x384xf32> to vector<8x384xf32>
    %c7 = arith.constant 7 : index
    %c0_85 = arith.constant 0 : index
    %c0_86 = arith.constant 0 : index
    %227 = vector.load %arg28[%c7, %c0_85, %c0_86] : memref<8x8x384xf32, #tpu.memory_space<vmem>>, vector<1x8x384xf32>
    %228 = vector.shape_cast %227 : vector<1x8x384xf32> to vector<8x384xf32>
    %229 = vector.shape_cast %226 : vector<8x384xf32> to vector<1x8x384xf32>
    tpu.vector_store %arg28[%c7, %c0_85, %c0_86], %229 {strides = array<i32>} : memref<8x8x384xf32, #tpu.memory_space<vmem>>, vector<1x8x384xf32>,
    %c0_87 = arith.constant 0 : index
    %c0_88 = arith.constant 0 : index
    %230 = vector.load %arg16[%c0_87, %c0_88] : memref<128x384xbf16, #tpu.memory_space<vmem>>, vector<128x384xbf16>
    %231 = arith.extf %230 : vector<128x384xbf16> to vector<128x384xf32>
    %c0_89 = arith.constant 0 : index
    %c0_90 = arith.constant 0 : index
    %232 = vector.load %arg18[%c0_89, %c0_90] : memref<1x384xf32, #tpu.memory_space<vmem>>, vector<1x384xf32>
    %cst_91 = arith.constant 0.000000e+00 : f32
    %233 = vector.broadcast %cst_91 : f32 to vector<8x128xf32>
    %c0_92 = arith.constant 0 : index
    %c0_93 = arith.constant 0 : index
    %c0_94 = arith.constant 0 : index
    %234 = vector.load %arg28[%c0_92, %c0_93, %c0_94] : memref<8x8x384xf32, #tpu.memory_space<vmem>>, vector<1x8x384xf32>
    %235 = vector.shape_cast %234 : vector<1x8x384xf32> to vector<8x384xf32>
    %cst_95 = arith.constant dense<0.000000e+00> : vector<8x384xf32>
    %236 = tpu.matmul %233, %231, %cst_95 {dimension_numbers = #tpu.dot_dimension_numbers<[1], [0], [0], [1], [0, 0, 1, 1], [], []>} : vector<8x128xf32>, vector<128x384xf32>, vector<8x384xf32> -> vector<8x384xf32>
    %237 = vector.broadcast %232 : vector<1x384xf32> to vector<8x384xf32>
    %238 = arith.addf %236, %237 : vector<8x384xf32>
    %239 = vector.extract_strided_slice %235 {offsets = [0, 0], sizes = [8, 128], strides = [1, 1]} : vector<8x384xf32> to vector<8x128xf32>
    %240 = vector.extract_strided_slice %238 {offsets = [0, 0], sizes = [8, 128], strides = [1, 1]} : vector<8x384xf32> to vector<8x128xf32>
    %241 = arith.addf %239, %240 : vector<8x128xf32>
    %cst_96 = arith.constant 0.000000e+00 : f32
    %242 = vector.broadcast %cst_96 : f32 to vector<8x128xf32>
    %243 = arith.subf %242, %241 : vector<8x128xf32>
    %244 = math.exp %243 : vector<8x128xf32>
    %cst_97 = arith.constant 1.000000e+00 : f32
    %245 = vector.broadcast %cst_97 : f32 to vector<8x128xf32>
    %246 = arith.addf %245, %244 : vector<8x128xf32>
    %cst_98 = arith.constant 1.000000e+00 : f32
    %247 = vector.broadcast %cst_98 : f32 to vector<8x128xf32>
    %248 = arith.divf %247, %246 : vector<8x128xf32>
    %249 = vector.extract_strided_slice %235 {offsets = [0, 128], sizes = [8, 128], strides = [1, 1]} : vector<8x384xf32> to vector<8x128xf32>
    %250 = vector.extract_strided_slice %238 {offsets = [0, 128], sizes = [8, 128], strides = [1, 1]} : vector<8x384xf32> to vector<8x128xf32>
    %251 = arith.addf %249, %250 : vector<8x128xf32>
    %cst_99 = arith.constant 0.000000e+00 : f32
    %252 = vector.broadcast %cst_99 : f32 to vector<8x128xf32>
    %253 = arith.subf %252, %251 : vector<8x128xf32>
    %254 = math.exp %253 : vector<8x128xf32>
    %cst_100 = arith.constant 1.000000e+00 : f32
    %255 = vector.broadcast %cst_100 : f32 to vector<8x128xf32>
    %256 = arith.addf %255, %254 : vector<8x128xf32>
    %cst_101 = arith.constant 1.000000e+00 : f32
    %257 = vector.broadcast %cst_101 : f32 to vector<8x128xf32>
    %258 = arith.divf %257, %256 : vector<8x128xf32>
    %259 = vector.extract_strided_slice %235 {offsets = [0, 256], sizes = [8, 128], strides = [1, 1]} : vector<8x384xf32> to vector<8x128xf32>
    %260 = vector.extract_strided_slice %238 {offsets = [0, 256], sizes = [8, 128], strides = [1, 1]} : vector<8x384xf32> to vector<8x128xf32>
    %261 = arith.mulf %248, %260 : vector<8x128xf32>
    %262 = arith.addf %259, %261 : vector<8x128xf32>
    %263 = math.tanh %262 : vector<8x128xf32>
    %cst_102 = arith.constant 1.000000e+00 : f32
    %264 = vector.broadcast %cst_102 : f32 to vector<8x128xf32>
    %265 = arith.subf %264, %258 : vector<8x128xf32>
    %266 = arith.mulf %265, %263 : vector<8x128xf32>
    %267 = arith.mulf %258, %233 : vector<8x128xf32>
    %268 = arith.addf %266, %267 : vector<8x128xf32>
    %c1_103 = arith.constant 1 : index
    %c0_104 = arith.constant 0 : index
    %c0_105 = arith.constant 0 : index
    %269 = vector.load %arg28[%c1_103, %c0_104, %c0_105] : memref<8x8x384xf32, #tpu.memory_space<vmem>>, vector<1x8x384xf32>
    %270 = vector.shape_cast %269 : vector<1x8x384xf32> to vector<8x384xf32>
    %cst_106 = arith.constant dense<0.000000e+00> : vector<8x384xf32>
    %271 = tpu.matmul %268, %231, %cst_106 {dimension_numbers = #tpu.dot_dimension_numbers<[1], [0], [0], [1], [0, 0, 1, 1], [], []>} : vector<8x128xf32>, vector<128x384xf32>, vector<8x384xf32> -> vector<8x384xf32>
    %272 = vector.broadcast %232 : vector<1x384xf32> to vector<8x384xf32>
    %273 = arith.addf %271, %272 : vector<8x384xf32>
    %274 = vector.extract_strided_slice %270 {offsets = [0, 0], sizes = [8, 128], strides = [1, 1]} : vector<8x384xf32> to vector<8x128xf32>
    %275 = vector.extract_strided_slice %273 {offsets = [0, 0], sizes = [8, 128], strides = [1, 1]} : vector<8x384xf32> to vector<8x128xf32>
    %276 = arith.addf %274, %275 : vector<8x128xf32>
    %cst_107 = arith.constant 0.000000e+00 : f32
    %277 = vector.broadcast %cst_107 : f32 to vector<8x128xf32>
    %278 = arith.subf %277, %276 : vector<8x128xf32>
    %279 = math.exp %278 : vector<8x128xf32>
    %cst_108 = arith.constant 1.000000e+00 : f32
    %280 = vector.broadcast %cst_108 : f32 to vector<8x128xf32>
    %281 = arith.addf %280, %279 : vector<8x128xf32>
    %cst_109 = arith.constant 1.000000e+00 : f32
    %282 = vector.broadcast %cst_109 : f32 to vector<8x128xf32>
    %283 = arith.divf %282, %281 : vector<8x128xf32>
    %284 = vector.extract_strided_slice %270 {offsets = [0, 128], sizes = [8, 128], strides = [1, 1]} : vector<8x384xf32> to vector<8x128xf32>
    %285 = vector.extract_strided_slice %273 {offsets = [0, 128], sizes = [8, 128], strides = [1, 1]} : vector<8x384xf32> to vector<8x128xf32>
    %286 = arith.addf %284, %285 : vector<8x128xf32>
    %cst_110 = arith.constant 0.000000e+00 : f32
    %287 = vector.broadcast %cst_110 : f32 to vector<8x128xf32>
    %288 = arith.subf %287, %286 : vector<8x128xf32>
    %289 = math.exp %288 : vector<8x128xf32>
    %cst_111 = arith.constant 1.000000e+00 : f32
    %290 = vector.broadcast %cst_111 : f32 to vector<8x128xf32>
    %291 = arith.addf %290, %289 : vector<8x128xf32>
    %cst_112 = arith.constant 1.000000e+00 : f32
    %292 = vector.broadcast %cst_112 : f32 to vector<8x128xf32>
    %293 = arith.divf %292, %291 : vector<8x128xf32>
    %294 = vector.extract_strided_slice %270 {offsets = [0, 256], sizes = [8, 128], strides = [1, 1]} : vector<8x384xf32> to vector<8x128xf32>
    %295 = vector.extract_strided_slice %273 {offsets = [0, 256], sizes = [8, 128], strides = [1, 1]} : vector<8x384xf32> to vector<8x128xf32>
    %296 = arith.mulf %283, %295 : vector<8x128xf32>
    %297 = arith.addf %294, %296 : vector<8x128xf32>
    %298 = math.tanh %297 : vector<8x128xf32>
    %cst_113 = arith.constant 1.000000e+00 : f32
    %299 = vector.broadcast %cst_113 : f32 to vector<8x128xf32>
    %300 = arith.subf %299, %293 : vector<8x128xf32>
    %301 = arith.mulf %300, %298 : vector<8x128xf32>
    %302 = arith.mulf %293, %268 : vector<8x128xf32>
    %303 = arith.addf %301, %302 : vector<8x128xf32>
    %c2_114 = arith.constant 2 : index
    %c0_115 = arith.constant 0 : index
    %c0_116 = arith.constant 0 : index
    %304 = vector.load %arg28[%c2_114, %c0_115, %c0_116] : memref<8x8x384xf32, #tpu.memory_space<vmem>>, vector<1x8x384xf32>
    %305 = vector.shape_cast %304 : vector<1x8x384xf32> to vector<8x384xf32>
    %cst_117 = arith.constant dense<0.000000e+00> : vector<8x384xf32>
    %306 = tpu.matmul %303, %231, %cst_117 {dimension_numbers = #tpu.dot_dimension_numbers<[1], [0], [0], [1], [0, 0, 1, 1], [], []>} : vector<8x128xf32>, vector<128x384xf32>, vector<8x384xf32> -> vector<8x384xf32>
    %307 = vector.broadcast %232 : vector<1x384xf32> to vector<8x384xf32>
    %308 = arith.addf %306, %307 : vector<8x384xf32>
    %309 = vector.extract_strided_slice %305 {offsets = [0, 0], sizes = [8, 128], strides = [1, 1]} : vector<8x384xf32> to vector<8x128xf32>
    %310 = vector.extract_strided_slice %308 {offsets = [0, 0], sizes = [8, 128], strides = [1, 1]} : vector<8x384xf32> to vector<8x128xf32>
    %311 = arith.addf %309, %310 : vector<8x128xf32>
    %cst_118 = arith.constant 0.000000e+00 : f32
    %312 = vector.broadcast %cst_118 : f32 to vector<8x128xf32>
    %313 = arith.subf %312, %311 : vector<8x128xf32>
    %314 = math.exp %313 : vector<8x128xf32>
    %cst_119 = arith.constant 1.000000e+00 : f32
    %315 = vector.broadcast %cst_119 : f32 to vector<8x128xf32>
    %316 = arith.addf %315, %314 : vector<8x128xf32>
    %cst_120 = arith.constant 1.000000e+00 : f32
    %317 = vector.broadcast %cst_120 : f32 to vector<8x128xf32>
    %318 = arith.divf %317, %316 : vector<8x128xf32>
    %319 = vector.extract_strided_slice %305 {offsets = [0, 128], sizes = [8, 128], strides = [1, 1]} : vector<8x384xf32> to vector<8x128xf32>
    %320 = vector.extract_strided_slice %308 {offsets = [0, 128], sizes = [8, 128], strides = [1, 1]} : vector<8x384xf32> to vector<8x128xf32>
    %321 = arith.addf %319, %320 : vector<8x128xf32>
    %cst_121 = arith.constant 0.000000e+00 : f32
    %322 = vector.broadcast %cst_121 : f32 to vector<8x128xf32>
    %323 = arith.subf %322, %321 : vector<8x128xf32>
    %324 = math.exp %323 : vector<8x128xf32>
    %cst_122 = arith.constant 1.000000e+00 : f32
    %325 = vector.broadcast %cst_122 : f32 to vector<8x128xf32>
    %326 = arith.addf %325, %324 : vector<8x128xf32>
    %cst_123 = arith.constant 1.000000e+00 : f32
    %327 = vector.broadcast %cst_123 : f32 to vector<8x128xf32>
    %328 = arith.divf %327, %326 : vector<8x128xf32>
    %329 = vector.extract_strided_slice %305 {offsets = [0, 256], sizes = [8, 128], strides = [1, 1]} : vector<8x384xf32> to vector<8x128xf32>
    %330 = vector.extract_strided_slice %308 {offsets = [0, 256], sizes = [8, 128], strides = [1, 1]} : vector<8x384xf32> to vector<8x128xf32>
    %331 = arith.mulf %318, %330 : vector<8x128xf32>
    %332 = arith.addf %329, %331 : vector<8x128xf32>
    %333 = math.tanh %332 : vector<8x128xf32>
    %cst_124 = arith.constant 1.000000e+00 : f32
    %334 = vector.broadcast %cst_124 : f32 to vector<8x128xf32>
    %335 = arith.subf %334, %328 : vector<8x128xf32>
    %336 = arith.mulf %335, %333 : vector<8x128xf32>
    %337 = arith.mulf %328, %303 : vector<8x128xf32>
    %338 = arith.addf %336, %337 : vector<8x128xf32>
    %c3_125 = arith.constant 3 : index
    %c0_126 = arith.constant 0 : index
    %c0_127 = arith.constant 0 : index
    %339 = vector.load %arg28[%c3_125, %c0_126, %c0_127] : memref<8x8x384xf32, #tpu.memory_space<vmem>>, vector<1x8x384xf32>
    %340 = vector.shape_cast %339 : vector<1x8x384xf32> to vector<8x384xf32>
    %cst_128 = arith.constant dense<0.000000e+00> : vector<8x384xf32>
    %341 = tpu.matmul %338, %231, %cst_128 {dimension_numbers = #tpu.dot_dimension_numbers<[1], [0], [0], [1], [0, 0, 1, 1], [], []>} : vector<8x128xf32>, vector<128x384xf32>, vector<8x384xf32> -> vector<8x384xf32>
    %342 = vector.broadcast %232 : vector<1x384xf32> to vector<8x384xf32>
    %343 = arith.addf %341, %342 : vector<8x384xf32>
    %344 = vector.extract_strided_slice %340 {offsets = [0, 0], sizes = [8, 128], strides = [1, 1]} : vector<8x384xf32> to vector<8x128xf32>
    %345 = vector.extract_strided_slice %343 {offsets = [0, 0], sizes = [8, 128], strides = [1, 1]} : vector<8x384xf32> to vector<8x128xf32>
    %346 = arith.addf %344, %345 : vector<8x128xf32>
    %cst_129 = arith.constant 0.000000e+00 : f32
    %347 = vector.broadcast %cst_129 : f32 to vector<8x128xf32>
    %348 = arith.subf %347, %346 : vector<8x128xf32>
    %349 = math.exp %348 : vector<8x128xf32>
    %cst_130 = arith.constant 1.000000e+00 : f32
    %350 = vector.broadcast %cst_130 : f32 to vector<8x128xf32>
    %351 = arith.addf %350, %349 : vector<8x128xf32>
    %cst_131 = arith.constant 1.000000e+00 : f32
    %352 = vector.broadcast %cst_131 : f32 to vector<8x128xf32>
    %353 = arith.divf %352, %351 : vector<8x128xf32>
    %354 = vector.extract_strided_slice %340 {offsets = [0, 128], sizes = [8, 128], strides = [1, 1]} : vector<8x384xf32> to vector<8x128xf32>
    %355 = vector.extract_strided_slice %343 {offsets = [0, 128], sizes = [8, 128], strides = [1, 1]} : vector<8x384xf32> to vector<8x128xf32>
    %356 = arith.addf %354, %355 : vector<8x128xf32>
    %cst_132 = arith.constant 0.000000e+00 : f32
    %357 = vector.broadcast %cst_132 : f32 to vector<8x128xf32>
    %358 = arith.subf %357, %356 : vector<8x128xf32>
    %359 = math.exp %358 : vector<8x128xf32>
    %cst_133 = arith.constant 1.000000e+00 : f32
    %360 = vector.broadcast %cst_133 : f32 to vector<8x128xf32>
    %361 = arith.addf %360, %359 : vector<8x128xf32>
    %cst_134 = arith.constant 1.000000e+00 : f32
    %362 = vector.broadcast %cst_134 : f32 to vector<8x128xf32>
    %363 = arith.divf %362, %361 : vector<8x128xf32>
    %364 = vector.extract_strided_slice %340 {offsets = [0, 256], sizes = [8, 128], strides = [1, 1]} : vector<8x384xf32> to vector<8x128xf32>
    %365 = vector.extract_strided_slice %343 {offsets = [0, 256], sizes = [8, 128], strides = [1, 1]} : vector<8x384xf32> to vector<8x128xf32>
    %366 = arith.mulf %353, %365 : vector<8x128xf32>
    %367 = arith.addf %364, %366 : vector<8x128xf32>
    %368 = math.tanh %367 : vector<8x128xf32>
    %cst_135 = arith.constant 1.000000e+00 : f32
    %369 = vector.broadcast %cst_135 : f32 to vector<8x128xf32>
    %370 = arith.subf %369, %363 : vector<8x128xf32>
    %371 = arith.mulf %370, %368 : vector<8x128xf32>
    %372 = arith.mulf %363, %338 : vector<8x128xf32>
    %373 = arith.addf %371, %372 : vector<8x128xf32>
    %c4_136 = arith.constant 4 : index
    %c0_137 = arith.constant 0 : index
    %c0_138 = arith.constant 0 : index
    %374 = vector.load %arg28[%c4_136, %c0_137, %c0_138] : memref<8x8x384xf32, #tpu.memory_space<vmem>>, vector<1x8x384xf32>
    %375 = vector.shape_cast %374 : vector<1x8x384xf32> to vector<8x384xf32>
    %cst_139 = arith.constant dense<0.000000e+00> : vector<8x384xf32>
    %376 = tpu.matmul %373, %231, %cst_139 {dimension_numbers = #tpu.dot_dimension_numbers<[1], [0], [0], [1], [0, 0, 1, 1], [], []>} : vector<8x128xf32>, vector<128x384xf32>, vector<8x384xf32> -> vector<8x384xf32>
    %377 = vector.broadcast %232 : vector<1x384xf32> to vector<8x384xf32>
    %378 = arith.addf %376, %377 : vector<8x384xf32>
    %379 = vector.extract_strided_slice %375 {offsets = [0, 0], sizes = [8, 128], strides = [1, 1]} : vector<8x384xf32> to vector<8x128xf32>
    %380 = vector.extract_strided_slice %378 {offsets = [0, 0], sizes = [8, 128], strides = [1, 1]} : vector<8x384xf32> to vector<8x128xf32>
    %381 = arith.addf %379, %380 : vector<8x128xf32>
    %cst_140 = arith.constant 0.000000e+00 : f32
    %382 = vector.broadcast %cst_140 : f32 to vector<8x128xf32>
    %383 = arith.subf %382, %381 : vector<8x128xf32>
    %384 = math.exp %383 : vector<8x128xf32>
    %cst_141 = arith.constant 1.000000e+00 : f32
    %385 = vector.broadcast %cst_141 : f32 to vector<8x128xf32>
    %386 = arith.addf %385, %384 : vector<8x128xf32>
    %cst_142 = arith.constant 1.000000e+00 : f32
    %387 = vector.broadcast %cst_142 : f32 to vector<8x128xf32>
    %388 = arith.divf %387, %386 : vector<8x128xf32>
    %389 = vector.extract_strided_slice %375 {offsets = [0, 128], sizes = [8, 128], strides = [1, 1]} : vector<8x384xf32> to vector<8x128xf32>
    %390 = vector.extract_strided_slice %378 {offsets = [0, 128], sizes = [8, 128], strides = [1, 1]} : vector<8x384xf32> to vector<8x128xf32>
    %391 = arith.addf %389, %390 : vector<8x128xf32>
    %cst_143 = arith.constant 0.000000e+00 : f32
    %392 = vector.broadcast %cst_143 : f32 to vector<8x128xf32>
    %393 = arith.subf %392, %391 : vector<8x128xf32>
    %394 = math.exp %393 : vector<8x128xf32>
    %cst_144 = arith.constant 1.000000e+00 : f32
    %395 = vector.broadcast %cst_144 : f32 to vector<8x128xf32>
    %396 = arith.addf %395, %394 : vector<8x128xf32>
    %cst_145 = arith.constant 1.000000e+00 : f32
    %397 = vector.broadcast %cst_145 : f32 to vector<8x128xf32>
    %398 = arith.divf %397, %396 : vector<8x128xf32>
    %399 = vector.extract_strided_slice %375 {offsets = [0, 256], sizes = [8, 128], strides = [1, 1]} : vector<8x384xf32> to vector<8x128xf32>
    %400 = vector.extract_strided_slice %378 {offsets = [0, 256], sizes = [8, 128], strides = [1, 1]} : vector<8x384xf32> to vector<8x128xf32>
    %401 = arith.mulf %388, %400 : vector<8x128xf32>
    %402 = arith.addf %399, %401 : vector<8x128xf32>
    %403 = math.tanh %402 : vector<8x128xf32>
    %cst_146 = arith.constant 1.000000e+00 : f32
    %404 = vector.broadcast %cst_146 : f32 to vector<8x128xf32>
    %405 = arith.subf %404, %398 : vector<8x128xf32>
    %406 = arith.mulf %405, %403 : vector<8x128xf32>
    %407 = arith.mulf %398, %373 : vector<8x128xf32>
    %408 = arith.addf %406, %407 : vector<8x128xf32>
    %c5_147 = arith.constant 5 : index
    %c0_148 = arith.constant 0 : index
    %c0_149 = arith.constant 0 : index
    %409 = vector.load %arg28[%c5_147, %c0_148, %c0_149] : memref<8x8x384xf32, #tpu.memory_space<vmem>>, vector<1x8x384xf32>
    %410 = vector.shape_cast %409 : vector<1x8x384xf32> to vector<8x384xf32>
    %cst_150 = arith.constant dense<0.000000e+00> : vector<8x384xf32>
    %411 = tpu.matmul %408, %231, %cst_150 {dimension_numbers = #tpu.dot_dimension_numbers<[1], [0], [0], [1], [0, 0, 1, 1], [], []>} : vector<8x128xf32>, vector<128x384xf32>, vector<8x384xf32> -> vector<8x384xf32>
    %412 = vector.broadcast %232 : vector<1x384xf32> to vector<8x384xf32>
    %413 = arith.addf %411, %412 : vector<8x384xf32>
    %414 = vector.extract_strided_slice %410 {offsets = [0, 0], sizes = [8, 128], strides = [1, 1]} : vector<8x384xf32> to vector<8x128xf32>
    %415 = vector.extract_strided_slice %413 {offsets = [0, 0], sizes = [8, 128], strides = [1, 1]} : vector<8x384xf32> to vector<8x128xf32>
    %416 = arith.addf %414, %415 : vector<8x128xf32>
    %cst_151 = arith.constant 0.000000e+00 : f32
    %417 = vector.broadcast %cst_151 : f32 to vector<8x128xf32>
    %418 = arith.subf %417, %416 : vector<8x128xf32>
    %419 = math.exp %418 : vector<8x128xf32>
    %cst_152 = arith.constant 1.000000e+00 : f32
    %420 = vector.broadcast %cst_152 : f32 to vector<8x128xf32>
    %421 = arith.addf %420, %419 : vector<8x128xf32>
    %cst_153 = arith.constant 1.000000e+00 : f32
    %422 = vector.broadcast %cst_153 : f32 to vector<8x128xf32>
    %423 = arith.divf %422, %421 : vector<8x128xf32>
    %424 = vector.extract_strided_slice %410 {offsets = [0, 128], sizes = [8, 128], strides = [1, 1]} : vector<8x384xf32> to vector<8x128xf32>
    %425 = vector.extract_strided_slice %413 {offsets = [0, 128], sizes = [8, 128], strides = [1, 1]} : vector<8x384xf32> to vector<8x128xf32>
    %426 = arith.addf %424, %425 : vector<8x128xf32>
    %cst_154 = arith.constant 0.000000e+00 : f32
    %427 = vector.broadcast %cst_154 : f32 to vector<8x128xf32>
    %428 = arith.subf %427, %426 : vector<8x128xf32>
    %429 = math.exp %428 : vector<8x128xf32>
    %cst_155 = arith.constant 1.000000e+00 : f32
    %430 = vector.broadcast %cst_155 : f32 to vector<8x128xf32>
    %431 = arith.addf %430, %429 : vector<8x128xf32>
    %cst_156 = arith.constant 1.000000e+00 : f32
    %432 = vector.broadcast %cst_156 : f32 to vector<8x128xf32>
    %433 = arith.divf %432, %431 : vector<8x128xf32>
    %434 = vector.extract_strided_slice %410 {offsets = [0, 256], sizes = [8, 128], strides = [1, 1]} : vector<8x384xf32> to vector<8x128xf32>
    %435 = vector.extract_strided_slice %413 {offsets = [0, 256], sizes = [8, 128], strides = [1, 1]} : vector<8x384xf32> to vector<8x128xf32>
    %436 = arith.mulf %423, %435 : vector<8x128xf32>
    %437 = arith.addf %434, %436 : vector<8x128xf32>
    %438 = math.tanh %437 : vector<8x128xf32>
    %cst_157 = arith.constant 1.000000e+00 : f32
    %439 = vector.broadcast %cst_157 : f32 to vector<8x128xf32>
    %440 = arith.subf %439, %433 : vector<8x128xf32>
    %441 = arith.mulf %440, %438 : vector<8x128xf32>
    %442 = arith.mulf %433, %408 : vector<8x128xf32>
    %443 = arith.addf %441, %442 : vector<8x128xf32>
    %c6_158 = arith.constant 6 : index
    %c0_159 = arith.constant 0 : index
    %c0_160 = arith.constant 0 : index
    %444 = vector.load %arg28[%c6_158, %c0_159, %c0_160] : memref<8x8x384xf32, #tpu.memory_space<vmem>>, vector<1x8x384xf32>
    %445 = vector.shape_cast %444 : vector<1x8x384xf32> to vector<8x384xf32>
    %cst_161 = arith.constant dense<0.000000e+00> : vector<8x384xf32>
    %446 = tpu.matmul %443, %231, %cst_161 {dimension_numbers = #tpu.dot_dimension_numbers<[1], [0], [0], [1], [0, 0, 1, 1], [], []>} : vector<8x128xf32>, vector<128x384xf32>, vector<8x384xf32> -> vector<8x384xf32>
    %447 = vector.broadcast %232 : vector<1x384xf32> to vector<8x384xf32>
    %448 = arith.addf %446, %447 : vector<8x384xf32>
    %449 = vector.extract_strided_slice %445 {offsets = [0, 0], sizes = [8, 128], strides = [1, 1]} : vector<8x384xf32> to vector<8x128xf32>
    %450 = vector.extract_strided_slice %448 {offsets = [0, 0], sizes = [8, 128], strides = [1, 1]} : vector<8x384xf32> to vector<8x128xf32>
    %451 = arith.addf %449, %450 : vector<8x128xf32>
    %cst_162 = arith.constant 0.000000e+00 : f32
    %452 = vector.broadcast %cst_162 : f32 to vector<8x128xf32>
    %453 = arith.subf %452, %451 : vector<8x128xf32>
    %454 = math.exp %453 : vector<8x128xf32>
    %cst_163 = arith.constant 1.000000e+00 : f32
    %455 = vector.broadcast %cst_163 : f32 to vector<8x128xf32>
    %456 = arith.addf %455, %454 : vector<8x128xf32>
    %cst_164 = arith.constant 1.000000e+00 : f32
    %457 = vector.broadcast %cst_164 : f32 to vector<8x128xf32>
    %458 = arith.divf %457, %456 : vector<8x128xf32>
    %459 = vector.extract_strided_slice %445 {offsets = [0, 128], sizes = [8, 128], strides = [1, 1]} : vector<8x384xf32> to vector<8x128xf32>
    %460 = vector.extract_strided_slice %448 {offsets = [0, 128], sizes = [8, 128], strides = [1, 1]} : vector<8x384xf32> to vector<8x128xf32>
    %461 = arith.addf %459, %460 : vector<8x128xf32>
    %cst_165 = arith.constant 0.000000e+00 : f32
    %462 = vector.broadcast %cst_165 : f32 to vector<8x128xf32>
    %463 = arith.subf %462, %461 : vector<8x128xf32>
    %464 = math.exp %463 : vector<8x128xf32>
    %cst_166 = arith.constant 1.000000e+00 : f32
    %465 = vector.broadcast %cst_166 : f32 to vector<8x128xf32>
    %466 = arith.addf %465, %464 : vector<8x128xf32>
    %cst_167 = arith.constant 1.000000e+00 : f32
    %467 = vector.broadcast %cst_167 : f32 to vector<8x128xf32>
    %468 = arith.divf %467, %466 : vector<8x128xf32>
    %469 = vector.extract_strided_slice %445 {offsets = [0, 256], sizes = [8, 128], strides = [1, 1]} : vector<8x384xf32> to vector<8x128xf32>
    %470 = vector.extract_strided_slice %448 {offsets = [0, 256], sizes = [8, 128], strides = [1, 1]} : vector<8x384xf32> to vector<8x128xf32>
    %471 = arith.mulf %458, %470 : vector<8x128xf32>
    %472 = arith.addf %469, %471 : vector<8x128xf32>
    %473 = math.tanh %472 : vector<8x128xf32>
    %cst_168 = arith.constant 1.000000e+00 : f32
    %474 = vector.broadcast %cst_168 : f32 to vector<8x128xf32>
    %475 = arith.subf %474, %468 : vector<8x128xf32>
    %476 = arith.mulf %475, %473 : vector<8x128xf32>
    %477 = arith.mulf %468, %443 : vector<8x128xf32>
    %478 = arith.addf %476, %477 : vector<8x128xf32>
    %c7_169 = arith.constant 7 : index
    %c0_170 = arith.constant 0 : index
    %c0_171 = arith.constant 0 : index
    %479 = vector.load %arg28[%c7_169, %c0_170, %c0_171] : memref<8x8x384xf32, #tpu.memory_space<vmem>>, vector<1x8x384xf32>
    %480 = vector.shape_cast %479 : vector<1x8x384xf32> to vector<8x384xf32>
    %cst_172 = arith.constant dense<0.000000e+00> : vector<8x384xf32>
    %481 = tpu.matmul %478, %231, %cst_172 {dimension_numbers = #tpu.dot_dimension_numbers<[1], [0], [0], [1], [0, 0, 1, 1], [], []>} : vector<8x128xf32>, vector<128x384xf32>, vector<8x384xf32> -> vector<8x384xf32>
    %482 = vector.broadcast %232 : vector<1x384xf32> to vector<8x384xf32>
    %483 = arith.addf %481, %482 : vector<8x384xf32>
    %484 = vector.extract_strided_slice %480 {offsets = [0, 0], sizes = [8, 128], strides = [1, 1]} : vector<8x384xf32> to vector<8x128xf32>
    %485 = vector.extract_strided_slice %483 {offsets = [0, 0], sizes = [8, 128], strides = [1, 1]} : vector<8x384xf32> to vector<8x128xf32>
    %486 = arith.addf %484, %485 : vector<8x128xf32>
    %cst_173 = arith.constant 0.000000e+00 : f32
    %487 = vector.broadcast %cst_173 : f32 to vector<8x128xf32>
    %488 = arith.subf %487, %486 : vector<8x128xf32>
    %489 = math.exp %488 : vector<8x128xf32>
    %cst_174 = arith.constant 1.000000e+00 : f32
    %490 = vector.broadcast %cst_174 : f32 to vector<8x128xf32>
    %491 = arith.addf %490, %489 : vector<8x128xf32>
    %cst_175 = arith.constant 1.000000e+00 : f32
    %492 = vector.broadcast %cst_175 : f32 to vector<8x128xf32>
    %493 = arith.divf %492, %491 : vector<8x128xf32>
    %494 = vector.extract_strided_slice %480 {offsets = [0, 128], sizes = [8, 128], strides = [1, 1]} : vector<8x384xf32> to vector<8x128xf32>
    %495 = vector.extract_strided_slice %483 {offsets = [0, 128], sizes = [8, 128], strides = [1, 1]} : vector<8x384xf32> to vector<8x128xf32>
    %496 = arith.addf %494, %495 : vector<8x128xf32>
    %cst_176 = arith.constant 0.000000e+00 : f32
    %497 = vector.broadcast %cst_176 : f32 to vector<8x128xf32>
    %498 = arith.subf %497, %496 : vector<8x128xf32>
    %499 = math.exp %498 : vector<8x128xf32>
    %cst_177 = arith.constant 1.000000e+00 : f32
    %500 = vector.broadcast %cst_177 : f32 to vector<8x128xf32>
    %501 = arith.addf %500, %499 : vector<8x128xf32>
    %cst_178 = arith.constant 1.000000e+00 : f32
    %502 = vector.broadcast %cst_178 : f32 to vector<8x128xf32>
    %503 = arith.divf %502, %501 : vector<8x128xf32>
    %504 = vector.extract_strided_slice %480 {offsets = [0, 256], sizes = [8, 128], strides = [1, 1]} : vector<8x384xf32> to vector<8x128xf32>
    %505 = vector.extract_strided_slice %483 {offsets = [0, 256], sizes = [8, 128], strides = [1, 1]} : vector<8x384xf32> to vector<8x128xf32>
    %506 = arith.mulf %493, %505 : vector<8x128xf32>
    %507 = arith.addf %504, %506 : vector<8x128xf32>
    %508 = math.tanh %507 : vector<8x128xf32>
    %cst_179 = arith.constant 1.000000e+00 : f32
    %509 = vector.broadcast %cst_179 : f32 to vector<8x128xf32>
    %510 = arith.subf %509, %503 : vector<8x128xf32>
    %511 = arith.mulf %510, %508 : vector<8x128xf32>
    %512 = arith.mulf %503, %478 : vector<8x128xf32>
    %513 = arith.addf %511, %512 : vector<8x128xf32>
    %c0_180 = arith.constant 0 : index
    %c0_181 = arith.constant 0 : index
    %514 = vector.load %arg19[%c0_180, %c0_181] : memref<128x128xbf16, #tpu.memory_space<vmem>>, vector<128x128xbf16>
    %515 = arith.extf %514 : vector<128x128xbf16> to vector<128x128xf32>
    %cst_182 = arith.constant dense<0.000000e+00> : vector<8x128xf32>
    %516 = tpu.matmul %182, %515, %cst_182 {dimension_numbers = #tpu.dot_dimension_numbers<[1], [0], [0], [1], [0, 0, 1, 1], [], []>} : vector<8x128xf32>, vector<128x128xf32>, vector<8x128xf32> -> vector<8x128xf32>
    %c0_183 = arith.constant 0 : index
    %c0_184 = arith.constant 0 : index
    %517 = vector.load %arg20[%c0_183, %c0_184] : memref<128x128xbf16, #tpu.memory_space<vmem>>, vector<128x128xbf16>
    %518 = arith.extf %517 : vector<128x128xbf16> to vector<128x128xf32>
    %cst_185 = arith.constant dense<0.000000e+00> : vector<8x128xf32>
    %519 = tpu.matmul %513, %518, %cst_185 {dimension_numbers = #tpu.dot_dimension_numbers<[1], [0], [0], [1], [0, 0, 1, 1], [], []>} : vector<8x128xf32>, vector<128x128xf32>, vector<8x128xf32> -> vector<8x128xf32>
    %520 = arith.addf %516, %519 : vector<8x128xf32>
    %c0_186 = arith.constant 0 : index
    %c0_187 = arith.constant 0 : index
    %521 = vector.load %arg21[%c0_186, %c0_187] : memref<1x128xf32, #tpu.memory_space<vmem>>, vector<1x128xf32>
    %522 = vector.broadcast %521 : vector<1x128xf32> to vector<8x128xf32>
    %523 = arith.addf %520, %522 : vector<8x128xf32>
    %524 = arith.addf %134, %523 : vector<8x128xf32>
    %c0_188 = arith.constant 0 : index
    %c0_189 = arith.constant 0 : index
    %525 = vector.load %arg22[%c0_188, %c0_189] : memref<1x128xf32, #tpu.memory_space<vmem>>, vector<1x128xf32>
    %c0_190 = arith.constant 0 : index
    %c0_191 = arith.constant 0 : index
    %526 = vector.load %arg23[%c0_190, %c0_191] : memref<1x128xf32, #tpu.memory_space<vmem>>, vector<1x128xf32>
    %cst_192 = arith.constant dense<0.000000e+00> : vector<8xf32>
    %527 = vector.multi_reduction <add>, %524, %cst_192 [1] : vector<8x128xf32> to vector<8xf32>
    %528 = vector.shape_cast %527 : vector<8xf32> to vector<8x1xf32>
    %cst_193 = arith.constant 1.280000e+02 : f32
    %529 = vector.broadcast %cst_193 : f32 to vector<8x1xf32>
    %530 = arith.divf %528, %529 : vector<8x1xf32>
    %531 = vector.broadcast %530 : vector<8x1xf32> to vector<8x128xf32>
    %532 = arith.subf %524, %531 : vector<8x128xf32>
    %533 = arith.mulf %532, %532 : vector<8x128xf32>
    %cst_194 = arith.constant dense<0.000000e+00> : vector<8xf32>
    %534 = vector.multi_reduction <add>, %533, %cst_194 [1] : vector<8x128xf32> to vector<8xf32>
    %535 = vector.shape_cast %534 : vector<8xf32> to vector<8x1xf32>
    %cst_195 = arith.constant 1.280000e+02 : f32
    %536 = vector.broadcast %cst_195 : f32 to vector<8x1xf32>
    %537 = arith.divf %535, %536 : vector<8x1xf32>
    %538 = vector.broadcast %530 : vector<8x1xf32> to vector<8x128xf32>
    %539 = arith.subf %524, %538 : vector<8x128xf32>
    %cst_196 = arith.constant 1.000000e-03 : f32
    %540 = vector.broadcast %cst_196 : f32 to vector<8x1xf32>
    %541 = arith.addf %537, %540 : vector<8x1xf32>
    %542 = math.rsqrt %541 : vector<8x1xf32>
    %543 = vector.broadcast %542 : vector<8x1xf32> to vector<8x128xf32>
    %544 = arith.mulf %539, %543 : vector<8x128xf32>
    %545 = vector.broadcast %525 : vector<1x128xf32> to vector<8x128xf32>
    %546 = arith.mulf %544, %545 : vector<8x128xf32>
    %547 = vector.broadcast %526 : vector<1x128xf32> to vector<8x128xf32>
    %548 = arith.addf %546, %547 : vector<8x128xf32>
    %549 = tpu.concatenate %134, %182, %513, %548 in 0 : vector<8x128xf32>, vector<8x128xf32>, vector<8x128xf32>, vector<8x128xf32> -> vector<32x128xf32>
    %550 = arith.mulf %549, %549 : vector<32x128xf32>
    %cst_197 = arith.constant dense<0.000000e+00> : vector<32xf32>
    %551 = vector.multi_reduction <add>, %550, %cst_197 [1] : vector<32x128xf32> to vector<32xf32>
    %552 = vector.shape_cast %551 : vector<32xf32> to vector<32x1xf32>
    %553 = math.rsqrt %552 : vector<32x1xf32>
    %554 = vector.broadcast %553 : vector<32x1xf32> to vector<32x128xf32>
    %555 = arith.mulf %549, %554 : vector<32x128xf32>
    %c0_198 = arith.constant 0 : index
    %c0_199 = arith.constant 0 : index
    %556 = vector.load %arg4[%c0_198, %c0_199] : memref<128x128xf32, #tpu.memory_space<vmem>>, vector<128x128xf32>
    %cst_200 = arith.constant dense<0.000000e+00> : vector<32x128xf32>
    %557 = tpu.matmul %555, %556, %cst_200 {dimension_numbers = #tpu.dot_dimension_numbers<[1], [0], [0], [1], [0, 0, 1, 1], [], []>} : vector<32x128xf32>, vector<128x128xf32>, vector<32x128xf32> -> vector<32x128xf32>
    %cst_201 = arith.constant 2.000000e+01 : f32
    %558 = vector.broadcast %cst_201 : f32 to vector<32x128xf32>
    %559 = arith.mulf %558, %557 : vector<32x128xf32>
    %560 = vector.extract_strided_slice %559 {offsets = [0, 0], sizes = [8, 128], strides = [1, 1]} : vector<32x128xf32> to vector<8x128xf32>
    %c0_202 = arith.constant 0 : index
    %c0_203 = arith.constant 0 : index
    %561 = vector.load %arg24[%c0_202, %c0_203] : memref<8x128xf32, #tpu.memory_space<vmem>>, vector<8x128xf32>
    tpu.vector_store %arg24[%c0_202, %c0_203], %560 {strides = array<i32>} : memref<8x128xf32, #tpu.memory_space<vmem>>, vector<8x128xf32>,
    %562 = vector.extract_strided_slice %559 {offsets = [8, 0], sizes = [8, 128], strides = [1, 1]} : vector<32x128xf32> to vector<8x128xf32>
    %c0_204 = arith.constant 0 : index
    %c0_205 = arith.constant 0 : index
    %563 = vector.load %arg25[%c0_204, %c0_205] : memref<8x128xf32, #tpu.memory_space<vmem>>, vector<8x128xf32>
    tpu.vector_store %arg25[%c0_204, %c0_205], %562 {strides = array<i32>} : memref<8x128xf32, #tpu.memory_space<vmem>>, vector<8x128xf32>,
    %564 = vector.extract_strided_slice %559 {offsets = [16, 0], sizes = [8, 128], strides = [1, 1]} : vector<32x128xf32> to vector<8x128xf32>
    %c0_206 = arith.constant 0 : index
    %c0_207 = arith.constant 0 : index
    %565 = vector.load %arg26[%c0_206, %c0_207] : memref<8x128xf32, #tpu.memory_space<vmem>>, vector<8x128xf32>
    tpu.vector_store %arg26[%c0_206, %c0_207], %564 {strides = array<i32>} : memref<8x128xf32, #tpu.memory_space<vmem>>, vector<8x128xf32>,
    %566 = vector.extract_strided_slice %559 {offsets = [24, 0], sizes = [8, 128], strides = [1, 1]} : vector<32x128xf32> to vector<8x128xf32>
    %c0_208 = arith.constant 0 : index
    %c0_209 = arith.constant 0 : index
    %567 = vector.load %arg27[%c0_208, %c0_209] : memref<8x128xf32, #tpu.memory_space<vmem>>, vector<8x128xf32>
    tpu.vector_store %arg27[%c0_208, %c0_209], %566 {strides = array<i32>} : memref<8x128xf32, #tpu.memory_space<vmem>>, vector<8x128xf32>,
    return
  }
  func.func @transform_0(%arg0: i32) -> (i32, i32) {
    %c0_i32 = arith.constant 0 : i32
    %c0_i32_0 = arith.constant 0 : i32
    %c0_i32_1 = arith.constant 0 : i32
    return %c0_i32, %c0_i32_0 : i32, i32
  }
  func.func @transform_1(%arg0: i32) -> (i32, i32) {
    %c0_i32 = arith.constant 0 : i32
    %c0_i32_0 = arith.constant 0 : i32
    %c0_i32_1 = arith.constant 0 : i32
    return %c0_i32, %c0_i32_0 : i32, i32
  }
  func.func @transform_2(%arg0: i32) -> (i32, i32) {
    %c0_i32 = arith.constant 0 : i32
    %c0_i32_0 = arith.constant 0 : i32
    %c0_i32_1 = arith.constant 0 : i32
    return %c0_i32, %c0_i32_0 : i32, i32
  }
  func.func @transform_3(%arg0: i32) -> (i32, i32) {
    %c0_i32 = arith.constant 0 : i32
    %c0_i32_0 = arith.constant 0 : i32
    %c0_i32_1 = arith.constant 0 : i32
    return %c0_i32, %c0_i32_0 : i32, i32
  }
  func.func @transform_4(%arg0: i32) -> (i32, i32) {
    %c0_i32 = arith.constant 0 : i32
    %c0_i32_0 = arith.constant 0 : i32
    %c0_i32_1 = arith.constant 0 : i32
    return %c0_i32, %c0_i32_0 : i32, i32
  }
  func.func @transform_5(%arg0: i32) -> (i32, i32) {
    %c0_i32 = arith.constant 0 : i32
    %c0_i32_0 = arith.constant 0 : i32
    %c0_i32_1 = arith.constant 0 : i32
    return %c0_i32, %c0_i32_0 : i32, i32
  }
  func.func @transform_6(%arg0: i32) -> (i32, i32) {
    %c0_i32 = arith.constant 0 : i32
    %c0_i32_0 = arith.constant 0 : i32
    %c0_i32_1 = arith.constant 0 : i32
    return %c0_i32, %c0_i32_0 : i32, i32
  }
  func.func @transform_7(%arg0: i32) -> (i32, i32) {
    %c0_i32 = arith.constant 0 : i32
    %c0_i32_0 = arith.constant 0 : i32
    %c0_i32_1 = arith.constant 0 : i32
    return %c0_i32, %c0_i32_0 : i32, i32
  }
  func.func @transform_8(%arg0: i32) -> (i32, i32) {
    %c0_i32 = arith.constant 0 : i32
    %c0_i32_0 = arith.constant 0 : i32
    %c0_i32_1 = arith.constant 0 : i32
    return %c0_i32, %c0_i32_0 : i32, i32
  }
  func.func @transform_9(%arg0: i32) -> (i32, i32) {
    %c0_i32 = arith.constant 0 : i32
    %c0_i32_0 = arith.constant 0 : i32
    %c0_i32_1 = arith.constant 0 : i32
    return %c0_i32, %c0_i32_0 : i32, i32
  }
  func.func @transform_10(%arg0: i32) -> (i32, i32, i32) {
    %c0_i32 = arith.constant 0 : i32
    %c0_i32_0 = arith.constant 0 : i32
    %c0_i32_1 = arith.constant 0 : i32
    %c0_i32_2 = arith.constant 0 : i32
    return %c0_i32, %c0_i32_0, %c0_i32_1 : i32, i32, i32
  }
  func.func @transform_11(%arg0: i32) -> (i32, i32) {
    %c0_i32 = arith.constant 0 : i32
    %c0_i32_0 = arith.constant 0 : i32
    %c0_i32_1 = arith.constant 0 : i32
    return %c0_i32, %c0_i32_0 : i32, i32
  }
  func.func @transform_12(%arg0: i32) -> (i32, i32) {
    %c0_i32 = arith.constant 0 : i32
    %c0_i32_0 = arith.constant 0 : i32
    %c0_i32_1 = arith.constant 0 : i32
    return %c0_i32, %c0_i32_0 : i32, i32
  }
  func.func @transform_13(%arg0: i32) -> (i32, i32) {
    %c0_i32 = arith.constant 0 : i32
    %c0_i32_0 = arith.constant 0 : i32
    %c0_i32_1 = arith.constant 0 : i32
    return %c0_i32, %c0_i32_0 : i32, i32
  }
  func.func @transform_14(%arg0: i32) -> (i32, i32) {
    %c0_i32 = arith.constant 0 : i32
    %c0_i32_0 = arith.constant 0 : i32
    %c0_i32_1 = arith.constant 0 : i32
    return %c0_i32, %c0_i32_0 : i32, i32
  }
  func.func @transform_15(%arg0: i32) -> (i32, i32) {
    %c0_i32 = arith.constant 0 : i32
    %c0_i32_0 = arith.constant 0 : i32
    %c0_i32_1 = arith.constant 0 : i32
    return %c0_i32, %c0_i32_0 : i32, i32
  }
  func.func @transform_16(%arg0: i32) -> (i32, i32) {
    %c0_i32 = arith.constant 0 : i32
    %c0_i32_0 = arith.constant 0 : i32
    %c0_i32_1 = arith.constant 0 : i32
    return %c0_i32, %c0_i32_0 : i32, i32
  }
  func.func @transform_17(%arg0: i32) -> (i32, i32) {
    %c0_i32 = arith.constant 0 : i32
    %c0_i32_0 = arith.constant 0 : i32
    %c0_i32_1 = arith.constant 0 : i32
    return %c0_i32, %c0_i32_0 : i32, i32
  }
  func.func @transform_18(%arg0: i32) -> (i32, i32) {
    %c0_i32 = arith.constant 0 : i32
    %c0_i32_0 = arith.constant 0 : i32
    %c0_i32_1 = arith.constant 0 : i32
    return %c0_i32, %c0_i32_0 : i32, i32
  }
  func.func @transform_19(%arg0: i32) -> (i32, i32) {
    %c0_i32 = arith.constant 0 : i32
    %c0_i32_0 = arith.constant 0 : i32
    %c0_i32_1 = arith.constant 0 : i32
    return %c0_i32, %c0_i32_0 : i32, i32
  }
  func.func @transform_20(%arg0: i32) -> (i32, i32) {
    %c0_i32 = arith.constant 0 : i32
    %c0_i32_0 = arith.constant 0 : i32
    %c0_i32_1 = arith.constant 0 : i32
    return %c0_i32, %c0_i32_0 : i32, i32
  }
  func.func @transform_21(%arg0: i32) -> (i32, i32) {
    %c0_i32 = arith.constant 0 : i32
    %c0_i32_0 = arith.constant 0 : i32
    %c0_i32_1 = arith.constant 0 : i32
    return %c0_i32, %c0_i32_0 : i32, i32
  }
  func.func @transform_22(%arg0: i32) -> (i32, i32) {
    %c0_i32 = arith.constant 0 : i32
    %c0_i32_0 = arith.constant 0 : i32
    %c0_i32_1 = arith.constant 0 : i32
    return %c0_i32, %c0_i32_0 : i32, i32
  }
  func.func @transform_23(%arg0: i32) -> (i32, i32) {
    %c0_i32 = arith.constant 0 : i32
    %c0_i32_0 = arith.constant 0 : i32
    %c0_i32_1 = arith.constant 0 : i32
    return %c0_i32, %c0_i32_0 : i32, i32
  }
  func.func @transform_24(%arg0: i32) -> (i32, i32) {
    %c0_i32 = arith.constant 0 : i32
    %c0_i32_0 = arith.constant 0 : i32
    %c0_i32_1 = arith.constant 0 : i32
    return %c0_i32, %c0_i32_0 : i32, i32
  }
  func.func @transform_25(%arg0: i32) -> (i32, i32) {
    %c0_i32 = arith.constant 0 : i32
    %c0_i32_0 = arith.constant 0 : i32
    %c0_i32_1 = arith.constant 0 : i32
    return %c0_i32, %c0_i32_0 : i32, i32
  }
  func.func @transform_26(%arg0: i32) -> (i32, i32) {
    %c0_i32 = arith.constant 0 : i32
    %c0_i32_0 = arith.constant 0 : i32
    %c0_i32_1 = arith.constant 0 : i32
    return %c0_i32, %c0_i32_0 : i32, i32
  }
}

</mosaic_0001>

<llo_original>
// kernel: tpu_custom_call.1
$region0: #{tpu_custom_call.1}
  #allocation0 [shape = 'u32[]', space=smem, size = 0x4, offset = 0x4, fixed_abs, tag = 'smem constant byte address 0x4 - core index']
  #allocation1 [shape = 'u32[144,128]{1,0:T(1,128)}', space=vmem, size = 0x12000, scoped, tag = 'internal scratch']
  #allocation2 [shape = 'f32[8,8,384]{2,1,0:T(8,128)}', space=vmem, size = 0x18000, scoped, tag = 'scratch operand']
  %s0 = inlined_call_operand.hbm [shape: s32[8,8], index: 0, kind: input, shape index: {}]
  %s1 = inlined_call_operand.hbm [shape: s32[8,8], index: 1, kind: input, shape index: {}]
  %s2 = inlined_call_operand.hbm [shape: bf16[256,128], index: 2, kind: input, shape index: {}]
  %s3 = inlined_call_operand.hbm [shape: f32[128,128], index: 3, kind: input, shape index: {}]
  %s4 = inlined_call_operand.hbm [shape: bf16[128,128], index: 4, kind: input, shape index: {}]
  %s5 = inlined_call_operand.vmem [shape: f32[1,128], index: 5, kind: input, shape index: {}]
  %s6 = inlined_call_operand.hbm [shape: bf16[128,128], index: 6, kind: input, shape index: {}]
  %s7 = inlined_call_operand.hbm [shape: f32[1,128], index: 7, kind: input, shape index: {}]
  %s8 = inlined_call_operand.hbm [shape: f32[1,128], index: 8, kind: input, shape index: {}]
  %s9 = inlined_call_operand.hbm [shape: f32[1,128], index: 9, kind: input, shape index: {}]
  %s10 = inlined_call_operand.hbm [shape: bf16[3,128,128], index: 10, kind: input, shape index: {}]
  %s11 = inlined_call_operand.hbm [shape: f32[1,128], index: 11, kind: input, shape index: {}]
  %s12 = inlined_call_operand.hbm [shape: f32[1,128], index: 12, kind: input, shape index: {}]
  %s13 = inlined_call_operand.hbm [shape: f32[1,128], index: 13, kind: input, shape index: {}]
  %s14 = inlined_call_operand.hbm [shape: bf16[128,384], index: 14, kind: input, shape index: {}]
  %s15 = inlined_call_operand.hbm [shape: bf16[128,384], index: 15, kind: input, shape index: {}]
  %s16 = inlined_call_operand.vmem [shape: f32[1,384], index: 16, kind: input, shape index: {}]
  %s17 = inlined_call_operand.hbm [shape: f32[1,384], index: 17, kind: input, shape index: {}]
  %s18 = inlined_call_operand.vmem [shape: bf16[128,128], index: 18, kind: input, shape index: {}]
  %s19 = inlined_call_operand.hbm [shape: bf16[128,128], index: 19, kind: input, shape index: {}]
  %s20 = inlined_call_operand.vmem [shape: f32[1,128], index: 20, kind: input, shape index: {}]
  %s21 = inlined_call_operand.vmem [shape: f32[1,128], index: 21, kind: input, shape index: {}]
  %s22 = inlined_call_operand.vmem [shape: f32[1,128], index: 22, kind: input, shape index: {}]
  %s23 = inlined_call_operand.hbm [shape: f32[8,128], index: 23, kind: output, shape index: {0}]
  %s24 = inlined_call_operand.hbm [shape: f32[8,128], index: 24, kind: output, shape index: {1}]
  %s25 = inlined_call_operand.hbm [shape: f32[8,128], index: 25, kind: output, shape index: {2}]
  %s26 = inlined_call_operand.hbm [shape: f32[8,128], index: 26, kind: output, shape index: {3}]
  %27 = xla_tuple %s23, %s24, %s25, %s26
  %s28 = sld [smem:[#allocation0]]
  $region194: #{tpu_custom_call.1} parent=0
    _
  %s30 = ssub.s32 1, %s28
  %s31 = scalar_select 0, %s30, %s28
  $region1: #{tpu_custom_call.1} parent=0
    #allocation3 [shape = 'u8[4096]{0}', space=vmem, size = 0x1000, scoped, tag = 'input window, operand 0, single buffered']
    #allocation4 [shape = 's32[1]{0}', space=sflag, size = 0x4, scoped, tag = 'scoped memory for tpu_custom_call.1']
    #allocation5 [shape = 's32[1]{0}', space=sflag, size = 0x4, scoped, tag = 'scoped memory for tpu_custom_call.1']
    #allocation6 [shape = 'u8[4096]{0}', space=vmem, size = 0x1000, scoped, tag = 'input window, operand 1, single buffered']
    #allocation7 [shape = 's32[1]{0}', space=sflag, size = 0x4, scoped, tag = 'scoped memory for tpu_custom_call.1']
    #allocation8 [shape = 'u8[65536]{0}', space=vmem, size = 0x10000, scoped, tag = 'input window, operand 2, single buffered']
    #allocation9 [shape = 'u8[65536]{0}', space=vmem, size = 0x10000, scoped, tag = 'input window, operand 3, single buffered']
    #allocation10 [shape = 's32[1]{0}', space=sflag, size = 0x4, scoped, tag = 'scoped memory for tpu_custom_call.1']
    #allocation11 [shape = 'u8[32768]{0}', space=vmem, size = 0x8000, scoped, tag = 'input window, operand 4, single buffered']
    #allocation12 [shape = 'u8[32768]{0}', space=vmem, size = 0x8000, scoped, tag = 'input window, operand 6, single buffered']
    #allocation13 [shape = 's32[1]{0}', space=sflag, size = 0x4, scoped, tag = 'scoped memory for tpu_custom_call.1']
    #allocation14 [shape = 'u8[512]{0}', space=vmem, size = 0x400, scoped, tag = 'input window, operand 7, single buffered']
    #allocation15 [shape = 'u8[512]{0}', space=vmem, size = 0x400, scoped, tag = 'input window, operand 8, single buffered']
    #allocation16 [shape = 's32[1]{0}', space=sflag, size = 0x4, scoped, tag = 'scoped memory for tpu_custom_call.1']
    #allocation17 [shape = 'u8[512]{0}', space=vmem, size = 0x400, scoped, tag = 'input window, operand 9, single buffered']
    #allocation18 [shape = 'u8[98304]{0}', space=vmem, size = 0x18000, scoped, tag = 'input window, operand 10, single buffered']
    #allocation19 [shape = 's32[1]{0}', space=sflag, size = 0x4, scoped, tag = 'scoped memory for tpu_custom_call.1']
    #allocation20 [shape = 'u8[512]{0}', space=vmem, size = 0x400, scoped, tag = 'input window, operand 11, single buffered']
    #allocation21 [shape = 'u8[512]{0}', space=vmem, size = 0x400, scoped, tag = 'input window, operand 12, single buffered']
    #allocation22 [shape = 's32[1]{0}', space=sflag, size = 0x4, scoped, tag = 'scoped memory for tpu_custom_call.1']
    #allocation23 [shape = 'u8[512]{0}', space=vmem, size = 0x400, scoped, tag = 'input window, operand 13, single buffered']
    #allocation24 [shape = 'u8[98304]{0}', space=vmem, size = 0x18000, scoped, tag = 'input window, operand 14, single buffered']
    #allocation25 [shape = 's32[1]{0}', space=sflag, size = 0x4, scoped, tag = 'scoped memory for tpu_custom_call.1']
    #allocation26 [shape = 'u8[98304]{0}', space=vmem, size = 0x18000, scoped, tag = 'input window, operand 15, single buffered']
    #allocation27 [shape = 'u8[1536]{0}', space=vmem, size = 0x800, scoped, tag = 'input window, operand 17, single buffered']
    #allocation28 [shape = 's32[1]{0}', space=sflag, size = 0x4, scoped, tag = 'scoped memory for tpu_custom_call.1']
    #allocation29 [shape = 'u8[32768]{0}', space=vmem, size = 0x8000, scoped, tag = 'input window, operand 19, single buffered']
    #allocation30 [shape = 'u8[4096]{0}', space=vmem, size = 0x1000, scoped, tag = 'output window, operand 0, single buffered']
    #allocation31 [shape = 'u8[4096]{0}', space=vmem, size = 0x1000, scoped, tag = 'output window, operand 1, single buffered']
    #allocation32 [shape = 's32[1]{0}', space=sflag, size = 0x4, scoped, tag = 'scoped memory for tpu_custom_call.1']
    #allocation33 [shape = 'u8[4096]{0}', space=vmem, size = 0x1000, scoped, tag = 'output window, operand 2, single buffered']
    #allocation34 [shape = 'u8[4096]{0}', space=vmem, size = 0x1000, scoped, tag = 'output window, operand 3, single buffered']
    #allocation35 [shape = 's32[1]{0}', space=sflag, size = 0x4, scoped, tag = 'scoped memory for tpu_custom_call.1']
    %32 = vsyncpa [#allocation4], 0
    %33 = vsyncpa [#allocation7], 0
    %34 = vsyncpa [#allocation10], 0
    %35 = vsyncpa [#allocation13], 0
    %36 = vsyncpa [#allocation16], 0
    %37 = vsyncpa [#allocation19], 0
    %38 = vsyncpa [#allocation22], 0
    %39 = vsyncpa [#allocation25], 0
    %40 = vsyncpa [#allocation28], 0
    %41 = vsyncpa [#allocation5], 0
    %42 = vsyncpa [#allocation32], 0
    %43 = vsyncpa [#allocation35], 0
    // Predicated region
    $region2: #{tpu_custom_call.1} parent=1 // pred_check
      _
    $region3: #{tpu_custom_call.1} parent=1 // pred_check_branch
      %45 = sbr.rel (0) target = $region5
    $region4: #{tpu_custom_call.1} parent=1 // pred_region
      %s47 = ssub.s32 128, 128
      %48 = vsyncadd [#allocation4], %s47
      %s50 = sshll.u32 [#allocation3], 4
      %s51 = int_to_ptr.vmem [resolvable:$true] %s50
      %53 = dma.hbm_to_vmem [thread:$0]  %s0, 128, %s51, [#allocation4]
    $region5: #{tpu_custom_call.1} parent=1 // pred_fallthru
      _
    // Predicated region
    $region6: #{tpu_custom_call.1} parent=1 // pred_check
      _
    $region7: #{tpu_custom_call.1} parent=1 // pred_check_branch
      %55 = sbr.rel (0) target = $region9
    $region8: #{tpu_custom_call.1} parent=1 // pred_region
      %s57 = ssub.s32 128, 128
      %58 = vsyncadd [#allocation7], %s57
      %s60 = sshll.u32 [#allocation6], 4
      %s61 = int_to_ptr.vmem [resolvable:$true] %s60
      %63 = dma.hbm_to_vmem [thread:$0]  %s1, 128, %s61, [#allocation7]
    $region9: #{tpu_custom_call.1} parent=1 // pred_fallthru
      _
    // Predicated region
    $region10: #{tpu_custom_call.1} parent=1 // pred_check
      _
    $region11: #{tpu_custom_call.1} parent=1 // pred_check_branch
      %65 = sbr.rel (0) target = $region13
    $region12: #{tpu_custom_call.1} parent=1 // pred_region
      %s67 = ssub.s32 2048, 2048
      %68 = vsyncadd [#allocation7], %s67
      %s69 = sshll.u32 [#allocation8], 4
      %s70 = int_to_ptr.vmem [resolvable:$true] %s69
      %75 = dma.hbm_to_vmem [thread:$0]  %s2, 2048, %s70, [#allocation7], 64, 64, 4
    $region13: #{tpu_custom_call.1} parent=1 // pred_fallthru
      _
    // Predicated region
    $region14: #{tpu_custom_call.1} parent=1 // pred_check
      _
    $region15: #{tpu_custom_call.1} parent=1 // pred_check_branch
      %77 = sbr.rel (0) target = $region17
    $region16: #{tpu_custom_call.1} parent=1 // pred_region
      %s79 = ssub.s32 2048, 2048
      %80 = vsyncadd [#allocation10], %s79
      %s81 = sshll.u32 [#allocation9], 4
      %s82 = int_to_ptr.vmem [resolvable:$true] %s81
      %87 = dma.hbm_to_vmem [thread:$0]  %s3, 2048, %s82, [#allocation10], 128, 128, 8
    $region17: #{tpu_custom_call.1} parent=1 // pred_fallthru
      _
    // Predicated region
    $region18: #{tpu_custom_call.1} parent=1 // pred_check
      _
    $region19: #{tpu_custom_call.1} parent=1 // pred_check_branch
      %89 = sbr.rel (0) target = $region21
    $region20: #{tpu_custom_call.1} parent=1 // pred_region
      %s91 = ssub.s32 1024, 1024
      %92 = vsyncadd [#allocation10], %s91
      %s93 = sshll.u32 [#allocation11], 4
      %s94 = int_to_ptr.vmem [resolvable:$true] %s93
      %99 = dma.hbm_to_vmem [thread:$0]  %s4, 1024, %s94, [#allocation10], 64, 64, 4
    $region21: #{tpu_custom_call.1} parent=1 // pred_fallthru
      _
    // Predicated region
    $region22: #{tpu_custom_call.1} parent=1 // pred_check
      _
    $region23: #{tpu_custom_call.1} parent=1 // pred_check_branch
      %101 = sbr.rel (0) target = $region25
    $region24: #{tpu_custom_call.1} parent=1 // pred_region
      _
    $region25: #{tpu_custom_call.1} parent=1 // pred_fallthru
      _
    // Predicated region
    $region26: #{tpu_custom_call.1} parent=1 // pred_check
      _
    $region27: #{tpu_custom_call.1} parent=1 // pred_check_branch
      %103 = sbr.rel (0) target = $region29
    $region28: #{tpu_custom_call.1} parent=1 // pred_region
      %s105 = ssub.s32 1024, 1024
      %106 = vsyncadd [#allocation13], %s105
      %s107 = sshll.u32 [#allocation12], 4
      %s108 = int_to_ptr.vmem [resolvable:$true] %s107
      %113 = dma.hbm_to_vmem [thread:$0]  %s6, 1024, %s108, [#allocation13], 64, 64, 4
    $region29: #{tpu_custom_call.1} parent=1 // pred_fallthru
      _
    // Predicated region
    $region30: #{tpu_custom_call.1} parent=1 // pred_check
      _
    $region31: #{tpu_custom_call.1} parent=1 // pred_check_branch
      %115 = sbr.rel (0) target = $region33
    $region32: #{tpu_custom_call.1} parent=1 // pred_region
      %s117 = ssub.s32 16, 16
      %118 = vsyncadd [#allocation13], %s117
      %s120 = sshll.u32 [#allocation14], 4
      %s121 = int_to_ptr.vmem [resolvable:$true] %s120
      %123 = dma.hbm_to_vmem [thread:$0]  %s7, 16, %s121, [#allocation13]
    $region33: #{tpu_custom_call.1} parent=1 // pred_fallthru
      _
    // Predicated region
    $region34: #{tpu_custom_call.1} parent=1 // pred_check
      _
    $region35: #{tpu_custom_call.1} parent=1 // pred_check_branch
      %125 = sbr.rel (0) target = $region37
    $region36: #{tpu_custom_call.1} parent=1 // pred_region
      %s127 = ssub.s32 16, 16
      %128 = vsyncadd [#allocation16], %s127
      %s130 = sshll.u32 [#allocation15], 4
      %s131 = int_to_ptr.vmem [resolvable:$true] %s130
      %133 = dma.hbm_to_vmem [thread:$0]  %s8, 16, %s131, [#allocation16]
    $region37: #{tpu_custom_call.1} parent=1 // pred_fallthru
      _
    // Predicated region
    $region38: #{tpu_custom_call.1} parent=1 // pred_check
      _
    $region39: #{tpu_custom_call.1} parent=1 // pred_check_branch
      %135 = sbr.rel (0) target = $region41
    $region40: #{tpu_custom_call.1} parent=1 // pred_region
      %s137 = ssub.s32 16, 16
      %138 = vsyncadd [#allocation16], %s137
      %s140 = sshll.u32 [#allocation17], 4
      %s141 = int_to_ptr.vmem [resolvable:$true] %s140
      %143 = dma.hbm_to_vmem [thread:$0]  %s9, 16, %s141, [#allocation16]
    $region41: #{tpu_custom_call.1} parent=1 // pred_fallthru
      _
    // Predicated region
    $region42: #{tpu_custom_call.1} parent=1 // pred_check
      _
    $region43: #{tpu_custom_call.1} parent=1 // pred_check_branch
      %145 = sbr.rel (0) target = $region45
    $region44: #{tpu_custom_call.1} parent=1 // pred_region
      %s147 = ssub.s32 3072, 3072
      %148 = vsyncadd [#allocation19], %s147
      %s149 = sshll.u32 [#allocation18], 4
      %s150 = int_to_ptr.vmem [resolvable:$true] %s149
      %155 = dma.hbm_to_vmem [thread:$0]  %s10, 3072, %s150, [#allocation19], 64, 64, 4
    $region45: #{tpu_custom_call.1} parent=1 // pred_fallthru
      _
    // Predicated region
    $region46: #{tpu_custom_call.1} parent=1 // pred_check
      _
    $region47: #{tpu_custom_call.1} parent=1 // pred_check_branch
      %157 = sbr.rel (0) target = $region49
    $region48: #{tpu_custom_call.1} parent=1 // pred_region
      %s159 = ssub.s32 16, 16
      %160 = vsyncadd [#allocation19], %s159
      %s162 = sshll.u32 [#allocation20], 4
      %s163 = int_to_ptr.vmem [resolvable:$true] %s162
      %165 = dma.hbm_to_vmem [thread:$0]  %s11, 16, %s163, [#allocation19]
    $region49: #{tpu_custom_call.1} parent=1 // pred_fallthru
      _
    // Predicated region
    $region50: #{tpu_custom_call.1} parent=1 // pred_check
      _
    $region51: #{tpu_custom_call.1} parent=1 // pred_check_branch
      %167 = sbr.rel (0) target = $region53
    $region52: #{tpu_custom_call.1} parent=1 // pred_region
      %s169 = ssub.s32 16, 16
      %170 = vsyncadd [#allocation22], %s169
      %s172 = sshll.u32 [#allocation21], 4
      %s173 = int_to_ptr.vmem [resolvable:$true] %s172
      %175 = dma.hbm_to_vmem [thread:$0]  %s12, 16, %s173, [#allocation22]
    $region53: #{tpu_custom_call.1} parent=1 // pred_fallthru
      _
    // Predicated region
    $region54: #{tpu_custom_call.1} parent=1 // pred_check
      _
    $region55: #{tpu_custom_call.1} parent=1 // pred_check_branch
      %177 = sbr.rel (0) target = $region57
    $region56: #{tpu_custom_call.1} parent=1 // pred_region
      %s179 = ssub.s32 16, 16
      %180 = vsyncadd [#allocation22], %s179
      %s182 = sshll.u32 [#allocation23], 4
      %s183 = int_to_ptr.vmem [resolvable:$true] %s182
      %185 = dma.hbm_to_vmem [thread:$0]  %s13, 16, %s183, [#allocation22]
    $region57: #{tpu_custom_call.1} parent=1 // pred_fallthru
      _
    // Predicated region
    $region58: #{tpu_custom_call.1} parent=1 // pred_check
      _
    $region59: #{tpu_custom_call.1} parent=1 // pred_check_branch
      %187 = sbr.rel (0) target = $region61
    $region60: #{tpu_custom_call.1} parent=1 // pred_region
      %s189 = ssub.s32 3072, 3072
      %190 = vsyncadd [#allocation25], %s189
      %s191 = sshll.u32 [#allocation24], 4
      %s192 = int_to_ptr.vmem [resolvable:$true] %s191
      %197 = dma.hbm_to_vmem [thread:$0]  %s14, 3072, %s192, [#allocation25], 192, 192, 12
    $region61: #{tpu_custom_call.1} parent=1 // pred_fallthru
      _
    // Predicated region
    $region62: #{tpu_custom_call.1} parent=1 // pred_check
      _
    $region63: #{tpu_custom_call.1} parent=1 // pred_check_branch
      %199 = sbr.rel (0) target = $region65
    $region64: #{tpu_custom_call.1} parent=1 // pred_region
      %s201 = ssub.s32 3072, 3072
      %202 = vsyncadd [#allocation25], %s201
      %s203 = sshll.u32 [#allocation26], 4
      %s204 = int_to_ptr.vmem [resolvable:$true] %s203
      %209 = dma.hbm_to_vmem [thread:$0]  %s15, 3072, %s204, [#allocation25], 192, 192, 12
    $region65: #{tpu_custom_call.1} parent=1 // pred_fallthru
      _
    // Predicated region
    $region66: #{tpu_custom_call.1} parent=1 // pred_check
      _
    $region67: #{tpu_custom_call.1} parent=1 // pred_check_branch
      %211 = sbr.rel (0) target = $region69
    $region68: #{tpu_custom_call.1} parent=1 // pred_region
      _
    $region69: #{tpu_custom_call.1} parent=1 // pred_fallthru
      _
    // Predicated region
    $region70: #{tpu_custom_call.1} parent=1 // pred_check
      _
    $region71: #{tpu_custom_call.1} parent=1 // pred_check_branch
      %213 = sbr.rel (0) target = $region73
    $region72: #{tpu_custom_call.1} parent=1 // pred_region
      %s215 = ssub.s32 48, 48
      %216 = vsyncadd [#allocation28], %s215
      %s218 = sshll.u32 [#allocation27], 4
      %s219 = int_to_ptr.vmem [resolvable:$true] %s218
      %221 = dma.hbm_to_vmem [thread:$0]  %s17, 48, %s219, [#allocation28]
    $region73: #{tpu_custom_call.1} parent=1 // pred_fallthru
      _
    // Predicated region
    $region74: #{tpu_custom_call.1} parent=1 // pred_check
      _
    $region75: #{tpu_custom_call.1} parent=1 // pred_check_branch
      %223 = sbr.rel (0) target = $region77
    $region76: #{tpu_custom_call.1} parent=1 // pred_region
      _
    $region77: #{tpu_custom_call.1} parent=1 // pred_fallthru
      _
    // Predicated region
    $region78: #{tpu_custom_call.1} parent=1 // pred_check
      _
    $region79: #{tpu_custom_call.1} parent=1 // pred_check_branch
      %225 = sbr.rel (0) target = $region81
    $region80: #{tpu_custom_call.1} parent=1 // pred_region
      %s227 = ssub.s32 1024, 1024
      %228 = vsyncadd [#allocation28], %s227
      %s229 = sshll.u32 [#allocation29], 4
      %s230 = int_to_ptr.vmem [resolvable:$true] %s229
      %235 = dma.hbm_to_vmem [thread:$0]  %s19, 1024, %s230, [#allocation28], 64, 64, 4
    $region81: #{tpu_custom_call.1} parent=1 // pred_fallthru
      _
    // Predicated region
    $region82: #{tpu_custom_call.1} parent=1 // pred_check
      _
    $region83: #{tpu_custom_call.1} parent=1 // pred_check_branch
      %237 = sbr.rel (0) target = $region85
    $region84: #{tpu_custom_call.1} parent=1 // pred_region
      _
    $region85: #{tpu_custom_call.1} parent=1 // pred_fallthru
      _
    // Predicated region
    $region86: #{tpu_custom_call.1} parent=1 // pred_check
      _
    $region87: #{tpu_custom_call.1} parent=1 // pred_check_branch
      %239 = sbr.rel (0) target = $region89
    $region88: #{tpu_custom_call.1} parent=1 // pred_region
      _
    $region89: #{tpu_custom_call.1} parent=1 // pred_fallthru
      _
    // Predicated region
    $region90: #{tpu_custom_call.1} parent=1 // pred_check
      _
    $region91: #{tpu_custom_call.1} parent=1 // pred_check_branch
      %241 = sbr.rel (0) target = $region93
    $region92: #{tpu_custom_call.1} parent=1 // pred_region
      _
    $region93: #{tpu_custom_call.1} parent=1 // pred_fallthru
      _
    // Predicated region
    $region94: #{tpu_custom_call.1} parent=1 // pred_check
      _
    $region95: #{tpu_custom_call.1} parent=1 // pred_check_branch
      %243 = sbr.rel (0) target = $region97
    $region96: #{tpu_custom_call.1} parent=1 // pred_region
      %244 = dma.done [#allocation4], 128
    $region97: #{tpu_custom_call.1} parent=1 // pred_fallthru
      _
    // Predicated region
    $region98: #{tpu_custom_call.1} parent=1 // pred_check
      _
    $region99: #{tpu_custom_call.1} parent=1 // pred_check_branch
      %246 = sbr.rel (0) target = $region101
    $region100: #{tpu_custom_call.1} parent=1 // pred_region
      %247 = dma.done [#allocation7], 128
    $region101: #{tpu_custom_call.1} parent=1 // pred_fallthru
      _
    // Predicated region
    $region102: #{tpu_custom_call.1} parent=1 // pred_check
      _
    $region103: #{tpu_custom_call.1} parent=1 // pred_check_branch
      %249 = sbr.rel (0) target = $region105
    $region104: #{tpu_custom_call.1} parent=1 // pred_region
      %250 = dma.done [#allocation7], 2048
    $region105: #{tpu_custom_call.1} parent=1 // pred_fallthru
      _
    // Predicated region
    $region106: #{tpu_custom_call.1} parent=1 // pred_check
      _
    $region107: #{tpu_custom_call.1} parent=1 // pred_check_branch
      %252 = sbr.rel (0) target = $region109
    $region108: #{tpu_custom_call.1} parent=1 // pred_region
      %253 = dma.done [#allocation10], 2048
    $region109: #{tpu_custom_call.1} parent=1 // pred_fallthru
      _
    // Predicated region
    $region110: #{tpu_custom_call.1} parent=1 // pred_check
      _
    $region111: #{tpu_custom_call.1} parent=1 // pred_check_branch
      %255 = sbr.rel (0) target = $region113
    $region112: #{tpu_custom_call.1} parent=1 // pred_region
      %256 = dma.done [#allocation10], 1024
    $region113: #{tpu_custom_call.1} parent=1 // pred_fallthru
      _
    // Predicated region
    $region114: #{tpu_custom_call.1} parent=1 // pred_check
      _
    $region115: #{tpu_custom_call.1} parent=1 // pred_check_branch
      %258 = sbr.rel (0) target = $region117
    $region116: #{tpu_custom_call.1} parent=1 // pred_region
      %259 = dma.done [#allocation13], 1024
    $region117: #{tpu_custom_call.1} parent=1 // pred_fallthru
      _
    // Predicated region
    $region118: #{tpu_custom_call.1} parent=1 // pred_check
      _
    $region119: #{tpu_custom_call.1} parent=1 // pred_check_branch
      %261 = sbr.rel (0) target = $region121
    $region120: #{tpu_custom_call.1} parent=1 // pred_region
      %262 = dma.done [#allocation13], 16
    $region121: #{tpu_custom_call.1} parent=1 // pred_fallthru
      _
    // Predicated region
    $region122: #{tpu_custom_call.1} parent=1 // pred_check
      _
    $region123: #{tpu_custom_call.1} parent=1 // pred_check_branch
      %264 = sbr.rel (0) target = $region125
    $region124: #{tpu_custom_call.1} parent=1 // pred_region
      %265 = dma.done [#allocation16], 16
    $region125: #{tpu_custom_call.1} parent=1 // pred_fallthru
      _
    // Predicated region
    $region126: #{tpu_custom_call.1} parent=1 // pred_check
      _
    $region127: #{tpu_custom_call.1} parent=1 // pred_check_branch
      %267 = sbr.rel (0) target = $region129
    $region128: #{tpu_custom_call.1} parent=1 // pred_region
      %268 = dma.done [#allocation16], 16
    $region129: #{tpu_custom_call.1} parent=1 // pred_fallthru
      _
    // Predicated region
    $region130: #{tpu_custom_call.1} parent=1 // pred_check
      _
    $region131: #{tpu_custom_call.1} parent=1 // pred_check_branch
      %270 = sbr.rel (0) target = $region133
    $region132: #{tpu_custom_call.1} parent=1 // pred_region
      %271 = dma.done [#allocation19], 3072
    $region133: #{tpu_custom_call.1} parent=1 // pred_fallthru
      _
    // Predicated region
    $region134: #{tpu_custom_call.1} parent=1 // pred_check
      _
    $region135: #{tpu_custom_call.1} parent=1 // pred_check_branch
      %273 = sbr.rel (0) target = $region137
    $region136: #{tpu_custom_call.1} parent=1 // pred_region
      %274 = dma.done [#allocation19], 16
    $region137: #{tpu_custom_call.1} parent=1 // pred_fallthru
      _
    // Predicated region
    $region138: #{tpu_custom_call.1} parent=1 // pred_check
      _
    $region139: #{tpu_custom_call.1} parent=1 // pred_check_branch
      %276 = sbr.rel (0) target = $region141
    $region140: #{tpu_custom_call.1} parent=1 // pred_region
      %277 = dma.done [#allocation22], 16
    $region141: #{tpu_custom_call.1} parent=1 // pred_fallthru
      _
    // Predicated region
    $region142: #{tpu_custom_call.1} parent=1 // pred_check
      _
    $region143: #{tpu_custom_call.1} parent=1 // pred_check_branch
      %279 = sbr.rel (0) target = $region145
    $region144: #{tpu_custom_call.1} parent=1 // pred_region
      %280 = dma.done [#allocation22], 16
    $region145: #{tpu_custom_call.1} parent=1 // pred_fallthru
      _
    // Predicated region
    $region146: #{tpu_custom_call.1} parent=1 // pred_check
      _
    $region147: #{tpu_custom_call.1} parent=1 // pred_check_branch
      %282 = sbr.rel (0) target = $region149
    $region148: #{tpu_custom_call.1} parent=1 // pred_region
      %283 = dma.done [#allocation25], 3072
    $region149: #{tpu_custom_call.1} parent=1 // pred_fallthru
      _
    // Predicated region
    $region150: #{tpu_custom_call.1} parent=1 // pred_check
      _
    $region151: #{tpu_custom_call.1} parent=1 // pred_check_branch
      %285 = sbr.rel (0) target = $region153
    $region152: #{tpu_custom_call.1} parent=1 // pred_region
      %286 = dma.done [#allocation25], 3072
    $region153: #{tpu_custom_call.1} parent=1 // pred_fallthru
      _
    // Predicated region
    $region154: #{tpu_custom_call.1} parent=1 // pred_check
      _
    $region155: #{tpu_custom_call.1} parent=1 // pred_check_branch
      %288 = sbr.rel (0) target = $region157
    $region156: #{tpu_custom_call.1} parent=1 // pred_region
      %289 = dma.done [#allocation28], 48
    $region157: #{tpu_custom_call.1} parent=1 // pred_fallthru
      _
    // Predicated region
    $region158: #{tpu_custom_call.1} parent=1 // pred_check
      _
    $region159: #{tpu_custom_call.1} parent=1 // pred_check_branch
      %291 = sbr.rel (0) target = $region161
    $region160: #{tpu_custom_call.1} parent=1 // pred_region
      %292 = dma.done [#allocation28], 1024
    $region161: #{tpu_custom_call.1} parent=1 // pred_fallthru
      _
    %v294 = vld [vmem:[#allocation3] sm:$0xff]
    %v295 = vld [vmem:[#allocation6] sm:$0xff]
    %v296 = vlaneseq
    %v297 = vand.u32 %v296, 127
    %v298 = vadd.s32 %v297, 128
    %v299 = vlaneseq
    %v300 = vshrl.u32 %v299, 7
    %v301 = vsub.s32 0, %v300
    %v302 = vrot.slane %v294, %v301
    %304 = vbcast.lane.b32.xlu0 %v302, 256
    %v305 = vpop.permute.xlu0 %304
    %v306 = vlaneseq
    %v307 = vshrl.u32 %v306, 7
    %v308 = vsub.s32 1, %v307
    %v309 = vrot.slane %v294, %v308
    %311 = vbcast.lane.b32.xlu0 %v309, 256
    %v312 = vpop.permute.xlu0 %311
    %v313 = vlaneseq
    %v314 = vshrl.u32 %v313, 7
    %v315 = vsub.s32 2, %v314
    %v316 = vrot.slane %v294, %v315
    %318 = vbcast.lane.b32.xlu0 %v316, 256
    %v319 = vpop.permute.xlu0 %318
    %v320 = vlaneseq
    %v321 = vshrl.u32 %v320, 7
    %v322 = vsub.s32 3, %v321
    %v323 = vrot.slane %v294, %v322
    %325 = vbcast.lane.b32.xlu0 %v323, 256
    %v326 = vpop.permute.xlu0 %325
    %v327 = vlaneseq
    %v328 = vshrl.u32 %v327, 7
    %v329 = vsub.s32 4, %v328
    %v330 = vrot.slane %v294, %v329
    %332 = vbcast.lane.b32.xlu0 %v330, 256
    %v333 = vpop.permute.xlu0 %332
    %v334 = vlaneseq
    %v335 = vshrl.u32 %v334, 7
    %v336 = vsub.s32 5, %v335
    %v337 = vrot.slane %v294, %v336
    %339 = vbcast.lane.b32.xlu0 %v337, 256
    %v340 = vpop.permute.xlu0 %339
    %v341 = vlaneseq
    %v342 = vshrl.u32 %v341, 7
    %v343 = vsub.s32 6, %v342
    %v344 = vrot.slane %v294, %v343
    %346 = vbcast.lane.b32.xlu0 %v344, 256
    %v347 = vpop.permute.xlu0 %346
    %v348 = vlaneseq
    %v349 = vshrl.u32 %v348, 7
    %v350 = vsub.s32 7, %v349
    %v351 = vrot.slane %v294, %v350
    %353 = vbcast.lane.b32.xlu0 %v351, 256
    %v354 = vpop.permute.xlu0 %353
    %vm355 = vcmp.eq.s32.totalorder %v297, %v305
    %vm356 = vcmp.eq.s32.totalorder %v298, %v305
    %vm357 = vcmp.eq.s32.totalorder %v297, %v312
    %vm358 = vcmp.eq.s32.totalorder %v298, %v312
    %vm359 = vcmp.eq.s32.totalorder %v297, %v319
    %vm360 = vcmp.eq.s32.totalorder %v298, %v319
    %vm361 = vcmp.eq.s32.totalorder %v297, %v326
    %vm362 = vcmp.eq.s32.totalorder %v298, %v326
    %vm363 = vcmp.eq.s32.totalorder %v297, %v333
    %vm364 = vcmp.eq.s32.totalorder %v298, %v333
    %vm365 = vcmp.eq.s32.totalorder %v297, %v340
    %vm366 = vcmp.eq.s32.totalorder %v298, %v340
    %vm367 = vcmp.eq.s32.totalorder %v297, %v347
    %vm368 = vcmp.eq.s32.totalorder %v298, %v347
    %vm369 = vcmp.eq.s32.totalorder %v297, %v354
    %vm370 = vcmp.eq.s32.totalorder %v298, %v354
    %v371 = vsel %vm355, 1, 0
    %v372 = vsel %vm356, 1, 0
    %v373 = vsel %vm357, 1, 0
    %v374 = vsel %vm358, 1, 0
    %v375 = vsel %vm359, 1, 0
    %v376 = vsel %vm360, 1, 0
    %v377 = vsel %vm361, 1, 0
    %v378 = vsel %vm362, 1, 0
    %v379 = vsel %vm363, 1, 0
    %v380 = vsel %vm364, 1, 0
    %v381 = vsel %vm365, 1, 0
    %v382 = vsel %vm366, 1, 0
    %v383 = vsel %vm367, 1, 0
    %v384 = vsel %vm368, 1, 0
    %v385 = vsel %vm369, 1, 0
    %v386 = vsel %vm370, 1, 0
    %v387 = vcvt.s32.f32 %v371
    %v388 = vcvt.s32.f32 %v372
    %v389 = vcvt.s32.f32 %v373
    %v390 = vcvt.s32.f32 %v374
    %v391 = vcvt.s32.f32 %v375
    %v392 = vcvt.s32.f32 %v376
    %v393 = vcvt.s32.f32 %v377
    %v394 = vcvt.s32.f32 %v378
    %v395 = vcvt.s32.f32 %v379
    %v396 = vcvt.s32.f32 %v380
    %v397 = vcvt.s32.f32 %v381
    %v398 = vcvt.s32.f32 %v382
    %v399 = vcvt.s32.f32 %v383
    %v400 = vcvt.s32.f32 %v384
    %v401 = vcvt.s32.f32 %v385
    %v402 = vcvt.s32.f32 %v386
    %v403 = vpack.c.bf16 %v387, %v387
    %v404 = vpack.c.bf16 %v388, %v388
    %v405 = vpack.c.bf16 %v389, %v389
    %v406 = vpack.c.bf16 %v390, %v390
    %v407 = vpack.c.bf16 %v391, %v391
    %v408 = vpack.c.bf16 %v392, %v392
    %v409 = vpack.c.bf16 %v393, %v393
    %v410 = vpack.c.bf16 %v394, %v394
    %v411 = vpack.c.bf16 %v395, %v395
    %v412 = vpack.c.bf16 %v396, %v396
    %v413 = vpack.c.bf16 %v397, %v397
    %v414 = vpack.c.bf16 %v398, %v398
    %v415 = vpack.c.bf16 %v399, %v399
    %v416 = vpack.c.bf16 %v400, %v400
    %v417 = vpack.c.bf16 %v401, %v401
    %v418 = vpack.c.bf16 %v402, %v402
    %v435 = vunpack.c.l.b16 %v403
    %v436 = vunpack.c.l.b16 %v404
    %v437 = vunpack.c.l.b16 %v405
    %v438 = vunpack.c.l.b16 %v406
    %v439 = vunpack.c.l.b16 %v407
    %v440 = vunpack.c.l.b16 %v408
    %v441 = vunpack.c.l.b16 %v409
    %v442 = vunpack.c.l.b16 %v410
    %v443 = vunpack.c.l.b16 %v411
    %v444 = vunpack.c.l.b16 %v412
    %v445 = vunpack.c.l.b16 %v413
    %v446 = vunpack.c.l.b16 %v414
    %v447 = vunpack.c.l.b16 %v415
    %v448 = vunpack.c.l.b16 %v416
    %v449 = vunpack.c.l.b16 %v417
    %v450 = vunpack.c.l.b16 %v418
    %v451 = vadd.s32 %v295, 129
    %v452 = vlaneseq
    %v453 = vshrl.u32 %v452, 7
    %v454 = vsub.s32 0, %v453
    %v455 = vrot.slane %v451, %v454
    %457 = vbcast.lane.b32.xlu0 %v455, 256
    %v458 = vpop.permute.xlu0 %457
    %v459 = vlaneseq
    %v460 = vshrl.u32 %v459, 7
    %v461 = vsub.s32 1, %v460
    %v462 = vrot.slane %v451, %v461
    %464 = vbcast.lane.b32.xlu0 %v462, 256
    %v465 = vpop.permute.xlu0 %464
    %v466 = vlaneseq
    %v467 = vshrl.u32 %v466, 7
    %v468 = vsub.s32 2, %v467
    %v469 = vrot.slane %v451, %v468
    %471 = vbcast.lane.b32.xlu0 %v469, 256
    %v472 = vpop.permute.xlu0 %471
    %v473 = vlaneseq
    %v474 = vshrl.u32 %v473, 7
    %v475 = vsub.s32 3, %v474
    %v476 = vrot.slane %v451, %v475
    %478 = vbcast.lane.b32.xlu0 %v476, 256
    %v479 = vpop.permute.xlu0 %478
    %v480 = vlaneseq
    %v481 = vshrl.u32 %v480, 7
    %v482 = vsub.s32 4, %v481
    %v483 = vrot.slane %v451, %v482
    %485 = vbcast.lane.b32.xlu0 %v483, 256
    %v486 = vpop.permute.xlu0 %485
    %v487 = vlaneseq
    %v488 = vshrl.u32 %v487, 7
    %v489 = vsub.s32 5, %v488
    %v490 = vrot.slane %v451, %v489
    %492 = vbcast.lane.b32.xlu0 %v490, 256
    %v493 = vpop.permute.xlu0 %492
    %v494 = vlaneseq
    %v495 = vshrl.u32 %v494, 7
    %v496 = vsub.s32 6, %v495
    %v497 = vrot.slane %v451, %v496
    %499 = vbcast.lane.b32.xlu0 %v497, 256
    %v500 = vpop.permute.xlu0 %499
    %v501 = vlaneseq
    %v502 = vshrl.u32 %v501, 7
    %v503 = vsub.s32 7, %v502
    %v504 = vrot.slane %v451, %v503
    %506 = vbcast.lane.b32.xlu0 %v504, 256
    %v507 = vpop.permute.xlu0 %506
    %vm508 = vcmp.eq.s32.totalorder %v297, %v458
    %vm509 = vcmp.eq.s32.totalorder %v298, %v458
    %vm510 = vcmp.eq.s32.totalorder %v297, %v465
    %vm511 = vcmp.eq.s32.totalorder %v298, %v465
    %vm512 = vcmp.eq.s32.totalorder %v297, %v472
    %vm513 = vcmp.eq.s32.totalorder %v298, %v472
    %vm514 = vcmp.eq.s32.totalorder %v297, %v479
    %vm515 = vcmp.eq.s32.totalorder %v298, %v479
    %vm516 = vcmp.eq.s32.totalorder %v297, %v486
    %vm517 = vcmp.eq.s32.totalorder %v298, %v486
    %vm518 = vcmp.eq.s32.totalorder %v297, %v493
    %vm519 = vcmp.eq.s32.totalorder %v298, %v493
    %vm520 = vcmp.eq.s32.totalorder %v297, %v500
    %vm521 = vcmp.eq.s32.totalorder %v298, %v500
    %vm522 = vcmp.eq.s32.totalorder %v297, %v507
    %vm523 = vcmp.eq.s32.totalorder %v298, %v507
    %v524 = vsel %vm508, 1, 0
    %v525 = vsel %vm509, 1, 0
    %v526 = vsel %vm510, 1, 0
    %v527 = vsel %vm511, 1, 0
    %v528 = vsel %vm512, 1, 0
    %v529 = vsel %vm513, 1, 0
    %v530 = vsel %vm514, 1, 0
    %v531 = vsel %vm515, 1, 0
    %v532 = vsel %vm516, 1, 0
    %v533 = vsel %vm517, 1, 0
    %v534 = vsel %vm518, 1, 0
    %v535 = vsel %vm519, 1, 0
    %v536 = vsel %vm520, 1, 0
    %v537 = vsel %vm521, 1, 0
    %v538 = vsel %vm522, 1, 0
    %v539 = vsel %vm523, 1, 0
    %v540 = vcvt.s32.f32 %v524
    %v541 = vcvt.s32.f32 %v525
    %v542 = vcvt.s32.f32 %v526
    %v543 = vcvt.s32.f32 %v527
    %v544 = vcvt.s32.f32 %v528
    %v545 = vcvt.s32.f32 %v529
    %v546 = vcvt.s32.f32 %v530
    %v547 = vcvt.s32.f32 %v531
    %v548 = vcvt.s32.f32 %v532
    %v549 = vcvt.s32.f32 %v533
    %v550 = vcvt.s32.f32 %v534
    %v551 = vcvt.s32.f32 %v535
    %v552 = vcvt.s32.f32 %v536
    %v553 = vcvt.s32.f32 %v537
    %v554 = vcvt.s32.f32 %v538
    %v555 = vcvt.s32.f32 %v539
    %v556 = vpack.c.bf16 %v540, %v540
    %v557 = vpack.c.bf16 %v541, %v541
    %v558 = vpack.c.bf16 %v542, %v542
    %v559 = vpack.c.bf16 %v543, %v543
    %v560 = vpack.c.bf16 %v544, %v544
    %v561 = vpack.c.bf16 %v545, %v545
    %v562 = vpack.c.bf16 %v546, %v546
    %v563 = vpack.c.bf16 %v547, %v547
    %v564 = vpack.c.bf16 %v548, %v548
    %v565 = vpack.c.bf16 %v549, %v549
    %v566 = vpack.c.bf16 %v550, %v550
    %v567 = vpack.c.bf16 %v551, %v551
    %v568 = vpack.c.bf16 %v552, %v552
    %v569 = vpack.c.bf16 %v553, %v553
    %v570 = vpack.c.bf16 %v554, %v554
    %v571 = vpack.c.bf16 %v555, %v555
    %v588 = vunpack.c.l.b16 %v556
    %v589 = vunpack.c.l.b16 %v557
    %v590 = vunpack.c.l.b16 %v558
    %v591 = vunpack.c.l.b16 %v559
    %v592 = vunpack.c.l.b16 %v560
    %v593 = vunpack.c.l.b16 %v561
    %v594 = vunpack.c.l.b16 %v562
    %v595 = vunpack.c.l.b16 %v563
    %v596 = vunpack.c.l.b16 %v564
    %v597 = vunpack.c.l.b16 %v565
    %v598 = vunpack.c.l.b16 %v566
    %v599 = vunpack.c.l.b16 %v567
    %v600 = vunpack.c.l.b16 %v568
    %v601 = vunpack.c.l.b16 %v569
    %v602 = vunpack.c.l.b16 %v570
    %v603 = vunpack.c.l.b16 %v571
    %v604 = vpack.c.b16 %v437, %v435
    %v605 = vpack.c.b16 %v438, %v436
    %v606 = vpack.c.b16 %v441, %v439
    %v607 = vpack.c.b16 %v442, %v440
    %v608 = vpack.c.b16 %v445, %v443
    %v609 = vpack.c.b16 %v446, %v444
    %v610 = vpack.c.b16 %v449, %v447
    %v611 = vpack.c.b16 %v450, %v448
    %v620 = vpack.c.b16 %v590, %v588
    %v621 = vpack.c.b16 %v591, %v589
    %v622 = vpack.c.b16 %v594, %v592
    %v623 = vpack.c.b16 %v595, %v593
    %v624 = vpack.c.b16 %v598, %v596
    %v625 = vpack.c.b16 %v599, %v597
    %v626 = vpack.c.b16 %v602, %v600
    %v627 = vpack.c.b16 %v603, %v601
    %v636 = vld [vmem:[#allocation8] sm:$0xf]
    %v637 = vld [vmem:[#allocation8 + $0x4] sm:$0xf]
    %v638 = vld [vmem:[#allocation8 + $0x8] sm:$0xf]
    %v639 = vld [vmem:[#allocation8 + $0xc] sm:$0xf]
    %v640 = vld [vmem:[#allocation8 + $0x10] sm:$0xf]
    %v641 = vld [vmem:[#allocation8 + $0x14] sm:$0xf]
    %v642 = vld [vmem:[#allocation8 + $0x18] sm:$0xf]
    %v643 = vld [vmem:[#allocation8 + $0x1c] sm:$0xf]
    %v644 = vld [vmem:[#allocation8 + $0x20] sm:$0xf]
    %v645 = vld [vmem:[#allocation8 + $0x24] sm:$0xf]
    %v646 = vld [vmem:[#allocation8 + $0x28] sm:$0xf]
    %v647 = vld [vmem:[#allocation8 + $0x2c] sm:$0xf]
    %v648 = vld [vmem:[#allocation8 + $0x30] sm:$0xf]
    %v649 = vld [vmem:[#allocation8 + $0x34] sm:$0xf]
    %v650 = vld [vmem:[#allocation8 + $0x38] sm:$0xf]
    %v651 = vld [vmem:[#allocation8 + $0x3c] sm:$0xf]
    %v652 = vld [vmem:[#allocation8 + $0x40] sm:$0xf]
    %v653 = vld [vmem:[#allocation8 + $0x44] sm:$0xf]
    %v654 = vld [vmem:[#allocation8 + $0x48] sm:$0xf]
    %v655 = vld [vmem:[#allocation8 + $0x4c] sm:$0xf]
    %v656 = vld [vmem:[#allocation8 + $0x50] sm:$0xf]
    %v657 = vld [vmem:[#allocation8 + $0x54] sm:$0xf]
    %v658 = vld [vmem:[#allocation8 + $0x58] sm:$0xf]
    %v659 = vld [vmem:[#allocation8 + $0x5c] sm:$0xf]
    %v660 = vld [vmem:[#allocation8 + $0x60] sm:$0xf]
    %v661 = vld [vmem:[#allocation8 + $0x64] sm:$0xf]
    %v662 = vld [vmem:[#allocation8 + $0x68] sm:$0xf]
    %v663 = vld [vmem:[#allocation8 + $0x6c] sm:$0xf]
    %v664 = vld [vmem:[#allocation8 + $0x70] sm:$0xf]
    %v665 = vld [vmem:[#allocation8 + $0x74] sm:$0xf]
    %v666 = vld [vmem:[#allocation8 + $0x78] sm:$0xf]
    %v667 = vld [vmem:[#allocation8 + $0x7c] sm:$0xf]
    %v700 = vunpack.c.l.b16 %v636
    %v701 = vunpack.c.l.b16 %v637
    %v702 = vunpack.c.l.b16 %v638
    %v703 = vunpack.c.l.b16 %v639
    %v704 = vunpack.c.l.b16 %v640
    %v705 = vunpack.c.l.b16 %v641
    %v706 = vunpack.c.l.b16 %v642
    %v707 = vunpack.c.l.b16 %v643
    %v708 = vunpack.c.l.b16 %v644
    %v709 = vunpack.c.l.b16 %v645
    %v710 = vunpack.c.l.b16 %v646
    %v711 = vunpack.c.l.b16 %v647
    %v712 = vunpack.c.l.b16 %v648
    %v713 = vunpack.c.l.b16 %v649
    %v714 = vunpack.c.l.b16 %v650
    %v715 = vunpack.c.l.b16 %v651
    %v716 = vunpack.c.l.b16 %v652
    %v717 = vunpack.c.l.b16 %v653
    %v718 = vunpack.c.l.b16 %v654
    %v719 = vunpack.c.l.b16 %v655
    %v720 = vunpack.c.l.b16 %v656
    %v721 = vunpack.c.l.b16 %v657
    %v722 = vunpack.c.l.b16 %v658
    %v723 = vunpack.c.l.b16 %v659
    %v724 = vunpack.c.l.b16 %v660
    %v725 = vunpack.c.l.b16 %v661
    %v726 = vunpack.c.l.b16 %v662
    %v727 = vunpack.c.l.b16 %v663
    %v728 = vunpack.c.l.b16 %v664
    %v729 = vunpack.c.l.b16 %v665
    %v730 = vunpack.c.l.b16 %v666
    %v731 = vunpack.c.l.b16 %v667
    %v732 = vpack.c.b16 %v701, %v700
    %v733 = vpack.c.b16 %v703, %v702
    %v734 = vpack.c.b16 %v705, %v704
    %v735 = vpack.c.b16 %v707, %v706
    %v736 = vpack.c.b16 %v709, %v708
    %v737 = vpack.c.b16 %v711, %v710
    %v738 = vpack.c.b16 %v713, %v712
    %v739 = vpack.c.b16 %v715, %v714
    %v740 = vpack.c.b16 %v717, %v716
    %v741 = vpack.c.b16 %v719, %v718
    %v742 = vpack.c.b16 %v721, %v720
    %v743 = vpack.c.b16 %v723, %v722
    %v744 = vpack.c.b16 %v725, %v724
    %v745 = vpack.c.b16 %v727, %v726
    %v746 = vpack.c.b16 %v729, %v728
    %v747 = vpack.c.b16 %v731, %v730
    %764 = vmatprep.subr.bf16.mxu0 0
    %765 = vmatpush1.bf16.msra.mxu0 %v732
    %766 = vmatprep.subr.bf16.mxu0 0
    %767 = vmatpush1.bf16.msra.mxu0 %v733
    %768 = vmatprep.subr.bf16.mxu0 0
    %769 = vmatpush1.bf16.msra.mxu0 %v734
    %770 = vmatprep.subr.bf16.mxu0 0
    %771 = vmatpush1.bf16.msra.mxu0 %v735
    %772 = vmatprep.subr.bf16.mxu0 0
    %773 = vmatpush1.bf16.msra.mxu0 %v736
    %774 = vmatprep.subr.bf16.mxu0 0
    %775 = vmatpush1.bf16.msra.mxu0 %v737
    %776 = vmatprep.subr.bf16.mxu0 0
    %777 = vmatpush1.bf16.msra.mxu0 %v738
    %778 = vmatprep.subr.bf16.mxu0 0
    %779 = vmatpush1.bf16.msra.mxu0 %v739
    %780 = vmatprep.subr.bf16.mxu0 0
    %781 = vmatpush1.bf16.msra.mxu0 %v740
    %782 = vmatprep.subr.bf16.mxu0 0
    %783 = vmatpush1.bf16.msra.mxu0 %v741
    %784 = vmatprep.subr.bf16.mxu0 0
    %785 = vmatpush1.bf16.msra.mxu0 %v742
    %786 = vmatprep.subr.bf16.mxu0 0
    %787 = vmatpush1.bf16.msra.mxu0 %v743
    %788 = vmatprep.subr.bf16.mxu0 0
    %789 = vmatpush1.bf16.msra.mxu0 %v744
    %790 = vmatprep.subr.bf16.mxu0 0
    %791 = vmatpush1.bf16.msra.mxu0 %v745
    %792 = vmatprep.subr.bf16.mxu0 0
    %793 = vmatpush1.bf16.msra.mxu0 %v746
    %794 = vmatprep.subr.bf16.mxu0 0
    %795 = vmatpush1.bf16.msra.mxu0 %v747
    %796 = vmatprep.mubr.bf16.mxu0 %v605
    %797 = vmatmul.mubr.bf16.gmra.mrb[0].mxu0 %v604
    %v798 = vpop.f32.mrb[0].mxu0
    %v799 = vadd.f32 0.0, %v798
    %v800 = vpop.f32.mrb[0].mxu0
    %v801 = vpop.f32.mrb[0].mxu0
    %v802 = vadd.f32 0.0, %v801
    %v803 = vpop.f32.mrb[0].mxu0
    %804 = vmatprep.mubr.bf16.mxu0 %v607
    %805 = vmatmul.mubr.bf16.gmra.mrb[0].mxu0 %v606
    %v806 = vpop.f32.mrb[0].mxu0
    %v807 = vadd.f32 0.0, %v806
    %v808 = vpop.f32.mrb[0].mxu0
    %v809 = vpop.f32.mrb[0].mxu0
    %v810 = vadd.f32 0.0, %v809
    %v811 = vpop.f32.mrb[0].mxu0
    %812 = vmatprep.mubr.bf16.mxu0 %v609
    %813 = vmatmul.mubr.bf16.gmra.mrb[0].mxu0 %v608
    %v814 = vpop.f32.mrb[0].mxu0
    %v815 = vadd.f32 0.0, %v814
    %v816 = vpop.f32.mrb[0].mxu0
    %v817 = vpop.f32.mrb[0].mxu0
    %v818 = vadd.f32 0.0, %v817
    %v819 = vpop.f32.mrb[0].mxu0
    %820 = vmatprep.mubr.bf16.mxu0 %v611
    %821 = vmatmul.mubr.bf16.gmra.mrb[0].mxu0 %v610
    %v822 = vpop.f32.mrb[0].mxu0
    %v823 = vadd.f32 0.0, %v822
    %v824 = vpop.f32.mrb[0].mxu0
    %v825 = vpop.f32.mrb[0].mxu0
    %v826 = vadd.f32 0.0, %v825
    %v827 = vpop.f32.mrb[0].mxu0
    %828 = vmatprep.mubr.bf16.mxu0 %v621
    %829 = vmatmul.mubr.bf16.gmra.mrb[0].mxu0 %v620
    %v830 = vpop.f32.mrb[0].mxu0
    %v831 = vadd.f32 0.0, %v830
    %v832 = vpop.f32.mrb[0].mxu0
    %v833 = vpop.f32.mrb[0].mxu0
    %v834 = vadd.f32 0.0, %v833
    %v835 = vpop.f32.mrb[0].mxu0
    %836 = vmatprep.mubr.bf16.mxu0 %v623
    %837 = vmatmul.mubr.bf16.gmra.mrb[0].mxu0 %v622
    %v838 = vpop.f32.mrb[0].mxu0
    %v839 = vadd.f32 0.0, %v838
    %v840 = vpop.f32.mrb[0].mxu0
    %v841 = vpop.f32.mrb[0].mxu0
    %v842 = vadd.f32 0.0, %v841
    %v843 = vpop.f32.mrb[0].mxu0
    %844 = vmatprep.mubr.bf16.mxu0 %v625
    %845 = vmatmul.mubr.bf16.gmra.mrb[0].mxu0 %v624
    %v846 = vpop.f32.mrb[0].mxu0
    %v847 = vadd.f32 0.0, %v846
    %v848 = vpop.f32.mrb[0].mxu0
    %v849 = vpop.f32.mrb[0].mxu0
    %v850 = vadd.f32 0.0, %v849
    %v851 = vpop.f32.mrb[0].mxu0
    %852 = vmatprep.mubr.bf16.mxu0 %v627
    %853 = vmatmul.mubr.bf16.gmra.mrb[0].mxu0 %v626
    %v854 = vpop.f32.mrb[0].mxu0
    %v855 = vadd.f32 0.0, %v854
    %v856 = vpop.f32.mrb[0].mxu0
    %v857 = vpop.f32.mrb[0].mxu0
    %v858 = vadd.f32 0.0, %v857
    %v859 = vpop.f32.mrb[0].mxu0
    %860 = vdwg.mxu0
    %v861 = vadd.f32 %v799, %v831
    %v862 = vadd.f32 %v802, %v834
    %v863 = vadd.f32 %v807, %v839
    %v864 = vadd.f32 %v810, %v842
    %v865 = vadd.f32 %v815, %v847
    %v866 = vadd.f32 %v818, %v850
    %v867 = vadd.f32 %v823, %v855
    %v868 = vadd.f32 %v826, %v858
    %vm869 = vcmp.eq.s32.totalorder %v297, 0
    %vm870 = vcmp.eq.s32.totalorder %v298, 0
    %v871 = vsel %vm869, 1, 0
    %v872 = vsel %vm870, 1, 0
    %v873 = vcvt.s32.f32 %v871
    %v874 = vcvt.s32.f32 %v872
    %v875 = vpack.c.bf16 %v873, %v873
    %v876 = vpack.c.bf16 %v874, %v874
    %877 = vmatprep.subr.bf16.mxu0 %v605
    %878 = vmatpush1.bf16.xpose.msra.mxu0 %v604
    %879 = vmatprep.subr.bf16.mxu0 %v607
    %880 = vmatpush1.bf16.xpose.msra.mxu0 %v606
    %881 = vmatprep.subr.bf16.mxu0 %v609
    %882 = vmatpush1.bf16.xpose.msra.mxu0 %v608
    %883 = vmatprep.subr.bf16.mxu0 %v611
    %884 = vmatpush1.bf16.xpose.msra.mxu0 %v610
    %885 = vmatprep.subr.bf16.mxu0 0
    %886 = vmatpush1.bf16.xpose.msra.mxu0 0
    %887 = vmatprep.subr.bf16.mxu0 0
    %888 = vmatpush1.bf16.xpose.msra.mxu0 0
    %889 = vmatprep.subr.bf16.mxu0 0
    %890 = vmatpush1.bf16.xpose.msra.mxu0 0
    %891 = vmatprep.subr.bf16.mxu0 0
    %892 = vmatpush1.bf16.xpose.msra.mxu0 0
    %893 = vmatprep.subr.bf16.mxu0 0
    %894 = vmatpush1.bf16.xpose.msra.mxu0 0
    %895 = vmatprep.subr.bf16.mxu0 0
    %896 = vmatpush1.bf16.xpose.msra.mxu0 0
    %897 = vmatprep.subr.bf16.mxu0 0
    %898 = vmatpush1.bf16.xpose.msra.mxu0 0
    %899 = vmatprep.subr.bf16.mxu0 0
    %900 = vmatpush1.bf16.xpose.msra.mxu0 0
    %901 = vmatprep.subr.bf16.mxu0 0
    %902 = vmatpush1.bf16.xpose.msra.mxu0 0
    %903 = vmatprep.subr.bf16.mxu0 0
    %904 = vmatpush1.bf16.xpose.msra.mxu0 0
    %905 = vmatprep.subr.bf16.mxu0 0
    %906 = vmatpush1.bf16.xpose.msra.mxu0 0
    %907 = vmatprep.subr.bf16.mxu0 0
    %908 = vmatpush1.bf16.xpose.msra.mxu0 0
    %909 = vmatprep.mubr.bf16.mxu0 %v876
    %910 = vmatmul.mubr.bf16.gmra.mrb[0].mxu0 %v875
    %v911 = vpop.f32.mrb[0].mxu0
    %v912 = vadd.f32 0.0, %v911
    %v913 = vpop.f32.mrb[0].mxu0
    %v914 = vpop.f32.mrb[0].mxu0
    %v915 = vpop.f32.mrb[0].mxu0
    %916 = vdwg.mxu0
    %v917 = vld [vmem:[#allocation11] sm:$0xf]
    %v918 = vld [vmem:[#allocation11 + $0x4] sm:$0xf]
    %v919 = vld [vmem:[#allocation11 + $0x8] sm:$0xf]
    %v920 = vld [vmem:[#allocation11 + $0xc] sm:$0xf]
    %v921 = vld [vmem:[#allocation11 + $0x10] sm:$0xf]
    %v922 = vld [vmem:[#allocation11 + $0x14] sm:$0xf]
    %v923 = vld [vmem:[#allocation11 + $0x18] sm:$0xf]
    %v924 = vld [vmem:[#allocation11 + $0x1c] sm:$0xf]
    %v925 = vld [vmem:[#allocation11 + $0x20] sm:$0xf]
    %v926 = vld [vmem:[#allocation11 + $0x24] sm:$0xf]
    %v927 = vld [vmem:[#allocation11 + $0x28] sm:$0xf]
    %v928 = vld [vmem:[#allocation11 + $0x2c] sm:$0xf]
    %v929 = vld [vmem:[#allocation11 + $0x30] sm:$0xf]
    %v930 = vld [vmem:[#allocation11 + $0x34] sm:$0xf]
    %v931 = vld [vmem:[#allocation11 + $0x38] sm:$0xf]
    %v932 = vld [vmem:[#allocation11 + $0x3c] sm:$0xf]
    %v933 = vunpack.c.l.bf16 %v917
    %v934 = vunpack.c.l.bf16 %v918
    %v935 = vunpack.c.l.bf16 %v919
    %v936 = vunpack.c.l.bf16 %v920
    %v937 = vunpack.c.l.bf16 %v921
    %v938 = vunpack.c.l.bf16 %v922
    %v939 = vunpack.c.l.bf16 %v923
    %v940 = vunpack.c.l.bf16 %v924
    %v941 = vunpack.c.l.bf16 %v925
    %v942 = vunpack.c.l.bf16 %v926
    %v943 = vunpack.c.l.bf16 %v927
    %v944 = vunpack.c.l.bf16 %v928
    %v945 = vunpack.c.l.bf16 %v929
    %v946 = vunpack.c.l.bf16 %v930
    %v947 = vunpack.c.l.bf16 %v931
    %v948 = vunpack.c.l.bf16 %v932
    %v949 = vld [vmem:[%s5] sm:$0x1]
    %v951 = vlaneseq
    %v952 = vshrl.u32 %v951, 7
    %v953 = vsub.s32 0, %v952
    %v954 = vrot.slane %v949, %v953
    %956 = vmatprep.subr.mxu0 0.0
    %957 = vmatpush1.msra.mxu0 %v933
    %958 = vmatprep.subr.mxu0 0.0
    %959 = vmatpush1.msra.mxu0 %v934
    %960 = vmatprep.subr.mxu0 0.0
    %961 = vmatpush1.msra.mxu0 %v935
    %962 = vmatprep.subr.mxu0 0.0
    %963 = vmatpush1.msra.mxu0 %v936
    %964 = vmatprep.subr.mxu0 0.0
    %965 = vmatpush1.msra.mxu0 %v937
    %966 = vmatprep.subr.mxu0 0.0
    %967 = vmatpush1.msra.mxu0 %v938
    %968 = vmatprep.subr.mxu0 0.0
    %969 = vmatpush1.msra.mxu0 %v939
    %970 = vmatprep.subr.mxu0 0.0
    %971 = vmatpush1.msra.mxu0 %v940
    %972 = vmatprep.subr.mxu0 0.0
    %973 = vmatpush1.msra.mxu0 %v941
    %974 = vmatprep.subr.mxu0 0.0
    %975 = vmatpush1.msra.mxu0 %v942
    %976 = vmatprep.subr.mxu0 0.0
    %977 = vmatpush1.msra.mxu0 %v943
    %978 = vmatprep.subr.mxu0 0.0
    %979 = vmatpush1.msra.mxu0 %v944
    %980 = vmatprep.subr.mxu0 0.0
    %981 = vmatpush1.msra.mxu0 %v945
    %982 = vmatprep.subr.mxu0 0.0
    %983 = vmatpush1.msra.mxu0 %v946
    %984 = vmatprep.subr.mxu0 0.0
    %985 = vmatpush1.msra.mxu0 %v947
    %986 = vmatprep.subr.mxu0 0.0
    %987 = vmatpush1.msra.mxu0 %v948
    %988 = vmatprep.subr.mxu0 0.0
    %989 = vmatpush1.msra.mxu0 0.0
    %990 = vmatprep.subr.mxu0 0.0
    %991 = vmatpush1.msra.mxu0 0.0
    %992 = vmatprep.subr.mxu0 0.0
    %993 = vmatpush1.msra.mxu0 0.0
    %994 = vmatprep.subr.mxu0 0.0
    %995 = vmatpush1.msra.mxu0 0.0
    %996 = vmatprep.subr.mxu0 0.0
    %997 = vmatpush1.msra.mxu0 0.0
    %998 = vmatprep.subr.mxu0 0.0
    %999 = vmatpush1.msra.mxu0 0.0
    %1000 = vmatprep.subr.mxu0 0.0
    %1001 = vmatpush1.msra.mxu0 0.0
    %1002 = vmatprep.subr.mxu0 0.0
    %1003 = vmatpush1.msra.mxu0 0.0
    %1004 = vmatprep.subr.mxu0 0.0
    %1005 = vmatpush1.msra.mxu0 0.0
    %1006 = vmatprep.subr.mxu0 0.0
    %1007 = vmatpush1.msra.mxu0 0.0
    %1008 = vmatprep.subr.mxu0 0.0
    %1009 = vmatpush1.msra.mxu0 0.0
    %1010 = vmatprep.subr.mxu0 0.0
    %1011 = vmatpush1.msra.mxu0 0.0
    %1012 = vmatprep.subr.mxu0 0.0
    %1013 = vmatpush1.msra.mxu0 0.0
    %1014 = vmatprep.subr.mxu0 0.0
    %1015 = vmatpush1.msra.mxu0 0.0
    %1016 = vmatprep.subr.mxu0 0.0
    %1017 = vmatpush1.msra.mxu0 0.0
    %1018 = vmatprep.subr.mxu0 0.0
    %1019 = vmatpush1.msra.mxu0 0.0
    %1020 = vmatprep.mubr.f32.mxu0 0.0
    %1021 = vmatmul.mubr.f32.gmra.mrb[0].mxu0 %v861
    %v1022 = vpop.f32.mrb[0].mxu0
    %v1023 = vadd.f32 %v954, %v1022
    %v1024 = vpop.f32.mrb[0].mxu0
    %1025 = vmatprep.mubr.f32.mxu0 0.0
    %1026 = vmatmul.mubr.f32.gmra.mrb[0].mxu0 %v862
    %v1027 = vpop.f32.mrb[0].mxu0
    %v1028 = vadd.f32 %v954, %v1027
    %v1029 = vpop.f32.mrb[0].mxu0
    %1030 = vmatprep.mubr.f32.mxu0 0.0
    %1031 = vmatmul.mubr.f32.gmra.mrb[0].mxu0 %v863
    %v1032 = vpop.f32.mrb[0].mxu0
    %v1033 = vadd.f32 %v954, %v1032
    %v1034 = vpop.f32.mrb[0].mxu0
    %1035 = vmatprep.mubr.f32.mxu0 0.0
    %1036 = vmatmul.mubr.f32.gmra.mrb[0].mxu0 %v864
    %v1037 = vpop.f32.mrb[0].mxu0
    %v1038 = vadd.f32 %v954, %v1037
    %v1039 = vpop.f32.mrb[0].mxu0
    %1040 = vmatprep.mubr.f32.mxu0 0.0
    %1041 = vmatmul.mubr.f32.gmra.mrb[0].mxu0 %v865
    %v1042 = vpop.f32.mrb[0].mxu0
    %v1043 = vadd.f32 %v954, %v1042
    %v1044 = vpop.f32.mrb[0].mxu0
    %1045 = vmatprep.mubr.f32.mxu0 0.0
    %1046 = vmatmul.mubr.f32.gmra.mrb[0].mxu0 %v866
    %v1047 = vpop.f32.mrb[0].mxu0
    %v1048 = vadd.f32 %v954, %v1047
    %v1049 = vpop.f32.mrb[0].mxu0
    %1050 = vmatprep.mubr.f32.mxu0 0.0
    %1051 = vmatmul.mubr.f32.gmra.mrb[0].mxu0 %v867
    %v1052 = vpop.f32.mrb[0].mxu0
    %v1053 = vadd.f32 %v954, %v1052
    %v1054 = vpop.f32.mrb[0].mxu0
    %1055 = vmatprep.mubr.f32.mxu0 0.0
    %1056 = vmatmul.mubr.f32.gmra.mrb[0].mxu0 %v868
    %v1057 = vpop.f32.mrb[0].mxu0
    %v1058 = vadd.f32 %v954, %v1057
    %v1059 = vpop.f32.mrb[0].mxu0
    %1060 = vdwg.mxu0
    %v1061 = vmax.f32 %v1023, 0.0
    %v1062 = vmax.f32 %v1028, 0.0
    %v1063 = vmax.f32 %v1033, 0.0
    %v1064 = vmax.f32 %v1038, 0.0
    %v1065 = vmax.f32 %v1043, 0.0
    %v1066 = vmax.f32 %v1048, 0.0
    %v1067 = vmax.f32 %v1053, 0.0
    %v1068 = vmax.f32 %v1058, 0.0
    %1069 = vmatprep.subr.mxu0 0.0
    %1070 = vmatpush1.xpose.msra.mxu0 %v861
    %1071 = vmatprep.subr.mxu0 0.0
    %1072 = vmatpush1.xpose.msra.mxu0 %v862
    %1073 = vmatprep.subr.mxu0 0.0
    %1074 = vmatpush1.xpose.msra.mxu0 %v863
    %1075 = vmatprep.subr.mxu0 0.0
    %1076 = vmatpush1.xpose.msra.mxu0 %v864
    %1077 = vmatprep.subr.mxu0 0.0
    %1078 = vmatpush1.xpose.msra.mxu0 %v865
    %1079 = vmatprep.subr.mxu0 0.0
    %1080 = vmatpush1.xpose.msra.mxu0 %v866
    %1081 = vmatprep.subr.mxu0 0.0
    %1082 = vmatpush1.xpose.msra.mxu0 %v867
    %1083 = vmatprep.subr.mxu0 0.0
    %1084 = vmatpush1.xpose.msra.mxu0 %v868
    %1085 = vmatprep.subr.mxu0 0.0
    %1086 = vmatpush1.xpose.msra.mxu0 0.0
    %1087 = vmatprep.subr.mxu0 0.0
    %1088 = vmatpush1.xpose.msra.mxu0 0.0
    %1089 = vmatprep.subr.mxu0 0.0
    %1090 = vmatpush1.xpose.msra.mxu0 0.0
    %1091 = vmatprep.subr.mxu0 0.0
    %1092 = vmatpush1.xpose.msra.mxu0 0.0
    %1093 = vmatprep.subr.mxu0 0.0
    %1094 = vmatpush1.xpose.msra.mxu0 0.0
    %1095 = vmatprep.subr.mxu0 0.0
    %1096 = vmatpush1.xpose.msra.mxu0 0.0
    %1097 = vmatprep.subr.mxu0 0.0
    %1098 = vmatpush1.xpose.msra.mxu0 0.0
    %1099 = vmatprep.subr.mxu0 0.0
    %1100 = vmatpush1.xpose.msra.mxu0 0.0
    %1101 = vmatprep.subr.mxu0 0.0
    %1102 = vmatpush1.xpose.msra.mxu0 0.0
    %1103 = vmatprep.subr.mxu0 0.0
    %1104 = vmatpush1.xpose.msra.mxu0 0.0
    %1105 = vmatprep.subr.mxu0 0.0
    %1106 = vmatpush1.xpose.msra.mxu0 0.0
    %1107 = vmatprep.subr.mxu0 0.0
    %1108 = vmatpush1.xpose.msra.mxu0 0.0
    %1109 = vmatprep.subr.mxu0 0.0
    %1110 = vmatpush1.xpose.msra.mxu0 0.0
    %1111 = vmatprep.subr.mxu0 0.0
    %1112 = vmatpush1.xpose.msra.mxu0 0.0
    %1113 = vmatprep.subr.mxu0 0.0
    %1114 = vmatpush1.xpose.msra.mxu0 0.0
    %1115 = vmatprep.subr.mxu0 0.0
    %1116 = vmatpush1.xpose.msra.mxu0 0.0
    %1117 = vmatprep.subr.mxu0 0.0
    %1118 = vmatpush1.xpose.msra.mxu0 0.0
    %1119 = vmatprep.subr.mxu0 0.0
    %1120 = vmatpush1.xpose.msra.mxu0 0.0
    %1121 = vmatprep.subr.mxu0 0.0
    %1122 = vmatpush1.xpose.msra.mxu0 0.0
    %1123 = vmatprep.subr.mxu0 0.0
    %1124 = vmatpush1.xpose.msra.mxu0 0.0
    %1125 = vmatprep.subr.mxu0 0.0
    %1126 = vmatpush1.xpose.msra.mxu0 0.0
    %1127 = vmatprep.subr.mxu0 0.0
    %1128 = vmatpush1.xpose.msra.mxu0 0.0
    %1129 = vmatprep.subr.mxu0 0.0
    %1130 = vmatpush1.xpose.msra.mxu0 0.0
    %1131 = vmatprep.subr.mxu0 0.0
    %1132 = vmatpush1.xpose.msra.mxu0 0.0
    %1133 = vmatprep.mubr.f32.mxu0 0.0
    %1134 = vmatmul.mubr.f32.gmra.mrb[0].mxu0 %v1061
    %v1135 = vpop.f32.mrb[0].mxu0
    %v1136 = vadd.f32 0.0, %v1135
    %v1137 = vpop.f32.mrb[0].mxu0
    %1138 = vmatprep.mubr.f32.mxu0 0.0
    %1139 = vmatmul.mubr.f32.gmra.mrb[0].mxu0 %v1062
    %v1140 = vpop.f32.mrb[0].mxu0
    %v1141 = vadd.f32 0.0, %v1140
    %v1142 = vpop.f32.mrb[0].mxu0
    %1143 = vmatprep.mubr.f32.mxu0 0.0
    %1144 = vmatmul.mubr.f32.gmra.mrb[0].mxu0 %v1063
    %v1145 = vpop.f32.mrb[0].mxu0
    %v1146 = vadd.f32 0.0, %v1145
    %v1147 = vpop.f32.mrb[0].mxu0
    %1148 = vmatprep.mubr.f32.mxu0 0.0
    %1149 = vmatmul.mubr.f32.gmra.mrb[0].mxu0 %v1064
    %v1150 = vpop.f32.mrb[0].mxu0
    %v1151 = vadd.f32 0.0, %v1150
    %v1152 = vpop.f32.mrb[0].mxu0
    %1153 = vmatprep.mubr.f32.mxu0 0.0
    %1154 = vmatmul.mubr.f32.gmra.mrb[0].mxu0 %v1065
    %v1155 = vpop.f32.mrb[0].mxu0
    %v1156 = vadd.f32 0.0, %v1155
    %v1157 = vpop.f32.mrb[0].mxu0
    %1158 = vmatprep.mubr.f32.mxu0 0.0
    %1159 = vmatmul.mubr.f32.gmra.mrb[0].mxu0 %v1066
    %v1160 = vpop.f32.mrb[0].mxu0
    %v1161 = vadd.f32 0.0, %v1160
    %v1162 = vpop.f32.mrb[0].mxu0
    %1163 = vmatprep.mubr.f32.mxu0 0.0
    %1164 = vmatmul.mubr.f32.gmra.mrb[0].mxu0 %v1067
    %v1165 = vpop.f32.mrb[0].mxu0
    %v1166 = vadd.f32 0.0, %v1165
    %v1167 = vpop.f32.mrb[0].mxu0
    %1168 = vmatprep.mubr.f32.mxu0 0.0
    %1169 = vmatmul.mubr.f32.gmra.mrb[0].mxu0 %v1068
    %v1170 = vpop.f32.mrb[0].mxu0
    %v1171 = vadd.f32 0.0, %v1170
    %v1172 = vpop.f32.mrb[0].mxu0
    %1173 = vdwg.mxu0
    %v1174 = vlaneseq
    %v1175 = vshrl.u32 %v1174, 7
    %v1176 = vadd.s32 %v1175, 8
    %v1177 = vadd.s32 %v1175, 16
    %v1178 = vadd.s32 %v1175, 24
    %v1179 = vadd.s32 %v1175, 32
    %v1180 = vadd.s32 %v1175, 40
    %v1181 = vadd.s32 %v1175, 48
    %v1182 = vadd.s32 %v1175, 56
    %v1183 = vsub.s32 %v1175, %v297
    %v1184 = vsub.s32 %v1176, %v297
    %v1185 = vsub.s32 %v1177, %v297
    %v1186 = vsub.s32 %v1178, %v297
    %v1187 = vsub.s32 %v1179, %v297
    %v1188 = vsub.s32 %v1180, %v297
    %v1189 = vsub.s32 %v1181, %v297
    %v1190 = vsub.s32 %v1182, %v297
    %vm1191 = vcmp.ge.s32.totalorder %v1183, 0
    %vm1192 = vcmp.ge.s32.totalorder %v1184, 0
    %vm1193 = vcmp.ge.s32.totalorder %v1185, 0
    %vm1194 = vcmp.ge.s32.totalorder %v1186, 0
    %vm1195 = vcmp.ge.s32.totalorder %v1187, 0
    %vm1196 = vcmp.ge.s32.totalorder %v1188, 0
    %vm1197 = vcmp.ge.s32.totalorder %v1189, 0
    %vm1198 = vcmp.ge.s32.totalorder %v1190, 0
    %vm1199 = vcmp.le.s32.totalorder %v1183, %v1175
    %vm1200 = vcmp.le.s32.totalorder %v1184, %v1175
    %vm1201 = vcmp.le.s32.totalorder %v1185, %v1175
    %vm1202 = vcmp.le.s32.totalorder %v1186, %v1175
    %vm1203 = vcmp.le.s32.totalorder %v1187, %v1175
    %vm1204 = vcmp.le.s32.totalorder %v1188, %v1175
    %vm1205 = vcmp.le.s32.totalorder %v1189, %v1175
    %vm1206 = vcmp.le.s32.totalorder %v1190, %v1175
    %vm1207 = vmand %vm1191, %vm1199
    %vm1208 = vmand %vm1192, %vm1200
    %vm1209 = vmand %vm1193, %vm1201
    %vm1210 = vmand %vm1194, %vm1202
    %vm1211 = vmand %vm1195, %vm1203
    %vm1212 = vmand %vm1196, %vm1204
    %vm1213 = vmand %vm1197, %vm1205
    %vm1214 = vmand %vm1198, %vm1206
    %vm1215 = vcmp.lt.f32.partialorder %v912, 0.5
    %v1216 = vsel %vm1215, 1, 0
    %v1217 = vlaneseq
    %v1218 = vshrl.u32 %v1217, 7
    %v1219 = vsub.s32 0, %v1218
    %v1220 = vrot.slane %v1216, %v1219
    %vm1221 = vcmp.eq.s32.totalorder %v1220, 1
    %vm1222 = vmand %vm1207, %vm1221
    %vm1223 = vmand %vm1208, %vm1221
    %vm1224 = vmand %vm1209, %vm1221
    %vm1225 = vmand %vm1210, %vm1221
    %vm1226 = vmand %vm1211, %vm1221
    %vm1227 = vmand %vm1212, %vm1221
    %vm1228 = vmand %vm1213, %vm1221
    %vm1229 = vmand %vm1214, %vm1221
    %v1230 = vmul.f32 %v1136, 0.088388346
    %v1231 = vmul.f32 %v1141, 0.088388346
    %v1232 = vmul.f32 %v1146, 0.088388346
    %v1233 = vmul.f32 %v1151, 0.088388346
    %v1234 = vmul.f32 %v1156, 0.088388346
    %v1235 = vmul.f32 %v1161, 0.088388346
    %v1236 = vmul.f32 %v1166, 0.088388346
    %v1237 = vmul.f32 %v1171, 0.088388346
    %v1238 = vsel %vm1222, %v1230, -1e+09
    %v1239 = vsel %vm1223, %v1231, -1e+09
    %v1240 = vsel %vm1224, %v1232, -1e+09
    %v1241 = vsel %vm1225, %v1233, -1e+09
    %v1242 = vsel %vm1226, %v1234, -1e+09
    %v1243 = vsel %vm1227, %v1235, -1e+09
    %v1244 = vsel %vm1228, %v1236, -1e+09
    %v1245 = vsel %vm1229, %v1237, -1e+09
    %vm1246 = vcmask 523264
    %v1247 = vsel %vm1246, %v1238, -inf
    %1248 = vmax.xlane.f32.xlu0 %v1247
    %v1249 = vpop.xlane.xlu0 %1248
    %v1250 = vsel %vm1246, %v1239, -inf
    %1251 = vmax.xlane.f32.xlu0 %v1250
    %v1252 = vpop.xlane.xlu0 %1251
    %v1253 = vsel %vm1246, %v1240, -inf
    %1254 = vmax.xlane.f32.xlu0 %v1253
    %v1255 = vpop.xlane.xlu0 %1254
    %v1256 = vsel %vm1246, %v1241, -inf
    %1257 = vmax.xlane.f32.xlu0 %v1256
    %v1258 = vpop.xlane.xlu0 %1257
    %v1259 = vsel %vm1246, %v1242, -inf
    %1260 = vmax.xlane.f32.xlu0 %v1259
    %v1261 = vpop.xlane.xlu0 %1260
    %v1262 = vsel %vm1246, %v1243, -inf
    %1263 = vmax.xlane.f32.xlu0 %v1262
    %v1264 = vpop.xlane.xlu0 %1263
    %v1265 = vsel %vm1246, %v1244, -inf
    %1266 = vmax.xlane.f32.xlu0 %v1265
    %v1267 = vpop.xlane.xlu0 %1266
    %v1268 = vsel %vm1246, %v1245, -inf
    %1269 = vmax.xlane.f32.xlu0 %v1268
    %v1270 = vpop.xlane.xlu0 %1269
    %v1271 = vsub.f32 %v1238, %v1249
    %v1272 = vsub.f32 %v1239, %v1252
    %v1273 = vsub.f32 %v1240, %v1255
    %v1274 = vsub.f32 %v1241, %v1258
    %v1275 = vsub.f32 %v1242, %v1261
    %v1276 = vsub.f32 %v1243, %v1264
    %v1277 = vsub.f32 %v1244, %v1267
    %v1278 = vsub.f32 %v1245, %v1270
    %v1279 = vmul.f32 %v1271, 1.442695
    %v1280 = vpow.pop %v1279
    %v1281 = vmul.f32 %v1272, 1.442695
    %v1282 = vpow.pop %v1281
    %v1283 = vmul.f32 %v1273, 1.442695
    %v1284 = vpow.pop %v1283
    %v1285 = vmul.f32 %v1274, 1.442695
    %v1286 = vpow.pop %v1285
    %v1287 = vmul.f32 %v1275, 1.442695
    %v1288 = vpow.pop %v1287
    %v1289 = vmul.f32 %v1276, 1.442695
    %v1290 = vpow.pop %v1289
    %v1291 = vmul.f32 %v1277, 1.442695
    %v1292 = vpow.pop %v1291
    %v1293 = vmul.f32 %v1278, 1.442695
    %v1294 = vpow.pop %v1293
    %v1295 = vsel %vm1246, %v1280, 0.0
    %1296 = vadd.xlane.f32.xlu0 %v1295
    %v1297 = vpop.xlane.xlu0 %1296
    %v1298 = vsel %vm1246, %v1282, 0.0
    %1299 = vadd.xlane.f32.xlu0 %v1298
    %v1300 = vpop.xlane.xlu0 %1299
    %v1301 = vsel %vm1246, %v1284, 0.0
    %1302 = vadd.xlane.f32.xlu0 %v1301
    %v1303 = vpop.xlane.xlu0 %1302
    %v1304 = vsel %vm1246, %v1286, 0.0
    %1305 = vadd.xlane.f32.xlu0 %v1304
    %v1306 = vpop.xlane.xlu0 %1305
    %v1307 = vsel %vm1246, %v1288, 0.0
    %1308 = vadd.xlane.f32.xlu0 %v1307
    %v1309 = vpop.xlane.xlu0 %1308
    %v1310 = vsel %vm1246, %v1290, 0.0
    %1311 = vadd.xlane.f32.xlu0 %v1310
    %v1312 = vpop.xlane.xlu0 %1311
    %v1313 = vsel %vm1246, %v1292, 0.0
    %1314 = vadd.xlane.f32.xlu0 %v1313
    %v1315 = vpop.xlane.xlu0 %1314
    %v1316 = vsel %vm1246, %v1294, 0.0
    %1317 = vadd.xlane.f32.xlu0 %v1316
    %v1318 = vpop.xlane.xlu0 %1317
    %v1319 = vrcp.pop %v1297
    %v1320 = vrcp.pop %v1300
    %v1321 = vrcp.pop %v1303
    %v1322 = vrcp.pop %v1306
    %v1323 = vrcp.pop %v1309
    %v1324 = vrcp.pop %v1312
    %v1325 = vrcp.pop %v1315
    %v1326 = vrcp.pop %v1318
    %v1327 = vmul.f32 %v1280, %v1319
    %v1328 = vmul.f32 %v1282, %v1320
    %v1329 = vmul.f32 %v1284, %v1321
    %v1330 = vmul.f32 %v1286, %v1322
    %v1331 = vmul.f32 %v1288, %v1323
    %v1332 = vmul.f32 %v1290, %v1324
    %v1333 = vmul.f32 %v1292, %v1325
    %v1334 = vmul.f32 %v1294, %v1326
    %v1336 = vsel %vm1246, %v1327, 0
    %v1339 = vsel %vm1246, %v1328, 0
    %v1342 = vsel %vm1246, %v1329, 0
    %v1345 = vsel %vm1246, %v1330, 0
    %v1348 = vsel %vm1246, %v1331, 0
    %v1351 = vsel %vm1246, %v1332, 0
    %v1354 = vsel %vm1246, %v1333, 0
    %v1357 = vsel %vm1246, %v1334, 0
    %1359 = vmatprep.subr.mxu0 0.0
    %1360 = vmatpush1.msra.mxu0 %v861
    %1361 = vmatprep.subr.mxu0 0.0
    %1362 = vmatpush1.msra.mxu0 %v862
    %1363 = vmatprep.subr.mxu0 0.0
    %1364 = vmatpush1.msra.mxu0 %v863
    %1365 = vmatprep.subr.mxu0 0.0
    %1366 = vmatpush1.msra.mxu0 %v864
    %1367 = vmatprep.subr.mxu0 0.0
    %1368 = vmatpush1.msra.mxu0 %v865
    %1369 = vmatprep.subr.mxu0 0.0
    %1370 = vmatpush1.msra.mxu0 %v866
    %1371 = vmatprep.subr.mxu0 0.0
    %1372 = vmatpush1.msra.mxu0 %v867
    %1373 = vmatprep.subr.mxu0 0.0
    %1374 = vmatpush1.msra.mxu0 %v868
    %1375 = vmatprep.subr.mxu0 0.0
    %1376 = vmatpush1.msra.mxu0 0.0
    %1377 = vmatprep.subr.mxu0 0.0
    %1378 = vmatpush1.msra.mxu0 0.0
    %1379 = vmatprep.subr.mxu0 0.0
    %1380 = vmatpush1.msra.mxu0 0.0
    %1381 = vmatprep.subr.mxu0 0.0
    %1382 = vmatpush1.msra.mxu0 0.0
    %1383 = vmatprep.subr.mxu0 0.0
    %1384 = vmatpush1.msra.mxu0 0.0
    %1385 = vmatprep.subr.mxu0 0.0
    %1386 = vmatpush1.msra.mxu0 0.0
    %1387 = vmatprep.subr.mxu0 0.0
    %1388 = vmatpush1.msra.mxu0 0.0
    %1389 = vmatprep.subr.mxu0 0.0
    %1390 = vmatpush1.msra.mxu0 0.0
    %1391 = vmatprep.subr.mxu0 0.0
    %1392 = vmatpush1.msra.mxu0 0.0
    %1393 = vmatprep.subr.mxu0 0.0
    %1394 = vmatpush1.msra.mxu0 0.0
    %1395 = vmatprep.subr.mxu0 0.0
    %1396 = vmatpush1.msra.mxu0 0.0
    %1397 = vmatprep.subr.mxu0 0.0
    %1398 = vmatpush1.msra.mxu0 0.0
    %1399 = vmatprep.subr.mxu0 0.0
    %1400 = vmatpush1.msra.mxu0 0.0
    %1401 = vmatprep.subr.mxu0 0.0
    %1402 = vmatpush1.msra.mxu0 0.0
    %1403 = vmatprep.subr.mxu0 0.0
    %1404 = vmatpush1.msra.mxu0 0.0
    %1405 = vmatprep.subr.mxu0 0.0
    %1406 = vmatpush1.msra.mxu0 0.0
    %1407 = vmatprep.subr.mxu0 0.0
    %1408 = vmatpush1.msra.mxu0 0.0
    %1409 = vmatprep.subr.mxu0 0.0
    %1410 = vmatpush1.msra.mxu0 0.0
    %1411 = vmatprep.subr.mxu0 0.0
    %1412 = vmatpush1.msra.mxu0 0.0
    %1413 = vmatprep.subr.mxu0 0.0
    %1414 = vmatpush1.msra.mxu0 0.0
    %1415 = vmatprep.subr.mxu0 0.0
    %1416 = vmatpush1.msra.mxu0 0.0
    %1417 = vmatprep.subr.mxu0 0.0
    %1418 = vmatpush1.msra.mxu0 0.0
    %1419 = vmatprep.subr.mxu0 0.0
    %1420 = vmatpush1.msra.mxu0 0.0
    %1421 = vmatprep.subr.mxu0 0.0
    %1422 = vmatpush1.msra.mxu0 0.0
    %1423 = vmatprep.mubr.f32.mxu0 0.0
    %1424 = vmatmul.mubr.f32.gmra.mrb[0].mxu0 %v1336
    %v1425 = vpop.f32.mrb[0].mxu0
    %v1426 = vadd.f32 0.0, %v1425
    %v1427 = vpop.f32.mrb[0].mxu0
    %1428 = vmatprep.mubr.f32.mxu0 0.0
    %1429 = vmatmul.mubr.f32.gmra.mrb[0].mxu0 %v1339
    %v1430 = vpop.f32.mrb[0].mxu0
    %v1431 = vadd.f32 0.0, %v1430
    %v1432 = vpop.f32.mrb[0].mxu0
    %1433 = vmatprep.mubr.f32.mxu0 0.0
    %1434 = vmatmul.mubr.f32.gmra.mrb[0].mxu0 %v1342
    %v1435 = vpop.f32.mrb[0].mxu0
    %v1436 = vadd.f32 0.0, %v1435
    %v1437 = vpop.f32.mrb[0].mxu0
    %1438 = vmatprep.mubr.f32.mxu0 0.0
    %1439 = vmatmul.mubr.f32.gmra.mrb[0].mxu0 %v1345
    %v1440 = vpop.f32.mrb[0].mxu0
    %v1441 = vadd.f32 0.0, %v1440
    %v1442 = vpop.f32.mrb[0].mxu0
    %1443 = vmatprep.mubr.f32.mxu0 0.0
    %1444 = vmatmul.mubr.f32.gmra.mrb[0].mxu0 %v1348
    %v1445 = vpop.f32.mrb[0].mxu0
    %v1446 = vadd.f32 0.0, %v1445
    %v1447 = vpop.f32.mrb[0].mxu0
    %1448 = vmatprep.mubr.f32.mxu0 0.0
    %1449 = vmatmul.mubr.f32.gmra.mrb[0].mxu0 %v1351
    %v1450 = vpop.f32.mrb[0].mxu0
    %v1451 = vadd.f32 0.0, %v1450
    %v1452 = vpop.f32.mrb[0].mxu0
    %1453 = vmatprep.mubr.f32.mxu0 0.0
    %1454 = vmatmul.mubr.f32.gmra.mrb[0].mxu0 %v1354
    %v1455 = vpop.f32.mrb[0].mxu0
    %v1456 = vadd.f32 0.0, %v1455
    %v1457 = vpop.f32.mrb[0].mxu0
    %1458 = vmatprep.mubr.f32.mxu0 0.0
    %1459 = vmatmul.mubr.f32.gmra.mrb[0].mxu0 %v1357
    %v1460 = vpop.f32.mrb[0].mxu0
    %v1461 = vadd.f32 0.0, %v1460
    %v1462 = vpop.f32.mrb[0].mxu0
    %1463 = vdwg.mxu0
    %v1464 = vld [vmem:[#allocation12] sm:$0xf]
    %v1465 = vld [vmem:[#allocation12 + $0x4] sm:$0xf]
    %v1466 = vld [vmem:[#allocation12 + $0x8] sm:$0xf]
    %v1467 = vld [vmem:[#allocation12 + $0xc] sm:$0xf]
    %v1468 = vld [vmem:[#allocation12 + $0x10] sm:$0xf]
    %v1469 = vld [vmem:[#allocation12 + $0x14] sm:$0xf]
    %v1470 = vld [vmem:[#allocation12 + $0x18] sm:$0xf]
    %v1471 = vld [vmem:[#allocation12 + $0x1c] sm:$0xf]
    %v1472 = vld [vmem:[#allocation12 + $0x20] sm:$0xf]
    %v1473 = vld [vmem:[#allocation12 + $0x24] sm:$0xf]
    %v1474 = vld [vmem:[#allocation12 + $0x28] sm:$0xf]
    %v1475 = vld [vmem:[#allocation12 + $0x2c] sm:$0xf]
    %v1476 = vld [vmem:[#allocation12 + $0x30] sm:$0xf]
    %v1477 = vld [vmem:[#allocation12 + $0x34] sm:$0xf]
    %v1478 = vld [vmem:[#allocation12 + $0x38] sm:$0xf]
    %v1479 = vld [vmem:[#allocation12 + $0x3c] sm:$0xf]
    %v1480 = vunpack.c.l.bf16 %v1464
    %v1481 = vunpack.c.l.bf16 %v1465
    %v1482 = vunpack.c.l.bf16 %v1466
    %v1483 = vunpack.c.l.bf16 %v1467
    %v1484 = vunpack.c.l.bf16 %v1468
    %v1485 = vunpack.c.l.bf16 %v1469
    %v1486 = vunpack.c.l.bf16 %v1470
    %v1487 = vunpack.c.l.bf16 %v1471
    %v1488 = vunpack.c.l.bf16 %v1472
    %v1489 = vunpack.c.l.bf16 %v1473
    %v1490 = vunpack.c.l.bf16 %v1474
    %v1491 = vunpack.c.l.bf16 %v1475
    %v1492 = vunpack.c.l.bf16 %v1476
    %v1493 = vunpack.c.l.bf16 %v1477
    %v1494 = vunpack.c.l.bf16 %v1478
    %v1495 = vunpack.c.l.bf16 %v1479
    %v1496 = vld [vmem:[#allocation14] sm:$0x1]
    %v1498 = vlaneseq
    %v1499 = vshrl.u32 %v1498, 7
    %v1500 = vsub.s32 0, %v1499
    %v1501 = vrot.slane %v1496, %v1500
    %1503 = vmatprep.subr.mxu0 0.0
    %1504 = vmatpush1.msra.mxu0 %v1480
    %1505 = vmatprep.subr.mxu0 0.0
    %1506 = vmatpush1.msra.mxu0 %v1481
    %1507 = vmatprep.subr.mxu0 0.0
    %1508 = vmatpush1.msra.mxu0 %v1482
    %1509 = vmatprep.subr.mxu0 0.0
    %1510 = vmatpush1.msra.mxu0 %v1483
    %1511 = vmatprep.subr.mxu0 0.0
    %1512 = vmatpush1.msra.mxu0 %v1484
    %1513 = vmatprep.subr.mxu0 0.0
    %1514 = vmatpush1.msra.mxu0 %v1485
    %1515 = vmatprep.subr.mxu0 0.0
    %1516 = vmatpush1.msra.mxu0 %v1486
    %1517 = vmatprep.subr.mxu0 0.0
    %1518 = vmatpush1.msra.mxu0 %v1487
    %1519 = vmatprep.subr.mxu0 0.0
    %1520 = vmatpush1.msra.mxu0 %v1488
    %1521 = vmatprep.subr.mxu0 0.0
    %1522 = vmatpush1.msra.mxu0 %v1489
    %1523 = vmatprep.subr.mxu0 0.0
    %1524 = vmatpush1.msra.mxu0 %v1490
    %1525 = vmatprep.subr.mxu0 0.0
    %1526 = vmatpush1.msra.mxu0 %v1491
    %1527 = vmatprep.subr.mxu0 0.0
    %1528 = vmatpush1.msra.mxu0 %v1492
    %1529 = vmatprep.subr.mxu0 0.0
    %1530 = vmatpush1.msra.mxu0 %v1493
    %1531 = vmatprep.subr.mxu0 0.0
    %1532 = vmatpush1.msra.mxu0 %v1494
    %1533 = vmatprep.subr.mxu0 0.0
    %1534 = vmatpush1.msra.mxu0 %v1495
    %1535 = vmatprep.subr.mxu0 0.0
    %1536 = vmatpush1.msra.mxu0 0.0
    %1537 = vmatprep.subr.mxu0 0.0
    %1538 = vmatpush1.msra.mxu0 0.0
    %1539 = vmatprep.subr.mxu0 0.0
    %1540 = vmatpush1.msra.mxu0 0.0
    %1541 = vmatprep.subr.mxu0 0.0
    %1542 = vmatpush1.msra.mxu0 0.0
    %1543 = vmatprep.subr.mxu0 0.0
    %1544 = vmatpush1.msra.mxu0 0.0
    %1545 = vmatprep.subr.mxu0 0.0
    %1546 = vmatpush1.msra.mxu0 0.0
    %1547 = vmatprep.subr.mxu0 0.0
    %1548 = vmatpush1.msra.mxu0 0.0
    %1549 = vmatprep.subr.mxu0 0.0
    %1550 = vmatpush1.msra.mxu0 0.0
    %1551 = vmatprep.subr.mxu0 0.0
    %1552 = vmatpush1.msra.mxu0 0.0
    %1553 = vmatprep.subr.mxu0 0.0
    %1554 = vmatpush1.msra.mxu0 0.0
    %1555 = vmatprep.subr.mxu0 0.0
    %1556 = vmatpush1.msra.mxu0 0.0
    %1557 = vmatprep.subr.mxu0 0.0
    %1558 = vmatpush1.msra.mxu0 0.0
    %1559 = vmatprep.subr.mxu0 0.0
    %1560 = vmatpush1.msra.mxu0 0.0
    %1561 = vmatprep.subr.mxu0 0.0
    %1562 = vmatpush1.msra.mxu0 0.0
    %1563 = vmatprep.subr.mxu0 0.0
    %1564 = vmatpush1.msra.mxu0 0.0
    %1565 = vmatprep.subr.mxu0 0.0
    %1566 = vmatpush1.msra.mxu0 0.0
    %1567 = vmatprep.mubr.f32.mxu0 0.0
    %1568 = vmatmul.mubr.f32.gmra.mrb[0].mxu0 %v1426
    %v1569 = vpop.f32.mrb[0].mxu0
    %v1570 = vadd.f32 %v1501, %v1569
    %v1571 = vpop.f32.mrb[0].mxu0
    %1572 = vmatprep.mubr.f32.mxu0 0.0
    %1573 = vmatmul.mubr.f32.gmra.mrb[0].mxu0 %v1431
    %v1574 = vpop.f32.mrb[0].mxu0
    %v1575 = vadd.f32 %v1501, %v1574
    %v1576 = vpop.f32.mrb[0].mxu0
    %1577 = vmatprep.mubr.f32.mxu0 0.0
    %1578 = vmatmul.mubr.f32.gmra.mrb[0].mxu0 %v1436
    %v1579 = vpop.f32.mrb[0].mxu0
    %v1580 = vadd.f32 %v1501, %v1579
    %v1581 = vpop.f32.mrb[0].mxu0
    %1582 = vmatprep.mubr.f32.mxu0 0.0
    %1583 = vmatmul.mubr.f32.gmra.mrb[0].mxu0 %v1441
    %v1584 = vpop.f32.mrb[0].mxu0
    %v1585 = vadd.f32 %v1501, %v1584
    %v1586 = vpop.f32.mrb[0].mxu0
    %1587 = vmatprep.mubr.f32.mxu0 0.0
    %1588 = vmatmul.mubr.f32.gmra.mrb[0].mxu0 %v1446
    %v1589 = vpop.f32.mrb[0].mxu0
    %v1590 = vadd.f32 %v1501, %v1589
    %v1591 = vpop.f32.mrb[0].mxu0
    %1592 = vmatprep.mubr.f32.mxu0 0.0
    %1593 = vmatmul.mubr.f32.gmra.mrb[0].mxu0 %v1451
    %v1594 = vpop.f32.mrb[0].mxu0
    %v1595 = vadd.f32 %v1501, %v1594
    %v1596 = vpop.f32.mrb[0].mxu0
    %1597 = vmatprep.mubr.f32.mxu0 0.0
    %1598 = vmatmul.mubr.f32.gmra.mrb[0].mxu0 %v1456
    %v1599 = vpop.f32.mrb[0].mxu0
    %v1600 = vadd.f32 %v1501, %v1599
    %v1601 = vpop.f32.mrb[0].mxu0
    %1602 = vmatprep.mubr.f32.mxu0 0.0
    %1603 = vmatmul.mubr.f32.gmra.mrb[0].mxu0 %v1461
    %v1604 = vpop.f32.mrb[0].mxu0
    %v1605 = vadd.f32 %v1501, %v1604
    %v1606 = vpop.f32.mrb[0].mxu0
    %1607 = vdwg.mxu0
    %v1608 = vmax.f32 %v1570, 0.0
    %v1609 = vmax.f32 %v1575, 0.0
    %v1610 = vmax.f32 %v1580, 0.0
    %v1611 = vmax.f32 %v1585, 0.0
    %v1612 = vmax.f32 %v1590, 0.0
    %v1613 = vmax.f32 %v1595, 0.0
    %v1614 = vmax.f32 %v1600, 0.0
    %v1615 = vmax.f32 %v1605, 0.0
    %v1616 = vadd.f32 %v1608, %v1426
    %v1617 = vadd.f32 %v1609, %v1431
    %v1618 = vadd.f32 %v1610, %v1436
    %v1619 = vadd.f32 %v1611, %v1441
    %v1620 = vadd.f32 %v1612, %v1446
    %v1621 = vadd.f32 %v1613, %v1451
    %v1622 = vadd.f32 %v1614, %v1456
    %v1623 = vadd.f32 %v1615, %v1461
    %v1624 = vld [vmem:[#allocation15] sm:$0x1]
    %v1625 = vld [vmem:[#allocation17] sm:$0x1]
    %1626 = vadd.xlane.f32.xlu0 %v1616
    %v1627 = vpop.xlane.xlu0 %1626
    %1628 = vadd.xlane.f32.xlu0 %v1617
    %v1629 = vpop.xlane.xlu0 %1628
    %1630 = vadd.xlane.f32.xlu0 %v1618
    %v1631 = vpop.xlane.xlu0 %1630
    %1632 = vadd.xlane.f32.xlu0 %v1619
    %v1633 = vpop.xlane.xlu0 %1632
    %1634 = vadd.xlane.f32.xlu0 %v1620
    %v1635 = vpop.xlane.xlu0 %1634
    %1636 = vadd.xlane.f32.xlu0 %v1621
    %v1637 = vpop.xlane.xlu0 %1636
    %1638 = vadd.xlane.f32.xlu0 %v1622
    %v1639 = vpop.xlane.xlu0 %1638
    %1640 = vadd.xlane.f32.xlu0 %v1623
    %v1641 = vpop.xlane.xlu0 %1640
    %v1642 = vrcp.pop 128.0
    %v1643 = vmul.f32 %v1627, %v1642
    %v1644 = vmul.f32 %v1629, %v1642
    %v1645 = vmul.f32 %v1631, %v1642
    %v1646 = vmul.f32 %v1633, %v1642
    %v1647 = vmul.f32 %v1635, %v1642
    %v1648 = vmul.f32 %v1637, %v1642
    %v1649 = vmul.f32 %v1639, %v1642
    %v1650 = vmul.f32 %v1641, %v1642
    %v1651 = vsub.f32 %v1616, %v1643
    %v1652 = vsub.f32 %v1617, %v1644
    %v1653 = vsub.f32 %v1618, %v1645
    %v1654 = vsub.f32 %v1619, %v1646
    %v1655 = vsub.f32 %v1620, %v1647
    %v1656 = vsub.f32 %v1621, %v1648
    %v1657 = vsub.f32 %v1622, %v1649
    %v1658 = vsub.f32 %v1623, %v1650
    %v1659 = vmul.f32 %v1651, %v1651
    %v1660 = vmul.f32 %v1652, %v1652
    %v1661 = vmul.f32 %v1653, %v1653
    %v1662 = vmul.f32 %v1654, %v1654
    %v1663 = vmul.f32 %v1655, %v1655
    %v1664 = vmul.f32 %v1656, %v1656
    %v1665 = vmul.f32 %v1657, %v1657
    %v1666 = vmul.f32 %v1658, %v1658
    %1667 = vadd.xlane.f32.xlu0 %v1659
    %v1668 = vpop.xlane.xlu0 %1667
    %1669 = vadd.xlane.f32.xlu0 %v1660
    %v1670 = vpop.xlane.xlu0 %1669
    %1671 = vadd.xlane.f32.xlu0 %v1661
    %v1672 = vpop.xlane.xlu0 %1671
    %1673 = vadd.xlane.f32.xlu0 %v1662
    %v1674 = vpop.xlane.xlu0 %1673
    %1675 = vadd.xlane.f32.xlu0 %v1663
    %v1676 = vpop.xlane.xlu0 %1675
    %1677 = vadd.xlane.f32.xlu0 %v1664
    %v1678 = vpop.xlane.xlu0 %1677
    %1679 = vadd.xlane.f32.xlu0 %v1665
    %v1680 = vpop.xlane.xlu0 %1679
    %1681 = vadd.xlane.f32.xlu0 %v1666
    %v1682 = vpop.xlane.xlu0 %1681
    %v1683 = vmul.f32 %v1668, %v1642
    %v1684 = vmul.f32 %v1670, %v1642
    %v1685 = vmul.f32 %v1672, %v1642
    %v1686 = vmul.f32 %v1674, %v1642
    %v1687 = vmul.f32 %v1676, %v1642
    %v1688 = vmul.f32 %v1678, %v1642
    %v1689 = vmul.f32 %v1680, %v1642
    %v1690 = vmul.f32 %v1682, %v1642
    %v1691 = vadd.f32 %v1683, 0.001
    %v1692 = vadd.f32 %v1684, 0.001
    %v1693 = vadd.f32 %v1685, 0.001
    %v1694 = vadd.f32 %v1686, 0.001
    %v1695 = vadd.f32 %v1687, 0.001
    %v1696 = vadd.f32 %v1688, 0.001
    %v1697 = vadd.f32 %v1689, 0.001
    %v1698 = vadd.f32 %v1690, 0.001
    %v1699 = vrsqrt.pop %v1691
    %v1700 = vrsqrt.pop %v1692
    %v1701 = vrsqrt.pop %v1693
    %v1702 = vrsqrt.pop %v1694
    %v1703 = vrsqrt.pop %v1695
    %v1704 = vrsqrt.pop %v1696
    %v1705 = vrsqrt.pop %v1697
    %v1706 = vrsqrt.pop %v1698
    %v1707 = vmul.f32 %v1651, %v1699
    %v1708 = vmul.f32 %v1652, %v1700
    %v1709 = vmul.f32 %v1653, %v1701
    %v1710 = vmul.f32 %v1654, %v1702
    %v1711 = vmul.f32 %v1655, %v1703
    %v1712 = vmul.f32 %v1656, %v1704
    %v1713 = vmul.f32 %v1657, %v1705
    %v1714 = vmul.f32 %v1658, %v1706
    %v1716 = vlaneseq
    %v1717 = vshrl.u32 %v1716, 7
    %v1718 = vsub.s32 0, %v1717
    %v1719 = vrot.slane %v1624, %v1718
    %v1721 = vmul.f32 %v1707, %v1719
    %v1722 = vmul.f32 %v1708, %v1719
    %v1723 = vmul.f32 %v1709, %v1719
    %v1724 = vmul.f32 %v1710, %v1719
    %v1725 = vmul.f32 %v1711, %v1719
    %v1726 = vmul.f32 %v1712, %v1719
    %v1727 = vmul.f32 %v1713, %v1719
    %v1728 = vmul.f32 %v1714, %v1719
    %v1730 = vlaneseq
    %v1731 = vshrl.u32 %v1730, 7
    %v1732 = vsub.s32 0, %v1731
    %v1733 = vrot.slane %v1625, %v1732
    %v1735 = vadd.f32 %v1721, %v1733
    %v1736 = vadd.f32 %v1722, %v1733
    %v1737 = vadd.f32 %v1723, %v1733
    %v1738 = vadd.f32 %v1724, %v1733
    %v1739 = vadd.f32 %v1725, %v1733
    %v1740 = vadd.f32 %v1726, %v1733
    %v1741 = vadd.f32 %v1727, %v1733
    %v1742 = vadd.f32 %v1728, %v1733
    %vm1743 = vcmp.ne.s32.totalorder %v294, 0
    %v1744 = vlaneseq
    %v1745 = vshrl.u32 %v1744, 7
    %v1746 = vsub.s32 7, %v1745
    %v1747 = vrot.slane %v1735, %v1746
    %v1748 = vlaneseq
    %v1749 = vshrl.u32 %v1748, 7
    %v1750 = vsub.s32 7, %v1749
    %v1751 = vrot.slane %v1736, %v1750
    %v1752 = vlaneseq
    %v1753 = vshrl.u32 %v1752, 7
    %v1754 = vsub.s32 7, %v1753
    %v1755 = vrot.slane %v1737, %v1754
    %v1756 = vlaneseq
    %v1757 = vshrl.u32 %v1756, 7
    %v1758 = vsub.s32 7, %v1757
    %v1759 = vrot.slane %v1738, %v1758
    %v1760 = vlaneseq
    %v1761 = vshrl.u32 %v1760, 7
    %v1762 = vsub.s32 7, %v1761
    %v1763 = vrot.slane %v1739, %v1762
    %v1764 = vlaneseq
    %v1765 = vshrl.u32 %v1764, 7
    %v1766 = vsub.s32 7, %v1765
    %v1767 = vrot.slane %v1740, %v1766
    %v1768 = vlaneseq
    %v1769 = vshrl.u32 %v1768, 7
    %v1770 = vsub.s32 7, %v1769
    %v1771 = vrot.slane %v1741, %v1770
    %v1772 = vlaneseq
    %v1773 = vshrl.u32 %v1772, 7
    %v1774 = vsub.s32 7, %v1773
    %v1775 = vrot.slane %v1742, %v1774
    %v1776 = vmul.f32 %v1735, %v1747
    %v1777 = vmul.f32 %v1736, %v1751
    %v1778 = vmul.f32 %v1737, %v1755
    %v1779 = vmul.f32 %v1738, %v1759
    %v1780 = vmul.f32 %v1739, %v1763
    %v1781 = vmul.f32 %v1740, %v1767
    %v1782 = vmul.f32 %v1741, %v1771
    %v1783 = vmul.f32 %v1742, %v1775
    %1784 = vadd.xlane.f32.xlu0 %v1776
    %v1785 = vpop.xlane.xlu0 %1784
    %1786 = vadd.xlane.f32.xlu0 %v1777
    %v1787 = vpop.xlane.xlu0 %1786
    %1788 = vadd.xlane.f32.xlu0 %v1778
    %v1789 = vpop.xlane.xlu0 %1788
    %1790 = vadd.xlane.f32.xlu0 %v1779
    %v1791 = vpop.xlane.xlu0 %1790
    %1792 = vadd.xlane.f32.xlu0 %v1780
    %v1793 = vpop.xlane.xlu0 %1792
    %1794 = vadd.xlane.f32.xlu0 %v1781
    %v1795 = vpop.xlane.xlu0 %1794
    %1796 = vadd.xlane.f32.xlu0 %v1782
    %v1797 = vpop.xlane.xlu0 %1796
    %1798 = vadd.xlane.f32.xlu0 %v1783
    %v1799 = vpop.xlane.xlu0 %1798
    %v1800 = vmul.f32 %v1785, 0.088388346
    %v1801 = vmul.f32 %v1787, 0.088388346
    %v1802 = vmul.f32 %v1789, 0.088388346
    %v1803 = vmul.f32 %v1791, 0.088388346
    %v1804 = vmul.f32 %v1793, 0.088388346
    %v1805 = vmul.f32 %v1795, 0.088388346
    %v1806 = vmul.f32 %v1797, 0.088388346
    %v1807 = vmul.f32 %v1799, 0.088388346
    %v1816 = vlaneseq
    %v1817 = vshrl.u32 %v1816, 7
    %v1818 = vsub.s32 %v297, %v1817
    %v1819 = vrot.slane %v1800, %v1818
    %v1820 = vlaneseq
    %v1821 = vshrl.u32 %v1820, 7
    %v1822 = vsub.s32 %v297, %v1821
    %v1823 = vrot.slane %v1801, %v1822
    %v1824 = vlaneseq
    %v1825 = vshrl.u32 %v1824, 7
    %v1826 = vsub.s32 %v297, %v1825
    %v1827 = vrot.slane %v1802, %v1826
    %v1828 = vlaneseq
    %v1829 = vshrl.u32 %v1828, 7
    %v1830 = vsub.s32 %v297, %v1829
    %v1831 = vrot.slane %v1803, %v1830
    %v1832 = vlaneseq
    %v1833 = vshrl.u32 %v1832, 7
    %v1834 = vsub.s32 %v297, %v1833
    %v1835 = vrot.slane %v1804, %v1834
    %v1836 = vlaneseq
    %v1837 = vshrl.u32 %v1836, 7
    %v1838 = vsub.s32 %v297, %v1837
    %v1839 = vrot.slane %v1805, %v1838
    %v1840 = vlaneseq
    %v1841 = vshrl.u32 %v1840, 7
    %v1842 = vsub.s32 %v297, %v1841
    %v1843 = vrot.slane %v1806, %v1842
    %v1844 = vlaneseq
    %v1845 = vshrl.u32 %v1844, 7
    %v1846 = vsub.s32 %v297, %v1845
    %v1847 = vrot.slane %v1807, %v1846
    %vm1848 = vcmask 1041409
    %v1849 = vsel %vm1848, %v1823, %v1819
    %vm1850 = vcmask 1042434
    %v1851 = vsel %vm1850, %v1827, %v1849
    %vm1852 = vcmask 1043459
    %v1853 = vsel %vm1852, %v1831, %v1851
    %vm1854 = vcmask 1044484
    %v1855 = vsel %vm1854, %v1835, %v1853
    %vm1856 = vcmask 1045509
    %v1857 = vsel %vm1856, %v1839, %v1855
    %vm1858 = vcmask 1046534
    %v1859 = vsel %vm1858, %v1843, %v1857
    %vm1860 = vcmask 1047559
    %v1861 = vsel %vm1860, %v1847, %v1859
    %v1863 = vsel %vm1743, %v1861, -1e+09
    %vm1864 = vcmask 64512
    %v1865 = vsel %vm1864, %v1863, -inf
    %1866 = vmax.xlane.f32.xlu0 %v1865
    %v1867 = vpop.xlane.xlu0 %1866
    %v1868 = vsub.f32 %v1863, %v1867
    %v1869 = vmul.f32 %v1868, 1.442695
    %v1870 = vpow.pop %v1869
    %v1871 = vsel %vm1864, %v1870, 0.0
    %1872 = vadd.xlane.f32.xlu0 %v1871
    %v1873 = vpop.xlane.xlu0 %1872
    %v1874 = vrcp.pop %v1873
    %v1875 = vmul.f32 %v1870, %v1874
    %v1876 = vlaneseq
    %v1877 = vshrl.u32 %v1876, 7
    %v1878 = vsub.s32 0, %v1877
    %v1879 = vrot.slane %v1875, %v1878
    %1881 = vbcast.lane.b32.xlu0 %v1879, 256
    %v1882 = vpop.permute.xlu0 %1881
    %v1883 = vlaneseq
    %v1884 = vshrl.u32 %v1883, 7
    %v1885 = vsub.s32 1, %v1884
    %v1886 = vrot.slane %v1875, %v1885
    %1888 = vbcast.lane.b32.xlu0 %v1886, 256
    %v1889 = vpop.permute.xlu0 %1888
    %v1890 = vlaneseq
    %v1891 = vshrl.u32 %v1890, 7
    %v1892 = vsub.s32 2, %v1891
    %v1893 = vrot.slane %v1875, %v1892
    %1895 = vbcast.lane.b32.xlu0 %v1893, 256
    %v1896 = vpop.permute.xlu0 %1895
    %v1897 = vlaneseq
    %v1898 = vshrl.u32 %v1897, 7
    %v1899 = vsub.s32 3, %v1898
    %v1900 = vrot.slane %v1875, %v1899
    %1902 = vbcast.lane.b32.xlu0 %v1900, 256
    %v1903 = vpop.permute.xlu0 %1902
    %v1904 = vlaneseq
    %v1905 = vshrl.u32 %v1904, 7
    %v1906 = vsub.s32 4, %v1905
    %v1907 = vrot.slane %v1875, %v1906
    %1909 = vbcast.lane.b32.xlu0 %v1907, 256
    %v1910 = vpop.permute.xlu0 %1909
    %v1911 = vlaneseq
    %v1912 = vshrl.u32 %v1911, 7
    %v1913 = vsub.s32 5, %v1912
    %v1914 = vrot.slane %v1875, %v1913
    %1916 = vbcast.lane.b32.xlu0 %v1914, 256
    %v1917 = vpop.permute.xlu0 %1916
    %v1918 = vlaneseq
    %v1919 = vshrl.u32 %v1918, 7
    %v1920 = vsub.s32 6, %v1919
    %v1921 = vrot.slane %v1875, %v1920
    %1923 = vbcast.lane.b32.xlu0 %v1921, 256
    %v1924 = vpop.permute.xlu0 %1923
    %v1925 = vlaneseq
    %v1926 = vshrl.u32 %v1925, 7
    %v1927 = vsub.s32 7, %v1926
    %v1928 = vrot.slane %v1875, %v1927
    %1930 = vbcast.lane.b32.xlu0 %v1928, 256
    %v1931 = vpop.permute.xlu0 %1930
    %v1932 = vmul.f32 %v1882, %v1735
    %v1933 = vmul.f32 %v1889, %v1736
    %v1934 = vmul.f32 %v1896, %v1737
    %v1935 = vmul.f32 %v1903, %v1738
    %v1936 = vmul.f32 %v1910, %v1739
    %v1937 = vmul.f32 %v1917, %v1740
    %v1938 = vmul.f32 %v1924, %v1741
    %v1939 = vmul.f32 %v1931, %v1742
    %v1940 = vrot.slane %v1932, 4
    %v1941 = vadd.f32 %v1932, %v1940
    %v1942 = vrot.slane %v1941, 2
    %v1943 = vadd.f32 %v1941, %v1942
    %v1944 = vrot.slane %v1943, 1
    %v1945 = vadd.f32 %v1943, %v1944
    %v1946 = vrot.slane %v1933, 4
    %v1947 = vadd.f32 %v1933, %v1946
    %v1948 = vrot.slane %v1947, 2
    %v1949 = vadd.f32 %v1947, %v1948
    %v1950 = vrot.slane %v1949, 1
    %v1951 = vadd.f32 %v1949, %v1950
    %v1952 = vrot.slane %v1934, 4
    %v1953 = vadd.f32 %v1934, %v1952
    %v1954 = vrot.slane %v1953, 2
    %v1955 = vadd.f32 %v1953, %v1954
    %v1956 = vrot.slane %v1955, 1
    %v1957 = vadd.f32 %v1955, %v1956
    %v1958 = vrot.slane %v1935, 4
    %v1959 = vadd.f32 %v1935, %v1958
    %v1960 = vrot.slane %v1959, 2
    %v1961 = vadd.f32 %v1959, %v1960
    %v1962 = vrot.slane %v1961, 1
    %v1963 = vadd.f32 %v1961, %v1962
    %v1964 = vrot.slane %v1936, 4
    %v1965 = vadd.f32 %v1936, %v1964
    %v1966 = vrot.slane %v1965, 2
    %v1967 = vadd.f32 %v1965, %v1966
    %v1968 = vrot.slane %v1967, 1
    %v1969 = vadd.f32 %v1967, %v1968
    %v1970 = vrot.slane %v1937, 4
    %v1971 = vadd.f32 %v1937, %v1970
    %v1972 = vrot.slane %v1971, 2
    %v1973 = vadd.f32 %v1971, %v1972
    %v1974 = vrot.slane %v1973, 1
    %v1975 = vadd.f32 %v1973, %v1974
    %v1976 = vrot.slane %v1938, 4
    %v1977 = vadd.f32 %v1938, %v1976
    %v1978 = vrot.slane %v1977, 2
    %v1979 = vadd.f32 %v1977, %v1978
    %v1980 = vrot.slane %v1979, 1
    %v1981 = vadd.f32 %v1979, %v1980
    %v1982 = vrot.slane %v1939, 4
    %v1983 = vadd.f32 %v1939, %v1982
    %v1984 = vrot.slane %v1983, 2
    %v1985 = vadd.f32 %v1983, %v1984
    %v1986 = vrot.slane %v1985, 1
    %v1987 = vadd.f32 %v1985, %v1986
    %v1988 = vld [vmem:[#allocation18] sm:$0xf]
    %v1989 = vld [vmem:[#allocation18 + $0x4] sm:$0xf]
    %v1990 = vld [vmem:[#allocation18 + $0x8] sm:$0xf]
    %v1991 = vld [vmem:[#allocation18 + $0xc] sm:$0xf]
    %v1992 = vld [vmem:[#allocation18 + $0x10] sm:$0xf]
    %v1993 = vld [vmem:[#allocation18 + $0x14] sm:$0xf]
    %v1994 = vld [vmem:[#allocation18 + $0x18] sm:$0xf]
    %v1995 = vld [vmem:[#allocation18 + $0x1c] sm:$0xf]
    %v1996 = vld [vmem:[#allocation18 + $0x20] sm:$0xf]
    %v1997 = vld [vmem:[#allocation18 + $0x24] sm:$0xf]
    %v1998 = vld [vmem:[#allocation18 + $0x28] sm:$0xf]
    %v1999 = vld [vmem:[#allocation18 + $0x2c] sm:$0xf]
    %v2000 = vld [vmem:[#allocation18 + $0x30] sm:$0xf]
    %v2001 = vld [vmem:[#allocation18 + $0x34] sm:$0xf]
    %v2002 = vld [vmem:[#allocation18 + $0x38] sm:$0xf]
    %v2003 = vld [vmem:[#allocation18 + $0x3c] sm:$0xf]
    %v2004 = vunpack.c.l.bf16 %v1988
    %v2005 = vunpack.c.l.bf16 %v1989
    %v2006 = vunpack.c.l.bf16 %v1990
    %v2007 = vunpack.c.l.bf16 %v1991
    %v2008 = vunpack.c.l.bf16 %v1992
    %v2009 = vunpack.c.l.bf16 %v1993
    %v2010 = vunpack.c.l.bf16 %v1994
    %v2011 = vunpack.c.l.bf16 %v1995
    %v2012 = vunpack.c.l.bf16 %v1996
    %v2013 = vunpack.c.l.bf16 %v1997
    %v2014 = vunpack.c.l.bf16 %v1998
    %v2015 = vunpack.c.l.bf16 %v1999
    %v2016 = vunpack.c.l.bf16 %v2000
    %v2017 = vunpack.c.l.bf16 %v2001
    %v2018 = vunpack.c.l.bf16 %v2002
    %v2019 = vunpack.c.l.bf16 %v2003
    %s2020 = scalar_lea.vmem [#allocation18], 64
    %v2021 = vld [vmem:[%s2020] sm:$0xf]
    %v2022 = vld [vmem:[%s2020 + $0x4] sm:$0xf]
    %v2023 = vld [vmem:[%s2020 + $0x8] sm:$0xf]
    %v2024 = vld [vmem:[%s2020 + $0xc] sm:$0xf]
    %v2025 = vld [vmem:[%s2020 + $0x10] sm:$0xf]
    %v2026 = vld [vmem:[%s2020 + $0x14] sm:$0xf]
    %v2027 = vld [vmem:[%s2020 + $0x18] sm:$0xf]
    %v2028 = vld [vmem:[%s2020 + $0x1c] sm:$0xf]
    %v2029 = vld [vmem:[%s2020 + $0x20] sm:$0xf]
    %v2030 = vld [vmem:[%s2020 + $0x24] sm:$0xf]
    %v2031 = vld [vmem:[%s2020 + $0x28] sm:$0xf]
    %v2032 = vld [vmem:[%s2020 + $0x2c] sm:$0xf]
    %v2033 = vld [vmem:[%s2020 + $0x30] sm:$0xf]
    %v2034 = vld [vmem:[%s2020 + $0x34] sm:$0xf]
    %v2035 = vld [vmem:[%s2020 + $0x38] sm:$0xf]
    %v2036 = vld [vmem:[%s2020 + $0x3c] sm:$0xf]
    %v2037 = vunpack.c.l.bf16 %v2021
    %v2038 = vunpack.c.l.bf16 %v2022
    %v2039 = vunpack.c.l.bf16 %v2023
    %v2040 = vunpack.c.l.bf16 %v2024
    %v2041 = vunpack.c.l.bf16 %v2025
    %v2042 = vunpack.c.l.bf16 %v2026
    %v2043 = vunpack.c.l.bf16 %v2027
    %v2044 = vunpack.c.l.bf16 %v2028
    %v2045 = vunpack.c.l.bf16 %v2029
    %v2046 = vunpack.c.l.bf16 %v2030
    %v2047 = vunpack.c.l.bf16 %v2031
    %v2048 = vunpack.c.l.bf16 %v2032
    %v2049 = vunpack.c.l.bf16 %v2033
    %v2050 = vunpack.c.l.bf16 %v2034
    %v2051 = vunpack.c.l.bf16 %v2035
    %v2052 = vunpack.c.l.bf16 %v2036
    %v2061 = vrot.slane %v799, 6
    %v2062 = vrot.slane %v802, 5
    %v2063 = vsel %vm1848, %v2062, %v2061
    %v2064 = vrot.slane %v807, 4
    %v2065 = vsel %vm1850, %v2064, %v2063
    %v2066 = vrot.slane %v810, 3
    %v2067 = vsel %vm1852, %v2066, %v2065
    %v2068 = vrot.slane %v815, 2
    %v2069 = vsel %vm1854, %v2068, %v2067
    %v2070 = vrot.slane %v818, 1
    %v2071 = vsel %vm1856, %v2070, %v2069
    %v2072 = vsel %vm1858, %v823, %v2071
    %v2073 = vrot.slane %v826, 7
    %v2074 = vsel %vm1860, %v2073, %v2072
    %2076 = vmatprep.subr.mxu0 0.0
    %2077 = vmatpush1.msra.mxu0 %v2037
    %2078 = vmatprep.subr.mxu0 0.0
    %2079 = vmatpush1.msra.mxu0 %v2038
    %2080 = vmatprep.subr.mxu0 0.0
    %2081 = vmatpush1.msra.mxu0 %v2039
    %2082 = vmatprep.subr.mxu0 0.0
    %2083 = vmatpush1.msra.mxu0 %v2040
    %2084 = vmatprep.subr.mxu0 0.0
    %2085 = vmatpush1.msra.mxu0 %v2041
    %2086 = vmatprep.subr.mxu0 0.0
    %2087 = vmatpush1.msra.mxu0 %v2042
    %2088 = vmatprep.subr.mxu0 0.0
    %2089 = vmatpush1.msra.mxu0 %v2043
    %2090 = vmatprep.subr.mxu0 0.0
    %2091 = vmatpush1.msra.mxu0 %v2044
    %2092 = vmatprep.subr.mxu0 0.0
    %2093 = vmatpush1.msra.mxu0 %v2045
    %2094 = vmatprep.subr.mxu0 0.0
    %2095 = vmatpush1.msra.mxu0 %v2046
    %2096 = vmatprep.subr.mxu0 0.0
    %2097 = vmatpush1.msra.mxu0 %v2047
    %2098 = vmatprep.subr.mxu0 0.0
    %2099 = vmatpush1.msra.mxu0 %v2048
    %2100 = vmatprep.subr.mxu0 0.0
    %2101 = vmatpush1.msra.mxu0 %v2049
    %2102 = vmatprep.subr.mxu0 0.0
    %2103 = vmatpush1.msra.mxu0 %v2050
    %2104 = vmatprep.subr.mxu0 0.0
    %2105 = vmatpush1.msra.mxu0 %v2051
    %2106 = vmatprep.subr.mxu0 0.0
    %2107 = vmatpush1.msra.mxu0 %v2052
    %2108 = vmatprep.subr.mxu0 0.0
    %2109 = vmatpush1.msra.mxu0 0.0
    %2110 = vmatprep.subr.mxu0 0.0
    %2111 = vmatpush1.msra.mxu0 0.0
    %2112 = vmatprep.subr.mxu0 0.0
    %2113 = vmatpush1.msra.mxu0 0.0
    %2114 = vmatprep.subr.mxu0 0.0
    %2115 = vmatpush1.msra.mxu0 0.0
    %2116 = vmatprep.subr.mxu0 0.0
    %2117 = vmatpush1.msra.mxu0 0.0
    %2118 = vmatprep.subr.mxu0 0.0
    %2119 = vmatpush1.msra.mxu0 0.0
    %2120 = vmatprep.subr.mxu0 0.0
    %2121 = vmatpush1.msra.mxu0 0.0
    %2122 = vmatprep.subr.mxu0 0.0
    %2123 = vmatpush1.msra.mxu0 0.0
    %2124 = vmatprep.subr.mxu0 0.0
    %2125 = vmatpush1.msra.mxu0 0.0
    %2126 = vmatprep.subr.mxu0 0.0
    %2127 = vmatpush1.msra.mxu0 0.0
    %2128 = vmatprep.subr.mxu0 0.0
    %2129 = vmatpush1.msra.mxu0 0.0
    %2130 = vmatprep.subr.mxu0 0.0
    %2131 = vmatpush1.msra.mxu0 0.0
    %2132 = vmatprep.subr.mxu0 0.0
    %2133 = vmatpush1.msra.mxu0 0.0
    %2134 = vmatprep.subr.mxu0 0.0
    %2135 = vmatpush1.msra.mxu0 0.0
    %2136 = vmatprep.subr.mxu0 0.0
    %2137 = vmatpush1.msra.mxu0 0.0
    %2138 = vmatprep.subr.mxu0 0.0
    %2139 = vmatpush1.msra.mxu0 0.0
    %2140 = vmatprep.mubr.f32.mxu0 0.0
    %2141 = vmatmul.mubr.f32.gmra.mrb[0].mxu0 %v2074
    %v2142 = vpop.f32.mrb[0].mxu0
    %v2143 = vadd.f32 0.0, %v2142
    %v2144 = vpop.f32.mrb[0].mxu0
    %2145 = vdwg.mxu0
    %v2146 = vrot.slane %v799, 5
    %v2147 = vrot.slane %v802, 4
    %v2148 = vsel %vm1848, %v2147, %v2146
    %v2149 = vrot.slane %v807, 3
    %v2150 = vsel %vm1850, %v2149, %v2148
    %v2151 = vrot.slane %v810, 2
    %v2152 = vsel %vm1852, %v2151, %v2150
    %v2153 = vrot.slane %v815, 1
    %v2154 = vsel %vm1854, %v2153, %v2152
    %v2155 = vsel %vm1856, %v818, %v2154
    %v2156 = vrot.slane %v823, 7
    %v2157 = vsel %vm1858, %v2156, %v2155
    %v2158 = vrot.slane %v826, 6
    %v2159 = vsel %vm1860, %v2158, %v2157
    %2161 = vmatprep.subr.mxu0 0.0
    %2162 = vmatpush1.msra.mxu0 %v2004
    %2163 = vmatprep.subr.mxu0 0.0
    %2164 = vmatpush1.msra.mxu0 %v2005
    %2165 = vmatprep.subr.mxu0 0.0
    %2166 = vmatpush1.msra.mxu0 %v2006
    %2167 = vmatprep.subr.mxu0 0.0
    %2168 = vmatpush1.msra.mxu0 %v2007
    %2169 = vmatprep.subr.mxu0 0.0
    %2170 = vmatpush1.msra.mxu0 %v2008
    %2171 = vmatprep.subr.mxu0 0.0
    %2172 = vmatpush1.msra.mxu0 %v2009
    %2173 = vmatprep.subr.mxu0 0.0
    %2174 = vmatpush1.msra.mxu0 %v2010
    %2175 = vmatprep.subr.mxu0 0.0
    %2176 = vmatpush1.msra.mxu0 %v2011
    %2177 = vmatprep.subr.mxu0 0.0
    %2178 = vmatpush1.msra.mxu0 %v2012
    %2179 = vmatprep.subr.mxu0 0.0
    %2180 = vmatpush1.msra.mxu0 %v2013
    %2181 = vmatprep.subr.mxu0 0.0
    %2182 = vmatpush1.msra.mxu0 %v2014
    %2183 = vmatprep.subr.mxu0 0.0
    %2184 = vmatpush1.msra.mxu0 %v2015
    %2185 = vmatprep.subr.mxu0 0.0
    %2186 = vmatpush1.msra.mxu0 %v2016
    %2187 = vmatprep.subr.mxu0 0.0
    %2188 = vmatpush1.msra.mxu0 %v2017
    %2189 = vmatprep.subr.mxu0 0.0
    %2190 = vmatpush1.msra.mxu0 %v2018
    %2191 = vmatprep.subr.mxu0 0.0
    %2192 = vmatpush1.msra.mxu0 %v2019
    %2193 = vmatprep.subr.mxu0 0.0
    %2194 = vmatpush1.msra.mxu0 0.0
    %2195 = vmatprep.subr.mxu0 0.0
    %2196 = vmatpush1.msra.mxu0 0.0
    %2197 = vmatprep.subr.mxu0 0.0
    %2198 = vmatpush1.msra.mxu0 0.0
    %2199 = vmatprep.subr.mxu0 0.0
    %2200 = vmatpush1.msra.mxu0 0.0
    %2201 = vmatprep.subr.mxu0 0.0
    %2202 = vmatpush1.msra.mxu0 0.0
    %2203 = vmatprep.subr.mxu0 0.0
    %2204 = vmatpush1.msra.mxu0 0.0
    %2205 = vmatprep.subr.mxu0 0.0
    %2206 = vmatpush1.msra.mxu0 0.0
    %2207 = vmatprep.subr.mxu0 0.0
    %2208 = vmatpush1.msra.mxu0 0.0
    %2209 = vmatprep.subr.mxu0 0.0
    %2210 = vmatpush1.msra.mxu0 0.0
    %2211 = vmatprep.subr.mxu0 0.0
    %2212 = vmatpush1.msra.mxu0 0.0
    %2213 = vmatprep.subr.mxu0 0.0
    %2214 = vmatpush1.msra.mxu0 0.0
    %2215 = vmatprep.subr.mxu0 0.0
    %2216 = vmatpush1.msra.mxu0 0.0
    %2217 = vmatprep.subr.mxu0 0.0
    %2218 = vmatpush1.msra.mxu0 0.0
    %2219 = vmatprep.subr.mxu0 0.0
    %2220 = vmatpush1.msra.mxu0 0.0
    %2221 = vmatprep.subr.mxu0 0.0
    %2222 = vmatpush1.msra.mxu0 0.0
    %2223 = vmatprep.subr.mxu0 0.0
    %2224 = vmatpush1.msra.mxu0 0.0
    %2225 = vmatprep.mubr.f32.mxu0 0.0
    %2226 = vmatmul.mubr.f32.gmra.mrb[0].mxu0 %v2159
    %v2227 = vpop.f32.mrb[0].mxu0
    %v2228 = vadd.f32 %v2143, %v2227
    %v2229 = vpop.f32.mrb[0].mxu0
    %2230 = vdwg.mxu0
    %s2231 = scalar_lea.vmem [#allocation18], 128
    %v2232 = vld [vmem:[%s2231] sm:$0xf]
    %v2233 = vld [vmem:[%s2231 + $0x4] sm:$0xf]
    %v2234 = vld [vmem:[%s2231 + $0x8] sm:$0xf]
    %v2235 = vld [vmem:[%s2231 + $0xc] sm:$0xf]
    %v2236 = vld [vmem:[%s2231 + $0x10] sm:$0xf]
    %v2237 = vld [vmem:[%s2231 + $0x14] sm:$0xf]
    %v2238 = vld [vmem:[%s2231 + $0x18] sm:$0xf]
    %v2239 = vld [vmem:[%s2231 + $0x1c] sm:$0xf]
    %v2240 = vld [vmem:[%s2231 + $0x20] sm:$0xf]
    %v2241 = vld [vmem:[%s2231 + $0x24] sm:$0xf]
    %v2242 = vld [vmem:[%s2231 + $0x28] sm:$0xf]
    %v2243 = vld [vmem:[%s2231 + $0x2c] sm:$0xf]
    %v2244 = vld [vmem:[%s2231 + $0x30] sm:$0xf]
    %v2245 = vld [vmem:[%s2231 + $0x34] sm:$0xf]
    %v2246 = vld [vmem:[%s2231 + $0x38] sm:$0xf]
    %v2247 = vld [vmem:[%s2231 + $0x3c] sm:$0xf]
    %v2248 = vunpack.c.l.bf16 %v2232
    %v2249 = vunpack.c.l.bf16 %v2233
    %v2250 = vunpack.c.l.bf16 %v2234
    %v2251 = vunpack.c.l.bf16 %v2235
    %v2252 = vunpack.c.l.bf16 %v2236
    %v2253 = vunpack.c.l.bf16 %v2237
    %v2254 = vunpack.c.l.bf16 %v2238
    %v2255 = vunpack.c.l.bf16 %v2239
    %v2256 = vunpack.c.l.bf16 %v2240
    %v2257 = vunpack.c.l.bf16 %v2241
    %v2258 = vunpack.c.l.bf16 %v2242
    %v2259 = vunpack.c.l.bf16 %v2243
    %v2260 = vunpack.c.l.bf16 %v2244
    %v2261 = vunpack.c.l.bf16 %v2245
    %v2262 = vunpack.c.l.bf16 %v2246
    %v2263 = vunpack.c.l.bf16 %v2247
    %v2264 = vrot.slane %v799, 7
    %v2265 = vrot.slane %v802, 6
    %v2266 = vsel %vm1848, %v2265, %v2264
    %v2267 = vrot.slane %v807, 5
    %v2268 = vsel %vm1850, %v2267, %v2266
    %v2269 = vrot.slane %v810, 4
    %v2270 = vsel %vm1852, %v2269, %v2268
    %v2271 = vrot.slane %v815, 3
    %v2272 = vsel %vm1854, %v2271, %v2270
    %v2273 = vrot.slane %v818, 2
    %v2274 = vsel %vm1856, %v2273, %v2272
    %v2275 = vrot.slane %v823, 1
    %v2276 = vsel %vm1858, %v2275, %v2274
    %v2277 = vsel %vm1860, %v826, %v2276
    %2279 = vmatprep.subr.mxu0 0.0
    %2280 = vmatpush1.msra.mxu0 %v2248
    %2281 = vmatprep.subr.mxu0 0.0
    %2282 = vmatpush1.msra.mxu0 %v2249
    %2283 = vmatprep.subr.mxu0 0.0
    %2284 = vmatpush1.msra.mxu0 %v2250
    %2285 = vmatprep.subr.mxu0 0.0
    %2286 = vmatpush1.msra.mxu0 %v2251
    %2287 = vmatprep.subr.mxu0 0.0
    %2288 = vmatpush1.msra.mxu0 %v2252
    %2289 = vmatprep.subr.mxu0 0.0
    %2290 = vmatpush1.msra.mxu0 %v2253
    %2291 = vmatprep.subr.mxu0 0.0
    %2292 = vmatpush1.msra.mxu0 %v2254
    %2293 = vmatprep.subr.mxu0 0.0
    %2294 = vmatpush1.msra.mxu0 %v2255
    %2295 = vmatprep.subr.mxu0 0.0
    %2296 = vmatpush1.msra.mxu0 %v2256
    %2297 = vmatprep.subr.mxu0 0.0
    %2298 = vmatpush1.msra.mxu0 %v2257
    %2299 = vmatprep.subr.mxu0 0.0
    %2300 = vmatpush1.msra.mxu0 %v2258
    %2301 = vmatprep.subr.mxu0 0.0
    %2302 = vmatpush1.msra.mxu0 %v2259
    %2303 = vmatprep.subr.mxu0 0.0
    %2304 = vmatpush1.msra.mxu0 %v2260
    %2305 = vmatprep.subr.mxu0 0.0
    %2306 = vmatpush1.msra.mxu0 %v2261
    %2307 = vmatprep.subr.mxu0 0.0
    %2308 = vmatpush1.msra.mxu0 %v2262
    %2309 = vmatprep.subr.mxu0 0.0
    %2310 = vmatpush1.msra.mxu0 %v2263
    %2311 = vmatprep.subr.mxu0 0.0
    %2312 = vmatpush1.msra.mxu0 0.0
    %2313 = vmatprep.subr.mxu0 0.0
    %2314 = vmatpush1.msra.mxu0 0.0
    %2315 = vmatprep.subr.mxu0 0.0
    %2316 = vmatpush1.msra.mxu0 0.0
    %2317 = vmatprep.subr.mxu0 0.0
    %2318 = vmatpush1.msra.mxu0 0.0
    %2319 = vmatprep.subr.mxu0 0.0
    %2320 = vmatpush1.msra.mxu0 0.0
    %2321 = vmatprep.subr.mxu0 0.0
    %2322 = vmatpush1.msra.mxu0 0.0
    %2323 = vmatprep.subr.mxu0 0.0
    %2324 = vmatpush1.msra.mxu0 0.0
    %2325 = vmatprep.subr.mxu0 0.0
    %2326 = vmatpush1.msra.mxu0 0.0
    %2327 = vmatprep.subr.mxu0 0.0
    %2328 = vmatpush1.msra.mxu0 0.0
    %2329 = vmatprep.subr.mxu0 0.0
    %2330 = vmatpush1.msra.mxu0 0.0
    %2331 = vmatprep.subr.mxu0 0.0
    %2332 = vmatpush1.msra.mxu0 0.0
    %2333 = vmatprep.subr.mxu0 0.0
    %2334 = vmatpush1.msra.mxu0 0.0
    %2335 = vmatprep.subr.mxu0 0.0
    %2336 = vmatpush1.msra.mxu0 0.0
    %2337 = vmatprep.subr.mxu0 0.0
    %2338 = vmatpush1.msra.mxu0 0.0
    %2339 = vmatprep.subr.mxu0 0.0
    %2340 = vmatpush1.msra.mxu0 0.0
    %2341 = vmatprep.subr.mxu0 0.0
    %2342 = vmatpush1.msra.mxu0 0.0
    %2343 = vmatprep.mubr.f32.mxu0 0.0
    %2344 = vmatmul.mubr.f32.gmra.mrb[0].mxu0 %v2277
    %v2345 = vpop.f32.mrb[0].mxu0
    %v2346 = vadd.f32 0.0, %v2345
    %v2347 = vpop.f32.mrb[0].mxu0
    %2348 = vdwg.mxu0
    %v2349 = vadd.f32 %v2228, %v2346
    %v2350 = vld [vmem:[#allocation20] sm:$0x1]
    %v2352 = vlaneseq
    %v2353 = vshrl.u32 %v2352, 7
    %v2354 = vsub.s32 0, %v2353
    %v2355 = vrot.slane %v2350, %v2354
    %v2357 = vadd.f32 %v2349, %v2355
    %v2358 = vrot.slane %v2357, 4
    %v2359 = vadd.f32 %v2357, %v2358
    %v2360 = vrot.slane %v2359, 2
    %v2361 = vadd.f32 %v2359, %v2360
    %v2362 = vrot.slane %v2361, 1
    %v2363 = vadd.f32 %v2361, %v2362
    %v2364 = vrcp.pop 8.0
    %v2365 = vmul.f32 %v2363, %v2364
    %v2366 = vsub.f32 %v2357, %v2365
    %v2367 = vmul.f32 %v2366, %v2366
    %v2368 = vrot.slane %v2367, 4
    %v2369 = vadd.f32 %v2367, %v2368
    %v2370 = vrot.slane %v2369, 2
    %v2371 = vadd.f32 %v2369, %v2370
    %v2372 = vrot.slane %v2371, 1
    %v2373 = vadd.f32 %v2371, %v2372
    %v2374 = vmul.f32 %v2373, %v2364
    %v2375 = vadd.f32 %v2374, 1e-05
    %v2376 = vrsqrt.pop %v2375
    %v2377 = vmul.f32 %v2366, %v2376
    %v2378 = vld [vmem:[#allocation21] sm:$0x1]
    %v2380 = vlaneseq
    %v2381 = vshrl.u32 %v2380, 7
    %v2382 = vsub.s32 0, %v2381
    %v2383 = vrot.slane %v2378, %v2382
    %v2385 = vmul.f32 %v2377, %v2383
    %v2386 = vld [vmem:[#allocation23] sm:$0x1]
    %v2388 = vlaneseq
    %v2389 = vshrl.u32 %v2388, 7
    %v2390 = vsub.s32 0, %v2389
    %v2391 = vrot.slane %v2386, %v2390
    %v2393 = vadd.f32 %v2385, %v2391
    %v2394 = vld [vmem:[#allocation24] sm:$0xff]
    %v2395 = vld [vmem:[#allocation24 + $0x8] sm:$0xf]
    %v2396 = vld [vmem:[#allocation24 + $0xc] sm:$0xff]
    %v2397 = vld [vmem:[#allocation24 + $0x14] sm:$0xf]
    %v2398 = vld [vmem:[#allocation24 + $0x18] sm:$0xff]
    %v2399 = vld [vmem:[#allocation24 + $0x20] sm:$0xf]
    %v2400 = vld [vmem:[#allocation24 + $0x24] sm:$0xff]
    %v2401 = vld [vmem:[#allocation24 + $0x2c] sm:$0xf]
    %v2402 = vld [vmem:[#allocation24 + $0x30] sm:$0xff]
    %v2403 = vld [vmem:[#allocation24 + $0x38] sm:$0xf]
    %v2404 = vld [vmem:[#allocation24 + $0x3c] sm:$0xff]
    %v2405 = vld [vmem:[#allocation24 + $0x44] sm:$0xf]
    %v2406 = vld [vmem:[#allocation24 + $0x48] sm:$0xff]
    %v2407 = vld [vmem:[#allocation24 + $0x50] sm:$0xf]
    %v2408 = vld [vmem:[#allocation24 + $0x54] sm:$0xff]
    %v2409 = vld [vmem:[#allocation24 + $0x5c] sm:$0xf]
    %v2410 = vld [vmem:[#allocation24 + $0x60] sm:$0xff]
    %v2411 = vld [vmem:[#allocation24 + $0x68] sm:$0xf]
    %v2412 = vld [vmem:[#allocation24 + $0x6c] sm:$0xff]
    %v2413 = vld [vmem:[#allocation24 + $0x74] sm:$0xf]
    %v2414 = vld [vmem:[#allocation24 + $0x78] sm:$0xff]
    %v2415 = vld [vmem:[#allocation24 + $0x80] sm:$0xf]
    %v2416 = vld [vmem:[#allocation24 + $0x84] sm:$0xff]
    %v2417 = vld [vmem:[#allocation24 + $0x8c] sm:$0xf]
    %v2418 = vld [vmem:[#allocation24 + $0x90] sm:$0xff]
    %v2419 = vld [vmem:[#allocation24 + $0x98] sm:$0xf]
    %v2420 = vld [vmem:[#allocation24 + $0x9c] sm:$0xff]
    %v2421 = vld [vmem:[#allocation24 + $0xa4] sm:$0xf]
    %v2422 = vld [vmem:[#allocation24 + $0xa8] sm:$0xff]
    %v2423 = vld [vmem:[#allocation24 + $0xb0] sm:$0xf]
    %v2424 = vld [vmem:[#allocation24 + $0xb4] sm:$0xff]
    %v2425 = vld [vmem:[#allocation24 + $0xbc] sm:$0xf]
    %v2426 = vunpack.c.l.bf16 %v2394
    %v2427 = vunpack.c.h.bf16 %v2394
    %v2428 = vunpack.c.l.bf16 %v2395
    %v2429 = vunpack.c.l.bf16 %v2396
    %v2430 = vunpack.c.h.bf16 %v2396
    %v2431 = vunpack.c.l.bf16 %v2397
    %v2432 = vunpack.c.l.bf16 %v2398
    %v2433 = vunpack.c.h.bf16 %v2398
    %v2434 = vunpack.c.l.bf16 %v2399
    %v2435 = vunpack.c.l.bf16 %v2400
    %v2436 = vunpack.c.h.bf16 %v2400
    %v2437 = vunpack.c.l.bf16 %v2401
    %v2438 = vunpack.c.l.bf16 %v2402
    %v2439 = vunpack.c.h.bf16 %v2402
    %v2440 = vunpack.c.l.bf16 %v2403
    %v2441 = vunpack.c.l.bf16 %v2404
    %v2442 = vunpack.c.h.bf16 %v2404
    %v2443 = vunpack.c.l.bf16 %v2405
    %v2444 = vunpack.c.l.bf16 %v2406
    %v2445 = vunpack.c.h.bf16 %v2406
    %v2446 = vunpack.c.l.bf16 %v2407
    %v2447 = vunpack.c.l.bf16 %v2408
    %v2448 = vunpack.c.h.bf16 %v2408
    %v2449 = vunpack.c.l.bf16 %v2409
    %v2450 = vunpack.c.l.bf16 %v2410
    %v2451 = vunpack.c.h.bf16 %v2410
    %v2452 = vunpack.c.l.bf16 %v2411
    %v2453 = vunpack.c.l.bf16 %v2412
    %v2454 = vunpack.c.h.bf16 %v2412
    %v2455 = vunpack.c.l.bf16 %v2413
    %v2456 = vunpack.c.l.bf16 %v2414
    %v2457 = vunpack.c.h.bf16 %v2414
    %v2458 = vunpack.c.l.bf16 %v2415
    %v2459 = vunpack.c.l.bf16 %v2416
    %v2460 = vunpack.c.h.bf16 %v2416
    %v2461 = vunpack.c.l.bf16 %v2417
    %v2462 = vunpack.c.l.bf16 %v2418
    %v2463 = vunpack.c.h.bf16 %v2418
    %v2464 = vunpack.c.l.bf16 %v2419
    %v2465 = vunpack.c.l.bf16 %v2420
    %v2466 = vunpack.c.h.bf16 %v2420
    %v2467 = vunpack.c.l.bf16 %v2421
    %v2468 = vunpack.c.l.bf16 %v2422
    %v2469 = vunpack.c.h.bf16 %v2422
    %v2470 = vunpack.c.l.bf16 %v2423
    %v2471 = vunpack.c.l.bf16 %v2424
    %v2472 = vunpack.c.h.bf16 %v2424
    %v2473 = vunpack.c.l.bf16 %v2425
    %v2474 = vld [vmem:[%s16] sm:$0x7]
    %v2476 = vlaneseq
    %v2477 = vshrl.u32 %v2476, 7
    %v2478 = vsub.s32 0, %v2477
    %v2479 = vrot.slane %v2474, %v2478
    %v2480 = vlaneseq
    %v2481 = vshrl.u32 %v2480, 7
    %v2482 = vsub.s32 1, %v2481
    %v2483 = vrot.slane %v2474, %v2482
    %v2484 = vlaneseq
    %v2485 = vshrl.u32 %v2484, 7
    %v2486 = vsub.s32 2, %v2485
    %v2487 = vrot.slane %v2474, %v2486
    %2491 = vmatprep.subr.mxu0 %v2427
    %2492 = vmatpush1.msra.mxu0 %v2426
    %2493 = vmatprep.subr.mxu0 %v2430
    %2494 = vmatpush1.msra.mxu0 %v2429
    %2495 = vmatprep.subr.mxu0 %v2433
    %2496 = vmatpush1.msra.mxu0 %v2432
    %2497 = vmatprep.subr.mxu0 %v2436
    %2498 = vmatpush1.msra.mxu0 %v2435
    %2499 = vmatprep.subr.mxu0 %v2439
    %2500 = vmatpush1.msra.mxu0 %v2438
    %2501 = vmatprep.subr.mxu0 %v2442
    %2502 = vmatpush1.msra.mxu0 %v2441
    %2503 = vmatprep.subr.mxu0 %v2445
    %2504 = vmatpush1.msra.mxu0 %v2444
    %2505 = vmatprep.subr.mxu0 %v2448
    %2506 = vmatpush1.msra.mxu0 %v2447
    %2507 = vmatprep.subr.mxu0 %v2451
    %2508 = vmatpush1.msra.mxu0 %v2450
    %2509 = vmatprep.subr.mxu0 %v2454
    %2510 = vmatpush1.msra.mxu0 %v2453
    %2511 = vmatprep.subr.mxu0 %v2457
    %2512 = vmatpush1.msra.mxu0 %v2456
    %2513 = vmatprep.subr.mxu0 %v2460
    %2514 = vmatpush1.msra.mxu0 %v2459
    %2515 = vmatprep.subr.mxu0 %v2463
    %2516 = vmatpush1.msra.mxu0 %v2462
    %2517 = vmatprep.subr.mxu0 %v2466
    %2518 = vmatpush1.msra.mxu0 %v2465
    %2519 = vmatprep.subr.mxu0 %v2469
    %2520 = vmatpush1.msra.mxu0 %v2468
    %2521 = vmatprep.subr.mxu0 %v2472
    %2522 = vmatpush1.msra.mxu0 %v2471
    %2523 = vmatprep.subr.mxu0 0.0
    %2524 = vmatpush1.msra.mxu0 0.0
    %2525 = vmatprep.subr.mxu0 0.0
    %2526 = vmatpush1.msra.mxu0 0.0
    %2527 = vmatprep.subr.mxu0 0.0
    %2528 = vmatpush1.msra.mxu0 0.0
    %2529 = vmatprep.subr.mxu0 0.0
    %2530 = vmatpush1.msra.mxu0 0.0
    %2531 = vmatprep.subr.mxu0 0.0
    %2532 = vmatpush1.msra.mxu0 0.0
    %2533 = vmatprep.subr.mxu0 0.0
    %2534 = vmatpush1.msra.mxu0 0.0
    %2535 = vmatprep.subr.mxu0 0.0
    %2536 = vmatpush1.msra.mxu0 0.0
    %2537 = vmatprep.subr.mxu0 0.0
    %2538 = vmatpush1.msra.mxu0 0.0
    %2539 = vmatprep.subr.mxu0 0.0
    %2540 = vmatpush1.msra.mxu0 0.0
    %2541 = vmatprep.subr.mxu0 0.0
    %2542 = vmatpush1.msra.mxu0 0.0
    %2543 = vmatprep.subr.mxu0 0.0
    %2544 = vmatpush1.msra.mxu0 0.0
    %2545 = vmatprep.subr.mxu0 0.0
    %2546 = vmatpush1.msra.mxu0 0.0
    %2547 = vmatprep.subr.mxu0 0.0
    %2548 = vmatpush1.msra.mxu0 0.0
    %2549 = vmatprep.subr.mxu0 0.0
    %2550 = vmatpush1.msra.mxu0 0.0
    %2551 = vmatprep.subr.mxu0 0.0
    %2552 = vmatpush1.msra.mxu0 0.0
    %2553 = vmatprep.subr.mxu0 0.0
    %2554 = vmatpush1.msra.mxu0 0.0
    %2555 = vmatprep.mubr.f32.mxu0 0.0
    %2556 = vmatmul.mubr.f32.gmra.mrb[0].mxu0 %v799
    %v2557 = vpop.f32.mrb[0].mxu0
    %v2558 = vadd.f32 %v2479, %v2557
    %v2559 = vpop.f32.mrb[0].mxu0
    %v2560 = vadd.f32 %v2483, %v2559
    %2561 = vmatprep.mubr.f32.mxu0 0.0
    %2562 = vmatmul.mubr.f32.gmra.mrb[0].mxu0 %v802
    %v2563 = vpop.f32.mrb[0].mxu0
    %v2564 = vadd.f32 %v2479, %v2563
    %v2565 = vpop.f32.mrb[0].mxu0
    %v2566 = vadd.f32 %v2483, %v2565
    %2567 = vmatprep.mubr.f32.mxu0 0.0
    %2568 = vmatmul.mubr.f32.gmra.mrb[0].mxu0 %v807
    %v2569 = vpop.f32.mrb[0].mxu0
    %v2570 = vadd.f32 %v2479, %v2569
    %v2571 = vpop.f32.mrb[0].mxu0
    %v2572 = vadd.f32 %v2483, %v2571
    %2573 = vmatprep.mubr.f32.mxu0 0.0
    %2574 = vmatmul.mubr.f32.gmra.mrb[0].mxu0 %v810
    %v2575 = vpop.f32.mrb[0].mxu0
    %v2576 = vadd.f32 %v2479, %v2575
    %v2577 = vpop.f32.mrb[0].mxu0
    %v2578 = vadd.f32 %v2483, %v2577
    %2579 = vmatprep.mubr.f32.mxu0 0.0
    %2580 = vmatmul.mubr.f32.gmra.mrb[0].mxu0 %v815
    %v2581 = vpop.f32.mrb[0].mxu0
    %v2582 = vadd.f32 %v2479, %v2581
    %v2583 = vpop.f32.mrb[0].mxu0
    %v2584 = vadd.f32 %v2483, %v2583
    %2585 = vmatprep.mubr.f32.mxu0 0.0
    %2586 = vmatmul.mubr.f32.gmra.mrb[0].mxu0 %v818
    %v2587 = vpop.f32.mrb[0].mxu0
    %v2588 = vadd.f32 %v2479, %v2587
    %v2589 = vpop.f32.mrb[0].mxu0
    %v2590 = vadd.f32 %v2483, %v2589
    %2591 = vmatprep.mubr.f32.mxu0 0.0
    %2592 = vmatmul.mubr.f32.gmra.mrb[0].mxu0 %v823
    %v2593 = vpop.f32.mrb[0].mxu0
    %v2594 = vadd.f32 %v2479, %v2593
    %v2595 = vpop.f32.mrb[0].mxu0
    %v2596 = vadd.f32 %v2483, %v2595
    %2597 = vmatprep.mubr.f32.mxu0 0.0
    %2598 = vmatmul.mubr.f32.gmra.mrb[0].mxu0 %v826
    %v2599 = vpop.f32.mrb[0].mxu0
    %v2600 = vadd.f32 %v2479, %v2599
    %v2601 = vpop.f32.mrb[0].mxu0
    %v2602 = vadd.f32 %v2483, %v2601
    %2603 = vdwg.mxu0
    %2604 = vmatprep.subr.mxu0 0.0
    %2605 = vmatpush1.msra.mxu0 %v2428
    %2606 = vmatprep.subr.mxu0 0.0
    %2607 = vmatpush1.msra.mxu0 %v2431
    %2608 = vmatprep.subr.mxu0 0.0
    %2609 = vmatpush1.msra.mxu0 %v2434
    %2610 = vmatprep.subr.mxu0 0.0
    %2611 = vmatpush1.msra.mxu0 %v2437
    %2612 = vmatprep.subr.mxu0 0.0
    %2613 = vmatpush1.msra.mxu0 %v2440
    %2614 = vmatprep.subr.mxu0 0.0
    %2615 = vmatpush1.msra.mxu0 %v2443
    %2616 = vmatprep.subr.mxu0 0.0
    %2617 = vmatpush1.msra.mxu0 %v2446
    %2618 = vmatprep.subr.mxu0 0.0
    %2619 = vmatpush1.msra.mxu0 %v2449
    %2620 = vmatprep.subr.mxu0 0.0
    %2621 = vmatpush1.msra.mxu0 %v2452
    %2622 = vmatprep.subr.mxu0 0.0
    %2623 = vmatpush1.msra.mxu0 %v2455
    %2624 = vmatprep.subr.mxu0 0.0
    %2625 = vmatpush1.msra.mxu0 %v2458
    %2626 = vmatprep.subr.mxu0 0.0
    %2627 = vmatpush1.msra.mxu0 %v2461
    %2628 = vmatprep.subr.mxu0 0.0
    %2629 = vmatpush1.msra.mxu0 %v2464
    %2630 = vmatprep.subr.mxu0 0.0
    %2631 = vmatpush1.msra.mxu0 %v2467
    %2632 = vmatprep.subr.mxu0 0.0
    %2633 = vmatpush1.msra.mxu0 %v2470
    %2634 = vmatprep.subr.mxu0 0.0
    %2635 = vmatpush1.msra.mxu0 %v2473
    %2636 = vmatprep.subr.mxu0 0.0
    %2637 = vmatpush1.msra.mxu0 0.0
    %2638 = vmatprep.subr.mxu0 0.0
    %2639 = vmatpush1.msra.mxu0 0.0
    %2640 = vmatprep.subr.mxu0 0.0
    %2641 = vmatpush1.msra.mxu0 0.0
    %2642 = vmatprep.subr.mxu0 0.0
    %2643 = vmatpush1.msra.mxu0 0.0
    %2644 = vmatprep.subr.mxu0 0.0
    %2645 = vmatpush1.msra.mxu0 0.0
    %2646 = vmatprep.subr.mxu0 0.0
    %2647 = vmatpush1.msra.mxu0 0.0
    %2648 = vmatprep.subr.mxu0 0.0
    %2649 = vmatpush1.msra.mxu0 0.0
    %2650 = vmatprep.subr.mxu0 0.0
    %2651 = vmatpush1.msra.mxu0 0.0
    %2652 = vmatprep.subr.mxu0 0.0
    %2653 = vmatpush1.msra.mxu0 0.0
    %2654 = vmatprep.subr.mxu0 0.0
    %2655 = vmatpush1.msra.mxu0 0.0
    %2656 = vmatprep.subr.mxu0 0.0
    %2657 = vmatpush1.msra.mxu0 0.0
    %2658 = vmatprep.subr.mxu0 0.0
    %2659 = vmatpush1.msra.mxu0 0.0
    %2660 = vmatprep.subr.mxu0 0.0
    %2661 = vmatpush1.msra.mxu0 0.0
    %2662 = vmatprep.subr.mxu0 0.0
    %2663 = vmatpush1.msra.mxu0 0.0
    %2664 = vmatprep.subr.mxu0 0.0
    %2665 = vmatpush1.msra.mxu0 0.0
    %2666 = vmatprep.subr.mxu0 0.0
    %2667 = vmatpush1.msra.mxu0 0.0
    %2668 = vmatprep.mubr.f32.mxu0 0.0
    %2669 = vmatmul.mubr.f32.gmra.mrb[0].mxu0 %v799
    %v2670 = vpop.f32.mrb[0].mxu0
    %v2671 = vadd.f32 %v2487, %v2670
    %v2672 = vpop.f32.mrb[0].mxu0
    %2673 = vmatprep.mubr.f32.mxu0 0.0
    %2674 = vmatmul.mubr.f32.gmra.mrb[0].mxu0 %v802
    %v2675 = vpop.f32.mrb[0].mxu0
    %v2676 = vadd.f32 %v2487, %v2675
    %v2677 = vpop.f32.mrb[0].mxu0
    %2678 = vmatprep.mubr.f32.mxu0 0.0
    %2679 = vmatmul.mubr.f32.gmra.mrb[0].mxu0 %v807
    %v2680 = vpop.f32.mrb[0].mxu0
    %v2681 = vadd.f32 %v2487, %v2680
    %v2682 = vpop.f32.mrb[0].mxu0
    %2683 = vmatprep.mubr.f32.mxu0 0.0
    %2684 = vmatmul.mubr.f32.gmra.mrb[0].mxu0 %v810
    %v2685 = vpop.f32.mrb[0].mxu0
    %v2686 = vadd.f32 %v2487, %v2685
    %v2687 = vpop.f32.mrb[0].mxu0
    %2688 = vmatprep.mubr.f32.mxu0 0.0
    %2689 = vmatmul.mubr.f32.gmra.mrb[0].mxu0 %v815
    %v2690 = vpop.f32.mrb[0].mxu0
    %v2691 = vadd.f32 %v2487, %v2690
    %v2692 = vpop.f32.mrb[0].mxu0
    %2693 = vmatprep.mubr.f32.mxu0 0.0
    %2694 = vmatmul.mubr.f32.gmra.mrb[0].mxu0 %v818
    %v2695 = vpop.f32.mrb[0].mxu0
    %v2696 = vadd.f32 %v2487, %v2695
    %v2697 = vpop.f32.mrb[0].mxu0
    %2698 = vmatprep.mubr.f32.mxu0 0.0
    %2699 = vmatmul.mubr.f32.gmra.mrb[0].mxu0 %v823
    %v2700 = vpop.f32.mrb[0].mxu0
    %v2701 = vadd.f32 %v2487, %v2700
    %v2702 = vpop.f32.mrb[0].mxu0
    %2703 = vmatprep.mubr.f32.mxu0 0.0
    %2704 = vmatmul.mubr.f32.gmra.mrb[0].mxu0 %v826
    %v2705 = vpop.f32.mrb[0].mxu0
    %v2706 = vadd.f32 %v2487, %v2705
    %v2707 = vpop.f32.mrb[0].mxu0
    %2708 = vdwg.mxu0
    %v2733 = vrot.slane %v2564, 7
    %v2734 = vsel %vm1848, %v2733, %v2558
    %v2735 = vrot.slane %v2570, 6
    %v2736 = vsel %vm1850, %v2735, %v2734
    %v2737 = vrot.slane %v2576, 5
    %v2738 = vsel %vm1852, %v2737, %v2736
    %v2739 = vrot.slane %v2582, 4
    %v2740 = vsel %vm1854, %v2739, %v2738
    %v2741 = vrot.slane %v2588, 3
    %v2742 = vsel %vm1856, %v2741, %v2740
    %v2743 = vrot.slane %v2594, 2
    %v2744 = vsel %vm1858, %v2743, %v2742
    %v2745 = vrot.slane %v2600, 1
    %v2746 = vsel %vm1860, %v2745, %v2744
    %v2747 = vrot.slane %v2566, 7
    %v2748 = vsel %vm1848, %v2747, %v2560
    %v2749 = vrot.slane %v2572, 6
    %v2750 = vsel %vm1850, %v2749, %v2748
    %v2751 = vrot.slane %v2578, 5
    %v2752 = vsel %vm1852, %v2751, %v2750
    %v2753 = vrot.slane %v2584, 4
    %v2754 = vsel %vm1854, %v2753, %v2752
    %v2755 = vrot.slane %v2590, 3
    %v2756 = vsel %vm1856, %v2755, %v2754
    %v2757 = vrot.slane %v2596, 2
    %v2758 = vsel %vm1858, %v2757, %v2756
    %v2759 = vrot.slane %v2602, 1
    %v2760 = vsel %vm1860, %v2759, %v2758
    %v2761 = vrot.slane %v2676, 7
    %v2762 = vsel %vm1848, %v2761, %v2671
    %v2763 = vrot.slane %v2681, 6
    %v2764 = vsel %vm1850, %v2763, %v2762
    %v2765 = vrot.slane %v2686, 5
    %v2766 = vsel %vm1852, %v2765, %v2764
    %v2767 = vrot.slane %v2691, 4
    %v2768 = vsel %vm1854, %v2767, %v2766
    %v2769 = vrot.slane %v2696, 3
    %v2770 = vsel %vm1856, %v2769, %v2768
    %v2771 = vrot.slane %v2701, 2
    %v2772 = vsel %vm1858, %v2771, %v2770
    %v2773 = vrot.slane %v2706, 1
    %v2774 = vsel %vm1860, %v2773, %v2772
    %2778 = vst [vmem:[#allocation2] sm:$0xff] %v2746
    %2779 = vst [vmem:[#allocation2 + $0x8] sm:$0xff] %v2760
    %2780 = vst [vmem:[#allocation2 + $0x10] sm:$0xff] %v2774
    %v2781 = vrot.slane %v2558, 1
    %v2782 = vsel %vm1848, %v2564, %v2781
    %v2783 = vrot.slane %v2570, 7
    %v2784 = vsel %vm1850, %v2783, %v2782
    %v2785 = vrot.slane %v2576, 6
    %v2786 = vsel %vm1852, %v2785, %v2784
    %v2787 = vrot.slane %v2582, 5
    %v2788 = vsel %vm1854, %v2787, %v2786
    %v2789 = vrot.slane %v2588, 4
    %v2790 = vsel %vm1856, %v2789, %v2788
    %v2791 = vrot.slane %v2594, 3
    %v2792 = vsel %vm1858, %v2791, %v2790
    %v2793 = vrot.slane %v2600, 2
    %v2794 = vsel %vm1860, %v2793, %v2792
    %v2795 = vrot.slane %v2560, 1
    %v2796 = vsel %vm1848, %v2566, %v2795
    %v2797 = vrot.slane %v2572, 7
    %v2798 = vsel %vm1850, %v2797, %v2796
    %v2799 = vrot.slane %v2578, 6
    %v2800 = vsel %vm1852, %v2799, %v2798
    %v2801 = vrot.slane %v2584, 5
    %v2802 = vsel %vm1854, %v2801, %v2800
    %v2803 = vrot.slane %v2590, 4
    %v2804 = vsel %vm1856, %v2803, %v2802
    %v2805 = vrot.slane %v2596, 3
    %v2806 = vsel %vm1858, %v2805, %v2804
    %v2807 = vrot.slane %v2602, 2
    %v2808 = vsel %vm1860, %v2807, %v2806
    %v2809 = vrot.slane %v2671, 1
    %v2810 = vsel %vm1848, %v2676, %v2809
    %v2811 = vrot.slane %v2681, 7
    %v2812 = vsel %vm1850, %v2811, %v2810
    %v2813 = vrot.slane %v2686, 6
    %v2814 = vsel %vm1852, %v2813, %v2812
    %v2815 = vrot.slane %v2691, 5
    %v2816 = vsel %vm1854, %v2815, %v2814
    %v2817 = vrot.slane %v2696, 4
    %v2818 = vsel %vm1856, %v2817, %v2816
    %v2819 = vrot.slane %v2701, 3
    %v2820 = vsel %vm1858, %v2819, %v2818
    %v2821 = vrot.slane %v2706, 2
    %v2822 = vsel %vm1860, %v2821, %v2820
    %s2826 = scalar_lea.vmem [#allocation2], 24
    %2827 = vst [vmem:[%s2826] sm:$0xff] %v2794
    %2828 = vst [vmem:[%s2826 + $0x8] sm:$0xff] %v2808
    %2829 = vst [vmem:[%s2826 + $0x10] sm:$0xff] %v2822
    %v2830 = vrot.slane %v2558, 2
    %v2831 = vrot.slane %v2564, 1
    %v2832 = vsel %vm1848, %v2831, %v2830
    %v2833 = vsel %vm1850, %v2570, %v2832
    %v2834 = vrot.slane %v2576, 7
    %v2835 = vsel %vm1852, %v2834, %v2833
    %v2836 = vrot.slane %v2582, 6
    %v2837 = vsel %vm1854, %v2836, %v2835
    %v2838 = vrot.slane %v2588, 5
    %v2839 = vsel %vm1856, %v2838, %v2837
    %v2840 = vrot.slane %v2594, 4
    %v2841 = vsel %vm1858, %v2840, %v2839
    %v2842 = vrot.slane %v2600, 3
    %v2843 = vsel %vm1860, %v2842, %v2841
    %v2844 = vrot.slane %v2560, 2
    %v2845 = vrot.slane %v2566, 1
    %v2846 = vsel %vm1848, %v2845, %v2844
    %v2847 = vsel %vm1850, %v2572, %v2846
    %v2848 = vrot.slane %v2578, 7
    %v2849 = vsel %vm1852, %v2848, %v2847
    %v2850 = vrot.slane %v2584, 6
    %v2851 = vsel %vm1854, %v2850, %v2849
    %v2852 = vrot.slane %v2590, 5
    %v2853 = vsel %vm1856, %v2852, %v2851
    %v2854 = vrot.slane %v2596, 4
    %v2855 = vsel %vm1858, %v2854, %v2853
    %v2856 = vrot.slane %v2602, 3
    %v2857 = vsel %vm1860, %v2856, %v2855
    %v2858 = vrot.slane %v2671, 2
    %v2859 = vrot.slane %v2676, 1
    %v2860 = vsel %vm1848, %v2859, %v2858
    %v2861 = vsel %vm1850, %v2681, %v2860
    %v2862 = vrot.slane %v2686, 7
    %v2863 = vsel %vm1852, %v2862, %v2861
    %v2864 = vrot.slane %v2691, 6
    %v2865 = vsel %vm1854, %v2864, %v2863
    %v2866 = vrot.slane %v2696, 5
    %v2867 = vsel %vm1856, %v2866, %v2865
    %v2868 = vrot.slane %v2701, 4
    %v2869 = vsel %vm1858, %v2868, %v2867
    %v2870 = vrot.slane %v2706, 3
    %v2871 = vsel %vm1860, %v2870, %v2869
    %s2875 = scalar_lea.vmem [#allocation2], 48
    %2876 = vst [vmem:[%s2875] sm:$0xff] %v2843
    %2877 = vst [vmem:[%s2875 + $0x8] sm:$0xff] %v2857
    %2878 = vst [vmem:[%s2875 + $0x10] sm:$0xff] %v2871
    %v2879 = vrot.slane %v2558, 3
    %v2880 = vrot.slane %v2564, 2
    %v2881 = vsel %vm1848, %v2880, %v2879
    %v2882 = vrot.slane %v2570, 1
    %v2883 = vsel %vm1850, %v2882, %v2881
    %v2884 = vsel %vm1852, %v2576, %v2883
    %v2885 = vrot.slane %v2582, 7
    %v2886 = vsel %vm1854, %v2885, %v2884
    %v2887 = vrot.slane %v2588, 6
    %v2888 = vsel %vm1856, %v2887, %v2886
    %v2889 = vrot.slane %v2594, 5
    %v2890 = vsel %vm1858, %v2889, %v2888
    %v2891 = vrot.slane %v2600, 4
    %v2892 = vsel %vm1860, %v2891, %v2890
    %v2893 = vrot.slane %v2560, 3
    %v2894 = vrot.slane %v2566, 2
    %v2895 = vsel %vm1848, %v2894, %v2893
    %v2896 = vrot.slane %v2572, 1
    %v2897 = vsel %vm1850, %v2896, %v2895
    %v2898 = vsel %vm1852, %v2578, %v2897
    %v2899 = vrot.slane %v2584, 7
    %v2900 = vsel %vm1854, %v2899, %v2898
    %v2901 = vrot.slane %v2590, 6
    %v2902 = vsel %vm1856, %v2901, %v2900
    %v2903 = vrot.slane %v2596, 5
    %v2904 = vsel %vm1858, %v2903, %v2902
    %v2905 = vrot.slane %v2602, 4
    %v2906 = vsel %vm1860, %v2905, %v2904
    %v2907 = vrot.slane %v2671, 3
    %v2908 = vrot.slane %v2676, 2
    %v2909 = vsel %vm1848, %v2908, %v2907
    %v2910 = vrot.slane %v2681, 1
    %v2911 = vsel %vm1850, %v2910, %v2909
    %v2912 = vsel %vm1852, %v2686, %v2911
    %v2913 = vrot.slane %v2691, 7
    %v2914 = vsel %vm1854, %v2913, %v2912
    %v2915 = vrot.slane %v2696, 6
    %v2916 = vsel %vm1856, %v2915, %v2914
    %v2917 = vrot.slane %v2701, 5
    %v2918 = vsel %vm1858, %v2917, %v2916
    %v2919 = vrot.slane %v2706, 4
    %v2920 = vsel %vm1860, %v2919, %v2918
    %s2924 = scalar_lea.vmem [#allocation2], 72
    %2925 = vst [vmem:[%s2924] sm:$0xff] %v2892
    %2926 = vst [vmem:[%s2924 + $0x8] sm:$0xff] %v2906
    %2927 = vst [vmem:[%s2924 + $0x10] sm:$0xff] %v2920
    %v2928 = vrot.slane %v2558, 4
    %v2929 = vrot.slane %v2564, 3
    %v2930 = vsel %vm1848, %v2929, %v2928
    %v2931 = vrot.slane %v2570, 2
    %v2932 = vsel %vm1850, %v2931, %v2930
    %v2933 = vrot.slane %v2576, 1
    %v2934 = vsel %vm1852, %v2933, %v2932
    %v2935 = vsel %vm1854, %v2582, %v2934
    %v2936 = vrot.slane %v2588, 7
    %v2937 = vsel %vm1856, %v2936, %v2935
    %v2938 = vrot.slane %v2594, 6
    %v2939 = vsel %vm1858, %v2938, %v2937
    %v2940 = vrot.slane %v2600, 5
    %v2941 = vsel %vm1860, %v2940, %v2939
    %v2942 = vrot.slane %v2560, 4
    %v2943 = vrot.slane %v2566, 3
    %v2944 = vsel %vm1848, %v2943, %v2942
    %v2945 = vrot.slane %v2572, 2
    %v2946 = vsel %vm1850, %v2945, %v2944
    %v2947 = vrot.slane %v2578, 1
    %v2948 = vsel %vm1852, %v2947, %v2946
    %v2949 = vsel %vm1854, %v2584, %v2948
    %v2950 = vrot.slane %v2590, 7
    %v2951 = vsel %vm1856, %v2950, %v2949
    %v2952 = vrot.slane %v2596, 6
    %v2953 = vsel %vm1858, %v2952, %v2951
    %v2954 = vrot.slane %v2602, 5
    %v2955 = vsel %vm1860, %v2954, %v2953
    %v2956 = vrot.slane %v2671, 4
    %v2957 = vrot.slane %v2676, 3
    %v2958 = vsel %vm1848, %v2957, %v2956
    %v2959 = vrot.slane %v2681, 2
    %v2960 = vsel %vm1850, %v2959, %v2958
    %v2961 = vrot.slane %v2686, 1
    %v2962 = vsel %vm1852, %v2961, %v2960
    %v2963 = vsel %vm1854, %v2691, %v2962
    %v2964 = vrot.slane %v2696, 7
    %v2965 = vsel %vm1856, %v2964, %v2963
    %v2966 = vrot.slane %v2701, 6
    %v2967 = vsel %vm1858, %v2966, %v2965
    %v2968 = vrot.slane %v2706, 5
    %v2969 = vsel %vm1860, %v2968, %v2967
    %s2973 = scalar_lea.vmem [#allocation2], 96
    %2974 = vst [vmem:[%s2973] sm:$0xff] %v2941
    %2975 = vst [vmem:[%s2973 + $0x8] sm:$0xff] %v2955
    %2976 = vst [vmem:[%s2973 + $0x10] sm:$0xff] %v2969
    %v2977 = vrot.slane %v2558, 5
    %v2978 = vrot.slane %v2564, 4
    %v2979 = vsel %vm1848, %v2978, %v2977
    %v2980 = vrot.slane %v2570, 3
    %v2981 = vsel %vm1850, %v2980, %v2979
    %v2982 = vrot.slane %v2576, 2
    %v2983 = vsel %vm1852, %v2982, %v2981
    %v2984 = vrot.slane %v2582, 1
    %v2985 = vsel %vm1854, %v2984, %v2983
    %v2986 = vsel %vm1856, %v2588, %v2985
    %v2987 = vrot.slane %v2594, 7
    %v2988 = vsel %vm1858, %v2987, %v2986
    %v2989 = vrot.slane %v2600, 6
    %v2990 = vsel %vm1860, %v2989, %v2988
    %v2991 = vrot.slane %v2560, 5
    %v2992 = vrot.slane %v2566, 4
    %v2993 = vsel %vm1848, %v2992, %v2991
    %v2994 = vrot.slane %v2572, 3
    %v2995 = vsel %vm1850, %v2994, %v2993
    %v2996 = vrot.slane %v2578, 2
    %v2997 = vsel %vm1852, %v2996, %v2995
    %v2998 = vrot.slane %v2584, 1
    %v2999 = vsel %vm1854, %v2998, %v2997
    %v3000 = vsel %vm1856, %v2590, %v2999
    %v3001 = vrot.slane %v2596, 7
    %v3002 = vsel %vm1858, %v3001, %v3000
    %v3003 = vrot.slane %v2602, 6
    %v3004 = vsel %vm1860, %v3003, %v3002
    %v3005 = vrot.slane %v2671, 5
    %v3006 = vrot.slane %v2676, 4
    %v3007 = vsel %vm1848, %v3006, %v3005
    %v3008 = vrot.slane %v2681, 3
    %v3009 = vsel %vm1850, %v3008, %v3007
    %v3010 = vrot.slane %v2686, 2
    %v3011 = vsel %vm1852, %v3010, %v3009
    %v3012 = vrot.slane %v2691, 1
    %v3013 = vsel %vm1854, %v3012, %v3011
    %v3014 = vsel %vm1856, %v2696, %v3013
    %v3015 = vrot.slane %v2701, 7
    %v3016 = vsel %vm1858, %v3015, %v3014
    %v3017 = vrot.slane %v2706, 6
    %v3018 = vsel %vm1860, %v3017, %v3016
    %s3022 = scalar_lea.vmem [#allocation2], 120
    %3023 = vst [vmem:[%s3022] sm:$0xff] %v2990
    %3024 = vst [vmem:[%s3022 + $0x8] sm:$0xff] %v3004
    %3025 = vst [vmem:[%s3022 + $0x10] sm:$0xff] %v3018
    %v3026 = vrot.slane %v2558, 6
    %v3027 = vrot.slane %v2564, 5
    %v3028 = vsel %vm1848, %v3027, %v3026
    %v3029 = vrot.slane %v2570, 4
    %v3030 = vsel %vm1850, %v3029, %v3028
    %v3031 = vrot.slane %v2576, 3
    %v3032 = vsel %vm1852, %v3031, %v3030
    %v3033 = vrot.slane %v2582, 2
    %v3034 = vsel %vm1854, %v3033, %v3032
    %v3035 = vrot.slane %v2588, 1
    %v3036 = vsel %vm1856, %v3035, %v3034
    %v3037 = vsel %vm1858, %v2594, %v3036
    %v3038 = vrot.slane %v2600, 7
    %v3039 = vsel %vm1860, %v3038, %v3037
    %v3040 = vrot.slane %v2560, 6
    %v3041 = vrot.slane %v2566, 5
    %v3042 = vsel %vm1848, %v3041, %v3040
    %v3043 = vrot.slane %v2572, 4
    %v3044 = vsel %vm1850, %v3043, %v3042
    %v3045 = vrot.slane %v2578, 3
    %v3046 = vsel %vm1852, %v3045, %v3044
    %v3047 = vrot.slane %v2584, 2
    %v3048 = vsel %vm1854, %v3047, %v3046
    %v3049 = vrot.slane %v2590, 1
    %v3050 = vsel %vm1856, %v3049, %v3048
    %v3051 = vsel %vm1858, %v2596, %v3050
    %v3052 = vrot.slane %v2602, 7
    %v3053 = vsel %vm1860, %v3052, %v3051
    %v3054 = vrot.slane %v2671, 6
    %v3055 = vrot.slane %v2676, 5
    %v3056 = vsel %vm1848, %v3055, %v3054
    %v3057 = vrot.slane %v2681, 4
    %v3058 = vsel %vm1850, %v3057, %v3056
    %v3059 = vrot.slane %v2686, 3
    %v3060 = vsel %vm1852, %v3059, %v3058
    %v3061 = vrot.slane %v2691, 2
    %v3062 = vsel %vm1854, %v3061, %v3060
    %v3063 = vrot.slane %v2696, 1
    %v3064 = vsel %vm1856, %v3063, %v3062
    %v3065 = vsel %vm1858, %v2701, %v3064
    %v3066 = vrot.slane %v2706, 7
    %v3067 = vsel %vm1860, %v3066, %v3065
    %s3071 = scalar_lea.vmem [#allocation2], 144
    %3072 = vst [vmem:[%s3071] sm:$0xff] %v3039
    %3073 = vst [vmem:[%s3071 + $0x8] sm:$0xff] %v3053
    %3074 = vst [vmem:[%s3071 + $0x10] sm:$0xff] %v3067
    %v3075 = vrot.slane %v2558, 7
    %v3076 = vrot.slane %v2564, 6
    %v3077 = vsel %vm1848, %v3076, %v3075
    %v3078 = vrot.slane %v2570, 5
    %v3079 = vsel %vm1850, %v3078, %v3077
    %v3080 = vrot.slane %v2576, 4
    %v3081 = vsel %vm1852, %v3080, %v3079
    %v3082 = vrot.slane %v2582, 3
    %v3083 = vsel %vm1854, %v3082, %v3081
    %v3084 = vrot.slane %v2588, 2
    %v3085 = vsel %vm1856, %v3084, %v3083
    %v3086 = vrot.slane %v2594, 1
    %v3087 = vsel %vm1858, %v3086, %v3085
    %v3088 = vsel %vm1860, %v2600, %v3087
    %v3089 = vrot.slane %v2560, 7
    %v3090 = vrot.slane %v2566, 6
    %v3091 = vsel %vm1848, %v3090, %v3089
    %v3092 = vrot.slane %v2572, 5
    %v3093 = vsel %vm1850, %v3092, %v3091
    %v3094 = vrot.slane %v2578, 4
    %v3095 = vsel %vm1852, %v3094, %v3093
    %v3096 = vrot.slane %v2584, 3
    %v3097 = vsel %vm1854, %v3096, %v3095
    %v3098 = vrot.slane %v2590, 2
    %v3099 = vsel %vm1856, %v3098, %v3097
    %v3100 = vrot.slane %v2596, 1
    %v3101 = vsel %vm1858, %v3100, %v3099
    %v3102 = vsel %vm1860, %v2602, %v3101
    %v3103 = vrot.slane %v2671, 7
    %v3104 = vrot.slane %v2676, 6
    %v3105 = vsel %vm1848, %v3104, %v3103
    %v3106 = vrot.slane %v2681, 5
    %v3107 = vsel %vm1850, %v3106, %v3105
    %v3108 = vrot.slane %v2686, 4
    %v3109 = vsel %vm1852, %v3108, %v3107
    %v3110 = vrot.slane %v2691, 3
    %v3111 = vsel %vm1854, %v3110, %v3109
    %v3112 = vrot.slane %v2696, 2
    %v3113 = vsel %vm1856, %v3112, %v3111
    %v3114 = vrot.slane %v2701, 1
    %v3115 = vsel %vm1858, %v3114, %v3113
    %v3116 = vsel %vm1860, %v2706, %v3115
    %s3120 = scalar_lea.vmem [#allocation2], 168
    %3121 = vst [vmem:[%s3120] sm:$0xff] %v3088
    %3122 = vst [vmem:[%s3120 + $0x8] sm:$0xff] %v3102
    %3123 = vst [vmem:[%s3120 + $0x10] sm:$0xff] %v3116
    %v3124 = vld [vmem:[#allocation26] sm:$0xff]
    %v3125 = vld [vmem:[#allocation26 + $0x8] sm:$0xf]
    %v3126 = vld [vmem:[#allocation26 + $0xc] sm:$0xff]
    %v3127 = vld [vmem:[#allocation26 + $0x14] sm:$0xf]
    %v3128 = vld [vmem:[#allocation26 + $0x18] sm:$0xff]
    %v3129 = vld [vmem:[#allocation26 + $0x20] sm:$0xf]
    %v3130 = vld [vmem:[#allocation26 + $0x24] sm:$0xff]
    %v3131 = vld [vmem:[#allocation26 + $0x2c] sm:$0xf]
    %v3132 = vld [vmem:[#allocation26 + $0x30] sm:$0xff]
    %v3133 = vld [vmem:[#allocation26 + $0x38] sm:$0xf]
    %v3134 = vld [vmem:[#allocation26 + $0x3c] sm:$0xff]
    %v3135 = vld [vmem:[#allocation26 + $0x44] sm:$0xf]
    %v3136 = vld [vmem:[#allocation26 + $0x48] sm:$0xff]
    %v3137 = vld [vmem:[#allocation26 + $0x50] sm:$0xf]
    %v3138 = vld [vmem:[#allocation26 + $0x54] sm:$0xff]
    %v3139 = vld [vmem:[#allocation26 + $0x5c] sm:$0xf]
    %v3140 = vld [vmem:[#allocation26 + $0x60] sm:$0xff]
    %v3141 = vld [vmem:[#allocation26 + $0x68] sm:$0xf]
    %v3142 = vld [vmem:[#allocation26 + $0x6c] sm:$0xff]
    %v3143 = vld [vmem:[#allocation26 + $0x74] sm:$0xf]
    %v3144 = vld [vmem:[#allocation26 + $0x78] sm:$0xff]
    %v3145 = vld [vmem:[#allocation26 + $0x80] sm:$0xf]
    %v3146 = vld [vmem:[#allocation26 + $0x84] sm:$0xff]
    %v3147 = vld [vmem:[#allocation26 + $0x8c] sm:$0xf]
    %v3148 = vld [vmem:[#allocation26 + $0x90] sm:$0xff]
    %v3149 = vld [vmem:[#allocation26 + $0x98] sm:$0xf]
    %v3150 = vld [vmem:[#allocation26 + $0x9c] sm:$0xff]
    %v3151 = vld [vmem:[#allocation26 + $0xa4] sm:$0xf]
    %v3152 = vld [vmem:[#allocation26 + $0xa8] sm:$0xff]
    %v3153 = vld [vmem:[#allocation26 + $0xb0] sm:$0xf]
    %v3154 = vld [vmem:[#allocation26 + $0xb4] sm:$0xff]
    %v3155 = vld [vmem:[#allocation26 + $0xbc] sm:$0xf]
    %v3156 = vunpack.c.l.bf16 %v3124
    %v3157 = vunpack.c.h.bf16 %v3124
    %v3158 = vunpack.c.l.bf16 %v3125
    %v3159 = vunpack.c.l.bf16 %v3126
    %v3160 = vunpack.c.h.bf16 %v3126
    %v3161 = vunpack.c.l.bf16 %v3127
    %v3162 = vunpack.c.l.bf16 %v3128
    %v3163 = vunpack.c.h.bf16 %v3128
    %v3164 = vunpack.c.l.bf16 %v3129
    %v3165 = vunpack.c.l.bf16 %v3130
    %v3166 = vunpack.c.h.bf16 %v3130
    %v3167 = vunpack.c.l.bf16 %v3131
    %v3168 = vunpack.c.l.bf16 %v3132
    %v3169 = vunpack.c.h.bf16 %v3132
    %v3170 = vunpack.c.l.bf16 %v3133
    %v3171 = vunpack.c.l.bf16 %v3134
    %v3172 = vunpack.c.h.bf16 %v3134
    %v3173 = vunpack.c.l.bf16 %v3135
    %v3174 = vunpack.c.l.bf16 %v3136
    %v3175 = vunpack.c.h.bf16 %v3136
    %v3176 = vunpack.c.l.bf16 %v3137
    %v3177 = vunpack.c.l.bf16 %v3138
    %v3178 = vunpack.c.h.bf16 %v3138
    %v3179 = vunpack.c.l.bf16 %v3139
    %v3180 = vunpack.c.l.bf16 %v3140
    %v3181 = vunpack.c.h.bf16 %v3140
    %v3182 = vunpack.c.l.bf16 %v3141
    %v3183 = vunpack.c.l.bf16 %v3142
    %v3184 = vunpack.c.h.bf16 %v3142
    %v3185 = vunpack.c.l.bf16 %v3143
    %v3186 = vunpack.c.l.bf16 %v3144
    %v3187 = vunpack.c.h.bf16 %v3144
    %v3188 = vunpack.c.l.bf16 %v3145
    %v3189 = vunpack.c.l.bf16 %v3146
    %v3190 = vunpack.c.h.bf16 %v3146
    %v3191 = vunpack.c.l.bf16 %v3147
    %v3192 = vunpack.c.l.bf16 %v3148
    %v3193 = vunpack.c.h.bf16 %v3148
    %v3194 = vunpack.c.l.bf16 %v3149
    %v3195 = vunpack.c.l.bf16 %v3150
    %v3196 = vunpack.c.h.bf16 %v3150
    %v3197 = vunpack.c.l.bf16 %v3151
    %v3198 = vunpack.c.l.bf16 %v3152
    %v3199 = vunpack.c.h.bf16 %v3152
    %v3200 = vunpack.c.l.bf16 %v3153
    %v3201 = vunpack.c.l.bf16 %v3154
    %v3202 = vunpack.c.h.bf16 %v3154
    %v3203 = vunpack.c.l.bf16 %v3155
    %v3204 = vld [vmem:[#allocation27] sm:$0x7]
    %v3205 = vld [vmem:[#allocation2] sm:$0xff]
    %v3206 = vld [vmem:[#allocation2 + $0x8] sm:$0xff]
    %v3207 = vld [vmem:[#allocation2 + $0x10] sm:$0xff]
    %v3209 = vlaneseq
    %v3210 = vshrl.u32 %v3209, 7
    %v3211 = vsub.s32 0, %v3210
    %v3212 = vrot.slane %v3204, %v3211
    %v3213 = vlaneseq
    %v3214 = vshrl.u32 %v3213, 7
    %v3215 = vsub.s32 1, %v3214
    %v3216 = vrot.slane %v3204, %v3215
    %v3217 = vlaneseq
    %v3218 = vshrl.u32 %v3217, 7
    %v3219 = vsub.s32 2, %v3218
    %v3220 = vrot.slane %v3204, %v3219
    %3224 = vmatprep.subr.mxu0 %v3157
    %3225 = vmatpush1.msra.mxu0 %v3156
    %3226 = vmatprep.subr.mxu0 %v3160
    %3227 = vmatpush1.msra.mxu0 %v3159
    %3228 = vmatprep.subr.mxu0 %v3163
    %3229 = vmatpush1.msra.mxu0 %v3162
    %3230 = vmatprep.subr.mxu0 %v3166
    %3231 = vmatpush1.msra.mxu0 %v3165
    %3232 = vmatprep.subr.mxu0 %v3169
    %3233 = vmatpush1.msra.mxu0 %v3168
    %3234 = vmatprep.subr.mxu0 %v3172
    %3235 = vmatpush1.msra.mxu0 %v3171
    %3236 = vmatprep.subr.mxu0 %v3175
    %3237 = vmatpush1.msra.mxu0 %v3174
    %3238 = vmatprep.subr.mxu0 %v3178
    %3239 = vmatpush1.msra.mxu0 %v3177
    %3240 = vmatprep.subr.mxu0 %v3181
    %3241 = vmatpush1.msra.mxu0 %v3180
    %3242 = vmatprep.subr.mxu0 %v3184
    %3243 = vmatpush1.msra.mxu0 %v3183
    %3244 = vmatprep.subr.mxu0 %v3187
    %3245 = vmatpush1.msra.mxu0 %v3186
    %3246 = vmatprep.subr.mxu0 %v3190
    %3247 = vmatpush1.msra.mxu0 %v3189
    %3248 = vmatprep.subr.mxu0 %v3193
    %3249 = vmatpush1.msra.mxu0 %v3192
    %3250 = vmatprep.subr.mxu0 %v3196
    %3251 = vmatpush1.msra.mxu0 %v3195
    %3252 = vmatprep.subr.mxu0 %v3199
    %3253 = vmatpush1.msra.mxu0 %v3198
    %3254 = vmatprep.subr.mxu0 %v3202
    %3255 = vmatpush1.msra.mxu0 %v3201
    %3256 = vmatprep.subr.mxu0 0.0
    %3257 = vmatpush1.msra.mxu0 0.0
    %3258 = vmatprep.subr.mxu0 0.0
    %3259 = vmatpush1.msra.mxu0 0.0
    %3260 = vmatprep.subr.mxu0 0.0
    %3261 = vmatpush1.msra.mxu0 0.0
    %3262 = vmatprep.subr.mxu0 0.0
    %3263 = vmatpush1.msra.mxu0 0.0
    %3264 = vmatprep.subr.mxu0 0.0
    %3265 = vmatpush1.msra.mxu0 0.0
    %3266 = vmatprep.subr.mxu0 0.0
    %3267 = vmatpush1.msra.mxu0 0.0
    %3268 = vmatprep.subr.mxu0 0.0
    %3269 = vmatpush1.msra.mxu0 0.0
    %3270 = vmatprep.subr.mxu0 0.0
    %3271 = vmatpush1.msra.mxu0 0.0
    %3272 = vmatprep.subr.mxu0 0.0
    %3273 = vmatpush1.msra.mxu0 0.0
    %3274 = vmatprep.subr.mxu0 0.0
    %3275 = vmatpush1.msra.mxu0 0.0
    %3276 = vmatprep.subr.mxu0 0.0
    %3277 = vmatpush1.msra.mxu0 0.0
    %3278 = vmatprep.subr.mxu0 0.0
    %3279 = vmatpush1.msra.mxu0 0.0
    %3280 = vmatprep.subr.mxu0 0.0
    %3281 = vmatpush1.msra.mxu0 0.0
    %3282 = vmatprep.subr.mxu0 0.0
    %3283 = vmatpush1.msra.mxu0 0.0
    %3284 = vmatprep.subr.mxu0 0.0
    %3285 = vmatpush1.msra.mxu0 0.0
    %3286 = vmatprep.subr.mxu0 0.0
    %3287 = vmatpush1.msra.mxu0 0.0
    %3288 = vmatprep.mubr.f32.mxu0 0.0
    %3289 = vmatmul.mubr.f32.gmra.mrb[0].mxu0 0.0
    %v3290 = vpop.f32.mrb[0].mxu0
    %v3291 = vadd.f32 %v3212, %v3290
    %v3292 = vpop.f32.mrb[0].mxu0
    %v3293 = vadd.f32 %v3216, %v3292
    %3294 = vdwg.mxu0
    %3295 = vmatprep.subr.mxu0 0.0
    %3296 = vmatpush1.msra.mxu0 %v3158
    %3297 = vmatprep.subr.mxu0 0.0
    %3298 = vmatpush1.msra.mxu0 %v3161
    %3299 = vmatprep.subr.mxu0 0.0
    %3300 = vmatpush1.msra.mxu0 %v3164
    %3301 = vmatprep.subr.mxu0 0.0
    %3302 = vmatpush1.msra.mxu0 %v3167
    %3303 = vmatprep.subr.mxu0 0.0
    %3304 = vmatpush1.msra.mxu0 %v3170
    %3305 = vmatprep.subr.mxu0 0.0
    %3306 = vmatpush1.msra.mxu0 %v3173
    %3307 = vmatprep.subr.mxu0 0.0
    %3308 = vmatpush1.msra.mxu0 %v3176
    %3309 = vmatprep.subr.mxu0 0.0
    %3310 = vmatpush1.msra.mxu0 %v3179
    %3311 = vmatprep.subr.mxu0 0.0
    %3312 = vmatpush1.msra.mxu0 %v3182
    %3313 = vmatprep.subr.mxu0 0.0
    %3314 = vmatpush1.msra.mxu0 %v3185
    %3315 = vmatprep.subr.mxu0 0.0
    %3316 = vmatpush1.msra.mxu0 %v3188
    %3317 = vmatprep.subr.mxu0 0.0
    %3318 = vmatpush1.msra.mxu0 %v3191
    %3319 = vmatprep.subr.mxu0 0.0
    %3320 = vmatpush1.msra.mxu0 %v3194
    %3321 = vmatprep.subr.mxu0 0.0
    %3322 = vmatpush1.msra.mxu0 %v3197
    %3323 = vmatprep.subr.mxu0 0.0
    %3324 = vmatpush1.msra.mxu0 %v3200
    %3325 = vmatprep.subr.mxu0 0.0
    %3326 = vmatpush1.msra.mxu0 %v3203
    %3327 = vmatprep.subr.mxu0 0.0
    %3328 = vmatpush1.msra.mxu0 0.0
    %3329 = vmatprep.subr.mxu0 0.0
    %3330 = vmatpush1.msra.mxu0 0.0
    %3331 = vmatprep.subr.mxu0 0.0
    %3332 = vmatpush1.msra.mxu0 0.0
    %3333 = vmatprep.subr.mxu0 0.0
    %3334 = vmatpush1.msra.mxu0 0.0
    %3335 = vmatprep.subr.mxu0 0.0
    %3336 = vmatpush1.msra.mxu0 0.0
    %3337 = vmatprep.subr.mxu0 0.0
    %3338 = vmatpush1.msra.mxu0 0.0
    %3339 = vmatprep.subr.mxu0 0.0
    %3340 = vmatpush1.msra.mxu0 0.0
    %3341 = vmatprep.subr.mxu0 0.0
    %3342 = vmatpush1.msra.mxu0 0.0
    %3343 = vmatprep.subr.mxu0 0.0
    %3344 = vmatpush1.msra.mxu0 0.0
    %3345 = vmatprep.subr.mxu0 0.0
    %3346 = vmatpush1.msra.mxu0 0.0
    %3347 = vmatprep.subr.mxu0 0.0
    %3348 = vmatpush1.msra.mxu0 0.0
    %3349 = vmatprep.subr.mxu0 0.0
    %3350 = vmatpush1.msra.mxu0 0.0
    %3351 = vmatprep.subr.mxu0 0.0
    %3352 = vmatpush1.msra.mxu0 0.0
    %3353 = vmatprep.subr.mxu0 0.0
    %3354 = vmatpush1.msra.mxu0 0.0
    %3355 = vmatprep.subr.mxu0 0.0
    %3356 = vmatpush1.msra.mxu0 0.0
    %3357 = vmatprep.subr.mxu0 0.0
    %3358 = vmatpush1.msra.mxu0 0.0
    %3359 = vmatprep.mubr.f32.mxu0 0.0
    %3360 = vmatmul.mubr.f32.gmra.mrb[0].mxu0 0.0
    %v3361 = vpop.f32.mrb[0].mxu0
    %v3362 = vadd.f32 %v3220, %v3361
    %v3363 = vpop.f32.mrb[0].mxu0
    %3364 = vdwg.mxu0
    %v3365 = vadd.f32 %v3205, %v3291
    %v3366 = vsub.f32 0.0, %v3365
    %v3367 = vmul.f32 %v3366, 1.442695
    %v3368 = vpow.pop %v3367
    %v3369 = vadd.f32 %v3368, 1.0
    %v3370 = vrcp.pop %v3369
    %v3371 = vmul.f32 1.0, %v3370
    %v3372 = vadd.f32 %v3206, %v3293
    %v3373 = vsub.f32 0.0, %v3372
    %v3374 = vmul.f32 %v3373, 1.442695
    %v3375 = vpow.pop %v3374
    %v3376 = vadd.f32 %v3375, 1.0
    %v3377 = vrcp.pop %v3376
    %v3378 = vmul.f32 1.0, %v3377
    %v3379 = vmul.f32 %v3371, %v3362
    %v3380 = vadd.f32 %v3207, %v3379
    %v3381 = vtanh.pop %v3380
    %v3382 = vsub.f32 1.0, %v3378
    %v3383 = vmul.f32 %v3382, %v3381
    %v3384 = vmul.f32 %v3378, 0.0
    %v3385 = vadd.f32 %v3383, %v3384
    %v3386 = vld [vmem:[%s2826] sm:$0xff]
    %v3387 = vld [vmem:[%s2826 + $0x8] sm:$0xff]
    %v3388 = vld [vmem:[%s2826 + $0x10] sm:$0xff]
    %3389 = vmatprep.subr.mxu0 %v3157
    %3390 = vmatpush1.msra.mxu0 %v3156
    %3391 = vmatprep.subr.mxu0 %v3160
    %3392 = vmatpush1.msra.mxu0 %v3159
    %3393 = vmatprep.subr.mxu0 %v3163
    %3394 = vmatpush1.msra.mxu0 %v3162
    %3395 = vmatprep.subr.mxu0 %v3166
    %3396 = vmatpush1.msra.mxu0 %v3165
    %3397 = vmatprep.subr.mxu0 %v3169
    %3398 = vmatpush1.msra.mxu0 %v3168
    %3399 = vmatprep.subr.mxu0 %v3172
    %3400 = vmatpush1.msra.mxu0 %v3171
    %3401 = vmatprep.subr.mxu0 %v3175
    %3402 = vmatpush1.msra.mxu0 %v3174
    %3403 = vmatprep.subr.mxu0 %v3178
    %3404 = vmatpush1.msra.mxu0 %v3177
    %3405 = vmatprep.subr.mxu0 %v3181
    %3406 = vmatpush1.msra.mxu0 %v3180
    %3407 = vmatprep.subr.mxu0 %v3184
    %3408 = vmatpush1.msra.mxu0 %v3183
    %3409 = vmatprep.subr.mxu0 %v3187
    %3410 = vmatpush1.msra.mxu0 %v3186
    %3411 = vmatprep.subr.mxu0 %v3190
    %3412 = vmatpush1.msra.mxu0 %v3189
    %3413 = vmatprep.subr.mxu0 %v3193
    %3414 = vmatpush1.msra.mxu0 %v3192
    %3415 = vmatprep.subr.mxu0 %v3196
    %3416 = vmatpush1.msra.mxu0 %v3195
    %3417 = vmatprep.subr.mxu0 %v3199
    %3418 = vmatpush1.msra.mxu0 %v3198
    %3419 = vmatprep.subr.mxu0 %v3202
    %3420 = vmatpush1.msra.mxu0 %v3201
    %3421 = vmatprep.subr.mxu0 0.0
    %3422 = vmatpush1.msra.mxu0 0.0
    %3423 = vmatprep.subr.mxu0 0.0
    %3424 = vmatpush1.msra.mxu0 0.0
    %3425 = vmatprep.subr.mxu0 0.0
    %3426 = vmatpush1.msra.mxu0 0.0
    %3427 = vmatprep.subr.mxu0 0.0
    %3428 = vmatpush1.msra.mxu0 0.0
    %3429 = vmatprep.subr.mxu0 0.0
    %3430 = vmatpush1.msra.mxu0 0.0
    %3431 = vmatprep.subr.mxu0 0.0
    %3432 = vmatpush1.msra.mxu0 0.0
    %3433 = vmatprep.subr.mxu0 0.0
    %3434 = vmatpush1.msra.mxu0 0.0
    %3435 = vmatprep.subr.mxu0 0.0
    %3436 = vmatpush1.msra.mxu0 0.0
    %3437 = vmatprep.subr.mxu0 0.0
    %3438 = vmatpush1.msra.mxu0 0.0
    %3439 = vmatprep.subr.mxu0 0.0
    %3440 = vmatpush1.msra.mxu0 0.0
    %3441 = vmatprep.subr.mxu0 0.0
    %3442 = vmatpush1.msra.mxu0 0.0
    %3443 = vmatprep.subr.mxu0 0.0
    %3444 = vmatpush1.msra.mxu0 0.0
    %3445 = vmatprep.subr.mxu0 0.0
    %3446 = vmatpush1.msra.mxu0 0.0
    %3447 = vmatprep.subr.mxu0 0.0
    %3448 = vmatpush1.msra.mxu0 0.0
    %3449 = vmatprep.subr.mxu0 0.0
    %3450 = vmatpush1.msra.mxu0 0.0
    %3451 = vmatprep.subr.mxu0 0.0
    %3452 = vmatpush1.msra.mxu0 0.0
    %3453 = vmatprep.mubr.f32.mxu0 0.0
    %3454 = vmatmul.mubr.f32.gmra.mrb[0].mxu0 %v3385
    %v3455 = vpop.f32.mrb[0].mxu0
    %v3456 = vadd.f32 %v3212, %v3455
    %v3457 = vpop.f32.mrb[0].mxu0
    %v3458 = vadd.f32 %v3216, %v3457
    %3459 = vdwg.mxu0
    %3460 = vmatprep.subr.mxu0 0.0
    %3461 = vmatpush1.msra.mxu0 %v3158
    %3462 = vmatprep.subr.mxu0 0.0
    %3463 = vmatpush1.msra.mxu0 %v3161
    %3464 = vmatprep.subr.mxu0 0.0
    %3465 = vmatpush1.msra.mxu0 %v3164
    %3466 = vmatprep.subr.mxu0 0.0
    %3467 = vmatpush1.msra.mxu0 %v3167
    %3468 = vmatprep.subr.mxu0 0.0
    %3469 = vmatpush1.msra.mxu0 %v3170
    %3470 = vmatprep.subr.mxu0 0.0
    %3471 = vmatpush1.msra.mxu0 %v3173
    %3472 = vmatprep.subr.mxu0 0.0
    %3473 = vmatpush1.msra.mxu0 %v3176
    %3474 = vmatprep.subr.mxu0 0.0
    %3475 = vmatpush1.msra.mxu0 %v3179
    %3476 = vmatprep.subr.mxu0 0.0
    %3477 = vmatpush1.msra.mxu0 %v3182
    %3478 = vmatprep.subr.mxu0 0.0
    %3479 = vmatpush1.msra.mxu0 %v3185
    %3480 = vmatprep.subr.mxu0 0.0
    %3481 = vmatpush1.msra.mxu0 %v3188
    %3482 = vmatprep.subr.mxu0 0.0
    %3483 = vmatpush1.msra.mxu0 %v3191
    %3484 = vmatprep.subr.mxu0 0.0
    %3485 = vmatpush1.msra.mxu0 %v3194
    %3486 = vmatprep.subr.mxu0 0.0
    %3487 = vmatpush1.msra.mxu0 %v3197
    %3488 = vmatprep.subr.mxu0 0.0
    %3489 = vmatpush1.msra.mxu0 %v3200
    %3490 = vmatprep.subr.mxu0 0.0
    %3491 = vmatpush1.msra.mxu0 %v3203
    %3492 = vmatprep.subr.mxu0 0.0
    %3493 = vmatpush1.msra.mxu0 0.0
    %3494 = vmatprep.subr.mxu0 0.0
    %3495 = vmatpush1.msra.mxu0 0.0
    %3496 = vmatprep.subr.mxu0 0.0
    %3497 = vmatpush1.msra.mxu0 0.0
    %3498 = vmatprep.subr.mxu0 0.0
    %3499 = vmatpush1.msra.mxu0 0.0
    %3500 = vmatprep.subr.mxu0 0.0
    %3501 = vmatpush1.msra.mxu0 0.0
    %3502 = vmatprep.subr.mxu0 0.0
    %3503 = vmatpush1.msra.mxu0 0.0
    %3504 = vmatprep.subr.mxu0 0.0
    %3505 = vmatpush1.msra.mxu0 0.0
    %3506 = vmatprep.subr.mxu0 0.0
    %3507 = vmatpush1.msra.mxu0 0.0
    %3508 = vmatprep.subr.mxu0 0.0
    %3509 = vmatpush1.msra.mxu0 0.0
    %3510 = vmatprep.subr.mxu0 0.0
    %3511 = vmatpush1.msra.mxu0 0.0
    %3512 = vmatprep.subr.mxu0 0.0
    %3513 = vmatpush1.msra.mxu0 0.0
    %3514 = vmatprep.subr.mxu0 0.0
    %3515 = vmatpush1.msra.mxu0 0.0
    %3516 = vmatprep.subr.mxu0 0.0
    %3517 = vmatpush1.msra.mxu0 0.0
    %3518 = vmatprep.subr.mxu0 0.0
    %3519 = vmatpush1.msra.mxu0 0.0
    %3520 = vmatprep.subr.mxu0 0.0
    %3521 = vmatpush1.msra.mxu0 0.0
    %3522 = vmatprep.subr.mxu0 0.0
    %3523 = vmatpush1.msra.mxu0 0.0
    %3524 = vmatprep.mubr.f32.mxu0 0.0
    %3525 = vmatmul.mubr.f32.gmra.mrb[0].mxu0 %v3385
    %v3526 = vpop.f32.mrb[0].mxu0
    %v3527 = vadd.f32 %v3220, %v3526
    %v3528 = vpop.f32.mrb[0].mxu0
    %3529 = vdwg.mxu0
    %v3530 = vadd.f32 %v3386, %v3456
    %v3531 = vsub.f32 0.0, %v3530
    %v3532 = vmul.f32 %v3531, 1.442695
    %v3533 = vpow.pop %v3532
    %v3534 = vadd.f32 %v3533, 1.0
    %v3535 = vrcp.pop %v3534
    %v3536 = vmul.f32 1.0, %v3535
    %v3537 = vadd.f32 %v3387, %v3458
    %v3538 = vsub.f32 0.0, %v3537
    %v3539 = vmul.f32 %v3538, 1.442695
    %v3540 = vpow.pop %v3539
    %v3541 = vadd.f32 %v3540, 1.0
    %v3542 = vrcp.pop %v3541
    %v3543 = vmul.f32 1.0, %v3542
    %v3544 = vmul.f32 %v3536, %v3527
    %v3545 = vadd.f32 %v3388, %v3544
    %v3546 = vtanh.pop %v3545
    %v3547 = vsub.f32 1.0, %v3543
    %v3548 = vmul.f32 %v3547, %v3546
    %v3549 = vmul.f32 %v3543, %v3385
    %v3550 = vadd.f32 %v3548, %v3549
    %v3551 = vld [vmem:[%s2875] sm:$0xff]
    %v3552 = vld [vmem:[%s2875 + $0x8] sm:$0xff]
    %v3553 = vld [vmem:[%s2875 + $0x10] sm:$0xff]
    %3554 = vmatprep.subr.mxu0 %v3157
    %3555 = vmatpush1.msra.mxu0 %v3156
    %3556 = vmatprep.subr.mxu0 %v3160
    %3557 = vmatpush1.msra.mxu0 %v3159
    %3558 = vmatprep.subr.mxu0 %v3163
    %3559 = vmatpush1.msra.mxu0 %v3162
    %3560 = vmatprep.subr.mxu0 %v3166
    %3561 = vmatpush1.msra.mxu0 %v3165
    %3562 = vmatprep.subr.mxu0 %v3169
    %3563 = vmatpush1.msra.mxu0 %v3168
    %3564 = vmatprep.subr.mxu0 %v3172
    %3565 = vmatpush1.msra.mxu0 %v3171
    %3566 = vmatprep.subr.mxu0 %v3175
    %3567 = vmatpush1.msra.mxu0 %v3174
    %3568 = vmatprep.subr.mxu0 %v3178
    %3569 = vmatpush1.msra.mxu0 %v3177
    %3570 = vmatprep.subr.mxu0 %v3181
    %3571 = vmatpush1.msra.mxu0 %v3180
    %3572 = vmatprep.subr.mxu0 %v3184
    %3573 = vmatpush1.msra.mxu0 %v3183
    %3574 = vmatprep.subr.mxu0 %v3187
    %3575 = vmatpush1.msra.mxu0 %v3186
    %3576 = vmatprep.subr.mxu0 %v3190
    %3577 = vmatpush1.msra.mxu0 %v3189
    %3578 = vmatprep.subr.mxu0 %v3193
    %3579 = vmatpush1.msra.mxu0 %v3192
    %3580 = vmatprep.subr.mxu0 %v3196
    %3581 = vmatpush1.msra.mxu0 %v3195
    %3582 = vmatprep.subr.mxu0 %v3199
    %3583 = vmatpush1.msra.mxu0 %v3198
    %3584 = vmatprep.subr.mxu0 %v3202
    %3585 = vmatpush1.msra.mxu0 %v3201
    %3586 = vmatprep.subr.mxu0 0.0
    %3587 = vmatpush1.msra.mxu0 0.0
    %3588 = vmatprep.subr.mxu0 0.0
    %3589 = vmatpush1.msra.mxu0 0.0
    %3590 = vmatprep.subr.mxu0 0.0
    %3591 = vmatpush1.msra.mxu0 0.0
    %3592 = vmatprep.subr.mxu0 0.0
    %3593 = vmatpush1.msra.mxu0 0.0
    %3594 = vmatprep.subr.mxu0 0.0
    %3595 = vmatpush1.msra.mxu0 0.0
    %3596 = vmatprep.subr.mxu0 0.0
    %3597 = vmatpush1.msra.mxu0 0.0
    %3598 = vmatprep.subr.mxu0 0.0
    %3599 = vmatpush1.msra.mxu0 0.0
    %3600 = vmatprep.subr.mxu0 0.0
    %3601 = vmatpush1.msra.mxu0 0.0
    %3602 = vmatprep.subr.mxu0 0.0
    %3603 = vmatpush1.msra.mxu0 0.0
    %3604 = vmatprep.subr.mxu0 0.0
    %3605 = vmatpush1.msra.mxu0 0.0
    %3606 = vmatprep.subr.mxu0 0.0
    %3607 = vmatpush1.msra.mxu0 0.0
    %3608 = vmatprep.subr.mxu0 0.0
    %3609 = vmatpush1.msra.mxu0 0.0
    %3610 = vmatprep.subr.mxu0 0.0
    %3611 = vmatpush1.msra.mxu0 0.0
    %3612 = vmatprep.subr.mxu0 0.0
    %3613 = vmatpush1.msra.mxu0 0.0
    %3614 = vmatprep.subr.mxu0 0.0
    %3615 = vmatpush1.msra.mxu0 0.0
    %3616 = vmatprep.subr.mxu0 0.0
    %3617 = vmatpush1.msra.mxu0 0.0
    %3618 = vmatprep.mubr.f32.mxu0 0.0
    %3619 = vmatmul.mubr.f32.gmra.mrb[0].mxu0 %v3550
    %v3620 = vpop.f32.mrb[0].mxu0
    %v3621 = vadd.f32 %v3212, %v3620
    %v3622 = vpop.f32.mrb[0].mxu0
    %v3623 = vadd.f32 %v3216, %v3622
    %3624 = vdwg.mxu0
    %3625 = vmatprep.subr.mxu0 0.0
    %3626 = vmatpush1.msra.mxu0 %v3158
    %3627 = vmatprep.subr.mxu0 0.0
    %3628 = vmatpush1.msra.mxu0 %v3161
    %3629 = vmatprep.subr.mxu0 0.0
    %3630 = vmatpush1.msra.mxu0 %v3164
    %3631 = vmatprep.subr.mxu0 0.0
    %3632 = vmatpush1.msra.mxu0 %v3167
    %3633 = vmatprep.subr.mxu0 0.0
    %3634 = vmatpush1.msra.mxu0 %v3170
    %3635 = vmatprep.subr.mxu0 0.0
    %3636 = vmatpush1.msra.mxu0 %v3173
    %3637 = vmatprep.subr.mxu0 0.0
    %3638 = vmatpush1.msra.mxu0 %v3176
    %3639 = vmatprep.subr.mxu0 0.0
    %3640 = vmatpush1.msra.mxu0 %v3179
    %3641 = vmatprep.subr.mxu0 0.0
    %3642 = vmatpush1.msra.mxu0 %v3182
    %3643 = vmatprep.subr.mxu0 0.0
    %3644 = vmatpush1.msra.mxu0 %v3185
    %3645 = vmatprep.subr.mxu0 0.0
    %3646 = vmatpush1.msra.mxu0 %v3188
    %3647 = vmatprep.subr.mxu0 0.0
    %3648 = vmatpush1.msra.mxu0 %v3191
    %3649 = vmatprep.subr.mxu0 0.0
    %3650 = vmatpush1.msra.mxu0 %v3194
    %3651 = vmatprep.subr.mxu0 0.0
    %3652 = vmatpush1.msra.mxu0 %v3197
    %3653 = vmatprep.subr.mxu0 0.0
    %3654 = vmatpush1.msra.mxu0 %v3200
    %3655 = vmatprep.subr.mxu0 0.0
    %3656 = vmatpush1.msra.mxu0 %v3203
    %3657 = vmatprep.subr.mxu0 0.0
    %3658 = vmatpush1.msra.mxu0 0.0
    %3659 = vmatprep.subr.mxu0 0.0
    %3660 = vmatpush1.msra.mxu0 0.0
    %3661 = vmatprep.subr.mxu0 0.0
    %3662 = vmatpush1.msra.mxu0 0.0
    %3663 = vmatprep.subr.mxu0 0.0
    %3664 = vmatpush1.msra.mxu0 0.0
    %3665 = vmatprep.subr.mxu0 0.0
    %3666 = vmatpush1.msra.mxu0 0.0
    %3667 = vmatprep.subr.mxu0 0.0
    %3668 = vmatpush1.msra.mxu0 0.0
    %3669 = vmatprep.subr.mxu0 0.0
    %3670 = vmatpush1.msra.mxu0 0.0
    %3671 = vmatprep.subr.mxu0 0.0
    %3672 = vmatpush1.msra.mxu0 0.0
    %3673 = vmatprep.subr.mxu0 0.0
    %3674 = vmatpush1.msra.mxu0 0.0
    %3675 = vmatprep.subr.mxu0 0.0
    %3676 = vmatpush1.msra.mxu0 0.0
    %3677 = vmatprep.subr.mxu0 0.0
    %3678 = vmatpush1.msra.mxu0 0.0
    %3679 = vmatprep.subr.mxu0 0.0
    %3680 = vmatpush1.msra.mxu0 0.0
    %3681 = vmatprep.subr.mxu0 0.0
    %3682 = vmatpush1.msra.mxu0 0.0
    %3683 = vmatprep.subr.mxu0 0.0
    %3684 = vmatpush1.msra.mxu0 0.0
    %3685 = vmatprep.subr.mxu0 0.0
    %3686 = vmatpush1.msra.mxu0 0.0
    %3687 = vmatprep.subr.mxu0 0.0
    %3688 = vmatpush1.msra.mxu0 0.0
    %3689 = vmatprep.mubr.f32.mxu0 0.0
    %3690 = vmatmul.mubr.f32.gmra.mrb[0].mxu0 %v3550
    %v3691 = vpop.f32.mrb[0].mxu0
    %v3692 = vadd.f32 %v3220, %v3691
    %v3693 = vpop.f32.mrb[0].mxu0
    %3694 = vdwg.mxu0
    %v3695 = vadd.f32 %v3551, %v3621
    %v3696 = vsub.f32 0.0, %v3695
    %v3697 = vmul.f32 %v3696, 1.442695
    %v3698 = vpow.pop %v3697
    %v3699 = vadd.f32 %v3698, 1.0
    %v3700 = vrcp.pop %v3699
    %v3701 = vmul.f32 1.0, %v3700
    %v3702 = vadd.f32 %v3552, %v3623
    %v3703 = vsub.f32 0.0, %v3702
    %v3704 = vmul.f32 %v3703, 1.442695
    %v3705 = vpow.pop %v3704
    %v3706 = vadd.f32 %v3705, 1.0
    %v3707 = vrcp.pop %v3706
    %v3708 = vmul.f32 1.0, %v3707
    %v3709 = vmul.f32 %v3701, %v3692
    %v3710 = vadd.f32 %v3553, %v3709
    %v3711 = vtanh.pop %v3710
    %v3712 = vsub.f32 1.0, %v3708
    %v3713 = vmul.f32 %v3712, %v3711
    %v3714 = vmul.f32 %v3708, %v3550
    %v3715 = vadd.f32 %v3713, %v3714
    %v3716 = vld [vmem:[%s2924] sm:$0xff]
    %v3717 = vld [vmem:[%s2924 + $0x8] sm:$0xff]
    %v3718 = vld [vmem:[%s2924 + $0x10] sm:$0xff]
    %3719 = vmatprep.subr.mxu0 %v3157
    %3720 = vmatpush1.msra.mxu0 %v3156
    %3721 = vmatprep.subr.mxu0 %v3160
    %3722 = vmatpush1.msra.mxu0 %v3159
    %3723 = vmatprep.subr.mxu0 %v3163
    %3724 = vmatpush1.msra.mxu0 %v3162
    %3725 = vmatprep.subr.mxu0 %v3166
    %3726 = vmatpush1.msra.mxu0 %v3165
    %3727 = vmatprep.subr.mxu0 %v3169
    %3728 = vmatpush1.msra.mxu0 %v3168
    %3729 = vmatprep.subr.mxu0 %v3172
    %3730 = vmatpush1.msra.mxu0 %v3171
    %3731 = vmatprep.subr.mxu0 %v3175
    %3732 = vmatpush1.msra.mxu0 %v3174
    %3733 = vmatprep.subr.mxu0 %v3178
    %3734 = vmatpush1.msra.mxu0 %v3177
    %3735 = vmatprep.subr.mxu0 %v3181
    %3736 = vmatpush1.msra.mxu0 %v3180
    %3737 = vmatprep.subr.mxu0 %v3184
    %3738 = vmatpush1.msra.mxu0 %v3183
    %3739 = vmatprep.subr.mxu0 %v3187
    %3740 = vmatpush1.msra.mxu0 %v3186
    %3741 = vmatprep.subr.mxu0 %v3190
    %3742 = vmatpush1.msra.mxu0 %v3189
    %3743 = vmatprep.subr.mxu0 %v3193
    %3744 = vmatpush1.msra.mxu0 %v3192
    %3745 = vmatprep.subr.mxu0 %v3196
    %3746 = vmatpush1.msra.mxu0 %v3195
    %3747 = vmatprep.subr.mxu0 %v3199
    %3748 = vmatpush1.msra.mxu0 %v3198
    %3749 = vmatprep.subr.mxu0 %v3202
    %3750 = vmatpush1.msra.mxu0 %v3201
    %3751 = vmatprep.subr.mxu0 0.0
    %3752 = vmatpush1.msra.mxu0 0.0
    %3753 = vmatprep.subr.mxu0 0.0
    %3754 = vmatpush1.msra.mxu0 0.0
    %3755 = vmatprep.subr.mxu0 0.0
    %3756 = vmatpush1.msra.mxu0 0.0
    %3757 = vmatprep.subr.mxu0 0.0
    %3758 = vmatpush1.msra.mxu0 0.0
    %3759 = vmatprep.subr.mxu0 0.0
    %3760 = vmatpush1.msra.mxu0 0.0
    %3761 = vmatprep.subr.mxu0 0.0
    %3762 = vmatpush1.msra.mxu0 0.0
    %3763 = vmatprep.subr.mxu0 0.0
    %3764 = vmatpush1.msra.mxu0 0.0
    %3765 = vmatprep.subr.mxu0 0.0
    %3766 = vmatpush1.msra.mxu0 0.0
    %3767 = vmatprep.subr.mxu0 0.0
    %3768 = vmatpush1.msra.mxu0 0.0
    %3769 = vmatprep.subr.mxu0 0.0
    %3770 = vmatpush1.msra.mxu0 0.0
    %3771 = vmatprep.subr.mxu0 0.0
    %3772 = vmatpush1.msra.mxu0 0.0
    %3773 = vmatprep.subr.mxu0 0.0
    %3774 = vmatpush1.msra.mxu0 0.0
    %3775 = vmatprep.subr.mxu0 0.0
    %3776 = vmatpush1.msra.mxu0 0.0
    %3777 = vmatprep.subr.mxu0 0.0
    %3778 = vmatpush1.msra.mxu0 0.0
    %3779 = vmatprep.subr.mxu0 0.0
    %3780 = vmatpush1.msra.mxu0 0.0
    %3781 = vmatprep.subr.mxu0 0.0
    %3782 = vmatpush1.msra.mxu0 0.0
    %3783 = vmatprep.mubr.f32.mxu0 0.0
    %3784 = vmatmul.mubr.f32.gmra.mrb[0].mxu0 %v3715
    %v3785 = vpop.f32.mrb[0].mxu0
    %v3786 = vadd.f32 %v3212, %v3785
    %v3787 = vpop.f32.mrb[0].mxu0
    %v3788 = vadd.f32 %v3216, %v3787
    %3789 = vdwg.mxu0
    %3790 = vmatprep.subr.mxu0 0.0
    %3791 = vmatpush1.msra.mxu0 %v3158
    %3792 = vmatprep.subr.mxu0 0.0
    %3793 = vmatpush1.msra.mxu0 %v3161
    %3794 = vmatprep.subr.mxu0 0.0
    %3795 = vmatpush1.msra.mxu0 %v3164
    %3796 = vmatprep.subr.mxu0 0.0
    %3797 = vmatpush1.msra.mxu0 %v3167
    %3798 = vmatprep.subr.mxu0 0.0
    %3799 = vmatpush1.msra.mxu0 %v3170
    %3800 = vmatprep.subr.mxu0 0.0
    %3801 = vmatpush1.msra.mxu0 %v3173
    %3802 = vmatprep.subr.mxu0 0.0
    %3803 = vmatpush1.msra.mxu0 %v3176
    %3804 = vmatprep.subr.mxu0 0.0
    %3805 = vmatpush1.msra.mxu0 %v3179
    %3806 = vmatprep.subr.mxu0 0.0
    %3807 = vmatpush1.msra.mxu0 %v3182
    %3808 = vmatprep.subr.mxu0 0.0
    %3809 = vmatpush1.msra.mxu0 %v3185
    %3810 = vmatprep.subr.mxu0 0.0
    %3811 = vmatpush1.msra.mxu0 %v3188
    %3812 = vmatprep.subr.mxu0 0.0
    %3813 = vmatpush1.msra.mxu0 %v3191
    %3814 = vmatprep.subr.mxu0 0.0
    %3815 = vmatpush1.msra.mxu0 %v3194
    %3816 = vmatprep.subr.mxu0 0.0
    %3817 = vmatpush1.msra.mxu0 %v3197
    %3818 = vmatprep.subr.mxu0 0.0
    %3819 = vmatpush1.msra.mxu0 %v3200
    %3820 = vmatprep.subr.mxu0 0.0
    %3821 = vmatpush1.msra.mxu0 %v3203
    %3822 = vmatprep.subr.mxu0 0.0
    %3823 = vmatpush1.msra.mxu0 0.0
    %3824 = vmatprep.subr.mxu0 0.0
    %3825 = vmatpush1.msra.mxu0 0.0
    %3826 = vmatprep.subr.mxu0 0.0
    %3827 = vmatpush1.msra.mxu0 0.0
    %3828 = vmatprep.subr.mxu0 0.0
    %3829 = vmatpush1.msra.mxu0 0.0
    %3830 = vmatprep.subr.mxu0 0.0
    %3831 = vmatpush1.msra.mxu0 0.0
    %3832 = vmatprep.subr.mxu0 0.0
    %3833 = vmatpush1.msra.mxu0 0.0
    %3834 = vmatprep.subr.mxu0 0.0
    %3835 = vmatpush1.msra.mxu0 0.0
    %3836 = vmatprep.subr.mxu0 0.0
    %3837 = vmatpush1.msra.mxu0 0.0
    %3838 = vmatprep.subr.mxu0 0.0
    %3839 = vmatpush1.msra.mxu0 0.0
    %3840 = vmatprep.subr.mxu0 0.0
    %3841 = vmatpush1.msra.mxu0 0.0
    %3842 = vmatprep.subr.mxu0 0.0
    %3843 = vmatpush1.msra.mxu0 0.0
    %3844 = vmatprep.subr.mxu0 0.0
    %3845 = vmatpush1.msra.mxu0 0.0
    %3846 = vmatprep.subr.mxu0 0.0
    %3847 = vmatpush1.msra.mxu0 0.0
    %3848 = vmatprep.subr.mxu0 0.0
    %3849 = vmatpush1.msra.mxu0 0.0
    %3850 = vmatprep.subr.mxu0 0.0
    %3851 = vmatpush1.msra.mxu0 0.0
    %3852 = vmatprep.subr.mxu0 0.0
    %3853 = vmatpush1.msra.mxu0 0.0
    %3854 = vmatprep.mubr.f32.mxu0 0.0
    %3855 = vmatmul.mubr.f32.gmra.mrb[0].mxu0 %v3715
    %v3856 = vpop.f32.mrb[0].mxu0
    %v3857 = vadd.f32 %v3220, %v3856
    %v3858 = vpop.f32.mrb[0].mxu0
    %3859 = vdwg.mxu0
    %v3860 = vadd.f32 %v3716, %v3786
    %v3861 = vsub.f32 0.0, %v3860
    %v3862 = vmul.f32 %v3861, 1.442695
    %v3863 = vpow.pop %v3862
    %v3864 = vadd.f32 %v3863, 1.0
    %v3865 = vrcp.pop %v3864
    %v3866 = vmul.f32 1.0, %v3865
    %v3867 = vadd.f32 %v3717, %v3788
    %v3868 = vsub.f32 0.0, %v3867
    %v3869 = vmul.f32 %v3868, 1.442695
    %v3870 = vpow.pop %v3869
    %v3871 = vadd.f32 %v3870, 1.0
    %v3872 = vrcp.pop %v3871
    %v3873 = vmul.f32 1.0, %v3872
    %v3874 = vmul.f32 %v3866, %v3857
    %v3875 = vadd.f32 %v3718, %v3874
    %v3876 = vtanh.pop %v3875
    %v3877 = vsub.f32 1.0, %v3873
    %v3878 = vmul.f32 %v3877, %v3876
    %v3879 = vmul.f32 %v3873, %v3715
    %v3880 = vadd.f32 %v3878, %v3879
    %v3881 = vld [vmem:[%s2973] sm:$0xff]
    %v3882 = vld [vmem:[%s2973 + $0x8] sm:$0xff]
    %v3883 = vld [vmem:[%s2973 + $0x10] sm:$0xff]
    %3884 = vmatprep.subr.mxu0 %v3157
    %3885 = vmatpush1.msra.mxu0 %v3156
    %3886 = vmatprep.subr.mxu0 %v3160
    %3887 = vmatpush1.msra.mxu0 %v3159
    %3888 = vmatprep.subr.mxu0 %v3163
    %3889 = vmatpush1.msra.mxu0 %v3162
    %3890 = vmatprep.subr.mxu0 %v3166
    %3891 = vmatpush1.msra.mxu0 %v3165
    %3892 = vmatprep.subr.mxu0 %v3169
    %3893 = vmatpush1.msra.mxu0 %v3168
    %3894 = vmatprep.subr.mxu0 %v3172
    %3895 = vmatpush1.msra.mxu0 %v3171
    %3896 = vmatprep.subr.mxu0 %v3175
    %3897 = vmatpush1.msra.mxu0 %v3174
    %3898 = vmatprep.subr.mxu0 %v3178
    %3899 = vmatpush1.msra.mxu0 %v3177
    %3900 = vmatprep.subr.mxu0 %v3181
    %3901 = vmatpush1.msra.mxu0 %v3180
    %3902 = vmatprep.subr.mxu0 %v3184
    %3903 = vmatpush1.msra.mxu0 %v3183
    %3904 = vmatprep.subr.mxu0 %v3187
    %3905 = vmatpush1.msra.mxu0 %v3186
    %3906 = vmatprep.subr.mxu0 %v3190
    %3907 = vmatpush1.msra.mxu0 %v3189
    %3908 = vmatprep.subr.mxu0 %v3193
    %3909 = vmatpush1.msra.mxu0 %v3192
    %3910 = vmatprep.subr.mxu0 %v3196
    %3911 = vmatpush1.msra.mxu0 %v3195
    %3912 = vmatprep.subr.mxu0 %v3199
    %3913 = vmatpush1.msra.mxu0 %v3198
    %3914 = vmatprep.subr.mxu0 %v3202
    %3915 = vmatpush1.msra.mxu0 %v3201
    %3916 = vmatprep.subr.mxu0 0.0
    %3917 = vmatpush1.msra.mxu0 0.0
    %3918 = vmatprep.subr.mxu0 0.0
    %3919 = vmatpush1.msra.mxu0 0.0
    %3920 = vmatprep.subr.mxu0 0.0
    %3921 = vmatpush1.msra.mxu0 0.0
    %3922 = vmatprep.subr.mxu0 0.0
    %3923 = vmatpush1.msra.mxu0 0.0
    %3924 = vmatprep.subr.mxu0 0.0
    %3925 = vmatpush1.msra.mxu0 0.0
    %3926 = vmatprep.subr.mxu0 0.0
    %3927 = vmatpush1.msra.mxu0 0.0
    %3928 = vmatprep.subr.mxu0 0.0
    %3929 = vmatpush1.msra.mxu0 0.0
    %3930 = vmatprep.subr.mxu0 0.0
    %3931 = vmatpush1.msra.mxu0 0.0
    %3932 = vmatprep.subr.mxu0 0.0
    %3933 = vmatpush1.msra.mxu0 0.0
    %3934 = vmatprep.subr.mxu0 0.0
    %3935 = vmatpush1.msra.mxu0 0.0
    %3936 = vmatprep.subr.mxu0 0.0
    %3937 = vmatpush1.msra.mxu0 0.0
    %3938 = vmatprep.subr.mxu0 0.0
    %3939 = vmatpush1.msra.mxu0 0.0
    %3940 = vmatprep.subr.mxu0 0.0
    %3941 = vmatpush1.msra.mxu0 0.0
    %3942 = vmatprep.subr.mxu0 0.0
    %3943 = vmatpush1.msra.mxu0 0.0
    %3944 = vmatprep.subr.mxu0 0.0
    %3945 = vmatpush1.msra.mxu0 0.0
    %3946 = vmatprep.subr.mxu0 0.0
    %3947 = vmatpush1.msra.mxu0 0.0
    %3948 = vmatprep.mubr.f32.mxu0 0.0
    %3949 = vmatmul.mubr.f32.gmra.mrb[0].mxu0 %v3880
    %v3950 = vpop.f32.mrb[0].mxu0
    %v3951 = vadd.f32 %v3212, %v3950
    %v3952 = vpop.f32.mrb[0].mxu0
    %v3953 = vadd.f32 %v3216, %v3952
    %3954 = vdwg.mxu0
    %3955 = vmatprep.subr.mxu0 0.0
    %3956 = vmatpush1.msra.mxu0 %v3158
    %3957 = vmatprep.subr.mxu0 0.0
    %3958 = vmatpush1.msra.mxu0 %v3161
    %3959 = vmatprep.subr.mxu0 0.0
    %3960 = vmatpush1.msra.mxu0 %v3164
    %3961 = vmatprep.subr.mxu0 0.0
    %3962 = vmatpush1.msra.mxu0 %v3167
    %3963 = vmatprep.subr.mxu0 0.0
    %3964 = vmatpush1.msra.mxu0 %v3170
    %3965 = vmatprep.subr.mxu0 0.0
    %3966 = vmatpush1.msra.mxu0 %v3173
    %3967 = vmatprep.subr.mxu0 0.0
    %3968 = vmatpush1.msra.mxu0 %v3176
    %3969 = vmatprep.subr.mxu0 0.0
    %3970 = vmatpush1.msra.mxu0 %v3179
    %3971 = vmatprep.subr.mxu0 0.0
    %3972 = vmatpush1.msra.mxu0 %v3182
    %3973 = vmatprep.subr.mxu0 0.0
    %3974 = vmatpush1.msra.mxu0 %v3185
    %3975 = vmatprep.subr.mxu0 0.0
    %3976 = vmatpush1.msra.mxu0 %v3188
    %3977 = vmatprep.subr.mxu0 0.0
    %3978 = vmatpush1.msra.mxu0 %v3191
    %3979 = vmatprep.subr.mxu0 0.0
    %3980 = vmatpush1.msra.mxu0 %v3194
    %3981 = vmatprep.subr.mxu0 0.0
    %3982 = vmatpush1.msra.mxu0 %v3197
    %3983 = vmatprep.subr.mxu0 0.0
    %3984 = vmatpush1.msra.mxu0 %v3200
    %3985 = vmatprep.subr.mxu0 0.0
    %3986 = vmatpush1.msra.mxu0 %v3203
    %3987 = vmatprep.subr.mxu0 0.0
    %3988 = vmatpush1.msra.mxu0 0.0
    %3989 = vmatprep.subr.mxu0 0.0
    %3990 = vmatpush1.msra.mxu0 0.0
    %3991 = vmatprep.subr.mxu0 0.0
    %3992 = vmatpush1.msra.mxu0 0.0
    %3993 = vmatprep.subr.mxu0 0.0
    %3994 = vmatpush1.msra.mxu0 0.0
    %3995 = vmatprep.subr.mxu0 0.0
    %3996 = vmatpush1.msra.mxu0 0.0
    %3997 = vmatprep.subr.mxu0 0.0
    %3998 = vmatpush1.msra.mxu0 0.0
    %3999 = vmatprep.subr.mxu0 0.0
    %4000 = vmatpush1.msra.mxu0 0.0
    %4001 = vmatprep.subr.mxu0 0.0
    %4002 = vmatpush1.msra.mxu0 0.0
    %4003 = vmatprep.subr.mxu0 0.0
    %4004 = vmatpush1.msra.mxu0 0.0
    %4005 = vmatprep.subr.mxu0 0.0
    %4006 = vmatpush1.msra.mxu0 0.0
    %4007 = vmatprep.subr.mxu0 0.0
    %4008 = vmatpush1.msra.mxu0 0.0
    %4009 = vmatprep.subr.mxu0 0.0
    %4010 = vmatpush1.msra.mxu0 0.0
    %4011 = vmatprep.subr.mxu0 0.0
    %4012 = vmatpush1.msra.mxu0 0.0
    %4013 = vmatprep.subr.mxu0 0.0
    %4014 = vmatpush1.msra.mxu0 0.0
    %4015 = vmatprep.subr.mxu0 0.0
    %4016 = vmatpush1.msra.mxu0 0.0
    %4017 = vmatprep.subr.mxu0 0.0
    %4018 = vmatpush1.msra.mxu0 0.0
    %4019 = vmatprep.mubr.f32.mxu0 0.0
    %4020 = vmatmul.mubr.f32.gmra.mrb[0].mxu0 %v3880
    %v4021 = vpop.f32.mrb[0].mxu0
    %v4022 = vadd.f32 %v3220, %v4021
    %v4023 = vpop.f32.mrb[0].mxu0
    %4024 = vdwg.mxu0
    %v4025 = vadd.f32 %v3881, %v3951
    %v4026 = vsub.f32 0.0, %v4025
    %v4027 = vmul.f32 %v4026, 1.442695
    %v4028 = vpow.pop %v4027
    %v4029 = vadd.f32 %v4028, 1.0
    %v4030 = vrcp.pop %v4029
    %v4031 = vmul.f32 1.0, %v4030
    %v4032 = vadd.f32 %v3882, %v3953
    %v4033 = vsub.f32 0.0, %v4032
    %v4034 = vmul.f32 %v4033, 1.442695
    %v4035 = vpow.pop %v4034
    %v4036 = vadd.f32 %v4035, 1.0
    %v4037 = vrcp.pop %v4036
    %v4038 = vmul.f32 1.0, %v4037
    %v4039 = vmul.f32 %v4031, %v4022
    %v4040 = vadd.f32 %v3883, %v4039
    %v4041 = vtanh.pop %v4040
    %v4042 = vsub.f32 1.0, %v4038
    %v4043 = vmul.f32 %v4042, %v4041
    %v4044 = vmul.f32 %v4038, %v3880
    %v4045 = vadd.f32 %v4043, %v4044
    %v4046 = vld [vmem:[%s3022] sm:$0xff]
    %v4047 = vld [vmem:[%s3022 + $0x8] sm:$0xff]
    %v4048 = vld [vmem:[%s3022 + $0x10] sm:$0xff]
    %4049 = vmatprep.subr.mxu0 %v3157
    %4050 = vmatpush1.msra.mxu0 %v3156
    %4051 = vmatprep.subr.mxu0 %v3160
    %4052 = vmatpush1.msra.mxu0 %v3159
    %4053 = vmatprep.subr.mxu0 %v3163
    %4054 = vmatpush1.msra.mxu0 %v3162
    %4055 = vmatprep.subr.mxu0 %v3166
    %4056 = vmatpush1.msra.mxu0 %v3165
    %4057 = vmatprep.subr.mxu0 %v3169
    %4058 = vmatpush1.msra.mxu0 %v3168
    %4059 = vmatprep.subr.mxu0 %v3172
    %4060 = vmatpush1.msra.mxu0 %v3171
    %4061 = vmatprep.subr.mxu0 %v3175
    %4062 = vmatpush1.msra.mxu0 %v3174
    %4063 = vmatprep.subr.mxu0 %v3178
    %4064 = vmatpush1.msra.mxu0 %v3177
    %4065 = vmatprep.subr.mxu0 %v3181
    %4066 = vmatpush1.msra.mxu0 %v3180
    %4067 = vmatprep.subr.mxu0 %v3184
    %4068 = vmatpush1.msra.mxu0 %v3183
    %4069 = vmatprep.subr.mxu0 %v3187
    %4070 = vmatpush1.msra.mxu0 %v3186
    %4071 = vmatprep.subr.mxu0 %v3190
    %4072 = vmatpush1.msra.mxu0 %v3189
    %4073 = vmatprep.subr.mxu0 %v3193
    %4074 = vmatpush1.msra.mxu0 %v3192
    %4075 = vmatprep.subr.mxu0 %v3196
    %4076 = vmatpush1.msra.mxu0 %v3195
    %4077 = vmatprep.subr.mxu0 %v3199
    %4078 = vmatpush1.msra.mxu0 %v3198
    %4079 = vmatprep.subr.mxu0 %v3202
    %4080 = vmatpush1.msra.mxu0 %v3201
    %4081 = vmatprep.subr.mxu0 0.0
    %4082 = vmatpush1.msra.mxu0 0.0
    %4083 = vmatprep.subr.mxu0 0.0
    %4084 = vmatpush1.msra.mxu0 0.0
    %4085 = vmatprep.subr.mxu0 0.0
    %4086 = vmatpush1.msra.mxu0 0.0
    %4087 = vmatprep.subr.mxu0 0.0
    %4088 = vmatpush1.msra.mxu0 0.0
    %4089 = vmatprep.subr.mxu0 0.0
    %4090 = vmatpush1.msra.mxu0 0.0
    %4091 = vmatprep.subr.mxu0 0.0
    %4092 = vmatpush1.msra.mxu0 0.0
    %4093 = vmatprep.subr.mxu0 0.0
    %4094 = vmatpush1.msra.mxu0 0.0
    %4095 = vmatprep.subr.mxu0 0.0
    %4096 = vmatpush1.msra.mxu0 0.0
    %4097 = vmatprep.subr.mxu0 0.0
    %4098 = vmatpush1.msra.mxu0 0.0
    %4099 = vmatprep.subr.mxu0 0.0
    %4100 = vmatpush1.msra.mxu0 0.0
    %4101 = vmatprep.subr.mxu0 0.0
    %4102 = vmatpush1.msra.mxu0 0.0
    %4103 = vmatprep.subr.mxu0 0.0
    %4104 = vmatpush1.msra.mxu0 0.0
    %4105 = vmatprep.subr.mxu0 0.0
    %4106 = vmatpush1.msra.mxu0 0.0
    %4107 = vmatprep.subr.mxu0 0.0
    %4108 = vmatpush1.msra.mxu0 0.0
    %4109 = vmatprep.subr.mxu0 0.0
    %4110 = vmatpush1.msra.mxu0 0.0
    %4111 = vmatprep.subr.mxu0 0.0
    %4112 = vmatpush1.msra.mxu0 0.0
    %4113 = vmatprep.mubr.f32.mxu0 0.0
    %4114 = vmatmul.mubr.f32.gmra.mrb[0].mxu0 %v4045
    %v4115 = vpop.f32.mrb[0].mxu0
    %v4116 = vadd.f32 %v3212, %v4115
    %v4117 = vpop.f32.mrb[0].mxu0
    %v4118 = vadd.f32 %v3216, %v4117
    %4119 = vdwg.mxu0
    %4120 = vmatprep.subr.mxu0 0.0
    %4121 = vmatpush1.msra.mxu0 %v3158
    %4122 = vmatprep.subr.mxu0 0.0
    %4123 = vmatpush1.msra.mxu0 %v3161
    %4124 = vmatprep.subr.mxu0 0.0
    %4125 = vmatpush1.msra.mxu0 %v3164
    %4126 = vmatprep.subr.mxu0 0.0
    %4127 = vmatpush1.msra.mxu0 %v3167
    %4128 = vmatprep.subr.mxu0 0.0
    %4129 = vmatpush1.msra.mxu0 %v3170
    %4130 = vmatprep.subr.mxu0 0.0
    %4131 = vmatpush1.msra.mxu0 %v3173
    %4132 = vmatprep.subr.mxu0 0.0
    %4133 = vmatpush1.msra.mxu0 %v3176
    %4134 = vmatprep.subr.mxu0 0.0
    %4135 = vmatpush1.msra.mxu0 %v3179
    %4136 = vmatprep.subr.mxu0 0.0
    %4137 = vmatpush1.msra.mxu0 %v3182
    %4138 = vmatprep.subr.mxu0 0.0
    %4139 = vmatpush1.msra.mxu0 %v3185
    %4140 = vmatprep.subr.mxu0 0.0
    %4141 = vmatpush1.msra.mxu0 %v3188
    %4142 = vmatprep.subr.mxu0 0.0
    %4143 = vmatpush1.msra.mxu0 %v3191
    %4144 = vmatprep.subr.mxu0 0.0
    %4145 = vmatpush1.msra.mxu0 %v3194
    %4146 = vmatprep.subr.mxu0 0.0
    %4147 = vmatpush1.msra.mxu0 %v3197
    %4148 = vmatprep.subr.mxu0 0.0
    %4149 = vmatpush1.msra.mxu0 %v3200
    %4150 = vmatprep.subr.mxu0 0.0
    %4151 = vmatpush1.msra.mxu0 %v3203
    %4152 = vmatprep.subr.mxu0 0.0
    %4153 = vmatpush1.msra.mxu0 0.0
    %4154 = vmatprep.subr.mxu0 0.0
    %4155 = vmatpush1.msra.mxu0 0.0
    %4156 = vmatprep.subr.mxu0 0.0
    %4157 = vmatpush1.msra.mxu0 0.0
    %4158 = vmatprep.subr.mxu0 0.0
    %4159 = vmatpush1.msra.mxu0 0.0
    %4160 = vmatprep.subr.mxu0 0.0
    %4161 = vmatpush1.msra.mxu0 0.0
    %4162 = vmatprep.subr.mxu0 0.0
    %4163 = vmatpush1.msra.mxu0 0.0
    %4164 = vmatprep.subr.mxu0 0.0
    %4165 = vmatpush1.msra.mxu0 0.0
    %4166 = vmatprep.subr.mxu0 0.0
    %4167 = vmatpush1.msra.mxu0 0.0
    %4168 = vmatprep.subr.mxu0 0.0
    %4169 = vmatpush1.msra.mxu0 0.0
    %4170 = vmatprep.subr.mxu0 0.0
    %4171 = vmatpush1.msra.mxu0 0.0
    %4172 = vmatprep.subr.mxu0 0.0
    %4173 = vmatpush1.msra.mxu0 0.0
    %4174 = vmatprep.subr.mxu0 0.0
    %4175 = vmatpush1.msra.mxu0 0.0
    %4176 = vmatprep.subr.mxu0 0.0
    %4177 = vmatpush1.msra.mxu0 0.0
    %4178 = vmatprep.subr.mxu0 0.0
    %4179 = vmatpush1.msra.mxu0 0.0
    %4180 = vmatprep.subr.mxu0 0.0
    %4181 = vmatpush1.msra.mxu0 0.0
    %4182 = vmatprep.subr.mxu0 0.0
    %4183 = vmatpush1.msra.mxu0 0.0
    %4184 = vmatprep.mubr.f32.mxu0 0.0
    %4185 = vmatmul.mubr.f32.gmra.mrb[0].mxu0 %v4045
    %v4186 = vpop.f32.mrb[0].mxu0
    %v4187 = vadd.f32 %v3220, %v4186
    %v4188 = vpop.f32.mrb[0].mxu0
    %4189 = vdwg.mxu0
    %v4190 = vadd.f32 %v4046, %v4116
    %v4191 = vsub.f32 0.0, %v4190
    %v4192 = vmul.f32 %v4191, 1.442695
    %v4193 = vpow.pop %v4192
    %v4194 = vadd.f32 %v4193, 1.0
    %v4195 = vrcp.pop %v4194
    %v4196 = vmul.f32 1.0, %v4195
    %v4197 = vadd.f32 %v4047, %v4118
    %v4198 = vsub.f32 0.0, %v4197
    %v4199 = vmul.f32 %v4198, 1.442695
    %v4200 = vpow.pop %v4199
    %v4201 = vadd.f32 %v4200, 1.0
    %v4202 = vrcp.pop %v4201
    %v4203 = vmul.f32 1.0, %v4202
    %v4204 = vmul.f32 %v4196, %v4187
    %v4205 = vadd.f32 %v4048, %v4204
    %v4206 = vtanh.pop %v4205
    %v4207 = vsub.f32 1.0, %v4203
    %v4208 = vmul.f32 %v4207, %v4206
    %v4209 = vmul.f32 %v4203, %v4045
    %v4210 = vadd.f32 %v4208, %v4209
    %v4211 = vld [vmem:[%s3071] sm:$0xff]
    %v4212 = vld [vmem:[%s3071 + $0x8] sm:$0xff]
    %v4213 = vld [vmem:[%s3071 + $0x10] sm:$0xff]
    %4214 = vmatprep.subr.mxu0 %v3157
    %4215 = vmatpush1.msra.mxu0 %v3156
    %4216 = vmatprep.subr.mxu0 %v3160
    %4217 = vmatpush1.msra.mxu0 %v3159
    %4218 = vmatprep.subr.mxu0 %v3163
    %4219 = vmatpush1.msra.mxu0 %v3162
    %4220 = vmatprep.subr.mxu0 %v3166
    %4221 = vmatpush1.msra.mxu0 %v3165
    %4222 = vmatprep.subr.mxu0 %v3169
    %4223 = vmatpush1.msra.mxu0 %v3168
    %4224 = vmatprep.subr.mxu0 %v3172
    %4225 = vmatpush1.msra.mxu0 %v3171
    %4226 = vmatprep.subr.mxu0 %v3175
    %4227 = vmatpush1.msra.mxu0 %v3174
    %4228 = vmatprep.subr.mxu0 %v3178
    %4229 = vmatpush1.msra.mxu0 %v3177
    %4230 = vmatprep.subr.mxu0 %v3181
    %4231 = vmatpush1.msra.mxu0 %v3180
    %4232 = vmatprep.subr.mxu0 %v3184
    %4233 = vmatpush1.msra.mxu0 %v3183
    %4234 = vmatprep.subr.mxu0 %v3187
    %4235 = vmatpush1.msra.mxu0 %v3186
    %4236 = vmatprep.subr.mxu0 %v3190
    %4237 = vmatpush1.msra.mxu0 %v3189
    %4238 = vmatprep.subr.mxu0 %v3193
    %4239 = vmatpush1.msra.mxu0 %v3192
    %4240 = vmatprep.subr.mxu0 %v3196
    %4241 = vmatpush1.msra.mxu0 %v3195
    %4242 = vmatprep.subr.mxu0 %v3199
    %4243 = vmatpush1.msra.mxu0 %v3198
    %4244 = vmatprep.subr.mxu0 %v3202
    %4245 = vmatpush1.msra.mxu0 %v3201
    %4246 = vmatprep.subr.mxu0 0.0
    %4247 = vmatpush1.msra.mxu0 0.0
    %4248 = vmatprep.subr.mxu0 0.0
    %4249 = vmatpush1.msra.mxu0 0.0
    %4250 = vmatprep.subr.mxu0 0.0
    %4251 = vmatpush1.msra.mxu0 0.0
    %4252 = vmatprep.subr.mxu0 0.0
    %4253 = vmatpush1.msra.mxu0 0.0
    %4254 = vmatprep.subr.mxu0 0.0
    %4255 = vmatpush1.msra.mxu0 0.0
    %4256 = vmatprep.subr.mxu0 0.0
    %4257 = vmatpush1.msra.mxu0 0.0
    %4258 = vmatprep.subr.mxu0 0.0
    %4259 = vmatpush1.msra.mxu0 0.0
    %4260 = vmatprep.subr.mxu0 0.0
    %4261 = vmatpush1.msra.mxu0 0.0
    %4262 = vmatprep.subr.mxu0 0.0
    %4263 = vmatpush1.msra.mxu0 0.0
    %4264 = vmatprep.subr.mxu0 0.0
    %4265 = vmatpush1.msra.mxu0 0.0
    %4266 = vmatprep.subr.mxu0 0.0
    %4267 = vmatpush1.msra.mxu0 0.0
    %4268 = vmatprep.subr.mxu0 0.0
    %4269 = vmatpush1.msra.mxu0 0.0
    %4270 = vmatprep.subr.mxu0 0.0
    %4271 = vmatpush1.msra.mxu0 0.0
    %4272 = vmatprep.subr.mxu0 0.0
    %4273 = vmatpush1.msra.mxu0 0.0
    %4274 = vmatprep.subr.mxu0 0.0
    %4275 = vmatpush1.msra.mxu0 0.0
    %4276 = vmatprep.subr.mxu0 0.0
    %4277 = vmatpush1.msra.mxu0 0.0
    %4278 = vmatprep.mubr.f32.mxu0 0.0
    %4279 = vmatmul.mubr.f32.gmra.mrb[0].mxu0 %v4210
    %v4280 = vpop.f32.mrb[0].mxu0
    %v4281 = vadd.f32 %v3212, %v4280
    %v4282 = vpop.f32.mrb[0].mxu0
    %v4283 = vadd.f32 %v3216, %v4282
    %4284 = vdwg.mxu0
    %4285 = vmatprep.subr.mxu0 0.0
    %4286 = vmatpush1.msra.mxu0 %v3158
    %4287 = vmatprep.subr.mxu0 0.0
    %4288 = vmatpush1.msra.mxu0 %v3161
    %4289 = vmatprep.subr.mxu0 0.0
    %4290 = vmatpush1.msra.mxu0 %v3164
    %4291 = vmatprep.subr.mxu0 0.0
    %4292 = vmatpush1.msra.mxu0 %v3167
    %4293 = vmatprep.subr.mxu0 0.0
    %4294 = vmatpush1.msra.mxu0 %v3170
    %4295 = vmatprep.subr.mxu0 0.0
    %4296 = vmatpush1.msra.mxu0 %v3173
    %4297 = vmatprep.subr.mxu0 0.0
    %4298 = vmatpush1.msra.mxu0 %v3176
    %4299 = vmatprep.subr.mxu0 0.0
    %4300 = vmatpush1.msra.mxu0 %v3179
    %4301 = vmatprep.subr.mxu0 0.0
    %4302 = vmatpush1.msra.mxu0 %v3182
    %4303 = vmatprep.subr.mxu0 0.0
    %4304 = vmatpush1.msra.mxu0 %v3185
    %4305 = vmatprep.subr.mxu0 0.0
    %4306 = vmatpush1.msra.mxu0 %v3188
    %4307 = vmatprep.subr.mxu0 0.0
    %4308 = vmatpush1.msra.mxu0 %v3191
    %4309 = vmatprep.subr.mxu0 0.0
    %4310 = vmatpush1.msra.mxu0 %v3194
    %4311 = vmatprep.subr.mxu0 0.0
    %4312 = vmatpush1.msra.mxu0 %v3197
    %4313 = vmatprep.subr.mxu0 0.0
    %4314 = vmatpush1.msra.mxu0 %v3200
    %4315 = vmatprep.subr.mxu0 0.0
    %4316 = vmatpush1.msra.mxu0 %v3203
    %4317 = vmatprep.subr.mxu0 0.0
    %4318 = vmatpush1.msra.mxu0 0.0
    %4319 = vmatprep.subr.mxu0 0.0
    %4320 = vmatpush1.msra.mxu0 0.0
    %4321 = vmatprep.subr.mxu0 0.0
    %4322 = vmatpush1.msra.mxu0 0.0
    %4323 = vmatprep.subr.mxu0 0.0
    %4324 = vmatpush1.msra.mxu0 0.0
    %4325 = vmatprep.subr.mxu0 0.0
    %4326 = vmatpush1.msra.mxu0 0.0
    %4327 = vmatprep.subr.mxu0 0.0
    %4328 = vmatpush1.msra.mxu0 0.0
    %4329 = vmatprep.subr.mxu0 0.0
    %4330 = vmatpush1.msra.mxu0 0.0
    %4331 = vmatprep.subr.mxu0 0.0
    %4332 = vmatpush1.msra.mxu0 0.0
    %4333 = vmatprep.subr.mxu0 0.0
    %4334 = vmatpush1.msra.mxu0 0.0
    %4335 = vmatprep.subr.mxu0 0.0
    %4336 = vmatpush1.msra.mxu0 0.0
    %4337 = vmatprep.subr.mxu0 0.0
    %4338 = vmatpush1.msra.mxu0 0.0
    %4339 = vmatprep.subr.mxu0 0.0
    %4340 = vmatpush1.msra.mxu0 0.0
    %4341 = vmatprep.subr.mxu0 0.0
    %4342 = vmatpush1.msra.mxu0 0.0
    %4343 = vmatprep.subr.mxu0 0.0
    %4344 = vmatpush1.msra.mxu0 0.0
    %4345 = vmatprep.subr.mxu0 0.0
    %4346 = vmatpush1.msra.mxu0 0.0
    %4347 = vmatprep.subr.mxu0 0.0
    %4348 = vmatpush1.msra.mxu0 0.0
    %4349 = vmatprep.mubr.f32.mxu0 0.0
    %4350 = vmatmul.mubr.f32.gmra.mrb[0].mxu0 %v4210
    %v4351 = vpop.f32.mrb[0].mxu0
    %v4352 = vadd.f32 %v3220, %v4351
    %v4353 = vpop.f32.mrb[0].mxu0
    %4354 = vdwg.mxu0
    %v4355 = vadd.f32 %v4211, %v4281
    %v4356 = vsub.f32 0.0, %v4355
    %v4357 = vmul.f32 %v4356, 1.442695
    %v4358 = vpow.pop %v4357
    %v4359 = vadd.f32 %v4358, 1.0
    %v4360 = vrcp.pop %v4359
    %v4361 = vmul.f32 1.0, %v4360
    %v4362 = vadd.f32 %v4212, %v4283
    %v4363 = vsub.f32 0.0, %v4362
    %v4364 = vmul.f32 %v4363, 1.442695
    %v4365 = vpow.pop %v4364
    %v4366 = vadd.f32 %v4365, 1.0
    %v4367 = vrcp.pop %v4366
    %v4368 = vmul.f32 1.0, %v4367
    %v4369 = vmul.f32 %v4361, %v4352
    %v4370 = vadd.f32 %v4213, %v4369
    %v4371 = vtanh.pop %v4370
    %v4372 = vsub.f32 1.0, %v4368
    %v4373 = vmul.f32 %v4372, %v4371
    %v4374 = vmul.f32 %v4368, %v4210
    %v4375 = vadd.f32 %v4373, %v4374
    %v4376 = vld [vmem:[%s3120] sm:$0xff]
    %v4377 = vld [vmem:[%s3120 + $0x8] sm:$0xff]
    %v4378 = vld [vmem:[%s3120 + $0x10] sm:$0xff]
    %4379 = vmatprep.subr.mxu0 %v3157
    %4380 = vmatpush1.msra.mxu0 %v3156
    %4381 = vmatprep.subr.mxu0 %v3160
    %4382 = vmatpush1.msra.mxu0 %v3159
    %4383 = vmatprep.subr.mxu0 %v3163
    %4384 = vmatpush1.msra.mxu0 %v3162
    %4385 = vmatprep.subr.mxu0 %v3166
    %4386 = vmatpush1.msra.mxu0 %v3165
    %4387 = vmatprep.subr.mxu0 %v3169
    %4388 = vmatpush1.msra.mxu0 %v3168
    %4389 = vmatprep.subr.mxu0 %v3172
    %4390 = vmatpush1.msra.mxu0 %v3171
    %4391 = vmatprep.subr.mxu0 %v3175
    %4392 = vmatpush1.msra.mxu0 %v3174
    %4393 = vmatprep.subr.mxu0 %v3178
    %4394 = vmatpush1.msra.mxu0 %v3177
    %4395 = vmatprep.subr.mxu0 %v3181
    %4396 = vmatpush1.msra.mxu0 %v3180
    %4397 = vmatprep.subr.mxu0 %v3184
    %4398 = vmatpush1.msra.mxu0 %v3183
    %4399 = vmatprep.subr.mxu0 %v3187
    %4400 = vmatpush1.msra.mxu0 %v3186
    %4401 = vmatprep.subr.mxu0 %v3190
    %4402 = vmatpush1.msra.mxu0 %v3189
    %4403 = vmatprep.subr.mxu0 %v3193
    %4404 = vmatpush1.msra.mxu0 %v3192
    %4405 = vmatprep.subr.mxu0 %v3196
    %4406 = vmatpush1.msra.mxu0 %v3195
    %4407 = vmatprep.subr.mxu0 %v3199
    %4408 = vmatpush1.msra.mxu0 %v3198
    %4409 = vmatprep.subr.mxu0 %v3202
    %4410 = vmatpush1.msra.mxu0 %v3201
    %4411 = vmatprep.subr.mxu0 0.0
    %4412 = vmatpush1.msra.mxu0 0.0
    %4413 = vmatprep.subr.mxu0 0.0
    %4414 = vmatpush1.msra.mxu0 0.0
    %4415 = vmatprep.subr.mxu0 0.0
    %4416 = vmatpush1.msra.mxu0 0.0
    %4417 = vmatprep.subr.mxu0 0.0
    %4418 = vmatpush1.msra.mxu0 0.0
    %4419 = vmatprep.subr.mxu0 0.0
    %4420 = vmatpush1.msra.mxu0 0.0
    %4421 = vmatprep.subr.mxu0 0.0
    %4422 = vmatpush1.msra.mxu0 0.0
    %4423 = vmatprep.subr.mxu0 0.0
    %4424 = vmatpush1.msra.mxu0 0.0
    %4425 = vmatprep.subr.mxu0 0.0
    %4426 = vmatpush1.msra.mxu0 0.0
    %4427 = vmatprep.subr.mxu0 0.0
    %4428 = vmatpush1.msra.mxu0 0.0
    %4429 = vmatprep.subr.mxu0 0.0
    %4430 = vmatpush1.msra.mxu0 0.0
    %4431 = vmatprep.subr.mxu0 0.0
    %4432 = vmatpush1.msra.mxu0 0.0
    %4433 = vmatprep.subr.mxu0 0.0
    %4434 = vmatpush1.msra.mxu0 0.0
    %4435 = vmatprep.subr.mxu0 0.0
    %4436 = vmatpush1.msra.mxu0 0.0
    %4437 = vmatprep.subr.mxu0 0.0
    %4438 = vmatpush1.msra.mxu0 0.0
    %4439 = vmatprep.subr.mxu0 0.0
    %4440 = vmatpush1.msra.mxu0 0.0
    %4441 = vmatprep.subr.mxu0 0.0
    %4442 = vmatpush1.msra.mxu0 0.0
    %4443 = vmatprep.mubr.f32.mxu0 0.0
    %4444 = vmatmul.mubr.f32.gmra.mrb[0].mxu0 %v4375
    %v4445 = vpop.f32.mrb[0].mxu0
    %v4446 = vadd.f32 %v3212, %v4445
    %v4447 = vpop.f32.mrb[0].mxu0
    %v4448 = vadd.f32 %v3216, %v4447
    %4449 = vdwg.mxu0
    %4450 = vmatprep.subr.mxu0 0.0
    %4451 = vmatpush1.msra.mxu0 %v3158
    %4452 = vmatprep.subr.mxu0 0.0
    %4453 = vmatpush1.msra.mxu0 %v3161
    %4454 = vmatprep.subr.mxu0 0.0
    %4455 = vmatpush1.msra.mxu0 %v3164
    %4456 = vmatprep.subr.mxu0 0.0
    %4457 = vmatpush1.msra.mxu0 %v3167
    %4458 = vmatprep.subr.mxu0 0.0
    %4459 = vmatpush1.msra.mxu0 %v3170
    %4460 = vmatprep.subr.mxu0 0.0
    %4461 = vmatpush1.msra.mxu0 %v3173
    %4462 = vmatprep.subr.mxu0 0.0
    %4463 = vmatpush1.msra.mxu0 %v3176
    %4464 = vmatprep.subr.mxu0 0.0
    %4465 = vmatpush1.msra.mxu0 %v3179
    %4466 = vmatprep.subr.mxu0 0.0
    %4467 = vmatpush1.msra.mxu0 %v3182
    %4468 = vmatprep.subr.mxu0 0.0
    %4469 = vmatpush1.msra.mxu0 %v3185
    %4470 = vmatprep.subr.mxu0 0.0
    %4471 = vmatpush1.msra.mxu0 %v3188
    %4472 = vmatprep.subr.mxu0 0.0
    %4473 = vmatpush1.msra.mxu0 %v3191
    %4474 = vmatprep.subr.mxu0 0.0
    %4475 = vmatpush1.msra.mxu0 %v3194
    %4476 = vmatprep.subr.mxu0 0.0
    %4477 = vmatpush1.msra.mxu0 %v3197
    %4478 = vmatprep.subr.mxu0 0.0
    %4479 = vmatpush1.msra.mxu0 %v3200
    %4480 = vmatprep.subr.mxu0 0.0
    %4481 = vmatpush1.msra.mxu0 %v3203
    %4482 = vmatprep.subr.mxu0 0.0
    %4483 = vmatpush1.msra.mxu0 0.0
    %4484 = vmatprep.subr.mxu0 0.0
    %4485 = vmatpush1.msra.mxu0 0.0
    %4486 = vmatprep.subr.mxu0 0.0
    %4487 = vmatpush1.msra.mxu0 0.0
    %4488 = vmatprep.subr.mxu0 0.0
    %4489 = vmatpush1.msra.mxu0 0.0
    %4490 = vmatprep.subr.mxu0 0.0
    %4491 = vmatpush1.msra.mxu0 0.0
    %4492 = vmatprep.subr.mxu0 0.0
    %4493 = vmatpush1.msra.mxu0 0.0
    %4494 = vmatprep.subr.mxu0 0.0
    %4495 = vmatpush1.msra.mxu0 0.0
    %4496 = vmatprep.subr.mxu0 0.0
    %4497 = vmatpush1.msra.mxu0 0.0
    %4498 = vmatprep.subr.mxu0 0.0
    %4499 = vmatpush1.msra.mxu0 0.0
    %4500 = vmatprep.subr.mxu0 0.0
    %4501 = vmatpush1.msra.mxu0 0.0
    %4502 = vmatprep.subr.mxu0 0.0
    %4503 = vmatpush1.msra.mxu0 0.0
    %4504 = vmatprep.subr.mxu0 0.0
    %4505 = vmatpush1.msra.mxu0 0.0
    %4506 = vmatprep.subr.mxu0 0.0
    %4507 = vmatpush1.msra.mxu0 0.0
    %4508 = vmatprep.subr.mxu0 0.0
    %4509 = vmatpush1.msra.mxu0 0.0
    %4510 = vmatprep.subr.mxu0 0.0
    %4511 = vmatpush1.msra.mxu0 0.0
    %4512 = vmatprep.subr.mxu0 0.0
    %4513 = vmatpush1.msra.mxu0 0.0
    %4514 = vmatprep.mubr.f32.mxu0 0.0
    %4515 = vmatmul.mubr.f32.gmra.mrb[0].mxu0 %v4375
    %v4516 = vpop.f32.mrb[0].mxu0
    %v4517 = vadd.f32 %v3220, %v4516
    %v4518 = vpop.f32.mrb[0].mxu0
    %4519 = vdwg.mxu0
    %v4520 = vadd.f32 %v4376, %v4446
    %v4521 = vsub.f32 0.0, %v4520
    %v4522 = vmul.f32 %v4521, 1.442695
    %v4523 = vpow.pop %v4522
    %v4524 = vadd.f32 %v4523, 1.0
    %v4525 = vrcp.pop %v4524
    %v4526 = vmul.f32 1.0, %v4525
    %v4527 = vadd.f32 %v4377, %v4448
    %v4528 = vsub.f32 0.0, %v4527
    %v4529 = vmul.f32 %v4528, 1.442695
    %v4530 = vpow.pop %v4529
    %v4531 = vadd.f32 %v4530, 1.0
    %v4532 = vrcp.pop %v4531
    %v4533 = vmul.f32 1.0, %v4532
    %v4534 = vmul.f32 %v4526, %v4517
    %v4535 = vadd.f32 %v4378, %v4534
    %v4536 = vtanh.pop %v4535
    %v4537 = vsub.f32 1.0, %v4533
    %v4538 = vmul.f32 %v4537, %v4536
    %v4539 = vmul.f32 %v4533, %v4375
    %v4540 = vadd.f32 %v4538, %v4539
    %v4541 = vld [vmem:[%s18] sm:$0xf]
    %v4542 = vld [vmem:[%s18 + $0x4] sm:$0xf]
    %v4543 = vld [vmem:[%s18 + $0x8] sm:$0xf]
    %v4544 = vld [vmem:[%s18 + $0xc] sm:$0xf]
    %v4545 = vld [vmem:[%s18 + $0x10] sm:$0xf]
    %v4546 = vld [vmem:[%s18 + $0x14] sm:$0xf]
    %v4547 = vld [vmem:[%s18 + $0x18] sm:$0xf]
    %v4548 = vld [vmem:[%s18 + $0x1c] sm:$0xf]
    %v4549 = vld [vmem:[%s18 + $0x20] sm:$0xf]
    %v4550 = vld [vmem:[%s18 + $0x24] sm:$0xf]
    %v4551 = vld [vmem:[%s18 + $0x28] sm:$0xf]
    %v4552 = vld [vmem:[%s18 + $0x2c] sm:$0xf]
    %v4553 = vld [vmem:[%s18 + $0x30] sm:$0xf]
    %v4554 = vld [vmem:[%s18 + $0x34] sm:$0xf]
    %v4555 = vld [vmem:[%s18 + $0x38] sm:$0xf]
    %v4556 = vld [vmem:[%s18 + $0x3c] sm:$0xf]
    %v4557 = vunpack.c.l.bf16 %v4541
    %v4558 = vunpack.c.l.bf16 %v4542
    %v4559 = vunpack.c.l.bf16 %v4543
    %v4560 = vunpack.c.l.bf16 %v4544
    %v4561 = vunpack.c.l.bf16 %v4545
    %v4562 = vunpack.c.l.bf16 %v4546
    %v4563 = vunpack.c.l.bf16 %v4547
    %v4564 = vunpack.c.l.bf16 %v4548
    %v4565 = vunpack.c.l.bf16 %v4549
    %v4566 = vunpack.c.l.bf16 %v4550
    %v4567 = vunpack.c.l.bf16 %v4551
    %v4568 = vunpack.c.l.bf16 %v4552
    %v4569 = vunpack.c.l.bf16 %v4553
    %v4570 = vunpack.c.l.bf16 %v4554
    %v4571 = vunpack.c.l.bf16 %v4555
    %v4572 = vunpack.c.l.bf16 %v4556
    %v4573 = vld [vmem:[#allocation29] sm:$0xf]
    %v4574 = vld [vmem:[#allocation29 + $0x4] sm:$0xf]
    %v4575 = vld [vmem:[#allocation29 + $0x8] sm:$0xf]
    %v4576 = vld [vmem:[#allocation29 + $0xc] sm:$0xf]
    %v4577 = vld [vmem:[#allocation29 + $0x10] sm:$0xf]
    %v4578 = vld [vmem:[#allocation29 + $0x14] sm:$0xf]
    %v4579 = vld [vmem:[#allocation29 + $0x18] sm:$0xf]
    %v4580 = vld [vmem:[#allocation29 + $0x1c] sm:$0xf]
    %v4581 = vld [vmem:[#allocation29 + $0x20] sm:$0xf]
    %v4582 = vld [vmem:[#allocation29 + $0x24] sm:$0xf]
    %v4583 = vld [vmem:[#allocation29 + $0x28] sm:$0xf]
    %v4584 = vld [vmem:[#allocation29 + $0x2c] sm:$0xf]
    %v4585 = vld [vmem:[#allocation29 + $0x30] sm:$0xf]
    %v4586 = vld [vmem:[#allocation29 + $0x34] sm:$0xf]
    %v4587 = vld [vmem:[#allocation29 + $0x38] sm:$0xf]
    %v4588 = vld [vmem:[#allocation29 + $0x3c] sm:$0xf]
    %v4589 = vunpack.c.l.bf16 %v4573
    %v4590 = vunpack.c.l.bf16 %v4574
    %v4591 = vunpack.c.l.bf16 %v4575
    %v4592 = vunpack.c.l.bf16 %v4576
    %v4593 = vunpack.c.l.bf16 %v4577
    %v4594 = vunpack.c.l.bf16 %v4578
    %v4595 = vunpack.c.l.bf16 %v4579
    %v4596 = vunpack.c.l.bf16 %v4580
    %v4597 = vunpack.c.l.bf16 %v4581
    %v4598 = vunpack.c.l.bf16 %v4582
    %v4599 = vunpack.c.l.bf16 %v4583
    %v4600 = vunpack.c.l.bf16 %v4584
    %v4601 = vunpack.c.l.bf16 %v4585
    %v4602 = vunpack.c.l.bf16 %v4586
    %v4603 = vunpack.c.l.bf16 %v4587
    %v4604 = vunpack.c.l.bf16 %v4588
    %4605 = vmatprep.subr.mxu0 0.0
    %4606 = vmatpush1.msra.mxu0 %v4589
    %4607 = vmatprep.subr.mxu0 0.0
    %4608 = vmatpush1.msra.mxu0 %v4590
    %4609 = vmatprep.subr.mxu0 0.0
    %4610 = vmatpush1.msra.mxu0 %v4591
    %4611 = vmatprep.subr.mxu0 0.0
    %4612 = vmatpush1.msra.mxu0 %v4592
    %4613 = vmatprep.subr.mxu0 0.0
    %4614 = vmatpush1.msra.mxu0 %v4593
    %4615 = vmatprep.subr.mxu0 0.0
    %4616 = vmatpush1.msra.mxu0 %v4594
    %4617 = vmatprep.subr.mxu0 0.0
    %4618 = vmatpush1.msra.mxu0 %v4595
    %4619 = vmatprep.subr.mxu0 0.0
    %4620 = vmatpush1.msra.mxu0 %v4596
    %4621 = vmatprep.subr.mxu0 0.0
    %4622 = vmatpush1.msra.mxu0 %v4597
    %4623 = vmatprep.subr.mxu0 0.0
    %4624 = vmatpush1.msra.mxu0 %v4598
    %4625 = vmatprep.subr.mxu0 0.0
    %4626 = vmatpush1.msra.mxu0 %v4599
    %4627 = vmatprep.subr.mxu0 0.0
    %4628 = vmatpush1.msra.mxu0 %v4600
    %4629 = vmatprep.subr.mxu0 0.0
    %4630 = vmatpush1.msra.mxu0 %v4601
    %4631 = vmatprep.subr.mxu0 0.0
    %4632 = vmatpush1.msra.mxu0 %v4602
    %4633 = vmatprep.subr.mxu0 0.0
    %4634 = vmatpush1.msra.mxu0 %v4603
    %4635 = vmatprep.subr.mxu0 0.0
    %4636 = vmatpush1.msra.mxu0 %v4604
    %4637 = vmatprep.subr.mxu0 0.0
    %4638 = vmatpush1.msra.mxu0 0.0
    %4639 = vmatprep.subr.mxu0 0.0
    %4640 = vmatpush1.msra.mxu0 0.0
    %4641 = vmatprep.subr.mxu0 0.0
    %4642 = vmatpush1.msra.mxu0 0.0
    %4643 = vmatprep.subr.mxu0 0.0
    %4644 = vmatpush1.msra.mxu0 0.0
    %4645 = vmatprep.subr.mxu0 0.0
    %4646 = vmatpush1.msra.mxu0 0.0
    %4647 = vmatprep.subr.mxu0 0.0
    %4648 = vmatpush1.msra.mxu0 0.0
    %4649 = vmatprep.subr.mxu0 0.0
    %4650 = vmatpush1.msra.mxu0 0.0
    %4651 = vmatprep.subr.mxu0 0.0
    %4652 = vmatpush1.msra.mxu0 0.0
    %4653 = vmatprep.subr.mxu0 0.0
    %4654 = vmatpush1.msra.mxu0 0.0
    %4655 = vmatprep.subr.mxu0 0.0
    %4656 = vmatpush1.msra.mxu0 0.0
    %4657 = vmatprep.subr.mxu0 0.0
    %4658 = vmatpush1.msra.mxu0 0.0
    %4659 = vmatprep.subr.mxu0 0.0
    %4660 = vmatpush1.msra.mxu0 0.0
    %4661 = vmatprep.subr.mxu0 0.0
    %4662 = vmatpush1.msra.mxu0 0.0
    %4663 = vmatprep.subr.mxu0 0.0
    %4664 = vmatpush1.msra.mxu0 0.0
    %4665 = vmatprep.subr.mxu0 0.0
    %4666 = vmatpush1.msra.mxu0 0.0
    %4667 = vmatprep.subr.mxu0 0.0
    %4668 = vmatpush1.msra.mxu0 0.0
    %4669 = vmatprep.mubr.f32.mxu0 0.0
    %4670 = vmatmul.mubr.f32.gmra.mrb[0].mxu0 %v4540
    %v4671 = vpop.f32.mrb[0].mxu0
    %v4672 = vadd.f32 0.0, %v4671
    %v4673 = vpop.f32.mrb[0].mxu0
    %4674 = vdwg.mxu0
    %4675 = vmatprep.subr.mxu0 0.0
    %4676 = vmatpush1.msra.mxu0 %v4557
    %4677 = vmatprep.subr.mxu0 0.0
    %4678 = vmatpush1.msra.mxu0 %v4558
    %4679 = vmatprep.subr.mxu0 0.0
    %4680 = vmatpush1.msra.mxu0 %v4559
    %4681 = vmatprep.subr.mxu0 0.0
    %4682 = vmatpush1.msra.mxu0 %v4560
    %4683 = vmatprep.subr.mxu0 0.0
    %4684 = vmatpush1.msra.mxu0 %v4561
    %4685 = vmatprep.subr.mxu0 0.0
    %4686 = vmatpush1.msra.mxu0 %v4562
    %4687 = vmatprep.subr.mxu0 0.0
    %4688 = vmatpush1.msra.mxu0 %v4563
    %4689 = vmatprep.subr.mxu0 0.0
    %4690 = vmatpush1.msra.mxu0 %v4564
    %4691 = vmatprep.subr.mxu0 0.0
    %4692 = vmatpush1.msra.mxu0 %v4565
    %4693 = vmatprep.subr.mxu0 0.0
    %4694 = vmatpush1.msra.mxu0 %v4566
    %4695 = vmatprep.subr.mxu0 0.0
    %4696 = vmatpush1.msra.mxu0 %v4567
    %4697 = vmatprep.subr.mxu0 0.0
    %4698 = vmatpush1.msra.mxu0 %v4568
    %4699 = vmatprep.subr.mxu0 0.0
    %4700 = vmatpush1.msra.mxu0 %v4569
    %4701 = vmatprep.subr.mxu0 0.0
    %4702 = vmatpush1.msra.mxu0 %v4570
    %4703 = vmatprep.subr.mxu0 0.0
    %4704 = vmatpush1.msra.mxu0 %v4571
    %4705 = vmatprep.subr.mxu0 0.0
    %4706 = vmatpush1.msra.mxu0 %v4572
    %4707 = vmatprep.subr.mxu0 0.0
    %4708 = vmatpush1.msra.mxu0 0.0
    %4709 = vmatprep.subr.mxu0 0.0
    %4710 = vmatpush1.msra.mxu0 0.0
    %4711 = vmatprep.subr.mxu0 0.0
    %4712 = vmatpush1.msra.mxu0 0.0
    %4713 = vmatprep.subr.mxu0 0.0
    %4714 = vmatpush1.msra.mxu0 0.0
    %4715 = vmatprep.subr.mxu0 0.0
    %4716 = vmatpush1.msra.mxu0 0.0
    %4717 = vmatprep.subr.mxu0 0.0
    %4718 = vmatpush1.msra.mxu0 0.0
    %4719 = vmatprep.subr.mxu0 0.0
    %4720 = vmatpush1.msra.mxu0 0.0
    %4721 = vmatprep.subr.mxu0 0.0
    %4722 = vmatpush1.msra.mxu0 0.0
    %4723 = vmatprep.subr.mxu0 0.0
    %4724 = vmatpush1.msra.mxu0 0.0
    %4725 = vmatprep.subr.mxu0 0.0
    %4726 = vmatpush1.msra.mxu0 0.0
    %4727 = vmatprep.subr.mxu0 0.0
    %4728 = vmatpush1.msra.mxu0 0.0
    %4729 = vmatprep.subr.mxu0 0.0
    %4730 = vmatpush1.msra.mxu0 0.0
    %4731 = vmatprep.subr.mxu0 0.0
    %4732 = vmatpush1.msra.mxu0 0.0
    %4733 = vmatprep.subr.mxu0 0.0
    %4734 = vmatpush1.msra.mxu0 0.0
    %4735 = vmatprep.subr.mxu0 0.0
    %4736 = vmatpush1.msra.mxu0 0.0
    %4737 = vmatprep.subr.mxu0 0.0
    %4738 = vmatpush1.msra.mxu0 0.0
    %4739 = vmatprep.mubr.f32.mxu0 0.0
    %4740 = vmatmul.mubr.f32.gmra.mrb[0].mxu0 %v2393
    %v4741 = vpop.f32.mrb[0].mxu0
    %v4742 = vadd.f32 %v4672, %v4741
    %v4743 = vpop.f32.mrb[0].mxu0
    %4744 = vdwg.mxu0
    %v4745 = vld [vmem:[%s20] sm:$0x1]
    %v4747 = vlaneseq
    %v4748 = vshrl.u32 %v4747, 7
    %v4749 = vsub.s32 0, %v4748
    %v4750 = vrot.slane %v4745, %v4749
    %v4752 = vadd.f32 %v4742, %v4750
    %v4754 = vrot.slane %v4752, 1
    %v4755 = vrot.slane %v4752, 2
    %v4756 = vrot.slane %v4752, 3
    %v4757 = vrot.slane %v4752, 4
    %v4758 = vrot.slane %v4752, 5
    %v4759 = vrot.slane %v4752, 6
    %v4760 = vrot.slane %v4752, 7
    %v4769 = vadd.f32 %v1945, %v4752
    %v4770 = vadd.f32 %v1951, %v4754
    %v4771 = vadd.f32 %v1957, %v4755
    %v4772 = vadd.f32 %v1963, %v4756
    %v4773 = vadd.f32 %v1969, %v4757
    %v4774 = vadd.f32 %v1975, %v4758
    %v4775 = vadd.f32 %v1981, %v4759
    %v4776 = vadd.f32 %v1987, %v4760
    %v4777 = vld [vmem:[%s21] sm:$0x1]
    %v4778 = vld [vmem:[%s22] sm:$0x1]
    %v4787 = vrot.slane %v4770, 7
    %v4788 = vsel %vm1848, %v4787, %v4769
    %v4789 = vrot.slane %v4771, 6
    %v4790 = vsel %vm1850, %v4789, %v4788
    %v4791 = vrot.slane %v4772, 5
    %v4792 = vsel %vm1852, %v4791, %v4790
    %v4793 = vrot.slane %v4773, 4
    %v4794 = vsel %vm1854, %v4793, %v4792
    %v4795 = vrot.slane %v4774, 3
    %v4796 = vsel %vm1856, %v4795, %v4794
    %v4797 = vrot.slane %v4775, 2
    %v4798 = vsel %vm1858, %v4797, %v4796
    %v4799 = vrot.slane %v4776, 1
    %v4800 = vsel %vm1860, %v4799, %v4798
    %4802 = vadd.xlane.f32.xlu0 %v4800
    %v4803 = vpop.xlane.xlu0 %4802
    %v4804 = vmul.f32 %v4803, %v1642
    %v4806 = vrot.slane %v4804, 1
    %v4807 = vrot.slane %v4804, 2
    %v4808 = vrot.slane %v4804, 3
    %v4809 = vrot.slane %v4804, 4
    %v4810 = vrot.slane %v4804, 5
    %v4811 = vrot.slane %v4804, 6
    %v4812 = vrot.slane %v4804, 7
    %v4821 = vsub.f32 %v4769, %v4804
    %v4822 = vsub.f32 %v4770, %v4806
    %v4823 = vsub.f32 %v4771, %v4807
    %v4824 = vsub.f32 %v4772, %v4808
    %v4825 = vsub.f32 %v4773, %v4809
    %v4826 = vsub.f32 %v4774, %v4810
    %v4827 = vsub.f32 %v4775, %v4811
    %v4828 = vsub.f32 %v4776, %v4812
    %v4829 = vmul.f32 %v4821, %v4821
    %v4830 = vmul.f32 %v4822, %v4822
    %v4831 = vmul.f32 %v4823, %v4823
    %v4832 = vmul.f32 %v4824, %v4824
    %v4833 = vmul.f32 %v4825, %v4825
    %v4834 = vmul.f32 %v4826, %v4826
    %v4835 = vmul.f32 %v4827, %v4827
    %v4836 = vmul.f32 %v4828, %v4828
    %v4845 = vrot.slane %v4830, 7
    %v4846 = vsel %vm1848, %v4845, %v4829
    %v4847 = vrot.slane %v4831, 6
    %v4848 = vsel %vm1850, %v4847, %v4846
    %v4849 = vrot.slane %v4832, 5
    %v4850 = vsel %vm1852, %v4849, %v4848
    %v4851 = vrot.slane %v4833, 4
    %v4852 = vsel %vm1854, %v4851, %v4850
    %v4853 = vrot.slane %v4834, 3
    %v4854 = vsel %vm1856, %v4853, %v4852
    %v4855 = vrot.slane %v4835, 2
    %v4856 = vsel %vm1858, %v4855, %v4854
    %v4857 = vrot.slane %v4836, 1
    %v4858 = vsel %vm1860, %v4857, %v4856
    %4860 = vadd.xlane.f32.xlu0 %v4858
    %v4861 = vpop.xlane.xlu0 %4860
    %v4862 = vmul.f32 %v4861, %v1642
    %v4863 = vadd.f32 %v4862, 0.001
    %v4864 = vrsqrt.pop %v4863
    %v4866 = vrot.slane %v4864, 1
    %v4867 = vrot.slane %v4864, 2
    %v4868 = vrot.slane %v4864, 3
    %v4869 = vrot.slane %v4864, 4
    %v4870 = vrot.slane %v4864, 5
    %v4871 = vrot.slane %v4864, 6
    %v4872 = vrot.slane %v4864, 7
    %v4881 = vmul.f32 %v4821, %v4864
    %v4882 = vmul.f32 %v4822, %v4866
    %v4883 = vmul.f32 %v4823, %v4867
    %v4884 = vmul.f32 %v4824, %v4868
    %v4885 = vmul.f32 %v4825, %v4869
    %v4886 = vmul.f32 %v4826, %v4870
    %v4887 = vmul.f32 %v4827, %v4871
    %v4888 = vmul.f32 %v4828, %v4872
    %v4890 = vlaneseq
    %v4891 = vshrl.u32 %v4890, 7
    %v4892 = vsub.s32 0, %v4891
    %v4893 = vrot.slane %v4777, %v4892
    %v4895 = vmul.f32 %v4881, %v4893
    %v4896 = vmul.f32 %v4882, %v4893
    %v4897 = vmul.f32 %v4883, %v4893
    %v4898 = vmul.f32 %v4884, %v4893
    %v4899 = vmul.f32 %v4885, %v4893
    %v4900 = vmul.f32 %v4886, %v4893
    %v4901 = vmul.f32 %v4887, %v4893
    %v4902 = vmul.f32 %v4888, %v4893
    %v4904 = vlaneseq
    %v4905 = vshrl.u32 %v4904, 7
    %v4906 = vsub.s32 0, %v4905
    %v4907 = vrot.slane %v4778, %v4906
    %v4909 = vadd.f32 %v4895, %v4907
    %v4910 = vadd.f32 %v4896, %v4907
    %v4911 = vadd.f32 %v4897, %v4907
    %v4912 = vadd.f32 %v4898, %v4907
    %v4913 = vadd.f32 %v4899, %v4907
    %v4914 = vadd.f32 %v4900, %v4907
    %v4915 = vadd.f32 %v4901, %v4907
    %v4916 = vadd.f32 %v4902, %v4907
    %v4925 = vsel %vm1848, %v1951, %v1945
    %v4926 = vsel %vm1850, %v1957, %v4925
    %v4927 = vsel %vm1852, %v1963, %v4926
    %v4928 = vsel %vm1854, %v1969, %v4927
    %v4929 = vsel %vm1856, %v1975, %v4928
    %v4930 = vsel %vm1858, %v1981, %v4929
    %v4931 = vsel %vm1860, %v1987, %v4930
    %v4941 = vrot.slane %v4910, 7
    %v4942 = vsel %vm1848, %v4941, %v4909
    %v4943 = vrot.slane %v4911, 6
    %v4944 = vsel %vm1850, %v4943, %v4942
    %v4945 = vrot.slane %v4912, 5
    %v4946 = vsel %vm1852, %v4945, %v4944
    %v4947 = vrot.slane %v4913, 4
    %v4948 = vsel %vm1854, %v4947, %v4946
    %v4949 = vrot.slane %v4914, 3
    %v4950 = vsel %vm1856, %v4949, %v4948
    %v4951 = vrot.slane %v4915, 2
    %v4952 = vsel %vm1858, %v4951, %v4950
    %v4953 = vrot.slane %v4916, 1
    %v4954 = vsel %vm1860, %v4953, %v4952
    %v4956 = vmul.f32 %v4931, %v4931
    %v4957 = vmul.f32 %v2393, %v2393
    %v4958 = vmul.f32 %v4540, %v4540
    %v4959 = vmul.f32 %v4954, %v4954
    %4960 = vadd.xlane.f32.xlu0 %v4956
    %v4961 = vpop.xlane.xlu0 %4960
    %4962 = vadd.xlane.f32.xlu0 %v4957
    %v4963 = vpop.xlane.xlu0 %4962
    %4964 = vadd.xlane.f32.xlu0 %v4958
    %v4965 = vpop.xlane.xlu0 %4964
    %4966 = vadd.xlane.f32.xlu0 %v4959
    %v4967 = vpop.xlane.xlu0 %4966
    %v4968 = vrsqrt.pop %v4961
    %v4969 = vrsqrt.pop %v4963
    %v4970 = vrsqrt.pop %v4965
    %v4971 = vrsqrt.pop %v4967
    %v4972 = vmul.f32 %v4931, %v4968
    %v4973 = vmul.f32 %v2393, %v4969
    %v4974 = vmul.f32 %v4540, %v4970
    %v4975 = vmul.f32 %v4954, %v4971
    %v4976 = vld [vmem:[#allocation9] sm:$0xff]
    %v4977 = vld [vmem:[#allocation9 + $0x8] sm:$0xff]
    %v4978 = vld [vmem:[#allocation9 + $0x10] sm:$0xff]
    %v4979 = vld [vmem:[#allocation9 + $0x18] sm:$0xff]
    %v4980 = vld [vmem:[#allocation9 + $0x20] sm:$0xff]
    %v4981 = vld [vmem:[#allocation9 + $0x28] sm:$0xff]
    %v4982 = vld [vmem:[#allocation9 + $0x30] sm:$0xff]
    %v4983 = vld [vmem:[#allocation9 + $0x38] sm:$0xff]
    %v4984 = vld [vmem:[#allocation9 + $0x40] sm:$0xff]
    %v4985 = vld [vmem:[#allocation9 + $0x48] sm:$0xff]
    %v4986 = vld [vmem:[#allocation9 + $0x50] sm:$0xff]
    %v4987 = vld [vmem:[#allocation9 + $0x58] sm:$0xff]
    %v4988 = vld [vmem:[#allocation9 + $0x60] sm:$0xff]
    %v4989 = vld [vmem:[#allocation9 + $0x68] sm:$0xff]
    %v4990 = vld [vmem:[#allocation9 + $0x70] sm:$0xff]
    %v4991 = vld [vmem:[#allocation9 + $0x78] sm:$0xff]
    %4992 = vmatprep.subr.mxu0 0.0
    %4993 = vmatpush1.msra.mxu0 %v4976
    %4994 = vmatprep.subr.mxu0 0.0
    %4995 = vmatpush1.msra.mxu0 %v4977
    %4996 = vmatprep.subr.mxu0 0.0
    %4997 = vmatpush1.msra.mxu0 %v4978
    %4998 = vmatprep.subr.mxu0 0.0
    %4999 = vmatpush1.msra.mxu0 %v4979
    %5000 = vmatprep.subr.mxu0 0.0
    %5001 = vmatpush1.msra.mxu0 %v4980
    %5002 = vmatprep.subr.mxu0 0.0
    %5003 = vmatpush1.msra.mxu0 %v4981
    %5004 = vmatprep.subr.mxu0 0.0
    %5005 = vmatpush1.msra.mxu0 %v4982
    %5006 = vmatprep.subr.mxu0 0.0
    %5007 = vmatpush1.msra.mxu0 %v4983
    %5008 = vmatprep.subr.mxu0 0.0
    %5009 = vmatpush1.msra.mxu0 %v4984
    %5010 = vmatprep.subr.mxu0 0.0
    %5011 = vmatpush1.msra.mxu0 %v4985
    %5012 = vmatprep.subr.mxu0 0.0
    %5013 = vmatpush1.msra.mxu0 %v4986
    %5014 = vmatprep.subr.mxu0 0.0
    %5015 = vmatpush1.msra.mxu0 %v4987
    %5016 = vmatprep.subr.mxu0 0.0
    %5017 = vmatpush1.msra.mxu0 %v4988
    %5018 = vmatprep.subr.mxu0 0.0
    %5019 = vmatpush1.msra.mxu0 %v4989
    %5020 = vmatprep.subr.mxu0 0.0
    %5021 = vmatpush1.msra.mxu0 %v4990
    %5022 = vmatprep.subr.mxu0 0.0
    %5023 = vmatpush1.msra.mxu0 %v4991
    %5024 = vmatprep.subr.mxu0 0.0
    %5025 = vmatpush1.msra.mxu0 0.0
    %5026 = vmatprep.subr.mxu0 0.0
    %5027 = vmatpush1.msra.mxu0 0.0
    %5028 = vmatprep.subr.mxu0 0.0
    %5029 = vmatpush1.msra.mxu0 0.0
    %5030 = vmatprep.subr.mxu0 0.0
    %5031 = vmatpush1.msra.mxu0 0.0
    %5032 = vmatprep.subr.mxu0 0.0
    %5033 = vmatpush1.msra.mxu0 0.0
    %5034 = vmatprep.subr.mxu0 0.0
    %5035 = vmatpush1.msra.mxu0 0.0
    %5036 = vmatprep.subr.mxu0 0.0
    %5037 = vmatpush1.msra.mxu0 0.0
    %5038 = vmatprep.subr.mxu0 0.0
    %5039 = vmatpush1.msra.mxu0 0.0
    %5040 = vmatprep.subr.mxu0 0.0
    %5041 = vmatpush1.msra.mxu0 0.0
    %5042 = vmatprep.subr.mxu0 0.0
    %5043 = vmatpush1.msra.mxu0 0.0
    %5044 = vmatprep.subr.mxu0 0.0
    %5045 = vmatpush1.msra.mxu0 0.0
    %5046 = vmatprep.subr.mxu0 0.0
    %5047 = vmatpush1.msra.mxu0 0.0
    %5048 = vmatprep.subr.mxu0 0.0
    %5049 = vmatpush1.msra.mxu0 0.0
    %5050 = vmatprep.subr.mxu0 0.0
    %5051 = vmatpush1.msra.mxu0 0.0
    %5052 = vmatprep.subr.mxu0 0.0
    %5053 = vmatpush1.msra.mxu0 0.0
    %5054 = vmatprep.subr.mxu0 0.0
    %5055 = vmatpush1.msra.mxu0 0.0
    %5056 = vmatprep.mubr.f32.mxu0 0.0
    %5057 = vmatmul.mubr.f32.gmra.mrb[0].mxu0 %v4972
    %v5058 = vpop.f32.mrb[0].mxu0
    %v5059 = vadd.f32 0.0, %v5058
    %v5060 = vpop.f32.mrb[0].mxu0
    %5061 = vmatprep.mubr.f32.mxu0 0.0
    %5062 = vmatmul.mubr.f32.gmra.mrb[0].mxu0 %v4973
    %v5063 = vpop.f32.mrb[0].mxu0
    %v5064 = vadd.f32 0.0, %v5063
    %v5065 = vpop.f32.mrb[0].mxu0
    %5066 = vmatprep.mubr.f32.mxu0 0.0
    %5067 = vmatmul.mubr.f32.gmra.mrb[0].mxu0 %v4974
    %v5068 = vpop.f32.mrb[0].mxu0
    %v5069 = vadd.f32 0.0, %v5068
    %v5070 = vpop.f32.mrb[0].mxu0
    %5071 = vmatprep.mubr.f32.mxu0 0.0
    %5072 = vmatmul.mubr.f32.gmra.mrb[0].mxu0 %v4975
    %v5073 = vpop.f32.mrb[0].mxu0
    %v5074 = vadd.f32 0.0, %v5073
    %v5075 = vpop.f32.mrb[0].mxu0
    %5076 = vdwg.mxu0
    %v5077 = vmul.f32 %v5059, 20.0
    %v5078 = vmul.f32 %v5064, 20.0
    %v5079 = vmul.f32 %v5069, 20.0
    %v5080 = vmul.f32 %v5074, 20.0
    %5081 = vst [vmem:[#allocation30] sm:$0xff] %v5077
    %5082 = vst [vmem:[#allocation31] sm:$0xff] %v5078
    %5083 = vst [vmem:[#allocation33] sm:$0xff] %v5079
    %5084 = vst [vmem:[#allocation34] sm:$0xff] %v5080
    // Predicated region
    $region162: #{tpu_custom_call.1} parent=1 // pred_check
      _
    $region163: #{tpu_custom_call.1} parent=1 // pred_check_branch
      %5086 = sbr.rel (0) target = $region165
    $region164: #{tpu_custom_call.1} parent=1 // pred_region
      %s5088 = ssub.s32 128, 128
      %5089 = vsyncadd [#allocation5], %s5088
      %s5091 = sshll.u32 [#allocation30], 4
      %s5092 = int_to_ptr.vmem [resolvable:$true] %s5091
      %5094 = dma.vmem_to_hbm [thread:$0]  %s5092, 128, %s23, [#allocation5]
    $region165: #{tpu_custom_call.1} parent=1 // pred_fallthru
      _
    // Predicated region
    $region166: #{tpu_custom_call.1} parent=1 // pred_check
      _
    $region167: #{tpu_custom_call.1} parent=1 // pred_check_branch
      %5096 = sbr.rel (0) target = $region169
    $region168: #{tpu_custom_call.1} parent=1 // pred_region
      %s5098 = ssub.s32 128, 128
      %5099 = vsyncadd [#allocation32], %s5098
      %s5101 = sshll.u32 [#allocation31], 4
      %s5102 = int_to_ptr.vmem [resolvable:$true] %s5101
      %5104 = dma.vmem_to_hbm [thread:$0]  %s5102, 128, %s24, [#allocation32]
    $region169: #{tpu_custom_call.1} parent=1 // pred_fallthru
      _
    // Predicated region
    $region170: #{tpu_custom_call.1} parent=1 // pred_check
      _
    $region171: #{tpu_custom_call.1} parent=1 // pred_check_branch
      %5106 = sbr.rel (0) target = $region173
    $region172: #{tpu_custom_call.1} parent=1 // pred_region
      %s5108 = ssub.s32 128, 128
      %5109 = vsyncadd [#allocation32], %s5108
      %s5111 = sshll.u32 [#allocation33], 4
      %s5112 = int_to_ptr.vmem [resolvable:$true] %s5111
      %5114 = dma.vmem_to_hbm [thread:$0]  %s5112, 128, %s25, [#allocation32]
    $region173: #{tpu_custom_call.1} parent=1 // pred_fallthru
      _
    // Predicated region
    $region174: #{tpu_custom_call.1} parent=1 // pred_check
      _
    $region175: #{tpu_custom_call.1} parent=1 // pred_check_branch
      %5116 = sbr.rel (0) target = $region177
    $region176: #{tpu_custom_call.1} parent=1 // pred_region
      %s5118 = ssub.s32 128, 128
      %5119 = vsyncadd [#allocation35], %s5118
      %s5121 = sshll.u32 [#allocation34], 4
      %s5122 = int_to_ptr.vmem [resolvable:$true] %s5121
      %5124 = dma.vmem_to_hbm [thread:$0]  %s5122, 128, %s26, [#allocation35]
    $region177: #{tpu_custom_call.1} parent=1 // pred_fallthru
      _
    // Predicated region
    $region178: #{tpu_custom_call.1} parent=1 // pred_check
      _
    $region179: #{tpu_custom_call.1} parent=1 // pred_check_branch
      %5126 = sbr.rel (0) target = $region181
    $region180: #{tpu_custom_call.1} parent=1 // pred_region
      %5127 = dma.done [#allocation5], 128
    $region181: #{tpu_custom_call.1} parent=1 // pred_fallthru
      _
    // Predicated region
    $region182: #{tpu_custom_call.1} parent=1 // pred_check
      _
    $region183: #{tpu_custom_call.1} parent=1 // pred_check_branch
      %5129 = sbr.rel (0) target = $region185
    $region184: #{tpu_custom_call.1} parent=1 // pred_region
      %5130 = dma.done [#allocation32], 128
    $region185: #{tpu_custom_call.1} parent=1 // pred_fallthru
      _
    // Predicated region
    $region186: #{tpu_custom_call.1} parent=1 // pred_check
      _
    $region187: #{tpu_custom_call.1} parent=1 // pred_check_branch
      %5132 = sbr.rel (0) target = $region189
    $region188: #{tpu_custom_call.1} parent=1 // pred_region
      %5133 = dma.done [#allocation32], 128
    $region189: #{tpu_custom_call.1} parent=1 // pred_fallthru
      _
    // Predicated region
    $region190: #{tpu_custom_call.1} parent=1 // pred_check
      _
    $region191: #{tpu_custom_call.1} parent=1 // pred_check_branch
      %5135 = sbr.rel (0) target = $region193
    $region192: #{tpu_custom_call.1} parent=1 // pred_region
      %5136 = dma.done [#allocation35], 128
    $region193: #{tpu_custom_call.1} parent=1 // pred_fallthru
      _
    %5137 = vsyncpa [#allocation4], 1
    %5138 = vsyncpa [#allocation7], 1
    %5139 = vsyncpa [#allocation10], 1
    %5140 = vsyncpa [#allocation13], 1
    %5141 = vsyncpa [#allocation16], 1
    %5142 = vsyncpa [#allocation19], 1
    %5143 = vsyncpa [#allocation22], 1
    %5144 = vsyncpa [#allocation25], 1
    %5145 = vsyncpa [#allocation28], 1
    %5146 = vsyncpa [#allocation5], 1
    %5147 = vsyncpa [#allocation32], 1
    %5148 = vsyncpa [#allocation35], 1

</llo_original>
